<compile_context>
chip_gen: v5e
topology: v5e:2x2
jax: 0.10.0
libtpu: 0.0.40
codegen_flags: <defaults>
</compile_context>

<pallas_src>
import jax
import jax.numpy as jnp
import numpy as np
from jax import lax
from jax.experimental import pallas as pl
from jax.experimental.pallas import tpu as pltpu

_B = 8  # images per grid step


# ------------------------------ fused kernel --------------------------------

def _lenet_kernel(x_ref, w1_ref, r1_ref, pq1_ref, w2_ref, r2_ref, pq2_ref,
                  w5_ref, w6_ref, w7_ref, b_ref, o_ref, acc1, acc2, p1_ref):
    f32 = jnp.float32
    bf16 = jnp.bfloat16
    B = _B

    # ---- c1: Conv2d(3->8, k=5, pad=2) --------------------------------------
    # x rows = (b, padded row 0..35), lanes = 3*w + c (108 used, rest zero).
    # 5 banded-Toeplitz matmuls (one per kernel row), each at full K=128 depth.
    # Output rows = b*32 + i, lanes = 8*j + o.
    for kh in range(5):
        lhs = x_ref[:, kh:kh + 32, :].reshape(B * 32, 128)         # bf16 (256,128)
        d = jnp.dot(lhs, w1_ref[kh], preferred_element_type=f32)   # (256,256)
        if kh == 0:
            acc1[...] = d
        else:
            acc1[...] += d

    # ---- bias + ReLU folded into the s2 read; 2x2 avg-pool = 2 bf16 matmuls
    a1 = jnp.maximum(acc1[...] + b_ref[0:1, :], 0.0).astype(bf16)  # (256,256)
    t1 = jnp.dot(r1_ref[...], a1, preferred_element_type=f32)      # (128,256) rows b*16+p
    p1 = jnp.dot(t1.astype(bf16), pq1_ref[...],
                 preferred_element_type=f32)                       # (128,128) lanes 8*q+o
    p1_ref[:, 0:16, :] = p1.astype(bf16).reshape(B, 16, 128)
    p1_ref[:, 16:24, :] = jnp.zeros((B, 8, 128), bf16)             # keep pad rows zero

    # ---- c3: Conv2d(8->20, k=5, valid) --------------------------------------
    # p1 rows = (b, p 0..15 valid / 16..23 zero), lanes = 8*q + c.
    # Output rows = b*16 + i (i<12 valid), lanes = 20*j + o (240 used, rest 0).
    for kh in range(5):
        lhs = p1_ref[:, kh:kh + 16, :].reshape(B * 16, 128)        # bf16 (128,128)
        d = jnp.dot(lhs, w2_ref[kh], preferred_element_type=f32)   # (128,256)
        if kh == 0:
            acc2[...] = d
        else:
            acc2[...] += d

    # ---- bias + ReLU folded into the s4 read; 2x2 avg-pool = 2 bf16 matmuls
    # r2 has zero weight on the padded rows i>=12, so they never contribute.
    a2 = jnp.maximum(acc2[...] + b_ref[1:2, :], 0.0).astype(bf16)  # (128,256)
    t2 = jnp.dot(r2_ref[...], a2, preferred_element_type=f32)      # (48,256) rows p*8+b
    p2 = jnp.dot(t2.astype(bf16), pq2_ref[...],
                 preferred_element_type=f32).astype(bf16)          # (48,128) lanes 20*q+o

    # ---- f5 (720->120): 6 dots, torch NCHW flatten order folded into w5 ----
    acc5 = jnp.dot(p2[0:8, :], w5_ref[0], preferred_element_type=f32)
    for p in range(1, 6):
        acc5 = acc5 + jnp.dot(p2[p * 8:(p + 1) * 8, :], w5_ref[p],
                              preferred_element_type=f32)
    acc5 = acc5 + b_ref[2:3, 0:128]                                # (8,128)
    # TODO(synk): nn.Dropout(0.3) is identity in eval mode; not applied.

    # ---- f6 -> f7; dense (8,128) store with 8 real logit rows ---------------
    h6 = jnp.dot(acc5.astype(bf16), w6_ref[...],
                 preferred_element_type=f32) + b_ref[3:4, 0:128]
    out = jnp.dot(h6.astype(bf16), w7_ref[...],
                  preferred_element_type=f32) + b_ref[4:5, 0:128]
    o_ref[...] = out


# --------------------------- parameter preparation --------------------------

def init_params(key):
    ks = jax.random.split(key, 10)
    s = 0.05
    return {
        "c1_w": s * jax.random.normal(ks[0], (8, 3, 5, 5), jnp.float32),
        "c1_b": s * jax.random.normal(ks[1], (8,), jnp.float32),
        "c3_w": s * jax.random.normal(ks[2], (20, 8, 5, 5), jnp.float32),
        "c3_b": s * jax.random.normal(ks[3], (20,), jnp.float32),
        "f5_w": s * jax.random.normal(ks[4], (120, 720), jnp.float32),   # (out,in)
        "f5_b": s * jax.random.normal(ks[5], (120,), jnp.float32),
        "f6_w": s * jax.random.normal(ks[6], (84, 120), jnp.float32),
        "f6_b": s * jax.random.normal(ks[7], (84,), jnp.float32),
        "f7_w": s * jax.random.normal(ks[8], (10, 84), jnp.float32),
        "f7_b": s * jax.random.normal(ks[9], (10,), jnp.float32),
    }


def prepare_params(params):
    """One-time host-side prep: Toeplitz conv weights, pooling matrices, padded FCs."""
    bf = jnp.bfloat16
    c1 = np.asarray(params["c1_w"], np.float32)           # (O=8,C=3,KH,KW)
    c3 = np.asarray(params["c3_w"], np.float32)           # (O=20,C=8,KH,KW)

    # conv1: x lane 3*w + c  ->  out lane 8*j + o,  one (128,256) matrix per kh.
    w1 = np.zeros((5, 128, 256), np.float32)
    for kh in range(5):
        for dw in range(5):
            tap = c1[:, :, kh, dw].T                       # (c=3, o=8)
            for j in range(32):
                w = j + dw
                w1[kh, 3 * w:3 * w + 3, 8 * j:8 * j + 8] = tap

    # conv2: p1 lane 8*q + c  ->  out lane 20*j + o.
    w2 = np.zeros((5, 128, 256), np.float32)
    for kh in range(5):
        for dw in range(5):
            tap = c3[:, :, kh, dw].T                       # (c=8, o=20)
            for j in range(12):
                q = j + dw
                w2[kh, 8 * q:8 * q + 8, 20 * j:20 * j + 20] = tap

    # s2 avg-pool: row-pair (0.5) and lane-pair (0.5) selection matrices.
    r1 = np.zeros((128, 256), np.float32)                  # out row b*16+p
    for b in range(_B):
        for p in range(16):
            r1[b * 16 + p, b * 32 + 2 * p] = 0.5
            r1[b * 16 + p, b * 32 + 2 * p + 1] = 0.5
    pq1 = np.zeros((256, 128), np.float32)                 # lane 8j+o -> 8(j//2)+o
    for j in range(32):
        for o in range(8):
            pq1[8 * j + o, 8 * (j // 2) + o] = 0.5

    # s4 avg-pool (only valid conv2 rows i<12 are selected).
    r2 = np.zeros((48, 128), np.float32)                   # out row p*8+b
    for p in range(6):
        for b in range(_B):
            r2[p * 8 + b, b * 16 + 2 * p] = 0.5
            r2[p * 8 + b, b * 16 + 2 * p + 1] = 0.5
    pq2 = np.zeros((256, 128), np.float32)                 # lane 20j+o -> 20(j//2)+o
    for j in range(12):
        for o in range(20):
            pq2[20 * j + o, 20 * (j // 2) + o] = 0.5

    # f5: torch flatten index c*36 + h*6 + w folded in; input lane = 20*q + o.
    f5 = np.asarray(params["f5_w"], np.float32).reshape(120, 20, 6, 6)  # (out,c,h,w)
    w5 = np.zeros((6, 128, 128), np.float32)
    for p in range(6):
        for q in range(6):
            w5[p, 20 * q:20 * q + 20, :120] = f5[:, :, p, q].T          # (c, out)

    w6 = np.zeros((128, 128), np.float32)
    w6[:120, :84] = np.asarray(params["f6_w"], np.float32).T
    w7 = np.zeros((128, 128), np.float32)
    w7[:84, :10] = np.asarray(params["f7_w"], np.float32).T

    # Biases packed into one (8,256) f32 tile: rows = c1, c3, f5, f6, f7.
    bias = np.zeros((8, 256), np.float32)
    b1 = np.asarray(params["c1_b"], np.float32)
    b2 = np.asarray(params["c3_b"], np.float32)
    for j in range(32):
        bias[0, 8 * j:8 * j + 8] = b1
    for j in range(12):
        bias[1, 20 * j:20 * j + 20] = b2
    bias[2, :120] = np.asarray(params["f5_b"], np.float32)
    bias[3, :84] = np.asarray(params["f6_b"], np.float32)
    bias[4, :10] = np.asarray(params["f7_b"], np.float32)

    return {"w1": jnp.asarray(w1, bf), "w2": jnp.asarray(w2, bf),
            "r1": jnp.asarray(r1, bf), "pq1": jnp.asarray(pq1, bf),
            "r2": jnp.asarray(r2, bf), "pq2": jnp.asarray(pq2, bf),
            "w5": jnp.asarray(w5, bf), "w6": jnp.asarray(w6, bf),
            "w7": jnp.asarray(w7, bf), "b": jnp.asarray(bias, jnp.float32)}


# ------------------------------- forward pass --------------------------------

def lenet_forward(x_nchw, pp):
    n = x_nchw.shape[0]
    n_pad = ((n + _B - 1) // _B) * _B

    # Layout plumbing only: NCHW -> padded rows with lanes = 3*w + c, bf16 once.
    x = jnp.transpose(x_nchw, (0, 2, 3, 1)).astype(jnp.float32)    # (N,32,32,3)
    x = jnp.pad(x, ((0, 0), (2, 2), (2, 2), (0, 0)))               # (N,36,36,3)
    x = x.reshape(n, 36, 108)                                      # lane = 3*w + c
    x = jnp.pad(x, ((0, 0), (0, 0), (0, 20)))                      # (N,36,128)
    x = x.astype(jnp.bfloat16)
    if n_pad != n:                                                 # batch remainder
        x = jnp.pad(x, ((0, n_pad - n), (0, 0), (0, 0)))

    out = pl.pallas_call(
        _lenet_kernel,
        grid=(n_pad // _B,),
        out_shape=jax.ShapeDtypeStruct((n_pad, 128), jnp.float32),
        in_specs=[
            pl.BlockSpec((_B, 36, 128), lambda i: (i, 0, 0)),      # x (per step)
            pl.BlockSpec((5, 128, 256), lambda i: (0, 0, 0)),      # w1 (Toeplitz)
            pl.BlockSpec((128, 256), lambda i: (0, 0)),            # r1  row pool
            pl.BlockSpec((256, 128), lambda i: (0, 0)),            # pq1 lane pool
            pl.BlockSpec((5, 128, 256), lambda i: (0, 0, 0)),      # w2 (Toeplitz)
            pl.BlockSpec((48, 128), lambda i: (0, 0)),             # r2  row pool
            pl.BlockSpec((256, 128), lambda i: (0, 0)),            # pq2 lane pool
            pl.BlockSpec((6, 128, 128), lambda i: (0, 0, 0)),      # w5
            pl.BlockSpec((128, 128), lambda i: (0, 0)),            # w6
            pl.BlockSpec((128, 128), lambda i: (0, 0)),            # w7
            pl.BlockSpec((8, 256), lambda i: (0, 0)),              # packed biases
        ],
        out_specs=pl.BlockSpec((_B, 128), lambda i: (i, 0)),
        scratch_shapes=[
            pltpu.VMEM((_B * 32, 256), jnp.float32),    # conv1 accumulator
            pltpu.VMEM((_B * 16, 256), jnp.float32),    # conv2 accumulator
            pltpu.VMEM((_B, 24, 128), jnp.bfloat16),    # pooled1 (rows 16..23 = 0)
        ],
        compiler_params=pltpu.CompilerParams(
            dimension_semantics=("parallel",)),
    )(x, pp["w1"], pp["r1"], pp["pq1"], pp["w2"], pp["r2"], pp["pq2"],
      pp["w5"], pp["w6"], pp["w7"], pp["b"])
    return out[:n, :10]


# ------------------------------ pure-JAX reference ---------------------------

def lenet_reference(x, params):
    hp = lax.Precision.HIGHEST
    dn = ("NCHW", "OIHW", "NCHW")
    y = lax.conv_general_dilated(x, params["c1_w"], (1, 1), ((2, 2), (2, 2)),
                                 dimension_numbers=dn, precision=hp)
    y = jnp.maximum(y + params["c1_b"][None, :, None, None], 0.0)
    n, c, h, w = y.shape
    y = y.reshape(n, c, h // 2, 2, w // 2, 2).mean(axis=(3, 5))
    y = lax.conv_general_dilated(y, params["c3_w"], (1, 1), ((0, 0), (0, 0)),
                                 dimension_numbers=dn, precision=hp)
    y = jnp.maximum(y + params["c3_b"][None, :, None, None], 0.0)
    n, c, h, w = y.shape
    y = y.reshape(n, c, h // 2, 2, w // 2, 2).mean(axis=(3, 5))
    y = y.reshape(n, -1)
    y = jnp.dot(y, params["f5_w"].T, precision=hp) + params["f5_b"]
    y = jnp.dot(y, params["f6_w"].T, precision=hp) + params["f6_b"]
    y = jnp.dot(y, params["f7_w"].T, precision=hp) + params["f7_b"]
    return y


# ------------------------------------ main -----------------------------------

if __name__ == "__main__":
    key = jax.random.PRNGKey(0)
    k_x, k_p = jax.random.split(key)

    # The module implies 32x32 RGB input (f5 expects 6*6*20 features).
    x = jax.random.normal(k_x, (2, 3, 32, 32), jnp.float32)
    params = init_params(k_p)
    prepped = prepare_params(params)          # one-time weight prep (not per call)

    fwd = jax.jit(lenet_forward)
    out = jax.block_until_ready(fwd(x, prepped))
    assert out.shape == (2, 10) and out.dtype == jnp.float32

    ref = lenet_reference(x, params)
    err = float(jnp.max(jnp.abs(out - ref)))
    assert err < 3e-2, f"max abs diff vs reference too large: {err}"
    print("KERNEL_OK")
</pallas_src>

<mosaic_0001>
module attributes {stable_mosaic.version = 11 : i64} {
  func.func @_lenet_kernel(%arg0: i32, %arg1: memref<8x36x128xbf16, #tpu.memory_space<vmem>>, %arg2: memref<5x128x256xbf16, #tpu.memory_space<vmem>>, %arg3: memref<128x256xbf16, #tpu.memory_space<vmem>>, %arg4: memref<256x128xbf16, #tpu.memory_space<vmem>>, %arg5: memref<5x128x256xbf16, #tpu.memory_space<vmem>>, %arg6: memref<48x128xbf16, #tpu.memory_space<vmem>>, %arg7: memref<256x128xbf16, #tpu.memory_space<vmem>>, %arg8: memref<6x128x128xbf16, #tpu.memory_space<vmem>>, %arg9: memref<128x128xbf16, #tpu.memory_space<vmem>>, %arg10: memref<128x128xbf16, #tpu.memory_space<vmem>>, %arg11: memref<8x256xf32, #tpu.memory_space<vmem>>, %arg12: memref<8x128xf32, #tpu.memory_space<vmem>>, %arg13: memref<256x256xf32, #tpu.memory_space<vmem>>, %arg14: memref<128x256xf32, #tpu.memory_space<vmem>>, %arg15: memref<8x24x128xbf16, #tpu.memory_space<vmem>>) attributes {dimension_semantics = [#tpu.dimension_semantics<parallel>], iteration_bounds = array<i64: 1>, scalar_prefetch = 0 : i64, scratch_operands = 3 : i64, tpu.core_type = #tpu.core_type<tc>, window_params = [{transform_indices = @transform_0, window_bounds = array<i64: 8, 36, 128>}, {pipeline_mode = #tpu.pipeline_mode<synchronous>, transform_indices = @transform_1, window_bounds = array<i64: 5, 128, 256>}, {pipeline_mode = #tpu.pipeline_mode<synchronous>, transform_indices = @transform_2, window_bounds = array<i64: 128, 256>}, {pipeline_mode = #tpu.pipeline_mode<synchronous>, transform_indices = @transform_3, window_bounds = array<i64: 256, 128>}, {pipeline_mode = #tpu.pipeline_mode<synchronous>, transform_indices = @transform_4, window_bounds = array<i64: 5, 128, 256>}, {pipeline_mode = #tpu.pipeline_mode<synchronous>, transform_indices = @transform_5, window_bounds = array<i64: 48, 128>}, {pipeline_mode = #tpu.pipeline_mode<synchronous>, transform_indices = @transform_6, window_bounds = array<i64: 256, 128>}, {pipeline_mode = #tpu.pipeline_mode<synchronous>, transform_indices = @transform_7, window_bounds = array<i64: 6, 128, 128>}, {pipeline_mode = #tpu.pipeline_mode<synchronous>, transform_indices = @transform_8, window_bounds = array<i64: 128, 128>}, {pipeline_mode = #tpu.pipeline_mode<synchronous>, transform_indices = @transform_9, window_bounds = array<i64: 128, 128>}, {pipeline_mode = #tpu.pipeline_mode<synchronous>, transform_indices = @transform_10, window_bounds = array<i64: 8, 256>}, {transform_indices = @transform_11, window_bounds = array<i64: 8, 128>}]} {
    %c0 = arith.constant 0 : index
    %c0_0 = arith.constant 0 : index
    %c0_1 = arith.constant 0 : index
    %0 = vector.load %arg1[%c0, %c0_0, %c0_1] : memref<8x36x128xbf16, #tpu.memory_space<vmem>>, vector<8x32x128xbf16>
    %1 = vector.shape_cast %0 : vector<8x32x128xbf16> to vector<256x128xbf16>
    %c0_2 = arith.constant 0 : index
    %c0_3 = arith.constant 0 : index
    %c0_4 = arith.constant 0 : index
    %2 = vector.load %arg2[%c0_2, %c0_3, %c0_4] : memref<5x128x256xbf16, #tpu.memory_space<vmem>>, vector<1x128x256xbf16>
    %3 = vector.shape_cast %2 : vector<1x128x256xbf16> to vector<128x256xbf16>
    %cst = arith.constant dense<0.000000e+00> : vector<256x256xf32>
    %4 = tpu.matmul %1, %3, %cst {dimension_numbers = #tpu.dot_dimension_numbers<[1], [0], [0], [1], [0, 0, 1, 1], [], []>} : vector<256x128xbf16>, vector<128x256xbf16>, vector<256x256xf32> -> vector<256x256xf32>
    %c0_5 = arith.constant 0 : index
    %c0_6 = arith.constant 0 : index
    %5 = vector.load %arg13[%c0_5, %c0_6] : memref<256x256xf32, #tpu.memory_space<vmem>>, vector<256x256xf32>
    tpu.vector_store %arg13[%c0_5, %c0_6], %4 {strides = array<i32>} : memref<256x256xf32, #tpu.memory_space<vmem>>, vector<256x256xf32>,
    %c0_7 = arith.constant 0 : index
    %c1 = arith.constant 1 : index
    %c0_8 = arith.constant 0 : index
    %6 = vector.load %arg1[%c0_7, %c1, %c0_8] : memref<8x36x128xbf16, #tpu.memory_space<vmem>>, vector<8x32x128xbf16>
    %7 = vector.shape_cast %6 : vector<8x32x128xbf16> to vector<256x128xbf16>
    %c1_9 = arith.constant 1 : index
    %c0_10 = arith.constant 0 : index
    %c0_11 = arith.constant 0 : index
    %8 = vector.load %arg2[%c1_9, %c0_10, %c0_11] : memref<5x128x256xbf16, #tpu.memory_space<vmem>>, vector<1x128x256xbf16>
    %9 = vector.shape_cast %8 : vector<1x128x256xbf16> to vector<128x256xbf16>
    %cst_12 = arith.constant dense<0.000000e+00> : vector<256x256xf32>
    %10 = tpu.matmul %7, %9, %cst_12 {dimension_numbers = #tpu.dot_dimension_numbers<[1], [0], [0], [1], [0, 0, 1, 1], [], []>} : vector<256x128xbf16>, vector<128x256xbf16>, vector<256x256xf32> -> vector<256x256xf32>
    %c0_13 = arith.constant 0 : index
    %c0_14 = arith.constant 0 : index
    %11 = vector.load %arg13[%c0_13, %c0_14] : memref<256x256xf32, #tpu.memory_space<vmem>>, vector<256x256xf32>
    %12 = arith.addf %11, %10 : vector<256x256xf32>
    %c0_15 = arith.constant 0 : index
    %c0_16 = arith.constant 0 : index
    %13 = vector.load %arg13[%c0_15, %c0_16] : memref<256x256xf32, #tpu.memory_space<vmem>>, vector<256x256xf32>
    tpu.vector_store %arg13[%c0_15, %c0_16], %12 {strides = array<i32>} : memref<256x256xf32, #tpu.memory_space<vmem>>, vector<256x256xf32>,
    %c0_17 = arith.constant 0 : index
    %c2 = arith.constant 2 : index
    %c0_18 = arith.constant 0 : index
    %14 = vector.load %arg1[%c0_17, %c2, %c0_18] : memref<8x36x128xbf16, #tpu.memory_space<vmem>>, vector<8x32x128xbf16>
    %15 = vector.shape_cast %14 : vector<8x32x128xbf16> to vector<256x128xbf16>
    %c2_19 = arith.constant 2 : index
    %c0_20 = arith.constant 0 : index
    %c0_21 = arith.constant 0 : index
    %16 = vector.load %arg2[%c2_19, %c0_20, %c0_21] : memref<5x128x256xbf16, #tpu.memory_space<vmem>>, vector<1x128x256xbf16>
    %17 = vector.shape_cast %16 : vector<1x128x256xbf16> to vector<128x256xbf16>
    %cst_22 = arith.constant dense<0.000000e+00> : vector<256x256xf32>
    %18 = tpu.matmul %15, %17, %cst_22 {dimension_numbers = #tpu.dot_dimension_numbers<[1], [0], [0], [1], [0, 0, 1, 1], [], []>} : vector<256x128xbf16>, vector<128x256xbf16>, vector<256x256xf32> -> vector<256x256xf32>
    %c0_23 = arith.constant 0 : index
    %c0_24 = arith.constant 0 : index
    %19 = vector.load %arg13[%c0_23, %c0_24] : memref<256x256xf32, #tpu.memory_space<vmem>>, vector<256x256xf32>
    %20 = arith.addf %19, %18 : vector<256x256xf32>
    %c0_25 = arith.constant 0 : index
    %c0_26 = arith.constant 0 : index
    %21 = vector.load %arg13[%c0_25, %c0_26] : memref<256x256xf32, #tpu.memory_space<vmem>>, vector<256x256xf32>
    tpu.vector_store %arg13[%c0_25, %c0_26], %20 {strides = array<i32>} : memref<256x256xf32, #tpu.memory_space<vmem>>, vector<256x256xf32>,
    %c0_27 = arith.constant 0 : index
    %c3 = arith.constant 3 : index
    %c0_28 = arith.constant 0 : index
    %22 = vector.load %arg1[%c0_27, %c3, %c0_28] : memref<8x36x128xbf16, #tpu.memory_space<vmem>>, vector<8x32x128xbf16>
    %23 = vector.shape_cast %22 : vector<8x32x128xbf16> to vector<256x128xbf16>
    %c3_29 = arith.constant 3 : index
    %c0_30 = arith.constant 0 : index
    %c0_31 = arith.constant 0 : index
    %24 = vector.load %arg2[%c3_29, %c0_30, %c0_31] : memref<5x128x256xbf16, #tpu.memory_space<vmem>>, vector<1x128x256xbf16>
    %25 = vector.shape_cast %24 : vector<1x128x256xbf16> to vector<128x256xbf16>
    %cst_32 = arith.constant dense<0.000000e+00> : vector<256x256xf32>
    %26 = tpu.matmul %23, %25, %cst_32 {dimension_numbers = #tpu.dot_dimension_numbers<[1], [0], [0], [1], [0, 0, 1, 1], [], []>} : vector<256x128xbf16>, vector<128x256xbf16>, vector<256x256xf32> -> vector<256x256xf32>
    %c0_33 = arith.constant 0 : index
    %c0_34 = arith.constant 0 : index
    %27 = vector.load %arg13[%c0_33, %c0_34] : memref<256x256xf32, #tpu.memory_space<vmem>>, vector<256x256xf32>
    %28 = arith.addf %27, %26 : vector<256x256xf32>
    %c0_35 = arith.constant 0 : index
    %c0_36 = arith.constant 0 : index
    %29 = vector.load %arg13[%c0_35, %c0_36] : memref<256x256xf32, #tpu.memory_space<vmem>>, vector<256x256xf32>
    tpu.vector_store %arg13[%c0_35, %c0_36], %28 {strides = array<i32>} : memref<256x256xf32, #tpu.memory_space<vmem>>, vector<256x256xf32>,
    %c0_37 = arith.constant 0 : index
    %c4 = arith.constant 4 : index
    %c0_38 = arith.constant 0 : index
    %30 = vector.load %arg1[%c0_37, %c4, %c0_38] : memref<8x36x128xbf16, #tpu.memory_space<vmem>>, vector<8x32x128xbf16>
    %31 = vector.shape_cast %30 : vector<8x32x128xbf16> to vector<256x128xbf16>
    %c4_39 = arith.constant 4 : index
    %c0_40 = arith.constant 0 : index
    %c0_41 = arith.constant 0 : index
    %32 = vector.load %arg2[%c4_39, %c0_40, %c0_41] : memref<5x128x256xbf16, #tpu.memory_space<vmem>>, vector<1x128x256xbf16>
    %33 = vector.shape_cast %32 : vector<1x128x256xbf16> to vector<128x256xbf16>
    %cst_42 = arith.constant dense<0.000000e+00> : vector<256x256xf32>
    %34 = tpu.matmul %31, %33, %cst_42 {dimension_numbers = #tpu.dot_dimension_numbers<[1], [0], [0], [1], [0, 0, 1, 1], [], []>} : vector<256x128xbf16>, vector<128x256xbf16>, vector<256x256xf32> -> vector<256x256xf32>
    %c0_43 = arith.constant 0 : index
    %c0_44 = arith.constant 0 : index
    %35 = vector.load %arg13[%c0_43, %c0_44] : memref<256x256xf32, #tpu.memory_space<vmem>>, vector<256x256xf32>
    %36 = arith.addf %35, %34 : vector<256x256xf32>
    %c0_45 = arith.constant 0 : index
    %c0_46 = arith.constant 0 : index
    %37 = vector.load %arg13[%c0_45, %c0_46] : memref<256x256xf32, #tpu.memory_space<vmem>>, vector<256x256xf32>
    tpu.vector_store %arg13[%c0_45, %c0_46], %36 {strides = array<i32>} : memref<256x256xf32, #tpu.memory_space<vmem>>, vector<256x256xf32>,
    %c0_47 = arith.constant 0 : index
    %c0_48 = arith.constant 0 : index
    %38 = vector.load %arg13[%c0_47, %c0_48] : memref<256x256xf32, #tpu.memory_space<vmem>>, vector<256x256xf32>
    %c0_49 = arith.constant 0 : index
    %c0_50 = arith.constant 0 : index
    %39 = vector.load %arg11[%c0_49, %c0_50] : memref<8x256xf32, #tpu.memory_space<vmem>>, vector<1x256xf32>
    %40 = vector.broadcast %39 : vector<1x256xf32> to vector<256x256xf32>
    %41 = arith.addf %38, %40 : vector<256x256xf32>
    %cst_51 = arith.constant 0.000000e+00 : f32
    %42 = vector.broadcast %cst_51 : f32 to vector<256x256xf32>
    %43 = arith.maximumf %41, %42 : vector<256x256xf32>
    %44 = arith.truncf %43 : vector<256x256xf32> to vector<256x256xbf16>
    %c0_52 = arith.constant 0 : index
    %c0_53 = arith.constant 0 : index
    %45 = vector.load %arg3[%c0_52, %c0_53] : memref<128x256xbf16, #tpu.memory_space<vmem>>, vector<128x256xbf16>
    %cst_54 = arith.constant dense<0.000000e+00> : vector<128x256xf32>
    %46 = tpu.matmul %45, %44, %cst_54 {dimension_numbers = #tpu.dot_dimension_numbers<[1], [0], [0], [1], [0, 0, 1, 1], [], []>} : vector<128x256xbf16>, vector<256x256xbf16>, vector<128x256xf32> -> vector<128x256xf32>
    %47 = arith.truncf %46 : vector<128x256xf32> to vector<128x256xbf16>
    %c0_55 = arith.constant 0 : index
    %c0_56 = arith.constant 0 : index
    %48 = vector.load %arg4[%c0_55, %c0_56] : memref<256x128xbf16, #tpu.memory_space<vmem>>, vector<256x128xbf16>
    %cst_57 = arith.constant dense<0.000000e+00> : vector<128x128xf32>
    %49 = tpu.matmul %47, %48, %cst_57 {dimension_numbers = #tpu.dot_dimension_numbers<[1], [0], [0], [1], [0, 0, 1, 1], [], []>} : vector<128x256xbf16>, vector<256x128xbf16>, vector<128x128xf32> -> vector<128x128xf32>
    %50 = arith.truncf %49 : vector<128x128xf32> to vector<128x128xbf16>
    %51 = vector.shape_cast %50 : vector<128x128xbf16> to vector<8x16x128xbf16>
    %c0_58 = arith.constant 0 : index
    %c0_59 = arith.constant 0 : index
    %c0_60 = arith.constant 0 : index
    %52 = vector.load %arg15[%c0_58, %c0_59, %c0_60] : memref<8x24x128xbf16, #tpu.memory_space<vmem>>, vector<8x16x128xbf16>
    tpu.vector_store %arg15[%c0_58, %c0_59, %c0_60], %51 {strides = array<i32>} : memref<8x24x128xbf16, #tpu.memory_space<vmem>>, vector<8x16x128xbf16>,
    %cst_61 = arith.constant 0.000000e+00 : bf16
    %53 = vector.broadcast %cst_61 : bf16 to vector<8x8x128xbf16>
    %c0_62 = arith.constant 0 : index
    %c16 = arith.constant 16 : index
    %c0_63 = arith.constant 0 : index
    %54 = vector.load %arg15[%c0_62, %c16, %c0_63] : memref<8x24x128xbf16, #tpu.memory_space<vmem>>, vector<8x8x128xbf16>
    tpu.vector_store %arg15[%c0_62, %c16, %c0_63], %53 {strides = array<i32>} : memref<8x24x128xbf16, #tpu.memory_space<vmem>>, vector<8x8x128xbf16>,
    %c0_64 = arith.constant 0 : index
    %c0_65 = arith.constant 0 : index
    %c0_66 = arith.constant 0 : index
    %55 = vector.load %arg15[%c0_64, %c0_65, %c0_66] : memref<8x24x128xbf16, #tpu.memory_space<vmem>>, vector<8x16x128xbf16>
    %56 = vector.shape_cast %55 : vector<8x16x128xbf16> to vector<128x128xbf16>
    %c0_67 = arith.constant 0 : index
    %c0_68 = arith.constant 0 : index
    %c0_69 = arith.constant 0 : index
    %57 = vector.load %arg5[%c0_67, %c0_68, %c0_69] : memref<5x128x256xbf16, #tpu.memory_space<vmem>>, vector<1x128x256xbf16>
    %58 = vector.shape_cast %57 : vector<1x128x256xbf16> to vector<128x256xbf16>
    %cst_70 = arith.constant dense<0.000000e+00> : vector<128x256xf32>
    %59 = tpu.matmul %56, %58, %cst_70 {dimension_numbers = #tpu.dot_dimension_numbers<[1], [0], [0], [1], [0, 0, 1, 1], [], []>} : vector<128x128xbf16>, vector<128x256xbf16>, vector<128x256xf32> -> vector<128x256xf32>
    %c0_71 = arith.constant 0 : index
    %c0_72 = arith.constant 0 : index
    %60 = vector.load %arg14[%c0_71, %c0_72] : memref<128x256xf32, #tpu.memory_space<vmem>>, vector<128x256xf32>
    tpu.vector_store %arg14[%c0_71, %c0_72], %59 {strides = array<i32>} : memref<128x256xf32, #tpu.memory_space<vmem>>, vector<128x256xf32>,
    %c0_73 = arith.constant 0 : index
    %c1_74 = arith.constant 1 : index
    %c0_75 = arith.constant 0 : index
    %61 = vector.load %arg15[%c0_73, %c1_74, %c0_75] : memref<8x24x128xbf16, #tpu.memory_space<vmem>>, vector<8x16x128xbf16>
    %62 = vector.shape_cast %61 : vector<8x16x128xbf16> to vector<128x128xbf16>
    %c1_76 = arith.constant 1 : index
    %c0_77 = arith.constant 0 : index
    %c0_78 = arith.constant 0 : index
    %63 = vector.load %arg5[%c1_76, %c0_77, %c0_78] : memref<5x128x256xbf16, #tpu.memory_space<vmem>>, vector<1x128x256xbf16>
    %64 = vector.shape_cast %63 : vector<1x128x256xbf16> to vector<128x256xbf16>
    %cst_79 = arith.constant dense<0.000000e+00> : vector<128x256xf32>
    %65 = tpu.matmul %62, %64, %cst_79 {dimension_numbers = #tpu.dot_dimension_numbers<[1], [0], [0], [1], [0, 0, 1, 1], [], []>} : vector<128x128xbf16>, vector<128x256xbf16>, vector<128x256xf32> -> vector<128x256xf32>
    %c0_80 = arith.constant 0 : index
    %c0_81 = arith.constant 0 : index
    %66 = vector.load %arg14[%c0_80, %c0_81] : memref<128x256xf32, #tpu.memory_space<vmem>>, vector<128x256xf32>
    %67 = arith.addf %66, %65 : vector<128x256xf32>
    %c0_82 = arith.constant 0 : index
    %c0_83 = arith.constant 0 : index
    %68 = vector.load %arg14[%c0_82, %c0_83] : memref<128x256xf32, #tpu.memory_space<vmem>>, vector<128x256xf32>
    tpu.vector_store %arg14[%c0_82, %c0_83], %67 {strides = array<i32>} : memref<128x256xf32, #tpu.memory_space<vmem>>, vector<128x256xf32>,
    %c0_84 = arith.constant 0 : index
    %c2_85 = arith.constant 2 : index
    %c0_86 = arith.constant 0 : index
    %69 = vector.load %arg15[%c0_84, %c2_85, %c0_86] : memref<8x24x128xbf16, #tpu.memory_space<vmem>>, vector<8x16x128xbf16>
    %70 = vector.shape_cast %69 : vector<8x16x128xbf16> to vector<128x128xbf16>
    %c2_87 = arith.constant 2 : index
    %c0_88 = arith.constant 0 : index
    %c0_89 = arith.constant 0 : index
    %71 = vector.load %arg5[%c2_87, %c0_88, %c0_89] : memref<5x128x256xbf16, #tpu.memory_space<vmem>>, vector<1x128x256xbf16>
    %72 = vector.shape_cast %71 : vector<1x128x256xbf16> to vector<128x256xbf16>
    %cst_90 = arith.constant dense<0.000000e+00> : vector<128x256xf32>
    %73 = tpu.matmul %70, %72, %cst_90 {dimension_numbers = #tpu.dot_dimension_numbers<[1], [0], [0], [1], [0, 0, 1, 1], [], []>} : vector<128x128xbf16>, vector<128x256xbf16>, vector<128x256xf32> -> vector<128x256xf32>
    %c0_91 = arith.constant 0 : index
    %c0_92 = arith.constant 0 : index
    %74 = vector.load %arg14[%c0_91, %c0_92] : memref<128x256xf32, #tpu.memory_space<vmem>>, vector<128x256xf32>
    %75 = arith.addf %74, %73 : vector<128x256xf32>
    %c0_93 = arith.constant 0 : index
    %c0_94 = arith.constant 0 : index
    %76 = vector.load %arg14[%c0_93, %c0_94] : memref<128x256xf32, #tpu.memory_space<vmem>>, vector<128x256xf32>
    tpu.vector_store %arg14[%c0_93, %c0_94], %75 {strides = array<i32>} : memref<128x256xf32, #tpu.memory_space<vmem>>, vector<128x256xf32>,
    %c0_95 = arith.constant 0 : index
    %c3_96 = arith.constant 3 : index
    %c0_97 = arith.constant 0 : index
    %77 = vector.load %arg15[%c0_95, %c3_96, %c0_97] : memref<8x24x128xbf16, #tpu.memory_space<vmem>>, vector<8x16x128xbf16>
    %78 = vector.shape_cast %77 : vector<8x16x128xbf16> to vector<128x128xbf16>
    %c3_98 = arith.constant 3 : index
    %c0_99 = arith.constant 0 : index
    %c0_100 = arith.constant 0 : index
    %79 = vector.load %arg5[%c3_98, %c0_99, %c0_100] : memref<5x128x256xbf16, #tpu.memory_space<vmem>>, vector<1x128x256xbf16>
    %80 = vector.shape_cast %79 : vector<1x128x256xbf16> to vector<128x256xbf16>
    %cst_101 = arith.constant dense<0.000000e+00> : vector<128x256xf32>
    %81 = tpu.matmul %78, %80, %cst_101 {dimension_numbers = #tpu.dot_dimension_numbers<[1], [0], [0], [1], [0, 0, 1, 1], [], []>} : vector<128x128xbf16>, vector<128x256xbf16>, vector<128x256xf32> -> vector<128x256xf32>
    %c0_102 = arith.constant 0 : index
    %c0_103 = arith.constant 0 : index
    %82 = vector.load %arg14[%c0_102, %c0_103] : memref<128x256xf32, #tpu.memory_space<vmem>>, vector<128x256xf32>
    %83 = arith.addf %82, %81 : vector<128x256xf32>
    %c0_104 = arith.constant 0 : index
    %c0_105 = arith.constant 0 : index
    %84 = vector.load %arg14[%c0_104, %c0_105] : memref<128x256xf32, #tpu.memory_space<vmem>>, vector<128x256xf32>
    tpu.vector_store %arg14[%c0_104, %c0_105], %83 {strides = array<i32>} : memref<128x256xf32, #tpu.memory_space<vmem>>, vector<128x256xf32>,
    %c0_106 = arith.constant 0 : index
    %c4_107 = arith.constant 4 : index
    %c0_108 = arith.constant 0 : index
    %85 = vector.load %arg15[%c0_106, %c4_107, %c0_108] : memref<8x24x128xbf16, #tpu.memory_space<vmem>>, vector<8x16x128xbf16>
    %86 = vector.shape_cast %85 : vector<8x16x128xbf16> to vector<128x128xbf16>
    %c4_109 = arith.constant 4 : index
    %c0_110 = arith.constant 0 : index
    %c0_111 = arith.constant 0 : index
    %87 = vector.load %arg5[%c4_109, %c0_110, %c0_111] : memref<5x128x256xbf16, #tpu.memory_space<vmem>>, vector<1x128x256xbf16>
    %88 = vector.shape_cast %87 : vector<1x128x256xbf16> to vector<128x256xbf16>
    %cst_112 = arith.constant dense<0.000000e+00> : vector<128x256xf32>
    %89 = tpu.matmul %86, %88, %cst_112 {dimension_numbers = #tpu.dot_dimension_numbers<[1], [0], [0], [1], [0, 0, 1, 1], [], []>} : vector<128x128xbf16>, vector<128x256xbf16>, vector<128x256xf32> -> vector<128x256xf32>
    %c0_113 = arith.constant 0 : index
    %c0_114 = arith.constant 0 : index
    %90 = vector.load %arg14[%c0_113, %c0_114] : memref<128x256xf32, #tpu.memory_space<vmem>>, vector<128x256xf32>
    %91 = arith.addf %90, %89 : vector<128x256xf32>
    %c0_115 = arith.constant 0 : index
    %c0_116 = arith.constant 0 : index
    %92 = vector.load %arg14[%c0_115, %c0_116] : memref<128x256xf32, #tpu.memory_space<vmem>>, vector<128x256xf32>
    tpu.vector_store %arg14[%c0_115, %c0_116], %91 {strides = array<i32>} : memref<128x256xf32, #tpu.memory_space<vmem>>, vector<128x256xf32>,
    %c0_117 = arith.constant 0 : index
    %c0_118 = arith.constant 0 : index
    %93 = vector.load %arg14[%c0_117, %c0_118] : memref<128x256xf32, #tpu.memory_space<vmem>>, vector<128x256xf32>
    %c1_119 = arith.constant 1 : index
    %c0_120 = arith.constant 0 : index
    %94 = vector.load %arg11[%c1_119, %c0_120] : memref<8x256xf32, #tpu.memory_space<vmem>>, vector<1x256xf32>
    %95 = vector.broadcast %94 : vector<1x256xf32> to vector<128x256xf32>
    %96 = arith.addf %93, %95 : vector<128x256xf32>
    %cst_121 = arith.constant 0.000000e+00 : f32
    %97 = vector.broadcast %cst_121 : f32 to vector<128x256xf32>
    %98 = arith.maximumf %96, %97 : vector<128x256xf32>
    %99 = arith.truncf %98 : vector<128x256xf32> to vector<128x256xbf16>
    %c0_122 = arith.constant 0 : index
    %c0_123 = arith.constant 0 : index
    %100 = vector.load %arg6[%c0_122, %c0_123] : memref<48x128xbf16, #tpu.memory_space<vmem>>, vector<48x128xbf16>
    %cst_124 = arith.constant dense<0.000000e+00> : vector<48x256xf32>
    %101 = tpu.matmul %100, %99, %cst_124 {dimension_numbers = #tpu.dot_dimension_numbers<[1], [0], [0], [1], [0, 0, 1, 1], [], []>} : vector<48x128xbf16>, vector<128x256xbf16>, vector<48x256xf32> -> vector<48x256xf32>
    %102 = arith.truncf %101 : vector<48x256xf32> to vector<48x256xbf16>
    %c0_125 = arith.constant 0 : index
    %c0_126 = arith.constant 0 : index
    %103 = vector.load %arg7[%c0_125, %c0_126] : memref<256x128xbf16, #tpu.memory_space<vmem>>, vector<256x128xbf16>
    %cst_127 = arith.constant dense<0.000000e+00> : vector<48x128xf32>
    %104 = tpu.matmul %102, %103, %cst_127 {dimension_numbers = #tpu.dot_dimension_numbers<[1], [0], [0], [1], [0, 0, 1, 1], [], []>} : vector<48x256xbf16>, vector<256x128xbf16>, vector<48x128xf32> -> vector<48x128xf32>
    %105 = arith.truncf %104 : vector<48x128xf32> to vector<48x128xbf16>
    %106 = vector.extract_strided_slice %105 {offsets = [0, 0], sizes = [8, 128], strides = [1, 1]} : vector<48x128xbf16> to vector<8x128xbf16>
    %c0_128 = arith.constant 0 : index
    %c0_129 = arith.constant 0 : index
    %c0_130 = arith.constant 0 : index
    %107 = vector.load %arg8[%c0_128, %c0_129, %c0_130] : memref<6x128x128xbf16, #tpu.memory_space<vmem>>, vector<1x128x128xbf16>
    %108 = vector.shape_cast %107 : vector<1x128x128xbf16> to vector<128x128xbf16>
    %cst_131 = arith.constant dense<0.000000e+00> : vector<8x128xf32>
    %109 = tpu.matmul %106, %108, %cst_131 {dimension_numbers = #tpu.dot_dimension_numbers<[1], [0], [0], [1], [0, 0, 1, 1], [], []>} : vector<8x128xbf16>, vector<128x128xbf16>, vector<8x128xf32> -> vector<8x128xf32>
    %110 = vector.extract_strided_slice %105 {offsets = [8, 0], sizes = [8, 128], strides = [1, 1]} : vector<48x128xbf16> to vector<8x128xbf16>
    %c1_132 = arith.constant 1 : index
    %c0_133 = arith.constant 0 : index
    %c0_134 = arith.constant 0 : index
    %111 = vector.load %arg8[%c1_132, %c0_133, %c0_134] : memref<6x128x128xbf16, #tpu.memory_space<vmem>>, vector<1x128x128xbf16>
    %112 = vector.shape_cast %111 : vector<1x128x128xbf16> to vector<128x128xbf16>
    %cst_135 = arith.constant dense<0.000000e+00> : vector<8x128xf32>
    %113 = tpu.matmul %110, %112, %cst_135 {dimension_numbers = #tpu.dot_dimension_numbers<[1], [0], [0], [1], [0, 0, 1, 1], [], []>} : vector<8x128xbf16>, vector<128x128xbf16>, vector<8x128xf32> -> vector<8x128xf32>
    %114 = arith.addf %109, %113 : vector<8x128xf32>
    %115 = vector.extract_strided_slice %105 {offsets = [16, 0], sizes = [8, 128], strides = [1, 1]} : vector<48x128xbf16> to vector<8x128xbf16>
    %c2_136 = arith.constant 2 : index
    %c0_137 = arith.constant 0 : index
    %c0_138 = arith.constant 0 : index
    %116 = vector.load %arg8[%c2_136, %c0_137, %c0_138] : memref<6x128x128xbf16, #tpu.memory_space<vmem>>, vector<1x128x128xbf16>
    %117 = vector.shape_cast %116 : vector<1x128x128xbf16> to vector<128x128xbf16>
    %cst_139 = arith.constant dense<0.000000e+00> : vector<8x128xf32>
    %118 = tpu.matmul %115, %117, %cst_139 {dimension_numbers = #tpu.dot_dimension_numbers<[1], [0], [0], [1], [0, 0, 1, 1], [], []>} : vector<8x128xbf16>, vector<128x128xbf16>, vector<8x128xf32> -> vector<8x128xf32>
    %119 = arith.addf %114, %118 : vector<8x128xf32>
    %120 = vector.extract_strided_slice %105 {offsets = [24, 0], sizes = [8, 128], strides = [1, 1]} : vector<48x128xbf16> to vector<8x128xbf16>
    %c3_140 = arith.constant 3 : index
    %c0_141 = arith.constant 0 : index
    %c0_142 = arith.constant 0 : index
    %121 = vector.load %arg8[%c3_140, %c0_141, %c0_142] : memref<6x128x128xbf16, #tpu.memory_space<vmem>>, vector<1x128x128xbf16>
    %122 = vector.shape_cast %121 : vector<1x128x128xbf16> to vector<128x128xbf16>
    %cst_143 = arith.constant dense<0.000000e+00> : vector<8x128xf32>
    %123 = tpu.matmul %120, %122, %cst_143 {dimension_numbers = #tpu.dot_dimension_numbers<[1], [0], [0], [1], [0, 0, 1, 1], [], []>} : vector<8x128xbf16>, vector<128x128xbf16>, vector<8x128xf32> -> vector<8x128xf32>
    %124 = arith.addf %119, %123 : vector<8x128xf32>
    %125 = vector.extract_strided_slice %105 {offsets = [32, 0], sizes = [8, 128], strides = [1, 1]} : vector<48x128xbf16> to vector<8x128xbf16>
    %c4_144 = arith.constant 4 : index
    %c0_145 = arith.constant 0 : index
    %c0_146 = arith.constant 0 : index
    %126 = vector.load %arg8[%c4_144, %c0_145, %c0_146] : memref<6x128x128xbf16, #tpu.memory_space<vmem>>, vector<1x128x128xbf16>
    %127 = vector.shape_cast %126 : vector<1x128x128xbf16> to vector<128x128xbf16>
    %cst_147 = arith.constant dense<0.000000e+00> : vector<8x128xf32>
    %128 = tpu.matmul %125, %127, %cst_147 {dimension_numbers = #tpu.dot_dimension_numbers<[1], [0], [0], [1], [0, 0, 1, 1], [], []>} : vector<8x128xbf16>, vector<128x128xbf16>, vector<8x128xf32> -> vector<8x128xf32>
    %129 = arith.addf %124, %128 : vector<8x128xf32>
    %130 = vector.extract_strided_slice %105 {offsets = [40, 0], sizes = [8, 128], strides = [1, 1]} : vector<48x128xbf16> to vector<8x128xbf16>
    %c5 = arith.constant 5 : index
    %c0_148 = arith.constant 0 : index
    %c0_149 = arith.constant 0 : index
    %131 = vector.load %arg8[%c5, %c0_148, %c0_149] : memref<6x128x128xbf16, #tpu.memory_space<vmem>>, vector<1x128x128xbf16>
    %132 = vector.shape_cast %131 : vector<1x128x128xbf16> to vector<128x128xbf16>
    %cst_150 = arith.constant dense<0.000000e+00> : vector<8x128xf32>
    %133 = tpu.matmul %130, %132, %cst_150 {dimension_numbers = #tpu.dot_dimension_numbers<[1], [0], [0], [1], [0, 0, 1, 1], [], []>} : vector<8x128xbf16>, vector<128x128xbf16>, vector<8x128xf32> -> vector<8x128xf32>
    %134 = arith.addf %129, %133 : vector<8x128xf32>
    %c2_151 = arith.constant 2 : index
    %c0_152 = arith.constant 0 : index
    %135 = vector.load %arg11[%c2_151, %c0_152] : memref<8x256xf32, #tpu.memory_space<vmem>>, vector<1x128xf32>
    %136 = vector.broadcast %135 : vector<1x128xf32> to vector<8x128xf32>
    %137 = arith.addf %134, %136 : vector<8x128xf32>
    %138 = arith.truncf %137 : vector<8x128xf32> to vector<8x128xbf16>
    %c0_153 = arith.constant 0 : index
    %c0_154 = arith.constant 0 : index
    %139 = vector.load %arg9[%c0_153, %c0_154] : memref<128x128xbf16, #tpu.memory_space<vmem>>, vector<128x128xbf16>
    %cst_155 = arith.constant dense<0.000000e+00> : vector<8x128xf32>
    %140 = tpu.matmul %138, %139, %cst_155 {dimension_numbers = #tpu.dot_dimension_numbers<[1], [0], [0], [1], [0, 0, 1, 1], [], []>} : vector<8x128xbf16>, vector<128x128xbf16>, vector<8x128xf32> -> vector<8x128xf32>
    %c3_156 = arith.constant 3 : index
    %c0_157 = arith.constant 0 : index
    %141 = vector.load %arg11[%c3_156, %c0_157] : memref<8x256xf32, #tpu.memory_space<vmem>>, vector<1x128xf32>
    %142 = vector.broadcast %141 : vector<1x128xf32> to vector<8x128xf32>
    %143 = arith.addf %140, %142 : vector<8x128xf32>
    %144 = arith.truncf %143 : vector<8x128xf32> to vector<8x128xbf16>
    %c0_158 = arith.constant 0 : index
    %c0_159 = arith.constant 0 : index
    %145 = vector.load %arg10[%c0_158, %c0_159] : memref<128x128xbf16, #tpu.memory_space<vmem>>, vector<128x128xbf16>
    %cst_160 = arith.constant dense<0.000000e+00> : vector<8x128xf32>
    %146 = tpu.matmul %144, %145, %cst_160 {dimension_numbers = #tpu.dot_dimension_numbers<[1], [0], [0], [1], [0, 0, 1, 1], [], []>} : vector<8x128xbf16>, vector<128x128xbf16>, vector<8x128xf32> -> vector<8x128xf32>
    %c4_161 = arith.constant 4 : index
    %c0_162 = arith.constant 0 : index
    %147 = vector.load %arg11[%c4_161, %c0_162] : memref<8x256xf32, #tpu.memory_space<vmem>>, vector<1x128xf32>
    %148 = vector.broadcast %147 : vector<1x128xf32> to vector<8x128xf32>
    %149 = arith.addf %146, %148 : vector<8x128xf32>
    %c0_163 = arith.constant 0 : index
    %c0_164 = arith.constant 0 : index
    %150 = vector.load %arg12[%c0_163, %c0_164] : memref<8x128xf32, #tpu.memory_space<vmem>>, vector<8x128xf32>
    tpu.vector_store %arg12[%c0_163, %c0_164], %149 {strides = array<i32>} : memref<8x128xf32, #tpu.memory_space<vmem>>, vector<8x128xf32>,
    return
  }
  func.func @transform_0(%arg0: i32) -> (i32, i32, i32) {
    %c0_i32 = arith.constant 0 : i32
    %c0_i32_0 = arith.constant 0 : i32
    %c0_i32_1 = arith.constant 0 : i32
    return %arg0, %c0_i32, %c0_i32_0 : i32, i32, i32
  }
  func.func @transform_1(%arg0: i32) -> (i32, i32, i32) {
    %c0_i32 = arith.constant 0 : i32
    %c0_i32_0 = arith.constant 0 : i32
    %c0_i32_1 = arith.constant 0 : i32
    %c0_i32_2 = arith.constant 0 : i32
    return %c0_i32, %c0_i32_0, %c0_i32_1 : i32, i32, i32
  }
  func.func @transform_2(%arg0: i32) -> (i32, i32) {
    %c0_i32 = arith.constant 0 : i32
    %c0_i32_0 = arith.constant 0 : i32
    %c0_i32_1 = arith.constant 0 : i32
    return %c0_i32, %c0_i32_0 : i32, i32
  }
  func.func @transform_3(%arg0: i32) -> (i32, i32) {
    %c0_i32 = arith.constant 0 : i32
    %c0_i32_0 = arith.constant 0 : i32
    %c0_i32_1 = arith.constant 0 : i32
    return %c0_i32, %c0_i32_0 : i32, i32
  }
  func.func @transform_4(%arg0: i32) -> (i32, i32, i32) {
    %c0_i32 = arith.constant 0 : i32
    %c0_i32_0 = arith.constant 0 : i32
    %c0_i32_1 = arith.constant 0 : i32
    %c0_i32_2 = arith.constant 0 : i32
    return %c0_i32, %c0_i32_0, %c0_i32_1 : i32, i32, i32
  }
  func.func @transform_5(%arg0: i32) -> (i32, i32) {
    %c0_i32 = arith.constant 0 : i32
    %c0_i32_0 = arith.constant 0 : i32
    %c0_i32_1 = arith.constant 0 : i32
    return %c0_i32, %c0_i32_0 : i32, i32
  }
  func.func @transform_6(%arg0: i32) -> (i32, i32) {
    %c0_i32 = arith.constant 0 : i32
    %c0_i32_0 = arith.constant 0 : i32
    %c0_i32_1 = arith.constant 0 : i32
    return %c0_i32, %c0_i32_0 : i32, i32
  }
  func.func @transform_7(%arg0: i32) -> (i32, i32, i32) {
    %c0_i32 = arith.constant 0 : i32
    %c0_i32_0 = arith.constant 0 : i32
    %c0_i32_1 = arith.constant 0 : i32
    %c0_i32_2 = arith.constant 0 : i32
    return %c0_i32, %c0_i32_0, %c0_i32_1 : i32, i32, i32
  }
  func.func @transform_8(%arg0: i32) -> (i32, i32) {
    %c0_i32 = arith.constant 0 : i32
    %c0_i32_0 = arith.constant 0 : i32
    %c0_i32_1 = arith.constant 0 : i32
    return %c0_i32, %c0_i32_0 : i32, i32
  }
  func.func @transform_9(%arg0: i32) -> (i32, i32) {
    %c0_i32 = arith.constant 0 : i32
    %c0_i32_0 = arith.constant 0 : i32
    %c0_i32_1 = arith.constant 0 : i32
    return %c0_i32, %c0_i32_0 : i32, i32
  }
  func.func @transform_10(%arg0: i32) -> (i32, i32) {
    %c0_i32 = arith.constant 0 : i32
    %c0_i32_0 = arith.constant 0 : i32
    %c0_i32_1 = arith.constant 0 : i32
    return %c0_i32, %c0_i32_0 : i32, i32
  }
  func.func @transform_11(%arg0: i32) -> (i32, i32) {
    %c0_i32 = arith.constant 0 : i32
    %c0_i32_0 = arith.constant 0 : i32
    return %arg0, %c0_i32 : i32, i32
  }
}

</mosaic_0001>

<llo_original>
// kernel: lenet_forward.1
$region0: #{lenet_forward.1}
  #allocation0 [shape = 'u32[]', space=smem, size = 0x4, offset = 0x4, fixed_abs, tag = 'smem constant byte address 0x4 - core index']
  #allocation1 [shape = 'u32[72,128]{1,0:T(1,128)}', space=vmem, size = 0x9000, scoped, tag = 'internal scratch']
  #allocation2 [shape = 'f32[256,256]{1,0:T(8,128)}', space=vmem, size = 0x40000, scoped, tag = 'scratch operand']
  #allocation3 [shape = 'f32[128,256]{1,0:T(8,128)}', space=vmem, size = 0x20000, scoped, tag = 'scratch operand']
  #allocation4 [shape = 'bf16[8,24,128]{2,1,0:T(8,128)(2,1)}', space=vmem, size = 0xc000, scoped, tag = 'scratch operand']
  %s0 = inlined_call_operand.vmem [shape: bf16[8,36,128], index: 0, kind: input, shape index: {}]
  %s1 = inlined_call_operand.vmem [shape: bf16[5,128,256], index: 1, kind: input, shape index: {}]
  %s2 = inlined_call_operand.hbm [shape: bf16[128,256], index: 2, kind: input, shape index: {}]
  %s3 = inlined_call_operand.hbm [shape: bf16[256,128], index: 3, kind: input, shape index: {}]
  %s4 = inlined_call_operand.hbm [shape: bf16[5,128,256], index: 4, kind: input, shape index: {}]
  %s5 = inlined_call_operand.hbm [shape: bf16[48,128], index: 5, kind: input, shape index: {}]
  %s6 = inlined_call_operand.hbm [shape: bf16[256,128], index: 6, kind: input, shape index: {}]
  %s7 = inlined_call_operand.vmem [shape: bf16[6,128,128], index: 7, kind: input, shape index: {}]
  %s8 = inlined_call_operand.hbm [shape: bf16[128,128], index: 8, kind: input, shape index: {}]
  %s9 = inlined_call_operand.hbm [shape: bf16[128,128], index: 9, kind: input, shape index: {}]
  %s10 = inlined_call_operand.vmem [shape: f32[8,256], index: 10, kind: input, shape index: {}]
  %s11 = inlined_call_operand.vmem [shape: f32[8,128], index: 11, kind: output, shape index: {}]
  %s12 = sld [smem:[#allocation0]]
  $region82: #{lenet_forward.1} parent=0
    _
  %s14 = ssub.s32 1, %s12
  %s15 = scalar_select 0, %s14, %s12
  $region1: #{lenet_forward.1} parent=0
    #allocation5 [shape = 'u8[65536]{0}', space=vmem, size = 0x10000, scoped, tag = 'input window, operand 2, single buffered']
    #allocation6 [shape = 's32[1]{0}', space=sflag, size = 0x4, scoped, tag = 'scoped memory for lenet_forward.1']
    #allocation7 [shape = 'u8[65536]{0}', space=vmem, size = 0x10000, scoped, tag = 'input window, operand 3, single buffered']
    #allocation8 [shape = 's32[1]{0}', space=sflag, size = 0x4, scoped, tag = 'scoped memory for lenet_forward.1']
    #allocation9 [shape = 'u8[327680]{0}', space=vmem, size = 0x50000, scoped, tag = 'input window, operand 4, single buffered']
    #allocation10 [shape = 'u8[12288]{0}', space=vmem, size = 0x3000, scoped, tag = 'input window, operand 5, single buffered']
    #allocation11 [shape = 's32[1]{0}', space=sflag, size = 0x4, scoped, tag = 'scoped memory for lenet_forward.1']
    #allocation12 [shape = 'u8[65536]{0}', space=vmem, size = 0x10000, scoped, tag = 'input window, operand 6, single buffered']
    #allocation13 [shape = 'u8[32768]{0}', space=vmem, size = 0x8000, scoped, tag = 'input window, operand 8, single buffered']
    #allocation14 [shape = 's32[1]{0}', space=sflag, size = 0x4, scoped, tag = 'scoped memory for lenet_forward.1']
    #allocation15 [shape = 'u8[32768]{0}', space=vmem, size = 0x8000, scoped, tag = 'input window, operand 9, single buffered']
    %16 = vsyncpa [#allocation6], 0
    %17 = vsyncpa [#allocation8], 0
    %18 = vsyncpa [#allocation11], 0
    %19 = vsyncpa [#allocation14], 0
    // Predicated region
    $region2: #{lenet_forward.1} parent=1 // pred_check
      _
    $region3: #{lenet_forward.1} parent=1 // pred_check_branch
      %21 = sbr.rel (0) target = $region5
    $region4: #{lenet_forward.1} parent=1 // pred_region
      _
    $region5: #{lenet_forward.1} parent=1 // pred_fallthru
      _
    // Predicated region
    $region6: #{lenet_forward.1} parent=1 // pred_check
      _
    $region7: #{lenet_forward.1} parent=1 // pred_check_branch
      %23 = sbr.rel (0) target = $region9
    $region8: #{lenet_forward.1} parent=1 // pred_region
      _
    $region9: #{lenet_forward.1} parent=1 // pred_fallthru
      _
    // Predicated region
    $region10: #{lenet_forward.1} parent=1 // pred_check
      _
    $region11: #{lenet_forward.1} parent=1 // pred_check_branch
      %25 = sbr.rel (0) target = $region13
    $region12: #{lenet_forward.1} parent=1 // pred_region
      %27 = vsyncadd [#allocation6], 0
      %s28 = sshll.u32 %s2, 4
      %s29 = int_to_ptr.hbm [resolvable:$true] %s28
      %s30 = sshll.u32 [#allocation5], 4
      %s31 = int_to_ptr.vmem [resolvable:$true] %s30
      %36 = dma.hbm_to_vmem [thread:$0]  %s29, 2048, %s31, [#allocation6], 128, 128, 8
    $region13: #{lenet_forward.1} parent=1 // pred_fallthru
      _
    // Predicated region
    $region14: #{lenet_forward.1} parent=1 // pred_check
      _
    $region15: #{lenet_forward.1} parent=1 // pred_check_branch
      %38 = sbr.rel (0) target = $region17
    $region16: #{lenet_forward.1} parent=1 // pred_region
      %40 = vsyncadd [#allocation8], 0
      %s41 = sshll.u32 %s3, 4
      %s42 = int_to_ptr.hbm [resolvable:$true] %s41
      %s43 = sshll.u32 [#allocation7], 4
      %s44 = int_to_ptr.vmem [resolvable:$true] %s43
      %49 = dma.hbm_to_vmem [thread:$0]  %s42, 2048, %s44, [#allocation8], 64, 64, 4
    $region17: #{lenet_forward.1} parent=1 // pred_fallthru
      _
    // Predicated region
    $region18: #{lenet_forward.1} parent=1 // pred_check
      _
    $region19: #{lenet_forward.1} parent=1 // pred_check_branch
      %51 = sbr.rel (0) target = $region21
    $region20: #{lenet_forward.1} parent=1 // pred_region
      %53 = vsyncadd [#allocation8], 0
      %s54 = sshll.u32 %s4, 4
      %s55 = int_to_ptr.hbm [resolvable:$true] %s54
      %s56 = sshll.u32 [#allocation9], 4
      %s57 = int_to_ptr.vmem [resolvable:$true] %s56
      %62 = dma.hbm_to_vmem [thread:$0]  %s55, 10240, %s57, [#allocation8], 128, 128, 8
    $region21: #{lenet_forward.1} parent=1 // pred_fallthru
      _
    // Predicated region
    $region22: #{lenet_forward.1} parent=1 // pred_check
      _
    $region23: #{lenet_forward.1} parent=1 // pred_check_branch
      %64 = sbr.rel (0) target = $region25
    $region24: #{lenet_forward.1} parent=1 // pred_region
      %66 = vsyncadd [#allocation11], 0
      %s67 = sshll.u32 %s5, 4
      %s68 = int_to_ptr.hbm [resolvable:$true] %s67
      %s69 = sshll.u32 [#allocation10], 4
      %s70 = int_to_ptr.vmem [resolvable:$true] %s69
      %75 = dma.hbm_to_vmem [thread:$0]  %s68, 384, %s70, [#allocation11], 64, 64, 4
    $region25: #{lenet_forward.1} parent=1 // pred_fallthru
      _
    // Predicated region
    $region26: #{lenet_forward.1} parent=1 // pred_check
      _
    $region27: #{lenet_forward.1} parent=1 // pred_check_branch
      %77 = sbr.rel (0) target = $region29
    $region28: #{lenet_forward.1} parent=1 // pred_region
      %79 = vsyncadd [#allocation11], 0
      %s80 = sshll.u32 %s6, 4
      %s81 = int_to_ptr.hbm [resolvable:$true] %s80
      %s82 = sshll.u32 [#allocation12], 4
      %s83 = int_to_ptr.vmem [resolvable:$true] %s82
      %88 = dma.hbm_to_vmem [thread:$0]  %s81, 2048, %s83, [#allocation11], 64, 64, 4
    $region29: #{lenet_forward.1} parent=1 // pred_fallthru
      _
    // Predicated region
    $region30: #{lenet_forward.1} parent=1 // pred_check
      _
    $region31: #{lenet_forward.1} parent=1 // pred_check_branch
      %90 = sbr.rel (0) target = $region33
    $region32: #{lenet_forward.1} parent=1 // pred_region
      _
    $region33: #{lenet_forward.1} parent=1 // pred_fallthru
      _
    // Predicated region
    $region34: #{lenet_forward.1} parent=1 // pred_check
      _
    $region35: #{lenet_forward.1} parent=1 // pred_check_branch
      %92 = sbr.rel (0) target = $region37
    $region36: #{lenet_forward.1} parent=1 // pred_region
      %94 = vsyncadd [#allocation14], 0
      %s95 = sshll.u32 %s8, 4
      %s96 = int_to_ptr.hbm [resolvable:$true] %s95
      %s97 = sshll.u32 [#allocation13], 4
      %s98 = int_to_ptr.vmem [resolvable:$true] %s97
      %103 = dma.hbm_to_vmem [thread:$0]  %s96, 1024, %s98, [#allocation14], 64, 64, 4
    $region37: #{lenet_forward.1} parent=1 // pred_fallthru
      _
    // Predicated region
    $region38: #{lenet_forward.1} parent=1 // pred_check
      _
    $region39: #{lenet_forward.1} parent=1 // pred_check_branch
      %105 = sbr.rel (0) target = $region41
    $region40: #{lenet_forward.1} parent=1 // pred_region
      %107 = vsyncadd [#allocation14], 0
      %s108 = sshll.u32 %s9, 4
      %s109 = int_to_ptr.hbm [resolvable:$true] %s108
      %s110 = sshll.u32 [#allocation15], 4
      %s111 = int_to_ptr.vmem [resolvable:$true] %s110
      %116 = dma.hbm_to_vmem [thread:$0]  %s109, 1024, %s111, [#allocation14], 64, 64, 4
    $region41: #{lenet_forward.1} parent=1 // pred_fallthru
      _
    // Predicated region
    $region42: #{lenet_forward.1} parent=1 // pred_check
      _
    $region43: #{lenet_forward.1} parent=1 // pred_check_branch
      %118 = sbr.rel (0) target = $region45
    $region44: #{lenet_forward.1} parent=1 // pred_region
      _
    $region45: #{lenet_forward.1} parent=1 // pred_fallthru
      _
    // Predicated region
    $region46: #{lenet_forward.1} parent=1 // pred_check
      _
    $region47: #{lenet_forward.1} parent=1 // pred_check_branch
      %120 = sbr.rel (0) target = $region49
    $region48: #{lenet_forward.1} parent=1 // pred_region
      %122 = dma.done [#allocation6], 2048
    $region49: #{lenet_forward.1} parent=1 // pred_fallthru
      _
    // Predicated region
    $region50: #{lenet_forward.1} parent=1 // pred_check
      _
    $region51: #{lenet_forward.1} parent=1 // pred_check_branch
      %124 = sbr.rel (0) target = $region53
    $region52: #{lenet_forward.1} parent=1 // pred_region
      %126 = dma.done [#allocation8], 2048
    $region53: #{lenet_forward.1} parent=1 // pred_fallthru
      _
    // Predicated region
    $region54: #{lenet_forward.1} parent=1 // pred_check
      _
    $region55: #{lenet_forward.1} parent=1 // pred_check_branch
      %128 = sbr.rel (0) target = $region57
    $region56: #{lenet_forward.1} parent=1 // pred_region
      %130 = dma.done [#allocation8], 10240
    $region57: #{lenet_forward.1} parent=1 // pred_fallthru
      _
    // Predicated region
    $region58: #{lenet_forward.1} parent=1 // pred_check
      _
    $region59: #{lenet_forward.1} parent=1 // pred_check_branch
      %132 = sbr.rel (0) target = $region61
    $region60: #{lenet_forward.1} parent=1 // pred_region
      %134 = dma.done [#allocation11], 384
    $region61: #{lenet_forward.1} parent=1 // pred_fallthru
      _
    // Predicated region
    $region62: #{lenet_forward.1} parent=1 // pred_check
      _
    $region63: #{lenet_forward.1} parent=1 // pred_check_branch
      %136 = sbr.rel (0) target = $region65
    $region64: #{lenet_forward.1} parent=1 // pred_region
      %138 = dma.done [#allocation11], 2048
    $region65: #{lenet_forward.1} parent=1 // pred_fallthru
      _
    // Predicated region
    $region66: #{lenet_forward.1} parent=1 // pred_check
      _
    $region67: #{lenet_forward.1} parent=1 // pred_check_branch
      %140 = sbr.rel (0) target = $region69
    $region68: #{lenet_forward.1} parent=1 // pred_region
      %142 = dma.done [#allocation14], 1024
    $region69: #{lenet_forward.1} parent=1 // pred_fallthru
      _
    // Predicated region
    $region70: #{lenet_forward.1} parent=1 // pred_check
      _
    $region71: #{lenet_forward.1} parent=1 // pred_check_branch
      %144 = sbr.rel (0) target = $region73
    $region72: #{lenet_forward.1} parent=1 // pred_region
      %146 = dma.done [#allocation14], 1024
    $region73: #{lenet_forward.1} parent=1 // pred_fallthru
      _
    %v148 = vld [vmem:[%s0] sm:$0xf]
    %v149 = vld [vmem:[%s0 + $0x4] sm:$0xf]
    %v150 = vld [vmem:[%s0 + $0x8] sm:$0xf]
    %v151 = vld [vmem:[%s0 + $0xc] sm:$0xf]
    %v152 = vld [vmem:[%s0 + $0x14] sm:$0xf]
    %v153 = vld [vmem:[%s0 + $0x18] sm:$0xf]
    %v154 = vld [vmem:[%s0 + $0x1c] sm:$0xf]
    %v155 = vld [vmem:[%s0 + $0x20] sm:$0xf]
    %v156 = vld [vmem:[%s0 + $0x28] sm:$0xf]
    %v157 = vld [vmem:[%s0 + $0x2c] sm:$0xf]
    %v158 = vld [vmem:[%s0 + $0x30] sm:$0xf]
    %v159 = vld [vmem:[%s0 + $0x34] sm:$0xf]
    %v160 = vld [vmem:[%s0 + $0x3c] sm:$0xf]
    %v161 = vld [vmem:[%s0 + $0x40] sm:$0xf]
    %v162 = vld [vmem:[%s0 + $0x44] sm:$0xf]
    %v163 = vld [vmem:[%s0 + $0x48] sm:$0xf]
    %v164 = vld [vmem:[%s0 + $0x50] sm:$0xf]
    %v165 = vld [vmem:[%s0 + $0x54] sm:$0xf]
    %v166 = vld [vmem:[%s0 + $0x58] sm:$0xf]
    %v167 = vld [vmem:[%s0 + $0x5c] sm:$0xf]
    %v168 = vld [vmem:[%s0 + $0x64] sm:$0xf]
    %v169 = vld [vmem:[%s0 + $0x68] sm:$0xf]
    %v170 = vld [vmem:[%s0 + $0x6c] sm:$0xf]
    %v171 = vld [vmem:[%s0 + $0x70] sm:$0xf]
    %v172 = vld [vmem:[%s0 + $0x78] sm:$0xf]
    %v173 = vld [vmem:[%s0 + $0x7c] sm:$0xf]
    %v174 = vld [vmem:[%s0 + $0x80] sm:$0xf]
    %v175 = vld [vmem:[%s0 + $0x84] sm:$0xf]
    %v176 = vld [vmem:[%s0 + $0x8c] sm:$0xf]
    %v177 = vld [vmem:[%s0 + $0x90] sm:$0xf]
    %v178 = vld [vmem:[%s0 + $0x94] sm:$0xf]
    %v179 = vld [vmem:[%s0 + $0x98] sm:$0xf]
    %v180 = vld [vmem:[%s1] sm:$0xff]
    %v181 = vld [vmem:[%s1 + $0x8] sm:$0xff]
    %v182 = vld [vmem:[%s1 + $0x10] sm:$0xff]
    %v183 = vld [vmem:[%s1 + $0x18] sm:$0xff]
    %v184 = vld [vmem:[%s1 + $0x20] sm:$0xff]
    %v185 = vld [vmem:[%s1 + $0x28] sm:$0xff]
    %v186 = vld [vmem:[%s1 + $0x30] sm:$0xff]
    %v187 = vld [vmem:[%s1 + $0x38] sm:$0xff]
    %v188 = vld [vmem:[%s1 + $0x40] sm:$0xff]
    %v189 = vld [vmem:[%s1 + $0x48] sm:$0xff]
    %v190 = vld [vmem:[%s1 + $0x50] sm:$0xff]
    %v191 = vld [vmem:[%s1 + $0x58] sm:$0xff]
    %v192 = vld [vmem:[%s1 + $0x60] sm:$0xff]
    %v193 = vld [vmem:[%s1 + $0x68] sm:$0xff]
    %v194 = vld [vmem:[%s1 + $0x70] sm:$0xff]
    %v195 = vld [vmem:[%s1 + $0x78] sm:$0xff]
    %v228 = vunpack.c.l.b16 %v148
    %v229 = vunpack.c.l.b16 %v149
    %v230 = vunpack.c.l.b16 %v150
    %v231 = vunpack.c.l.b16 %v151
    %v232 = vunpack.c.l.b16 %v152
    %v233 = vunpack.c.l.b16 %v153
    %v234 = vunpack.c.l.b16 %v154
    %v235 = vunpack.c.l.b16 %v155
    %v236 = vunpack.c.l.b16 %v156
    %v237 = vunpack.c.l.b16 %v157
    %v238 = vunpack.c.l.b16 %v158
    %v239 = vunpack.c.l.b16 %v159
    %v240 = vunpack.c.l.b16 %v160
    %v241 = vunpack.c.l.b16 %v161
    %v242 = vunpack.c.l.b16 %v162
    %v243 = vunpack.c.l.b16 %v163
    %v244 = vunpack.c.l.b16 %v164
    %v245 = vunpack.c.l.b16 %v165
    %v246 = vunpack.c.l.b16 %v166
    %v247 = vunpack.c.l.b16 %v167
    %v248 = vunpack.c.l.b16 %v168
    %v249 = vunpack.c.l.b16 %v169
    %v250 = vunpack.c.l.b16 %v170
    %v251 = vunpack.c.l.b16 %v171
    %v252 = vunpack.c.l.b16 %v172
    %v253 = vunpack.c.l.b16 %v173
    %v254 = vunpack.c.l.b16 %v174
    %v255 = vunpack.c.l.b16 %v175
    %v256 = vunpack.c.l.b16 %v176
    %v257 = vunpack.c.l.b16 %v177
    %v258 = vunpack.c.l.b16 %v178
    %v259 = vunpack.c.l.b16 %v179
    %v260 = vpack.c.b16 %v229, %v228
    %v261 = vpack.c.b16 %v231, %v230
    %v262 = vpack.c.b16 %v233, %v232
    %v263 = vpack.c.b16 %v235, %v234
    %v264 = vpack.c.b16 %v237, %v236
    %v265 = vpack.c.b16 %v239, %v238
    %v266 = vpack.c.b16 %v241, %v240
    %v267 = vpack.c.b16 %v243, %v242
    %v268 = vpack.c.b16 %v245, %v244
    %v269 = vpack.c.b16 %v247, %v246
    %v270 = vpack.c.b16 %v249, %v248
    %v271 = vpack.c.b16 %v251, %v250
    %v272 = vpack.c.b16 %v253, %v252
    %v273 = vpack.c.b16 %v255, %v254
    %v274 = vpack.c.b16 %v257, %v256
    %v275 = vpack.c.b16 %v259, %v258
    %v308 = vunpack.c.l.b16 %v180
    %v309 = vunpack.c.h.b16 %v180
    %v310 = vunpack.c.l.b16 %v181
    %v311 = vunpack.c.h.b16 %v181
    %v312 = vunpack.c.l.b16 %v182
    %v313 = vunpack.c.h.b16 %v182
    %v314 = vunpack.c.l.b16 %v183
    %v315 = vunpack.c.h.b16 %v183
    %v316 = vunpack.c.l.b16 %v184
    %v317 = vunpack.c.h.b16 %v184
    %v318 = vunpack.c.l.b16 %v185
    %v319 = vunpack.c.h.b16 %v185
    %v320 = vunpack.c.l.b16 %v186
    %v321 = vunpack.c.h.b16 %v186
    %v322 = vunpack.c.l.b16 %v187
    %v323 = vunpack.c.h.b16 %v187
    %v324 = vunpack.c.l.b16 %v188
    %v325 = vunpack.c.h.b16 %v188
    %v326 = vunpack.c.l.b16 %v189
    %v327 = vunpack.c.h.b16 %v189
    %v328 = vunpack.c.l.b16 %v190
    %v329 = vunpack.c.h.b16 %v190
    %v330 = vunpack.c.l.b16 %v191
    %v331 = vunpack.c.h.b16 %v191
    %v332 = vunpack.c.l.b16 %v192
    %v333 = vunpack.c.h.b16 %v192
    %v334 = vunpack.c.l.b16 %v193
    %v335 = vunpack.c.h.b16 %v193
    %v336 = vunpack.c.l.b16 %v194
    %v337 = vunpack.c.h.b16 %v194
    %v338 = vunpack.c.l.b16 %v195
    %v339 = vunpack.c.h.b16 %v195
    %v340 = vpack.c.b16 %v310, %v308
    %v341 = vpack.c.b16 %v311, %v309
    %v342 = vpack.c.b16 %v314, %v312
    %v343 = vpack.c.b16 %v315, %v313
    %v344 = vpack.c.b16 %v318, %v316
    %v345 = vpack.c.b16 %v319, %v317
    %v346 = vpack.c.b16 %v322, %v320
    %v347 = vpack.c.b16 %v323, %v321
    %v348 = vpack.c.b16 %v326, %v324
    %v349 = vpack.c.b16 %v327, %v325
    %v350 = vpack.c.b16 %v330, %v328
    %v351 = vpack.c.b16 %v331, %v329
    %v352 = vpack.c.b16 %v334, %v332
    %v353 = vpack.c.b16 %v335, %v333
    %v354 = vpack.c.b16 %v338, %v336
    %v355 = vpack.c.b16 %v339, %v337
    %372 = vmatpush.bf16.msra.mxu0 %v354
    %373 = vmatpush.bf16.msra.mxu0 %v352
    %374 = vmatpush.bf16.msra.mxu0 %v350
    %375 = vmatpush.bf16.msra.mxu0 %v348
    %376 = vmatpush.bf16.msra.mxu0 %v346
    %377 = vmatpush.bf16.msra.mxu0 %v344
    %378 = vmatpush.bf16.msra.mxu0 %v342
    %379 = vmatpush.bf16.msra.mxu0 %v340
    %380 = vmatmul.bf16.gmra.mxu0 %v260
    %v381 = vpop.f32.mrf.mxu0
    %v382 = vadd.f32 0.0, %v381
    %v383 = vpop.f32.mrf.mxu0
    %v384 = vadd.f32 0.0, %v383
    %385 = vmatmul.bf16.gmra.mxu0 %v261
    %v386 = vpop.f32.mrf.mxu0
    %v387 = vadd.f32 0.0, %v386
    %v388 = vpop.f32.mrf.mxu0
    %v389 = vadd.f32 0.0, %v388
    %390 = vmatmul.bf16.gmra.mxu0 %v262
    %v391 = vpop.f32.mrf.mxu0
    %v392 = vadd.f32 0.0, %v391
    %v393 = vpop.f32.mrf.mxu0
    %v394 = vadd.f32 0.0, %v393
    %395 = vmatmul.bf16.gmra.mxu0 %v263
    %v396 = vpop.f32.mrf.mxu0
    %v397 = vadd.f32 0.0, %v396
    %v398 = vpop.f32.mrf.mxu0
    %v399 = vadd.f32 0.0, %v398
    %400 = vmatmul.bf16.gmra.mxu0 %v264
    %v401 = vpop.f32.mrf.mxu0
    %v402 = vadd.f32 0.0, %v401
    %v403 = vpop.f32.mrf.mxu0
    %v404 = vadd.f32 0.0, %v403
    %405 = vmatmul.bf16.gmra.mxu0 %v265
    %v406 = vpop.f32.mrf.mxu0
    %v407 = vadd.f32 0.0, %v406
    %v408 = vpop.f32.mrf.mxu0
    %v409 = vadd.f32 0.0, %v408
    %410 = vmatmul.bf16.gmra.mxu0 %v266
    %v411 = vpop.f32.mrf.mxu0
    %v412 = vadd.f32 0.0, %v411
    %v413 = vpop.f32.mrf.mxu0
    %v414 = vadd.f32 0.0, %v413
    %415 = vmatmul.bf16.gmra.mxu0 %v267
    %v416 = vpop.f32.mrf.mxu0
    %v417 = vadd.f32 0.0, %v416
    %v418 = vpop.f32.mrf.mxu0
    %v419 = vadd.f32 0.0, %v418
    %420 = vmatmul.bf16.gmra.mxu0 %v268
    %v421 = vpop.f32.mrf.mxu0
    %v422 = vadd.f32 0.0, %v421
    %v423 = vpop.f32.mrf.mxu0
    %v424 = vadd.f32 0.0, %v423
    %425 = vmatmul.bf16.gmra.mxu0 %v269
    %v426 = vpop.f32.mrf.mxu0
    %v427 = vadd.f32 0.0, %v426
    %v428 = vpop.f32.mrf.mxu0
    %v429 = vadd.f32 0.0, %v428
    %430 = vmatmul.bf16.gmra.mxu0 %v270
    %v431 = vpop.f32.mrf.mxu0
    %v432 = vadd.f32 0.0, %v431
    %v433 = vpop.f32.mrf.mxu0
    %v434 = vadd.f32 0.0, %v433
    %435 = vmatmul.bf16.gmra.mxu0 %v271
    %v436 = vpop.f32.mrf.mxu0
    %v437 = vadd.f32 0.0, %v436
    %v438 = vpop.f32.mrf.mxu0
    %v439 = vadd.f32 0.0, %v438
    %440 = vmatmul.bf16.gmra.mxu0 %v272
    %v441 = vpop.f32.mrf.mxu0
    %v442 = vadd.f32 0.0, %v441
    %v443 = vpop.f32.mrf.mxu0
    %v444 = vadd.f32 0.0, %v443
    %445 = vmatmul.bf16.gmra.mxu0 %v273
    %v446 = vpop.f32.mrf.mxu0
    %v447 = vadd.f32 0.0, %v446
    %v448 = vpop.f32.mrf.mxu0
    %v449 = vadd.f32 0.0, %v448
    %450 = vmatmul.bf16.gmra.mxu0 %v274
    %v451 = vpop.f32.mrf.mxu0
    %v452 = vadd.f32 0.0, %v451
    %v453 = vpop.f32.mrf.mxu0
    %v454 = vadd.f32 0.0, %v453
    %455 = vmatmul.bf16.gmra.mxu0 %v275
    %v456 = vpop.f32.mrf.mxu0
    %v457 = vadd.f32 0.0, %v456
    %v458 = vpop.f32.mrf.mxu0
    %v459 = vadd.f32 0.0, %v458
    %460 = vdwg.mxu0
    %461 = vmatpush.bf16.msra.mxu0 %v355
    %462 = vmatpush.bf16.msra.mxu0 %v353
    %463 = vmatpush.bf16.msra.mxu0 %v351
    %464 = vmatpush.bf16.msra.mxu0 %v349
    %465 = vmatpush.bf16.msra.mxu0 %v347
    %466 = vmatpush.bf16.msra.mxu0 %v345
    %467 = vmatpush.bf16.msra.mxu0 %v343
    %468 = vmatpush.bf16.msra.mxu0 %v341
    %469 = vmatmul.bf16.gmra.mxu0 %v260
    %v470 = vpop.f32.mrf.mxu0
    %v471 = vadd.f32 0.0, %v470
    %v472 = vpop.f32.mrf.mxu0
    %v473 = vadd.f32 0.0, %v472
    %474 = vmatmul.bf16.gmra.mxu0 %v261
    %v475 = vpop.f32.mrf.mxu0
    %v476 = vadd.f32 0.0, %v475
    %v477 = vpop.f32.mrf.mxu0
    %v478 = vadd.f32 0.0, %v477
    %479 = vmatmul.bf16.gmra.mxu0 %v262
    %v480 = vpop.f32.mrf.mxu0
    %v481 = vadd.f32 0.0, %v480
    %v482 = vpop.f32.mrf.mxu0
    %v483 = vadd.f32 0.0, %v482
    %484 = vmatmul.bf16.gmra.mxu0 %v263
    %v485 = vpop.f32.mrf.mxu0
    %v486 = vadd.f32 0.0, %v485
    %v487 = vpop.f32.mrf.mxu0
    %v488 = vadd.f32 0.0, %v487
    %489 = vmatmul.bf16.gmra.mxu0 %v264
    %v490 = vpop.f32.mrf.mxu0
    %v491 = vadd.f32 0.0, %v490
    %v492 = vpop.f32.mrf.mxu0
    %v493 = vadd.f32 0.0, %v492
    %494 = vmatmul.bf16.gmra.mxu0 %v265
    %v495 = vpop.f32.mrf.mxu0
    %v496 = vadd.f32 0.0, %v495
    %v497 = vpop.f32.mrf.mxu0
    %v498 = vadd.f32 0.0, %v497
    %499 = vmatmul.bf16.gmra.mxu0 %v266
    %v500 = vpop.f32.mrf.mxu0
    %v501 = vadd.f32 0.0, %v500
    %v502 = vpop.f32.mrf.mxu0
    %v503 = vadd.f32 0.0, %v502
    %504 = vmatmul.bf16.gmra.mxu0 %v267
    %v505 = vpop.f32.mrf.mxu0
    %v506 = vadd.f32 0.0, %v505
    %v507 = vpop.f32.mrf.mxu0
    %v508 = vadd.f32 0.0, %v507
    %509 = vmatmul.bf16.gmra.mxu0 %v268
    %v510 = vpop.f32.mrf.mxu0
    %v511 = vadd.f32 0.0, %v510
    %v512 = vpop.f32.mrf.mxu0
    %v513 = vadd.f32 0.0, %v512
    %514 = vmatmul.bf16.gmra.mxu0 %v269
    %v515 = vpop.f32.mrf.mxu0
    %v516 = vadd.f32 0.0, %v515
    %v517 = vpop.f32.mrf.mxu0
    %v518 = vadd.f32 0.0, %v517
    %519 = vmatmul.bf16.gmra.mxu0 %v270
    %v520 = vpop.f32.mrf.mxu0
    %v521 = vadd.f32 0.0, %v520
    %v522 = vpop.f32.mrf.mxu0
    %v523 = vadd.f32 0.0, %v522
    %524 = vmatmul.bf16.gmra.mxu0 %v271
    %v525 = vpop.f32.mrf.mxu0
    %v526 = vadd.f32 0.0, %v525
    %v527 = vpop.f32.mrf.mxu0
    %v528 = vadd.f32 0.0, %v527
    %529 = vmatmul.bf16.gmra.mxu0 %v272
    %v530 = vpop.f32.mrf.mxu0
    %v531 = vadd.f32 0.0, %v530
    %v532 = vpop.f32.mrf.mxu0
    %v533 = vadd.f32 0.0, %v532
    %534 = vmatmul.bf16.gmra.mxu0 %v273
    %v535 = vpop.f32.mrf.mxu0
    %v536 = vadd.f32 0.0, %v535
    %v537 = vpop.f32.mrf.mxu0
    %v538 = vadd.f32 0.0, %v537
    %539 = vmatmul.bf16.gmra.mxu0 %v274
    %v540 = vpop.f32.mrf.mxu0
    %v541 = vadd.f32 0.0, %v540
    %v542 = vpop.f32.mrf.mxu0
    %v543 = vadd.f32 0.0, %v542
    %544 = vmatmul.bf16.gmra.mxu0 %v275
    %v545 = vpop.f32.mrf.mxu0
    %v546 = vadd.f32 0.0, %v545
    %v547 = vpop.f32.mrf.mxu0
    %v548 = vadd.f32 0.0, %v547
    %549 = vdwg.mxu0
    %550 = vst [vmem:[#allocation2] sm:$0xff] %v382
    %551 = vst [vmem:[#allocation2 + $0x8] sm:$0xff] %v471
    %552 = vst [vmem:[#allocation2 + $0x10] sm:$0xff] %v384
    %553 = vst [vmem:[#allocation2 + $0x18] sm:$0xff] %v473
    %554 = vst [vmem:[#allocation2 + $0x20] sm:$0xff] %v387
    %555 = vst [vmem:[#allocation2 + $0x28] sm:$0xff] %v476
    %556 = vst [vmem:[#allocation2 + $0x30] sm:$0xff] %v389
    %557 = vst [vmem:[#allocation2 + $0x38] sm:$0xff] %v478
    %558 = vst [vmem:[#allocation2 + $0x40] sm:$0xff] %v392
    %559 = vst [vmem:[#allocation2 + $0x48] sm:$0xff] %v481
    %560 = vst [vmem:[#allocation2 + $0x50] sm:$0xff] %v394
    %561 = vst [vmem:[#allocation2 + $0x58] sm:$0xff] %v483
    %562 = vst [vmem:[#allocation2 + $0x60] sm:$0xff] %v397
    %563 = vst [vmem:[#allocation2 + $0x68] sm:$0xff] %v486
    %564 = vst [vmem:[#allocation2 + $0x70] sm:$0xff] %v399
    %565 = vst [vmem:[#allocation2 + $0x78] sm:$0xff] %v488
    %566 = vst [vmem:[#allocation2 + $0x80] sm:$0xff] %v402
    %567 = vst [vmem:[#allocation2 + $0x88] sm:$0xff] %v491
    %568 = vst [vmem:[#allocation2 + $0x90] sm:$0xff] %v404
    %569 = vst [vmem:[#allocation2 + $0x98] sm:$0xff] %v493
    %570 = vst [vmem:[#allocation2 + $0xa0] sm:$0xff] %v407
    %571 = vst [vmem:[#allocation2 + $0xa8] sm:$0xff] %v496
    %572 = vst [vmem:[#allocation2 + $0xb0] sm:$0xff] %v409
    %573 = vst [vmem:[#allocation2 + $0xb8] sm:$0xff] %v498
    %574 = vst [vmem:[#allocation2 + $0xc0] sm:$0xff] %v412
    %575 = vst [vmem:[#allocation2 + $0xc8] sm:$0xff] %v501
    %576 = vst [vmem:[#allocation2 + $0xd0] sm:$0xff] %v414
    %577 = vst [vmem:[#allocation2 + $0xd8] sm:$0xff] %v503
    %578 = vst [vmem:[#allocation2 + $0xe0] sm:$0xff] %v417
    %579 = vst [vmem:[#allocation2 + $0xe8] sm:$0xff] %v506
    %580 = vst [vmem:[#allocation2 + $0xf0] sm:$0xff] %v419
    %581 = vst [vmem:[#allocation2 + $0xf8] sm:$0xff] %v508
    %582 = vst [vmem:[#allocation2 + $0x100] sm:$0xff] %v422
    %583 = vst [vmem:[#allocation2 + $0x108] sm:$0xff] %v511
    %584 = vst [vmem:[#allocation2 + $0x110] sm:$0xff] %v424
    %585 = vst [vmem:[#allocation2 + $0x118] sm:$0xff] %v513
    %586 = vst [vmem:[#allocation2 + $0x120] sm:$0xff] %v427
    %587 = vst [vmem:[#allocation2 + $0x128] sm:$0xff] %v516
    %588 = vst [vmem:[#allocation2 + $0x130] sm:$0xff] %v429
    %589 = vst [vmem:[#allocation2 + $0x138] sm:$0xff] %v518
    %590 = vst [vmem:[#allocation2 + $0x140] sm:$0xff] %v432
    %591 = vst [vmem:[#allocation2 + $0x148] sm:$0xff] %v521
    %592 = vst [vmem:[#allocation2 + $0x150] sm:$0xff] %v434
    %593 = vst [vmem:[#allocation2 + $0x158] sm:$0xff] %v523
    %594 = vst [vmem:[#allocation2 + $0x160] sm:$0xff] %v437
    %595 = vst [vmem:[#allocation2 + $0x168] sm:$0xff] %v526
    %596 = vst [vmem:[#allocation2 + $0x170] sm:$0xff] %v439
    %597 = vst [vmem:[#allocation2 + $0x178] sm:$0xff] %v528
    %598 = vst [vmem:[#allocation2 + $0x180] sm:$0xff] %v442
    %599 = vst [vmem:[#allocation2 + $0x188] sm:$0xff] %v531
    %600 = vst [vmem:[#allocation2 + $0x190] sm:$0xff] %v444
    %601 = vst [vmem:[#allocation2 + $0x198] sm:$0xff] %v533
    %602 = vst [vmem:[#allocation2 + $0x1a0] sm:$0xff] %v447
    %603 = vst [vmem:[#allocation2 + $0x1a8] sm:$0xff] %v536
    %604 = vst [vmem:[#allocation2 + $0x1b0] sm:$0xff] %v449
    %605 = vst [vmem:[#allocation2 + $0x1b8] sm:$0xff] %v538
    %606 = vst [vmem:[#allocation2 + $0x1c0] sm:$0xff] %v452
    %607 = vst [vmem:[#allocation2 + $0x1c8] sm:$0xff] %v541
    %608 = vst [vmem:[#allocation2 + $0x1d0] sm:$0xff] %v454
    %609 = vst [vmem:[#allocation2 + $0x1d8] sm:$0xff] %v543
    %610 = vst [vmem:[#allocation2 + $0x1e0] sm:$0xff] %v457
    %611 = vst [vmem:[#allocation2 + $0x1e8] sm:$0xff] %v546
    %612 = vst [vmem:[#allocation2 + $0x1f0] sm:$0xff] %v459
    %613 = vst [vmem:[#allocation2 + $0x1f8] sm:$0xff] %v548
    %v614 = vld [vmem:[%s0] sm:$0xf]
    %v615 = vld [vmem:[%s0 + $0x4] sm:$0xf]
    %v616 = vld [vmem:[%s0 + $0x8] sm:$0xf]
    %v617 = vld [vmem:[%s0 + $0xc] sm:$0xf]
    %v618 = vld [vmem:[%s0 + $0x10] sm:$0x1]
    %v619 = vld [vmem:[%s0 + $0x14] sm:$0xf]
    %v620 = vld [vmem:[%s0 + $0x18] sm:$0xf]
    %v621 = vld [vmem:[%s0 + $0x1c] sm:$0xf]
    %v622 = vld [vmem:[%s0 + $0x20] sm:$0xf]
    %v623 = vld [vmem:[%s0 + $0x24] sm:$0x1]
    %v624 = vld [vmem:[%s0 + $0x28] sm:$0xf]
    %v625 = vld [vmem:[%s0 + $0x2c] sm:$0xf]
    %v626 = vld [vmem:[%s0 + $0x30] sm:$0xf]
    %v627 = vld [vmem:[%s0 + $0x34] sm:$0xf]
    %v628 = vld [vmem:[%s0 + $0x38] sm:$0x1]
    %v629 = vld [vmem:[%s0 + $0x3c] sm:$0xf]
    %v630 = vld [vmem:[%s0 + $0x40] sm:$0xf]
    %v631 = vld [vmem:[%s0 + $0x44] sm:$0xf]
    %v632 = vld [vmem:[%s0 + $0x48] sm:$0xf]
    %v633 = vld [vmem:[%s0 + $0x4c] sm:$0x1]
    %v634 = vld [vmem:[%s0 + $0x50] sm:$0xf]
    %v635 = vld [vmem:[%s0 + $0x54] sm:$0xf]
    %v636 = vld [vmem:[%s0 + $0x58] sm:$0xf]
    %v637 = vld [vmem:[%s0 + $0x5c] sm:$0xf]
    %v638 = vld [vmem:[%s0 + $0x60] sm:$0x1]
    %v639 = vld [vmem:[%s0 + $0x64] sm:$0xf]
    %v640 = vld [vmem:[%s0 + $0x68] sm:$0xf]
    %v641 = vld [vmem:[%s0 + $0x6c] sm:$0xf]
    %v642 = vld [vmem:[%s0 + $0x70] sm:$0xf]
    %v643 = vld [vmem:[%s0 + $0x74] sm:$0x1]
    %v644 = vld [vmem:[%s0 + $0x78] sm:$0xf]
    %v645 = vld [vmem:[%s0 + $0x7c] sm:$0xf]
    %v646 = vld [vmem:[%s0 + $0x80] sm:$0xf]
    %v647 = vld [vmem:[%s0 + $0x84] sm:$0xf]
    %v648 = vld [vmem:[%s0 + $0x88] sm:$0x1]
    %v649 = vld [vmem:[%s0 + $0x8c] sm:$0xf]
    %v650 = vld [vmem:[%s0 + $0x90] sm:$0xf]
    %v651 = vld [vmem:[%s0 + $0x94] sm:$0xf]
    %v652 = vld [vmem:[%s0 + $0x98] sm:$0xf]
    %v653 = vld [vmem:[%s0 + $0x9c] sm:$0x1]
    %vm654 = vsmask.f32 3328
    %vm655 = vsmask.f32 7440
    %vm656 = vmor %vm654, %vm655
    %v658 = vshrl.u32 %v614, 16
    %v660 = vrot.slane %v658, 4
    %v661 = vshll.u32 %v614, 16
    %v663 = vrot.slane %v661, 5
    %v664 = vor.u32 %v660, %v663
    %v665 = vrot.slane %v664, 4
    %v667 = vshll.u32 %v615, 16
    %v669 = vrot.slane %v667, 5
    %v670 = vsel %vm656, %v665, %v669
    %v671 = vshrl.u32 %v615, 16
    %v673 = vrot.slane %v671, 4
    %v674 = vor.u32 %v673, %v669
    %v675 = vrot.slane %v674, 4
    %v677 = vshll.u32 %v616, 16
    %v679 = vrot.slane %v677, 5
    %v680 = vsel %vm656, %v675, %v679
    %v681 = vshrl.u32 %v616, 16
    %v683 = vrot.slane %v681, 4
    %v684 = vor.u32 %v683, %v679
    %v685 = vrot.slane %v684, 4
    %v687 = vshll.u32 %v617, 16
    %v689 = vrot.slane %v687, 5
    %v690 = vsel %vm656, %v685, %v689
    %v691 = vshrl.u32 %v617, 16
    %v693 = vrot.slane %v691, 4
    %v694 = vor.u32 %v693, %v689
    %v695 = vrot.slane %v694, 4
    %v697 = vshll.u32 %v618, 16
    %v699 = vrot.slane %v697, 5
    %v700 = vsel %vm656, %v695, %v699
    %v702 = vshrl.u32 %v619, 16
    %v704 = vrot.slane %v702, 4
    %v705 = vshll.u32 %v619, 16
    %v707 = vrot.slane %v705, 5
    %v708 = vor.u32 %v704, %v707
    %v709 = vrot.slane %v708, 4
    %v711 = vshll.u32 %v620, 16
    %v713 = vrot.slane %v711, 5
    %v714 = vsel %vm656, %v709, %v713
    %v715 = vshrl.u32 %v620, 16
    %v717 = vrot.slane %v715, 4
    %v718 = vor.u32 %v717, %v713
    %v719 = vrot.slane %v718, 4
    %v721 = vshll.u32 %v621, 16
    %v723 = vrot.slane %v721, 5
    %v724 = vsel %vm656, %v719, %v723
    %v725 = vshrl.u32 %v621, 16
    %v727 = vrot.slane %v725, 4
    %v728 = vor.u32 %v727, %v723
    %v729 = vrot.slane %v728, 4
    %v731 = vshll.u32 %v622, 16
    %v733 = vrot.slane %v731, 5
    %v734 = vsel %vm656, %v729, %v733
    %v735 = vshrl.u32 %v622, 16
    %v737 = vrot.slane %v735, 4
    %v738 = vor.u32 %v737, %v733
    %v739 = vrot.slane %v738, 4
    %v741 = vshll.u32 %v623, 16
    %v743 = vrot.slane %v741, 5
    %v744 = vsel %vm656, %v739, %v743
    %v746 = vshrl.u32 %v624, 16
    %v748 = vrot.slane %v746, 4
    %v749 = vshll.u32 %v624, 16
    %v751 = vrot.slane %v749, 5
    %v752 = vor.u32 %v748, %v751
    %v753 = vrot.slane %v752, 4
    %v755 = vshll.u32 %v625, 16
    %v757 = vrot.slane %v755, 5
    %v758 = vsel %vm656, %v753, %v757
    %v759 = vshrl.u32 %v625, 16
    %v761 = vrot.slane %v759, 4
    %v762 = vor.u32 %v761, %v757
    %v763 = vrot.slane %v762, 4
    %v765 = vshll.u32 %v626, 16
    %v767 = vrot.slane %v765, 5
    %v768 = vsel %vm656, %v763, %v767
    %v769 = vshrl.u32 %v626, 16
    %v771 = vrot.slane %v769, 4
    %v772 = vor.u32 %v771, %v767
    %v773 = vrot.slane %v772, 4
    %v775 = vshll.u32 %v627, 16
    %v777 = vrot.slane %v775, 5
    %v778 = vsel %vm656, %v773, %v777
    %v779 = vshrl.u32 %v627, 16
    %v781 = vrot.slane %v779, 4
    %v782 = vor.u32 %v781, %v777
    %v783 = vrot.slane %v782, 4
    %v785 = vshll.u32 %v628, 16
    %v787 = vrot.slane %v785, 5
    %v788 = vsel %vm656, %v783, %v787
    %v790 = vshrl.u32 %v629, 16
    %v792 = vrot.slane %v790, 4
    %v793 = vshll.u32 %v629, 16
    %v795 = vrot.slane %v793, 5
    %v796 = vor.u32 %v792, %v795
    %v797 = vrot.slane %v796, 4
    %v799 = vshll.u32 %v630, 16
    %v801 = vrot.slane %v799, 5
    %v802 = vsel %vm656, %v797, %v801
    %v803 = vshrl.u32 %v630, 16
    %v805 = vrot.slane %v803, 4
    %v806 = vor.u32 %v805, %v801
    %v807 = vrot.slane %v806, 4
    %v809 = vshll.u32 %v631, 16
    %v811 = vrot.slane %v809, 5
    %v812 = vsel %vm656, %v807, %v811
    %v813 = vshrl.u32 %v631, 16
    %v815 = vrot.slane %v813, 4
    %v816 = vor.u32 %v815, %v811
    %v817 = vrot.slane %v816, 4
    %v819 = vshll.u32 %v632, 16
    %v821 = vrot.slane %v819, 5
    %v822 = vsel %vm656, %v817, %v821
    %v823 = vshrl.u32 %v632, 16
    %v825 = vrot.slane %v823, 4
    %v826 = vor.u32 %v825, %v821
    %v827 = vrot.slane %v826, 4
    %v829 = vshll.u32 %v633, 16
    %v831 = vrot.slane %v829, 5
    %v832 = vsel %vm656, %v827, %v831
    %v834 = vshrl.u32 %v634, 16
    %v836 = vrot.slane %v834, 4
    %v837 = vshll.u32 %v634, 16
    %v839 = vrot.slane %v837, 5
    %v840 = vor.u32 %v836, %v839
    %v841 = vrot.slane %v840, 4
    %v843 = vshll.u32 %v635, 16
    %v845 = vrot.slane %v843, 5
    %v846 = vsel %vm656, %v841, %v845
    %v847 = vshrl.u32 %v635, 16
    %v849 = vrot.slane %v847, 4
    %v850 = vor.u32 %v849, %v845
    %v851 = vrot.slane %v850, 4
    %v853 = vshll.u32 %v636, 16
    %v855 = vrot.slane %v853, 5
    %v856 = vsel %vm656, %v851, %v855
    %v857 = vshrl.u32 %v636, 16
    %v859 = vrot.slane %v857, 4
    %v860 = vor.u32 %v859, %v855
    %v861 = vrot.slane %v860, 4
    %v863 = vshll.u32 %v637, 16
    %v865 = vrot.slane %v863, 5
    %v866 = vsel %vm656, %v861, %v865
    %v867 = vshrl.u32 %v637, 16
    %v869 = vrot.slane %v867, 4
    %v870 = vor.u32 %v869, %v865
    %v871 = vrot.slane %v870, 4
    %v873 = vshll.u32 %v638, 16
    %v875 = vrot.slane %v873, 5
    %v876 = vsel %vm656, %v871, %v875
    %v878 = vshrl.u32 %v639, 16
    %v880 = vrot.slane %v878, 4
    %v881 = vshll.u32 %v639, 16
    %v883 = vrot.slane %v881, 5
    %v884 = vor.u32 %v880, %v883
    %v885 = vrot.slane %v884, 4
    %v887 = vshll.u32 %v640, 16
    %v889 = vrot.slane %v887, 5
    %v890 = vsel %vm656, %v885, %v889
    %v891 = vshrl.u32 %v640, 16
    %v893 = vrot.slane %v891, 4
    %v894 = vor.u32 %v893, %v889
    %v895 = vrot.slane %v894, 4
    %v897 = vshll.u32 %v641, 16
    %v899 = vrot.slane %v897, 5
    %v900 = vsel %vm656, %v895, %v899
    %v901 = vshrl.u32 %v641, 16
    %v903 = vrot.slane %v901, 4
    %v904 = vor.u32 %v903, %v899
    %v905 = vrot.slane %v904, 4
    %v907 = vshll.u32 %v642, 16
    %v909 = vrot.slane %v907, 5
    %v910 = vsel %vm656, %v905, %v909
    %v911 = vshrl.u32 %v642, 16
    %v913 = vrot.slane %v911, 4
    %v914 = vor.u32 %v913, %v909
    %v915 = vrot.slane %v914, 4
    %v917 = vshll.u32 %v643, 16
    %v919 = vrot.slane %v917, 5
    %v920 = vsel %vm656, %v915, %v919
    %v922 = vshrl.u32 %v644, 16
    %v924 = vrot.slane %v922, 4
    %v925 = vshll.u32 %v644, 16
    %v927 = vrot.slane %v925, 5
    %v928 = vor.u32 %v924, %v927
    %v929 = vrot.slane %v928, 4
    %v931 = vshll.u32 %v645, 16
    %v933 = vrot.slane %v931, 5
    %v934 = vsel %vm656, %v929, %v933
    %v935 = vshrl.u32 %v645, 16
    %v937 = vrot.slane %v935, 4
    %v938 = vor.u32 %v937, %v933
    %v939 = vrot.slane %v938, 4
    %v941 = vshll.u32 %v646, 16
    %v943 = vrot.slane %v941, 5
    %v944 = vsel %vm656, %v939, %v943
    %v945 = vshrl.u32 %v646, 16
    %v947 = vrot.slane %v945, 4
    %v948 = vor.u32 %v947, %v943
    %v949 = vrot.slane %v948, 4
    %v951 = vshll.u32 %v647, 16
    %v953 = vrot.slane %v951, 5
    %v954 = vsel %vm656, %v949, %v953
    %v955 = vshrl.u32 %v647, 16
    %v957 = vrot.slane %v955, 4
    %v958 = vor.u32 %v957, %v953
    %v959 = vrot.slane %v958, 4
    %v961 = vshll.u32 %v648, 16
    %v963 = vrot.slane %v961, 5
    %v964 = vsel %vm656, %v959, %v963
    %v966 = vshrl.u32 %v649, 16
    %v968 = vrot.slane %v966, 4
    %v969 = vshll.u32 %v649, 16
    %v971 = vrot.slane %v969, 5
    %v972 = vor.u32 %v968, %v971
    %v973 = vrot.slane %v972, 4
    %v975 = vshll.u32 %v650, 16
    %v977 = vrot.slane %v975, 5
    %v978 = vsel %vm656, %v973, %v977
    %v979 = vshrl.u32 %v650, 16
    %v981 = vrot.slane %v979, 4
    %v982 = vor.u32 %v981, %v977
    %v983 = vrot.slane %v982, 4
    %v985 = vshll.u32 %v651, 16
    %v987 = vrot.slane %v985, 5
    %v988 = vsel %vm656, %v983, %v987
    %v989 = vshrl.u32 %v651, 16
    %v991 = vrot.slane %v989, 4
    %v992 = vor.u32 %v991, %v987
    %v993 = vrot.slane %v992, 4
    %v995 = vshll.u32 %v652, 16
    %v997 = vrot.slane %v995, 5
    %v998 = vsel %vm656, %v993, %v997
    %v999 = vshrl.u32 %v652, 16
    %v1001 = vrot.slane %v999, 4
    %v1002 = vor.u32 %v1001, %v997
    %v1003 = vrot.slane %v1002, 4
    %v1005 = vshll.u32 %v653, 16
    %v1007 = vrot.slane %v1005, 5
    %v1008 = vsel %vm656, %v1003, %v1007
    %s1009 = scalar_lea.vmem %s1, 128
    %v1010 = vld [vmem:[%s1009] sm:$0xff]
    %v1011 = vld [vmem:[%s1009 + $0x8] sm:$0xff]
    %v1012 = vld [vmem:[%s1009 + $0x10] sm:$0xff]
    %v1013 = vld [vmem:[%s1009 + $0x18] sm:$0xff]
    %v1014 = vld [vmem:[%s1009 + $0x20] sm:$0xff]
    %v1015 = vld [vmem:[%s1009 + $0x28] sm:$0xff]
    %v1016 = vld [vmem:[%s1009 + $0x30] sm:$0xff]
    %v1017 = vld [vmem:[%s1009 + $0x38] sm:$0xff]
    %v1018 = vld [vmem:[%s1009 + $0x40] sm:$0xff]
    %v1019 = vld [vmem:[%s1009 + $0x48] sm:$0xff]
    %v1020 = vld [vmem:[%s1009 + $0x50] sm:$0xff]
    %v1021 = vld [vmem:[%s1009 + $0x58] sm:$0xff]
    %v1022 = vld [vmem:[%s1009 + $0x60] sm:$0xff]
    %v1023 = vld [vmem:[%s1009 + $0x68] sm:$0xff]
    %v1024 = vld [vmem:[%s1009 + $0x70] sm:$0xff]
    %v1025 = vld [vmem:[%s1009 + $0x78] sm:$0xff]
    %v1026 = vunpack.c.l.b16 %v670
    %v1027 = vunpack.c.l.b16 %v680
    %v1028 = vunpack.c.l.b16 %v690
    %v1029 = vunpack.c.l.b16 %v700
    %v1030 = vunpack.c.l.b16 %v714
    %v1031 = vunpack.c.l.b16 %v724
    %v1032 = vunpack.c.l.b16 %v734
    %v1033 = vunpack.c.l.b16 %v744
    %v1034 = vunpack.c.l.b16 %v758
    %v1035 = vunpack.c.l.b16 %v768
    %v1036 = vunpack.c.l.b16 %v778
    %v1037 = vunpack.c.l.b16 %v788
    %v1038 = vunpack.c.l.b16 %v802
    %v1039 = vunpack.c.l.b16 %v812
    %v1040 = vunpack.c.l.b16 %v822
    %v1041 = vunpack.c.l.b16 %v832
    %v1042 = vunpack.c.l.b16 %v846
    %v1043 = vunpack.c.l.b16 %v856
    %v1044 = vunpack.c.l.b16 %v866
    %v1045 = vunpack.c.l.b16 %v876
    %v1046 = vunpack.c.l.b16 %v890
    %v1047 = vunpack.c.l.b16 %v900
    %v1048 = vunpack.c.l.b16 %v910
    %v1049 = vunpack.c.l.b16 %v920
    %v1050 = vunpack.c.l.b16 %v934
    %v1051 = vunpack.c.l.b16 %v944
    %v1052 = vunpack.c.l.b16 %v954
    %v1053 = vunpack.c.l.b16 %v964
    %v1054 = vunpack.c.l.b16 %v978
    %v1055 = vunpack.c.l.b16 %v988
    %v1056 = vunpack.c.l.b16 %v998
    %v1057 = vunpack.c.l.b16 %v1008
    %v1058 = vpack.c.b16 %v1027, %v1026
    %v1059 = vpack.c.b16 %v1029, %v1028
    %v1060 = vpack.c.b16 %v1031, %v1030
    %v1061 = vpack.c.b16 %v1033, %v1032
    %v1062 = vpack.c.b16 %v1035, %v1034
    %v1063 = vpack.c.b16 %v1037, %v1036
    %v1064 = vpack.c.b16 %v1039, %v1038
    %v1065 = vpack.c.b16 %v1041, %v1040
    %v1066 = vpack.c.b16 %v1043, %v1042
    %v1067 = vpack.c.b16 %v1045, %v1044
    %v1068 = vpack.c.b16 %v1047, %v1046
    %v1069 = vpack.c.b16 %v1049, %v1048
    %v1070 = vpack.c.b16 %v1051, %v1050
    %v1071 = vpack.c.b16 %v1053, %v1052
    %v1072 = vpack.c.b16 %v1055, %v1054
    %v1073 = vpack.c.b16 %v1057, %v1056
    %v1106 = vunpack.c.l.b16 %v1010
    %v1107 = vunpack.c.h.b16 %v1010
    %v1108 = vunpack.c.l.b16 %v1011
    %v1109 = vunpack.c.h.b16 %v1011
    %v1110 = vunpack.c.l.b16 %v1012
    %v1111 = vunpack.c.h.b16 %v1012
    %v1112 = vunpack.c.l.b16 %v1013
    %v1113 = vunpack.c.h.b16 %v1013
    %v1114 = vunpack.c.l.b16 %v1014
    %v1115 = vunpack.c.h.b16 %v1014
    %v1116 = vunpack.c.l.b16 %v1015
    %v1117 = vunpack.c.h.b16 %v1015
    %v1118 = vunpack.c.l.b16 %v1016
    %v1119 = vunpack.c.h.b16 %v1016
    %v1120 = vunpack.c.l.b16 %v1017
    %v1121 = vunpack.c.h.b16 %v1017
    %v1122 = vunpack.c.l.b16 %v1018
    %v1123 = vunpack.c.h.b16 %v1018
    %v1124 = vunpack.c.l.b16 %v1019
    %v1125 = vunpack.c.h.b16 %v1019
    %v1126 = vunpack.c.l.b16 %v1020
    %v1127 = vunpack.c.h.b16 %v1020
    %v1128 = vunpack.c.l.b16 %v1021
    %v1129 = vunpack.c.h.b16 %v1021
    %v1130 = vunpack.c.l.b16 %v1022
    %v1131 = vunpack.c.h.b16 %v1022
    %v1132 = vunpack.c.l.b16 %v1023
    %v1133 = vunpack.c.h.b16 %v1023
    %v1134 = vunpack.c.l.b16 %v1024
    %v1135 = vunpack.c.h.b16 %v1024
    %v1136 = vunpack.c.l.b16 %v1025
    %v1137 = vunpack.c.h.b16 %v1025
    %v1138 = vpack.c.b16 %v1108, %v1106
    %v1139 = vpack.c.b16 %v1109, %v1107
    %v1140 = vpack.c.b16 %v1112, %v1110
    %v1141 = vpack.c.b16 %v1113, %v1111
    %v1142 = vpack.c.b16 %v1116, %v1114
    %v1143 = vpack.c.b16 %v1117, %v1115
    %v1144 = vpack.c.b16 %v1120, %v1118
    %v1145 = vpack.c.b16 %v1121, %v1119
    %v1146 = vpack.c.b16 %v1124, %v1122
    %v1147 = vpack.c.b16 %v1125, %v1123
    %v1148 = vpack.c.b16 %v1128, %v1126
    %v1149 = vpack.c.b16 %v1129, %v1127
    %v1150 = vpack.c.b16 %v1132, %v1130
    %v1151 = vpack.c.b16 %v1133, %v1131
    %v1152 = vpack.c.b16 %v1136, %v1134
    %v1153 = vpack.c.b16 %v1137, %v1135
    %1170 = vmatpush.bf16.msra.mxu0 %v1152
    %1171 = vmatpush.bf16.msra.mxu0 %v1150
    %1172 = vmatpush.bf16.msra.mxu0 %v1148
    %1173 = vmatpush.bf16.msra.mxu0 %v1146
    %1174 = vmatpush.bf16.msra.mxu0 %v1144
    %1175 = vmatpush.bf16.msra.mxu0 %v1142
    %1176 = vmatpush.bf16.msra.mxu0 %v1140
    %1177 = vmatpush.bf16.msra.mxu0 %v1138
    %1178 = vmatmul.bf16.gmra.mxu0 %v1058
    %v1179 = vpop.f32.mrf.mxu0
    %v1180 = vadd.f32 0.0, %v1179
    %v1181 = vpop.f32.mrf.mxu0
    %v1182 = vadd.f32 0.0, %v1181
    %1183 = vmatmul.bf16.gmra.mxu0 %v1059
    %v1184 = vpop.f32.mrf.mxu0
    %v1185 = vadd.f32 0.0, %v1184
    %v1186 = vpop.f32.mrf.mxu0
    %v1187 = vadd.f32 0.0, %v1186
    %1188 = vmatmul.bf16.gmra.mxu0 %v1060
    %v1189 = vpop.f32.mrf.mxu0
    %v1190 = vadd.f32 0.0, %v1189
    %v1191 = vpop.f32.mrf.mxu0
    %v1192 = vadd.f32 0.0, %v1191
    %1193 = vmatmul.bf16.gmra.mxu0 %v1061
    %v1194 = vpop.f32.mrf.mxu0
    %v1195 = vadd.f32 0.0, %v1194
    %v1196 = vpop.f32.mrf.mxu0
    %v1197 = vadd.f32 0.0, %v1196
    %1198 = vmatmul.bf16.gmra.mxu0 %v1062
    %v1199 = vpop.f32.mrf.mxu0
    %v1200 = vadd.f32 0.0, %v1199
    %v1201 = vpop.f32.mrf.mxu0
    %v1202 = vadd.f32 0.0, %v1201
    %1203 = vmatmul.bf16.gmra.mxu0 %v1063
    %v1204 = vpop.f32.mrf.mxu0
    %v1205 = vadd.f32 0.0, %v1204
    %v1206 = vpop.f32.mrf.mxu0
    %v1207 = vadd.f32 0.0, %v1206
    %1208 = vmatmul.bf16.gmra.mxu0 %v1064
    %v1209 = vpop.f32.mrf.mxu0
    %v1210 = vadd.f32 0.0, %v1209
    %v1211 = vpop.f32.mrf.mxu0
    %v1212 = vadd.f32 0.0, %v1211
    %1213 = vmatmul.bf16.gmra.mxu0 %v1065
    %v1214 = vpop.f32.mrf.mxu0
    %v1215 = vadd.f32 0.0, %v1214
    %v1216 = vpop.f32.mrf.mxu0
    %v1217 = vadd.f32 0.0, %v1216
    %1218 = vmatmul.bf16.gmra.mxu0 %v1066
    %v1219 = vpop.f32.mrf.mxu0
    %v1220 = vadd.f32 0.0, %v1219
    %v1221 = vpop.f32.mrf.mxu0
    %v1222 = vadd.f32 0.0, %v1221
    %1223 = vmatmul.bf16.gmra.mxu0 %v1067
    %v1224 = vpop.f32.mrf.mxu0
    %v1225 = vadd.f32 0.0, %v1224
    %v1226 = vpop.f32.mrf.mxu0
    %v1227 = vadd.f32 0.0, %v1226
    %1228 = vmatmul.bf16.gmra.mxu0 %v1068
    %v1229 = vpop.f32.mrf.mxu0
    %v1230 = vadd.f32 0.0, %v1229
    %v1231 = vpop.f32.mrf.mxu0
    %v1232 = vadd.f32 0.0, %v1231
    %1233 = vmatmul.bf16.gmra.mxu0 %v1069
    %v1234 = vpop.f32.mrf.mxu0
    %v1235 = vadd.f32 0.0, %v1234
    %v1236 = vpop.f32.mrf.mxu0
    %v1237 = vadd.f32 0.0, %v1236
    %1238 = vmatmul.bf16.gmra.mxu0 %v1070
    %v1239 = vpop.f32.mrf.mxu0
    %v1240 = vadd.f32 0.0, %v1239
    %v1241 = vpop.f32.mrf.mxu0
    %v1242 = vadd.f32 0.0, %v1241
    %1243 = vmatmul.bf16.gmra.mxu0 %v1071
    %v1244 = vpop.f32.mrf.mxu0
    %v1245 = vadd.f32 0.0, %v1244
    %v1246 = vpop.f32.mrf.mxu0
    %v1247 = vadd.f32 0.0, %v1246
    %1248 = vmatmul.bf16.gmra.mxu0 %v1072
    %v1249 = vpop.f32.mrf.mxu0
    %v1250 = vadd.f32 0.0, %v1249
    %v1251 = vpop.f32.mrf.mxu0
    %v1252 = vadd.f32 0.0, %v1251
    %1253 = vmatmul.bf16.gmra.mxu0 %v1073
    %v1254 = vpop.f32.mrf.mxu0
    %v1255 = vadd.f32 0.0, %v1254
    %v1256 = vpop.f32.mrf.mxu0
    %v1257 = vadd.f32 0.0, %v1256
    %1258 = vdwg.mxu0
    %1259 = vmatpush.bf16.msra.mxu0 %v1153
    %1260 = vmatpush.bf16.msra.mxu0 %v1151
    %1261 = vmatpush.bf16.msra.mxu0 %v1149
    %1262 = vmatpush.bf16.msra.mxu0 %v1147
    %1263 = vmatpush.bf16.msra.mxu0 %v1145
    %1264 = vmatpush.bf16.msra.mxu0 %v1143
    %1265 = vmatpush.bf16.msra.mxu0 %v1141
    %1266 = vmatpush.bf16.msra.mxu0 %v1139
    %1267 = vmatmul.bf16.gmra.mxu0 %v1058
    %v1268 = vpop.f32.mrf.mxu0
    %v1269 = vadd.f32 0.0, %v1268
    %v1270 = vpop.f32.mrf.mxu0
    %v1271 = vadd.f32 0.0, %v1270
    %1272 = vmatmul.bf16.gmra.mxu0 %v1059
    %v1273 = vpop.f32.mrf.mxu0
    %v1274 = vadd.f32 0.0, %v1273
    %v1275 = vpop.f32.mrf.mxu0
    %v1276 = vadd.f32 0.0, %v1275
    %1277 = vmatmul.bf16.gmra.mxu0 %v1060
    %v1278 = vpop.f32.mrf.mxu0
    %v1279 = vadd.f32 0.0, %v1278
    %v1280 = vpop.f32.mrf.mxu0
    %v1281 = vadd.f32 0.0, %v1280
    %1282 = vmatmul.bf16.gmra.mxu0 %v1061
    %v1283 = vpop.f32.mrf.mxu0
    %v1284 = vadd.f32 0.0, %v1283
    %v1285 = vpop.f32.mrf.mxu0
    %v1286 = vadd.f32 0.0, %v1285
    %1287 = vmatmul.bf16.gmra.mxu0 %v1062
    %v1288 = vpop.f32.mrf.mxu0
    %v1289 = vadd.f32 0.0, %v1288
    %v1290 = vpop.f32.mrf.mxu0
    %v1291 = vadd.f32 0.0, %v1290
    %1292 = vmatmul.bf16.gmra.mxu0 %v1063
    %v1293 = vpop.f32.mrf.mxu0
    %v1294 = vadd.f32 0.0, %v1293
    %v1295 = vpop.f32.mrf.mxu0
    %v1296 = vadd.f32 0.0, %v1295
    %1297 = vmatmul.bf16.gmra.mxu0 %v1064
    %v1298 = vpop.f32.mrf.mxu0
    %v1299 = vadd.f32 0.0, %v1298
    %v1300 = vpop.f32.mrf.mxu0
    %v1301 = vadd.f32 0.0, %v1300
    %1302 = vmatmul.bf16.gmra.mxu0 %v1065
    %v1303 = vpop.f32.mrf.mxu0
    %v1304 = vadd.f32 0.0, %v1303
    %v1305 = vpop.f32.mrf.mxu0
    %v1306 = vadd.f32 0.0, %v1305
    %1307 = vmatmul.bf16.gmra.mxu0 %v1066
    %v1308 = vpop.f32.mrf.mxu0
    %v1309 = vadd.f32 0.0, %v1308
    %v1310 = vpop.f32.mrf.mxu0
    %v1311 = vadd.f32 0.0, %v1310
    %1312 = vmatmul.bf16.gmra.mxu0 %v1067
    %v1313 = vpop.f32.mrf.mxu0
    %v1314 = vadd.f32 0.0, %v1313
    %v1315 = vpop.f32.mrf.mxu0
    %v1316 = vadd.f32 0.0, %v1315
    %1317 = vmatmul.bf16.gmra.mxu0 %v1068
    %v1318 = vpop.f32.mrf.mxu0
    %v1319 = vadd.f32 0.0, %v1318
    %v1320 = vpop.f32.mrf.mxu0
    %v1321 = vadd.f32 0.0, %v1320
    %1322 = vmatmul.bf16.gmra.mxu0 %v1069
    %v1323 = vpop.f32.mrf.mxu0
    %v1324 = vadd.f32 0.0, %v1323
    %v1325 = vpop.f32.mrf.mxu0
    %v1326 = vadd.f32 0.0, %v1325
    %1327 = vmatmul.bf16.gmra.mxu0 %v1070
    %v1328 = vpop.f32.mrf.mxu0
    %v1329 = vadd.f32 0.0, %v1328
    %v1330 = vpop.f32.mrf.mxu0
    %v1331 = vadd.f32 0.0, %v1330
    %1332 = vmatmul.bf16.gmra.mxu0 %v1071
    %v1333 = vpop.f32.mrf.mxu0
    %v1334 = vadd.f32 0.0, %v1333
    %v1335 = vpop.f32.mrf.mxu0
    %v1336 = vadd.f32 0.0, %v1335
    %1337 = vmatmul.bf16.gmra.mxu0 %v1072
    %v1338 = vpop.f32.mrf.mxu0
    %v1339 = vadd.f32 0.0, %v1338
    %v1340 = vpop.f32.mrf.mxu0
    %v1341 = vadd.f32 0.0, %v1340
    %1342 = vmatmul.bf16.gmra.mxu0 %v1073
    %v1343 = vpop.f32.mrf.mxu0
    %v1344 = vadd.f32 0.0, %v1343
    %v1345 = vpop.f32.mrf.mxu0
    %v1346 = vadd.f32 0.0, %v1345
    %1347 = vdwg.mxu0
    %v1348 = vld [vmem:[#allocation2] sm:$0xff]
    %v1349 = vld [vmem:[#allocation2 + $0x8] sm:$0xff]
    %v1350 = vld [vmem:[#allocation2 + $0x10] sm:$0xff]
    %v1351 = vld [vmem:[#allocation2 + $0x18] sm:$0xff]
    %v1352 = vld [vmem:[#allocation2 + $0x20] sm:$0xff]
    %v1353 = vld [vmem:[#allocation2 + $0x28] sm:$0xff]
    %v1354 = vld [vmem:[#allocation2 + $0x30] sm:$0xff]
    %v1355 = vld [vmem:[#allocation2 + $0x38] sm:$0xff]
    %v1356 = vld [vmem:[#allocation2 + $0x40] sm:$0xff]
    %v1357 = vld [vmem:[#allocation2 + $0x48] sm:$0xff]
    %v1358 = vld [vmem:[#allocation2 + $0x50] sm:$0xff]
    %v1359 = vld [vmem:[#allocation2 + $0x58] sm:$0xff]
    %v1360 = vld [vmem:[#allocation2 + $0x60] sm:$0xff]
    %v1361 = vld [vmem:[#allocation2 + $0x68] sm:$0xff]
    %v1362 = vld [vmem:[#allocation2 + $0x70] sm:$0xff]
    %v1363 = vld [vmem:[#allocation2 + $0x78] sm:$0xff]
    %v1364 = vld [vmem:[#allocation2 + $0x80] sm:$0xff]
    %v1365 = vld [vmem:[#allocation2 + $0x88] sm:$0xff]
    %v1366 = vld [vmem:[#allocation2 + $0x90] sm:$0xff]
    %v1367 = vld [vmem:[#allocation2 + $0x98] sm:$0xff]
    %v1368 = vld [vmem:[#allocation2 + $0xa0] sm:$0xff]
    %v1369 = vld [vmem:[#allocation2 + $0xa8] sm:$0xff]
    %v1370 = vld [vmem:[#allocation2 + $0xb0] sm:$0xff]
    %v1371 = vld [vmem:[#allocation2 + $0xb8] sm:$0xff]
    %v1372 = vld [vmem:[#allocation2 + $0xc0] sm:$0xff]
    %v1373 = vld [vmem:[#allocation2 + $0xc8] sm:$0xff]
    %v1374 = vld [vmem:[#allocation2 + $0xd0] sm:$0xff]
    %v1375 = vld [vmem:[#allocation2 + $0xd8] sm:$0xff]
    %v1376 = vld [vmem:[#allocation2 + $0xe0] sm:$0xff]
    %v1377 = vld [vmem:[#allocation2 + $0xe8] sm:$0xff]
    %v1378 = vld [vmem:[#allocation2 + $0xf0] sm:$0xff]
    %v1379 = vld [vmem:[#allocation2 + $0xf8] sm:$0xff]
    %v1380 = vld [vmem:[#allocation2 + $0x100] sm:$0xff]
    %v1381 = vld [vmem:[#allocation2 + $0x108] sm:$0xff]
    %v1382 = vld [vmem:[#allocation2 + $0x110] sm:$0xff]
    %v1383 = vld [vmem:[#allocation2 + $0x118] sm:$0xff]
    %v1384 = vld [vmem:[#allocation2 + $0x120] sm:$0xff]
    %v1385 = vld [vmem:[#allocation2 + $0x128] sm:$0xff]
    %v1386 = vld [vmem:[#allocation2 + $0x130] sm:$0xff]
    %v1387 = vld [vmem:[#allocation2 + $0x138] sm:$0xff]
    %v1388 = vld [vmem:[#allocation2 + $0x140] sm:$0xff]
    %v1389 = vld [vmem:[#allocation2 + $0x148] sm:$0xff]
    %v1390 = vld [vmem:[#allocation2 + $0x150] sm:$0xff]
    %v1391 = vld [vmem:[#allocation2 + $0x158] sm:$0xff]
    %v1392 = vld [vmem:[#allocation2 + $0x160] sm:$0xff]
    %v1393 = vld [vmem:[#allocation2 + $0x168] sm:$0xff]
    %v1394 = vld [vmem:[#allocation2 + $0x170] sm:$0xff]
    %v1395 = vld [vmem:[#allocation2 + $0x178] sm:$0xff]
    %v1396 = vld [vmem:[#allocation2 + $0x180] sm:$0xff]
    %v1397 = vld [vmem:[#allocation2 + $0x188] sm:$0xff]
    %v1398 = vld [vmem:[#allocation2 + $0x190] sm:$0xff]
    %v1399 = vld [vmem:[#allocation2 + $0x198] sm:$0xff]
    %v1400 = vld [vmem:[#allocation2 + $0x1a0] sm:$0xff]
    %v1401 = vld [vmem:[#allocation2 + $0x1a8] sm:$0xff]
    %v1402 = vld [vmem:[#allocation2 + $0x1b0] sm:$0xff]
    %v1403 = vld [vmem:[#allocation2 + $0x1b8] sm:$0xff]
    %v1404 = vld [vmem:[#allocation2 + $0x1c0] sm:$0xff]
    %v1405 = vld [vmem:[#allocation2 + $0x1c8] sm:$0xff]
    %v1406 = vld [vmem:[#allocation2 + $0x1d0] sm:$0xff]
    %v1407 = vld [vmem:[#allocation2 + $0x1d8] sm:$0xff]
    %v1408 = vld [vmem:[#allocation2 + $0x1e0] sm:$0xff]
    %v1409 = vld [vmem:[#allocation2 + $0x1e8] sm:$0xff]
    %v1410 = vld [vmem:[#allocation2 + $0x1f0] sm:$0xff]
    %v1411 = vld [vmem:[#allocation2 + $0x1f8] sm:$0xff]
    %v1412 = vadd.f32 %v1348, %v1180
    %v1413 = vadd.f32 %v1349, %v1269
    %v1414 = vadd.f32 %v1350, %v1182
    %v1415 = vadd.f32 %v1351, %v1271
    %v1416 = vadd.f32 %v1352, %v1185
    %v1417 = vadd.f32 %v1353, %v1274
    %v1418 = vadd.f32 %v1354, %v1187
    %v1419 = vadd.f32 %v1355, %v1276
    %v1420 = vadd.f32 %v1356, %v1190
    %v1421 = vadd.f32 %v1357, %v1279
    %v1422 = vadd.f32 %v1358, %v1192
    %v1423 = vadd.f32 %v1359, %v1281
    %v1424 = vadd.f32 %v1360, %v1195
    %v1425 = vadd.f32 %v1361, %v1284
    %v1426 = vadd.f32 %v1362, %v1197
    %v1427 = vadd.f32 %v1363, %v1286
    %v1428 = vadd.f32 %v1364, %v1200
    %v1429 = vadd.f32 %v1365, %v1289
    %v1430 = vadd.f32 %v1366, %v1202
    %v1431 = vadd.f32 %v1367, %v1291
    %v1432 = vadd.f32 %v1368, %v1205
    %v1433 = vadd.f32 %v1369, %v1294
    %v1434 = vadd.f32 %v1370, %v1207
    %v1435 = vadd.f32 %v1371, %v1296
    %v1436 = vadd.f32 %v1372, %v1210
    %v1437 = vadd.f32 %v1373, %v1299
    %v1438 = vadd.f32 %v1374, %v1212
    %v1439 = vadd.f32 %v1375, %v1301
    %v1440 = vadd.f32 %v1376, %v1215
    %v1441 = vadd.f32 %v1377, %v1304
    %v1442 = vadd.f32 %v1378, %v1217
    %v1443 = vadd.f32 %v1379, %v1306
    %v1444 = vadd.f32 %v1380, %v1220
    %v1445 = vadd.f32 %v1381, %v1309
    %v1446 = vadd.f32 %v1382, %v1222
    %v1447 = vadd.f32 %v1383, %v1311
    %v1448 = vadd.f32 %v1384, %v1225
    %v1449 = vadd.f32 %v1385, %v1314
    %v1450 = vadd.f32 %v1386, %v1227
    %v1451 = vadd.f32 %v1387, %v1316
    %v1452 = vadd.f32 %v1388, %v1230
    %v1453 = vadd.f32 %v1389, %v1319
    %v1454 = vadd.f32 %v1390, %v1232
    %v1455 = vadd.f32 %v1391, %v1321
    %v1456 = vadd.f32 %v1392, %v1235
    %v1457 = vadd.f32 %v1393, %v1324
    %v1458 = vadd.f32 %v1394, %v1237
    %v1459 = vadd.f32 %v1395, %v1326
    %v1460 = vadd.f32 %v1396, %v1240
    %v1461 = vadd.f32 %v1397, %v1329
    %v1462 = vadd.f32 %v1398, %v1242
    %v1463 = vadd.f32 %v1399, %v1331
    %v1464 = vadd.f32 %v1400, %v1245
    %v1465 = vadd.f32 %v1401, %v1334
    %v1466 = vadd.f32 %v1402, %v1247
    %v1467 = vadd.f32 %v1403, %v1336
    %v1468 = vadd.f32 %v1404, %v1250
    %v1469 = vadd.f32 %v1405, %v1339
    %v1470 = vadd.f32 %v1406, %v1252
    %v1471 = vadd.f32 %v1407, %v1341
    %v1472 = vadd.f32 %v1408, %v1255
    %v1473 = vadd.f32 %v1409, %v1344
    %v1474 = vadd.f32 %v1410, %v1257
    %v1475 = vadd.f32 %v1411, %v1346
    %1476 = vst [vmem:[#allocation2] sm:$0xff] %v1412
    %1477 = vst [vmem:[#allocation2 + $0x8] sm:$0xff] %v1413
    %1478 = vst [vmem:[#allocation2 + $0x10] sm:$0xff] %v1414
    %1479 = vst [vmem:[#allocation2 + $0x18] sm:$0xff] %v1415
    %1480 = vst [vmem:[#allocation2 + $0x20] sm:$0xff] %v1416
    %1481 = vst [vmem:[#allocation2 + $0x28] sm:$0xff] %v1417
    %1482 = vst [vmem:[#allocation2 + $0x30] sm:$0xff] %v1418
    %1483 = vst [vmem:[#allocation2 + $0x38] sm:$0xff] %v1419
    %1484 = vst [vmem:[#allocation2 + $0x40] sm:$0xff] %v1420
    %1485 = vst [vmem:[#allocation2 + $0x48] sm:$0xff] %v1421
    %1486 = vst [vmem:[#allocation2 + $0x50] sm:$0xff] %v1422
    %1487 = vst [vmem:[#allocation2 + $0x58] sm:$0xff] %v1423
    %1488 = vst [vmem:[#allocation2 + $0x60] sm:$0xff] %v1424
    %1489 = vst [vmem:[#allocation2 + $0x68] sm:$0xff] %v1425
    %1490 = vst [vmem:[#allocation2 + $0x70] sm:$0xff] %v1426
    %1491 = vst [vmem:[#allocation2 + $0x78] sm:$0xff] %v1427
    %1492 = vst [vmem:[#allocation2 + $0x80] sm:$0xff] %v1428
    %1493 = vst [vmem:[#allocation2 + $0x88] sm:$0xff] %v1429
    %1494 = vst [vmem:[#allocation2 + $0x90] sm:$0xff] %v1430
    %1495 = vst [vmem:[#allocation2 + $0x98] sm:$0xff] %v1431
    %1496 = vst [vmem:[#allocation2 + $0xa0] sm:$0xff] %v1432
    %1497 = vst [vmem:[#allocation2 + $0xa8] sm:$0xff] %v1433
    %1498 = vst [vmem:[#allocation2 + $0xb0] sm:$0xff] %v1434
    %1499 = vst [vmem:[#allocation2 + $0xb8] sm:$0xff] %v1435
    %1500 = vst [vmem:[#allocation2 + $0xc0] sm:$0xff] %v1436
    %1501 = vst [vmem:[#allocation2 + $0xc8] sm:$0xff] %v1437
    %1502 = vst [vmem:[#allocation2 + $0xd0] sm:$0xff] %v1438
    %1503 = vst [vmem:[#allocation2 + $0xd8] sm:$0xff] %v1439
    %1504 = vst [vmem:[#allocation2 + $0xe0] sm:$0xff] %v1440
    %1505 = vst [vmem:[#allocation2 + $0xe8] sm:$0xff] %v1441
    %1506 = vst [vmem:[#allocation2 + $0xf0] sm:$0xff] %v1442
    %1507 = vst [vmem:[#allocation2 + $0xf8] sm:$0xff] %v1443
    %1508 = vst [vmem:[#allocation2 + $0x100] sm:$0xff] %v1444
    %1509 = vst [vmem:[#allocation2 + $0x108] sm:$0xff] %v1445
    %1510 = vst [vmem:[#allocation2 + $0x110] sm:$0xff] %v1446
    %1511 = vst [vmem:[#allocation2 + $0x118] sm:$0xff] %v1447
    %1512 = vst [vmem:[#allocation2 + $0x120] sm:$0xff] %v1448
    %1513 = vst [vmem:[#allocation2 + $0x128] sm:$0xff] %v1449
    %1514 = vst [vmem:[#allocation2 + $0x130] sm:$0xff] %v1450
    %1515 = vst [vmem:[#allocation2 + $0x138] sm:$0xff] %v1451
    %1516 = vst [vmem:[#allocation2 + $0x140] sm:$0xff] %v1452
    %1517 = vst [vmem:[#allocation2 + $0x148] sm:$0xff] %v1453
    %1518 = vst [vmem:[#allocation2 + $0x150] sm:$0xff] %v1454
    %1519 = vst [vmem:[#allocation2 + $0x158] sm:$0xff] %v1455
    %1520 = vst [vmem:[#allocation2 + $0x160] sm:$0xff] %v1456
    %1521 = vst [vmem:[#allocation2 + $0x168] sm:$0xff] %v1457
    %1522 = vst [vmem:[#allocation2 + $0x170] sm:$0xff] %v1458
    %1523 = vst [vmem:[#allocation2 + $0x178] sm:$0xff] %v1459
    %1524 = vst [vmem:[#allocation2 + $0x180] sm:$0xff] %v1460
    %1525 = vst [vmem:[#allocation2 + $0x188] sm:$0xff] %v1461
    %1526 = vst [vmem:[#allocation2 + $0x190] sm:$0xff] %v1462
    %1527 = vst [vmem:[#allocation2 + $0x198] sm:$0xff] %v1463
    %1528 = vst [vmem:[#allocation2 + $0x1a0] sm:$0xff] %v1464
    %1529 = vst [vmem:[#allocation2 + $0x1a8] sm:$0xff] %v1465
    %1530 = vst [vmem:[#allocation2 + $0x1b0] sm:$0xff] %v1466
    %1531 = vst [vmem:[#allocation2 + $0x1b8] sm:$0xff] %v1467
    %1532 = vst [vmem:[#allocation2 + $0x1c0] sm:$0xff] %v1468
    %1533 = vst [vmem:[#allocation2 + $0x1c8] sm:$0xff] %v1469
    %1534 = vst [vmem:[#allocation2 + $0x1d0] sm:$0xff] %v1470
    %1535 = vst [vmem:[#allocation2 + $0x1d8] sm:$0xff] %v1471
    %1536 = vst [vmem:[#allocation2 + $0x1e0] sm:$0xff] %v1472
    %1537 = vst [vmem:[#allocation2 + $0x1e8] sm:$0xff] %v1473
    %1538 = vst [vmem:[#allocation2 + $0x1f0] sm:$0xff] %v1474
    %1539 = vst [vmem:[#allocation2 + $0x1f8] sm:$0xff] %v1475
    %v1540 = vld [vmem:[%s0] sm:$0xe]
    %v1541 = vld [vmem:[%s0 + $0x4] sm:$0xf]
    %v1542 = vld [vmem:[%s0 + $0x8] sm:$0xf]
    %v1543 = vld [vmem:[%s0 + $0xc] sm:$0xf]
    %v1544 = vld [vmem:[%s0 + $0x10] sm:$0x1]
    %v1545 = vld [vmem:[%s0 + $0x14] sm:$0xe]
    %v1546 = vld [vmem:[%s0 + $0x18] sm:$0xf]
    %v1547 = vld [vmem:[%s0 + $0x1c] sm:$0xf]
    %v1548 = vld [vmem:[%s0 + $0x20] sm:$0xf]
    %v1549 = vld [vmem:[%s0 + $0x24] sm:$0x1]
    %v1550 = vld [vmem:[%s0 + $0x28] sm:$0xe]
    %v1551 = vld [vmem:[%s0 + $0x2c] sm:$0xf]
    %v1552 = vld [vmem:[%s0 + $0x30] sm:$0xf]
    %v1553 = vld [vmem:[%s0 + $0x34] sm:$0xf]
    %v1554 = vld [vmem:[%s0 + $0x38] sm:$0x1]
    %v1555 = vld [vmem:[%s0 + $0x3c] sm:$0xe]
    %v1556 = vld [vmem:[%s0 + $0x40] sm:$0xf]
    %v1557 = vld [vmem:[%s0 + $0x44] sm:$0xf]
    %v1558 = vld [vmem:[%s0 + $0x48] sm:$0xf]
    %v1559 = vld [vmem:[%s0 + $0x4c] sm:$0x1]
    %v1560 = vld [vmem:[%s0 + $0x50] sm:$0xe]
    %v1561 = vld [vmem:[%s0 + $0x54] sm:$0xf]
    %v1562 = vld [vmem:[%s0 + $0x58] sm:$0xf]
    %v1563 = vld [vmem:[%s0 + $0x5c] sm:$0xf]
    %v1564 = vld [vmem:[%s0 + $0x60] sm:$0x1]
    %v1565 = vld [vmem:[%s0 + $0x64] sm:$0xe]
    %v1566 = vld [vmem:[%s0 + $0x68] sm:$0xf]
    %v1567 = vld [vmem:[%s0 + $0x6c] sm:$0xf]
    %v1568 = vld [vmem:[%s0 + $0x70] sm:$0xf]
    %v1569 = vld [vmem:[%s0 + $0x74] sm:$0x1]
    %v1570 = vld [vmem:[%s0 + $0x78] sm:$0xe]
    %v1571 = vld [vmem:[%s0 + $0x7c] sm:$0xf]
    %v1572 = vld [vmem:[%s0 + $0x80] sm:$0xf]
    %v1573 = vld [vmem:[%s0 + $0x84] sm:$0xf]
    %v1574 = vld [vmem:[%s0 + $0x88] sm:$0x1]
    %v1575 = vld [vmem:[%s0 + $0x8c] sm:$0xe]
    %v1576 = vld [vmem:[%s0 + $0x90] sm:$0xf]
    %v1577 = vld [vmem:[%s0 + $0x94] sm:$0xf]
    %v1578 = vld [vmem:[%s0 + $0x98] sm:$0xf]
    %v1579 = vld [vmem:[%s0 + $0x9c] sm:$0x1]
    %vm1620 = vcmask 1042432
    %vm1621 = vcmask 1046532
    %vm1622 = vmor %vm1620, %vm1621
    %v1623 = vrot.slane %v1540, 5
    %v1624 = vrot.slane %v1623, 4
    %v1625 = vrot.slane %v1541, 5
    %v1626 = vsel %vm1622, %v1624, %v1625
    %v1627 = vrot.slane %v1625, 4
    %v1628 = vrot.slane %v1542, 5
    %v1629 = vsel %vm1622, %v1627, %v1628
    %v1630 = vrot.slane %v1628, 4
    %v1631 = vrot.slane %v1543, 5
    %v1632 = vsel %vm1622, %v1630, %v1631
    %v1633 = vrot.slane %v1631, 4
    %v1634 = vrot.slane %v1544, 5
    %v1635 = vsel %vm1622, %v1633, %v1634
    %v1636 = vrot.slane %v1545, 5
    %v1637 = vrot.slane %v1636, 4
    %v1638 = vrot.slane %v1546, 5
    %v1639 = vsel %vm1622, %v1637, %v1638
    %v1640 = vrot.slane %v1638, 4
    %v1641 = vrot.slane %v1547, 5
    %v1642 = vsel %vm1622, %v1640, %v1641
    %v1643 = vrot.slane %v1641, 4
    %v1644 = vrot.slane %v1548, 5
    %v1645 = vsel %vm1622, %v1643, %v1644
    %v1646 = vrot.slane %v1644, 4
    %v1647 = vrot.slane %v1549, 5
    %v1648 = vsel %vm1622, %v1646, %v1647
    %v1649 = vrot.slane %v1550, 5
    %v1650 = vrot.slane %v1649, 4
    %v1651 = vrot.slane %v1551, 5
    %v1652 = vsel %vm1622, %v1650, %v1651
    %v1653 = vrot.slane %v1651, 4
    %v1654 = vrot.slane %v1552, 5
    %v1655 = vsel %vm1622, %v1653, %v1654
    %v1656 = vrot.slane %v1654, 4
    %v1657 = vrot.slane %v1553, 5
    %v1658 = vsel %vm1622, %v1656, %v1657
    %v1659 = vrot.slane %v1657, 4
    %v1660 = vrot.slane %v1554, 5
    %v1661 = vsel %vm1622, %v1659, %v1660
    %v1662 = vrot.slane %v1555, 5
    %v1663 = vrot.slane %v1662, 4
    %v1664 = vrot.slane %v1556, 5
    %v1665 = vsel %vm1622, %v1663, %v1664
    %v1666 = vrot.slane %v1664, 4
    %v1667 = vrot.slane %v1557, 5
    %v1668 = vsel %vm1622, %v1666, %v1667
    %v1669 = vrot.slane %v1667, 4
    %v1670 = vrot.slane %v1558, 5
    %v1671 = vsel %vm1622, %v1669, %v1670
    %v1672 = vrot.slane %v1670, 4
    %v1673 = vrot.slane %v1559, 5
    %v1674 = vsel %vm1622, %v1672, %v1673
    %v1675 = vrot.slane %v1560, 5
    %v1676 = vrot.slane %v1675, 4
    %v1677 = vrot.slane %v1561, 5
    %v1678 = vsel %vm1622, %v1676, %v1677
    %v1679 = vrot.slane %v1677, 4
    %v1680 = vrot.slane %v1562, 5
    %v1681 = vsel %vm1622, %v1679, %v1680
    %v1682 = vrot.slane %v1680, 4
    %v1683 = vrot.slane %v1563, 5
    %v1684 = vsel %vm1622, %v1682, %v1683
    %v1685 = vrot.slane %v1683, 4
    %v1686 = vrot.slane %v1564, 5
    %v1687 = vsel %vm1622, %v1685, %v1686
    %v1688 = vrot.slane %v1565, 5
    %v1689 = vrot.slane %v1688, 4
    %v1690 = vrot.slane %v1566, 5
    %v1691 = vsel %vm1622, %v1689, %v1690
    %v1692 = vrot.slane %v1690, 4
    %v1693 = vrot.slane %v1567, 5
    %v1694 = vsel %vm1622, %v1692, %v1693
    %v1695 = vrot.slane %v1693, 4
    %v1696 = vrot.slane %v1568, 5
    %v1697 = vsel %vm1622, %v1695, %v1696
    %v1698 = vrot.slane %v1696, 4
    %v1699 = vrot.slane %v1569, 5
    %v1700 = vsel %vm1622, %v1698, %v1699
    %v1701 = vrot.slane %v1570, 5
    %v1702 = vrot.slane %v1701, 4
    %v1703 = vrot.slane %v1571, 5
    %v1704 = vsel %vm1622, %v1702, %v1703
    %v1705 = vrot.slane %v1703, 4
    %v1706 = vrot.slane %v1572, 5
    %v1707 = vsel %vm1622, %v1705, %v1706
    %v1708 = vrot.slane %v1706, 4
    %v1709 = vrot.slane %v1573, 5
    %v1710 = vsel %vm1622, %v1708, %v1709
    %v1711 = vrot.slane %v1709, 4
    %v1712 = vrot.slane %v1574, 5
    %v1713 = vsel %vm1622, %v1711, %v1712
    %v1714 = vrot.slane %v1575, 5
    %v1715 = vrot.slane %v1714, 4
    %v1716 = vrot.slane %v1576, 5
    %v1717 = vsel %vm1622, %v1715, %v1716
    %v1718 = vrot.slane %v1716, 4
    %v1719 = vrot.slane %v1577, 5
    %v1720 = vsel %vm1622, %v1718, %v1719
    %v1721 = vrot.slane %v1719, 4
    %v1722 = vrot.slane %v1578, 5
    %v1723 = vsel %vm1622, %v1721, %v1722
    %v1724 = vrot.slane %v1722, 4
    %v1725 = vrot.slane %v1579, 5
    %v1726 = vsel %vm1622, %v1724, %v1725
    %s1727 = scalar_lea.vmem %s1, 256
    %v1728 = vld [vmem:[%s1727] sm:$0xff]
    %v1729 = vld [vmem:[%s1727 + $0x8] sm:$0xff]
    %v1730 = vld [vmem:[%s1727 + $0x10] sm:$0xff]
    %v1731 = vld [vmem:[%s1727 + $0x18] sm:$0xff]
    %v1732 = vld [vmem:[%s1727 + $0x20] sm:$0xff]
    %v1733 = vld [vmem:[%s1727 + $0x28] sm:$0xff]
    %v1734 = vld [vmem:[%s1727 + $0x30] sm:$0xff]
    %v1735 = vld [vmem:[%s1727 + $0x38] sm:$0xff]
    %v1736 = vld [vmem:[%s1727 + $0x40] sm:$0xff]
    %v1737 = vld [vmem:[%s1727 + $0x48] sm:$0xff]
    %v1738 = vld [vmem:[%s1727 + $0x50] sm:$0xff]
    %v1739 = vld [vmem:[%s1727 + $0x58] sm:$0xff]
    %v1740 = vld [vmem:[%s1727 + $0x60] sm:$0xff]
    %v1741 = vld [vmem:[%s1727 + $0x68] sm:$0xff]
    %v1742 = vld [vmem:[%s1727 + $0x70] sm:$0xff]
    %v1743 = vld [vmem:[%s1727 + $0x78] sm:$0xff]
    %v1744 = vunpack.c.l.b16 %v1626
    %v1745 = vunpack.c.l.b16 %v1629
    %v1746 = vunpack.c.l.b16 %v1632
    %v1747 = vunpack.c.l.b16 %v1635
    %v1748 = vunpack.c.l.b16 %v1639
    %v1749 = vunpack.c.l.b16 %v1642
    %v1750 = vunpack.c.l.b16 %v1645
    %v1751 = vunpack.c.l.b16 %v1648
    %v1752 = vunpack.c.l.b16 %v1652
    %v1753 = vunpack.c.l.b16 %v1655
    %v1754 = vunpack.c.l.b16 %v1658
    %v1755 = vunpack.c.l.b16 %v1661
    %v1756 = vunpack.c.l.b16 %v1665
    %v1757 = vunpack.c.l.b16 %v1668
    %v1758 = vunpack.c.l.b16 %v1671
    %v1759 = vunpack.c.l.b16 %v1674
    %v1760 = vunpack.c.l.b16 %v1678
    %v1761 = vunpack.c.l.b16 %v1681
    %v1762 = vunpack.c.l.b16 %v1684
    %v1763 = vunpack.c.l.b16 %v1687
    %v1764 = vunpack.c.l.b16 %v1691
    %v1765 = vunpack.c.l.b16 %v1694
    %v1766 = vunpack.c.l.b16 %v1697
    %v1767 = vunpack.c.l.b16 %v1700
    %v1768 = vunpack.c.l.b16 %v1704
    %v1769 = vunpack.c.l.b16 %v1707
    %v1770 = vunpack.c.l.b16 %v1710
    %v1771 = vunpack.c.l.b16 %v1713
    %v1772 = vunpack.c.l.b16 %v1717
    %v1773 = vunpack.c.l.b16 %v1720
    %v1774 = vunpack.c.l.b16 %v1723
    %v1775 = vunpack.c.l.b16 %v1726
    %v1776 = vpack.c.b16 %v1745, %v1744
    %v1777 = vpack.c.b16 %v1747, %v1746
    %v1778 = vpack.c.b16 %v1749, %v1748
    %v1779 = vpack.c.b16 %v1751, %v1750
    %v1780 = vpack.c.b16 %v1753, %v1752
    %v1781 = vpack.c.b16 %v1755, %v1754
    %v1782 = vpack.c.b16 %v1757, %v1756
    %v1783 = vpack.c.b16 %v1759, %v1758
    %v1784 = vpack.c.b16 %v1761, %v1760
    %v1785 = vpack.c.b16 %v1763, %v1762
    %v1786 = vpack.c.b16 %v1765, %v1764
    %v1787 = vpack.c.b16 %v1767, %v1766
    %v1788 = vpack.c.b16 %v1769, %v1768
    %v1789 = vpack.c.b16 %v1771, %v1770
    %v1790 = vpack.c.b16 %v1773, %v1772
    %v1791 = vpack.c.b16 %v1775, %v1774
    %v1824 = vunpack.c.l.b16 %v1728
    %v1825 = vunpack.c.h.b16 %v1728
    %v1826 = vunpack.c.l.b16 %v1729
    %v1827 = vunpack.c.h.b16 %v1729
    %v1828 = vunpack.c.l.b16 %v1730
    %v1829 = vunpack.c.h.b16 %v1730
    %v1830 = vunpack.c.l.b16 %v1731
    %v1831 = vunpack.c.h.b16 %v1731
    %v1832 = vunpack.c.l.b16 %v1732
    %v1833 = vunpack.c.h.b16 %v1732
    %v1834 = vunpack.c.l.b16 %v1733
    %v1835 = vunpack.c.h.b16 %v1733
    %v1836 = vunpack.c.l.b16 %v1734
    %v1837 = vunpack.c.h.b16 %v1734
    %v1838 = vunpack.c.l.b16 %v1735
    %v1839 = vunpack.c.h.b16 %v1735
    %v1840 = vunpack.c.l.b16 %v1736
    %v1841 = vunpack.c.h.b16 %v1736
    %v1842 = vunpack.c.l.b16 %v1737
    %v1843 = vunpack.c.h.b16 %v1737
    %v1844 = vunpack.c.l.b16 %v1738
    %v1845 = vunpack.c.h.b16 %v1738
    %v1846 = vunpack.c.l.b16 %v1739
    %v1847 = vunpack.c.h.b16 %v1739
    %v1848 = vunpack.c.l.b16 %v1740
    %v1849 = vunpack.c.h.b16 %v1740
    %v1850 = vunpack.c.l.b16 %v1741
    %v1851 = vunpack.c.h.b16 %v1741
    %v1852 = vunpack.c.l.b16 %v1742
    %v1853 = vunpack.c.h.b16 %v1742
    %v1854 = vunpack.c.l.b16 %v1743
    %v1855 = vunpack.c.h.b16 %v1743
    %v1856 = vpack.c.b16 %v1826, %v1824
    %v1857 = vpack.c.b16 %v1827, %v1825
    %v1858 = vpack.c.b16 %v1830, %v1828
    %v1859 = vpack.c.b16 %v1831, %v1829
    %v1860 = vpack.c.b16 %v1834, %v1832
    %v1861 = vpack.c.b16 %v1835, %v1833
    %v1862 = vpack.c.b16 %v1838, %v1836
    %v1863 = vpack.c.b16 %v1839, %v1837
    %v1864 = vpack.c.b16 %v1842, %v1840
    %v1865 = vpack.c.b16 %v1843, %v1841
    %v1866 = vpack.c.b16 %v1846, %v1844
    %v1867 = vpack.c.b16 %v1847, %v1845
    %v1868 = vpack.c.b16 %v1850, %v1848
    %v1869 = vpack.c.b16 %v1851, %v1849
    %v1870 = vpack.c.b16 %v1854, %v1852
    %v1871 = vpack.c.b16 %v1855, %v1853
    %1888 = vmatpush.bf16.msra.mxu0 %v1870
    %1889 = vmatpush.bf16.msra.mxu0 %v1868
    %1890 = vmatpush.bf16.msra.mxu0 %v1866
    %1891 = vmatpush.bf16.msra.mxu0 %v1864
    %1892 = vmatpush.bf16.msra.mxu0 %v1862
    %1893 = vmatpush.bf16.msra.mxu0 %v1860
    %1894 = vmatpush.bf16.msra.mxu0 %v1858
    %1895 = vmatpush.bf16.msra.mxu0 %v1856
    %1896 = vmatmul.bf16.gmra.mxu0 %v1776
    %v1897 = vpop.f32.mrf.mxu0
    %v1898 = vadd.f32 0.0, %v1897
    %v1899 = vpop.f32.mrf.mxu0
    %v1900 = vadd.f32 0.0, %v1899
    %1901 = vmatmul.bf16.gmra.mxu0 %v1777
    %v1902 = vpop.f32.mrf.mxu0
    %v1903 = vadd.f32 0.0, %v1902
    %v1904 = vpop.f32.mrf.mxu0
    %v1905 = vadd.f32 0.0, %v1904
    %1906 = vmatmul.bf16.gmra.mxu0 %v1778
    %v1907 = vpop.f32.mrf.mxu0
    %v1908 = vadd.f32 0.0, %v1907
    %v1909 = vpop.f32.mrf.mxu0
    %v1910 = vadd.f32 0.0, %v1909
    %1911 = vmatmul.bf16.gmra.mxu0 %v1779
    %v1912 = vpop.f32.mrf.mxu0
    %v1913 = vadd.f32 0.0, %v1912
    %v1914 = vpop.f32.mrf.mxu0
    %v1915 = vadd.f32 0.0, %v1914
    %1916 = vmatmul.bf16.gmra.mxu0 %v1780
    %v1917 = vpop.f32.mrf.mxu0
    %v1918 = vadd.f32 0.0, %v1917
    %v1919 = vpop.f32.mrf.mxu0
    %v1920 = vadd.f32 0.0, %v1919
    %1921 = vmatmul.bf16.gmra.mxu0 %v1781
    %v1922 = vpop.f32.mrf.mxu0
    %v1923 = vadd.f32 0.0, %v1922
    %v1924 = vpop.f32.mrf.mxu0
    %v1925 = vadd.f32 0.0, %v1924
    %1926 = vmatmul.bf16.gmra.mxu0 %v1782
    %v1927 = vpop.f32.mrf.mxu0
    %v1928 = vadd.f32 0.0, %v1927
    %v1929 = vpop.f32.mrf.mxu0
    %v1930 = vadd.f32 0.0, %v1929
    %1931 = vmatmul.bf16.gmra.mxu0 %v1783
    %v1932 = vpop.f32.mrf.mxu0
    %v1933 = vadd.f32 0.0, %v1932
    %v1934 = vpop.f32.mrf.mxu0
    %v1935 = vadd.f32 0.0, %v1934
    %1936 = vmatmul.bf16.gmra.mxu0 %v1784
    %v1937 = vpop.f32.mrf.mxu0
    %v1938 = vadd.f32 0.0, %v1937
    %v1939 = vpop.f32.mrf.mxu0
    %v1940 = vadd.f32 0.0, %v1939
    %1941 = vmatmul.bf16.gmra.mxu0 %v1785
    %v1942 = vpop.f32.mrf.mxu0
    %v1943 = vadd.f32 0.0, %v1942
    %v1944 = vpop.f32.mrf.mxu0
    %v1945 = vadd.f32 0.0, %v1944
    %1946 = vmatmul.bf16.gmra.mxu0 %v1786
    %v1947 = vpop.f32.mrf.mxu0
    %v1948 = vadd.f32 0.0, %v1947
    %v1949 = vpop.f32.mrf.mxu0
    %v1950 = vadd.f32 0.0, %v1949
    %1951 = vmatmul.bf16.gmra.mxu0 %v1787
    %v1952 = vpop.f32.mrf.mxu0
    %v1953 = vadd.f32 0.0, %v1952
    %v1954 = vpop.f32.mrf.mxu0
    %v1955 = vadd.f32 0.0, %v1954
    %1956 = vmatmul.bf16.gmra.mxu0 %v1788
    %v1957 = vpop.f32.mrf.mxu0
    %v1958 = vadd.f32 0.0, %v1957
    %v1959 = vpop.f32.mrf.mxu0
    %v1960 = vadd.f32 0.0, %v1959
    %1961 = vmatmul.bf16.gmra.mxu0 %v1789
    %v1962 = vpop.f32.mrf.mxu0
    %v1963 = vadd.f32 0.0, %v1962
    %v1964 = vpop.f32.mrf.mxu0
    %v1965 = vadd.f32 0.0, %v1964
    %1966 = vmatmul.bf16.gmra.mxu0 %v1790
    %v1967 = vpop.f32.mrf.mxu0
    %v1968 = vadd.f32 0.0, %v1967
    %v1969 = vpop.f32.mrf.mxu0
    %v1970 = vadd.f32 0.0, %v1969
    %1971 = vmatmul.bf16.gmra.mxu0 %v1791
    %v1972 = vpop.f32.mrf.mxu0
    %v1973 = vadd.f32 0.0, %v1972
    %v1974 = vpop.f32.mrf.mxu0
    %v1975 = vadd.f32 0.0, %v1974
    %1976 = vdwg.mxu0
    %1977 = vmatpush.bf16.msra.mxu0 %v1871
    %1978 = vmatpush.bf16.msra.mxu0 %v1869
    %1979 = vmatpush.bf16.msra.mxu0 %v1867
    %1980 = vmatpush.bf16.msra.mxu0 %v1865
    %1981 = vmatpush.bf16.msra.mxu0 %v1863
    %1982 = vmatpush.bf16.msra.mxu0 %v1861
    %1983 = vmatpush.bf16.msra.mxu0 %v1859
    %1984 = vmatpush.bf16.msra.mxu0 %v1857
    %1985 = vmatmul.bf16.gmra.mxu0 %v1776
    %v1986 = vpop.f32.mrf.mxu0
    %v1987 = vadd.f32 0.0, %v1986
    %v1988 = vpop.f32.mrf.mxu0
    %v1989 = vadd.f32 0.0, %v1988
    %1990 = vmatmul.bf16.gmra.mxu0 %v1777
    %v1991 = vpop.f32.mrf.mxu0
    %v1992 = vadd.f32 0.0, %v1991
    %v1993 = vpop.f32.mrf.mxu0
    %v1994 = vadd.f32 0.0, %v1993
    %1995 = vmatmul.bf16.gmra.mxu0 %v1778
    %v1996 = vpop.f32.mrf.mxu0
    %v1997 = vadd.f32 0.0, %v1996
    %v1998 = vpop.f32.mrf.mxu0
    %v1999 = vadd.f32 0.0, %v1998
    %2000 = vmatmul.bf16.gmra.mxu0 %v1779
    %v2001 = vpop.f32.mrf.mxu0
    %v2002 = vadd.f32 0.0, %v2001
    %v2003 = vpop.f32.mrf.mxu0
    %v2004 = vadd.f32 0.0, %v2003
    %2005 = vmatmul.bf16.gmra.mxu0 %v1780
    %v2006 = vpop.f32.mrf.mxu0
    %v2007 = vadd.f32 0.0, %v2006
    %v2008 = vpop.f32.mrf.mxu0
    %v2009 = vadd.f32 0.0, %v2008
    %2010 = vmatmul.bf16.gmra.mxu0 %v1781
    %v2011 = vpop.f32.mrf.mxu0
    %v2012 = vadd.f32 0.0, %v2011
    %v2013 = vpop.f32.mrf.mxu0
    %v2014 = vadd.f32 0.0, %v2013
    %2015 = vmatmul.bf16.gmra.mxu0 %v1782
    %v2016 = vpop.f32.mrf.mxu0
    %v2017 = vadd.f32 0.0, %v2016
    %v2018 = vpop.f32.mrf.mxu0
    %v2019 = vadd.f32 0.0, %v2018
    %2020 = vmatmul.bf16.gmra.mxu0 %v1783
    %v2021 = vpop.f32.mrf.mxu0
    %v2022 = vadd.f32 0.0, %v2021
    %v2023 = vpop.f32.mrf.mxu0
    %v2024 = vadd.f32 0.0, %v2023
    %2025 = vmatmul.bf16.gmra.mxu0 %v1784
    %v2026 = vpop.f32.mrf.mxu0
    %v2027 = vadd.f32 0.0, %v2026
    %v2028 = vpop.f32.mrf.mxu0
    %v2029 = vadd.f32 0.0, %v2028
    %2030 = vmatmul.bf16.gmra.mxu0 %v1785
    %v2031 = vpop.f32.mrf.mxu0
    %v2032 = vadd.f32 0.0, %v2031
    %v2033 = vpop.f32.mrf.mxu0
    %v2034 = vadd.f32 0.0, %v2033
    %2035 = vmatmul.bf16.gmra.mxu0 %v1786
    %v2036 = vpop.f32.mrf.mxu0
    %v2037 = vadd.f32 0.0, %v2036
    %v2038 = vpop.f32.mrf.mxu0
    %v2039 = vadd.f32 0.0, %v2038
    %2040 = vmatmul.bf16.gmra.mxu0 %v1787
    %v2041 = vpop.f32.mrf.mxu0
    %v2042 = vadd.f32 0.0, %v2041
    %v2043 = vpop.f32.mrf.mxu0
    %v2044 = vadd.f32 0.0, %v2043
    %2045 = vmatmul.bf16.gmra.mxu0 %v1788
    %v2046 = vpop.f32.mrf.mxu0
    %v2047 = vadd.f32 0.0, %v2046
    %v2048 = vpop.f32.mrf.mxu0
    %v2049 = vadd.f32 0.0, %v2048
    %2050 = vmatmul.bf16.gmra.mxu0 %v1789
    %v2051 = vpop.f32.mrf.mxu0
    %v2052 = vadd.f32 0.0, %v2051
    %v2053 = vpop.f32.mrf.mxu0
    %v2054 = vadd.f32 0.0, %v2053
    %2055 = vmatmul.bf16.gmra.mxu0 %v1790
    %v2056 = vpop.f32.mrf.mxu0
    %v2057 = vadd.f32 0.0, %v2056
    %v2058 = vpop.f32.mrf.mxu0
    %v2059 = vadd.f32 0.0, %v2058
    %2060 = vmatmul.bf16.gmra.mxu0 %v1791
    %v2061 = vpop.f32.mrf.mxu0
    %v2062 = vadd.f32 0.0, %v2061
    %v2063 = vpop.f32.mrf.mxu0
    %v2064 = vadd.f32 0.0, %v2063
    %2065 = vdwg.mxu0
    %v2066 = vld [vmem:[#allocation2] sm:$0xff]
    %v2067 = vld [vmem:[#allocation2 + $0x8] sm:$0xff]
    %v2068 = vld [vmem:[#allocation2 + $0x10] sm:$0xff]
    %v2069 = vld [vmem:[#allocation2 + $0x18] sm:$0xff]
    %v2070 = vld [vmem:[#allocation2 + $0x20] sm:$0xff]
    %v2071 = vld [vmem:[#allocation2 + $0x28] sm:$0xff]
    %v2072 = vld [vmem:[#allocation2 + $0x30] sm:$0xff]
    %v2073 = vld [vmem:[#allocation2 + $0x38] sm:$0xff]
    %v2074 = vld [vmem:[#allocation2 + $0x40] sm:$0xff]
    %v2075 = vld [vmem:[#allocation2 + $0x48] sm:$0xff]
    %v2076 = vld [vmem:[#allocation2 + $0x50] sm:$0xff]
    %v2077 = vld [vmem:[#allocation2 + $0x58] sm:$0xff]
    %v2078 = vld [vmem:[#allocation2 + $0x60] sm:$0xff]
    %v2079 = vld [vmem:[#allocation2 + $0x68] sm:$0xff]
    %v2080 = vld [vmem:[#allocation2 + $0x70] sm:$0xff]
    %v2081 = vld [vmem:[#allocation2 + $0x78] sm:$0xff]
    %v2082 = vld [vmem:[#allocation2 + $0x80] sm:$0xff]
    %v2083 = vld [vmem:[#allocation2 + $0x88] sm:$0xff]
    %v2084 = vld [vmem:[#allocation2 + $0x90] sm:$0xff]
    %v2085 = vld [vmem:[#allocation2 + $0x98] sm:$0xff]
    %v2086 = vld [vmem:[#allocation2 + $0xa0] sm:$0xff]
    %v2087 = vld [vmem:[#allocation2 + $0xa8] sm:$0xff]
    %v2088 = vld [vmem:[#allocation2 + $0xb0] sm:$0xff]
    %v2089 = vld [vmem:[#allocation2 + $0xb8] sm:$0xff]
    %v2090 = vld [vmem:[#allocation2 + $0xc0] sm:$0xff]
    %v2091 = vld [vmem:[#allocation2 + $0xc8] sm:$0xff]
    %v2092 = vld [vmem:[#allocation2 + $0xd0] sm:$0xff]
    %v2093 = vld [vmem:[#allocation2 + $0xd8] sm:$0xff]
    %v2094 = vld [vmem:[#allocation2 + $0xe0] sm:$0xff]
    %v2095 = vld [vmem:[#allocation2 + $0xe8] sm:$0xff]
    %v2096 = vld [vmem:[#allocation2 + $0xf0] sm:$0xff]
    %v2097 = vld [vmem:[#allocation2 + $0xf8] sm:$0xff]
    %v2098 = vld [vmem:[#allocation2 + $0x100] sm:$0xff]
    %v2099 = vld [vmem:[#allocation2 + $0x108] sm:$0xff]
    %v2100 = vld [vmem:[#allocation2 + $0x110] sm:$0xff]
    %v2101 = vld [vmem:[#allocation2 + $0x118] sm:$0xff]
    %v2102 = vld [vmem:[#allocation2 + $0x120] sm:$0xff]
    %v2103 = vld [vmem:[#allocation2 + $0x128] sm:$0xff]
    %v2104 = vld [vmem:[#allocation2 + $0x130] sm:$0xff]
    %v2105 = vld [vmem:[#allocation2 + $0x138] sm:$0xff]
    %v2106 = vld [vmem:[#allocation2 + $0x140] sm:$0xff]
    %v2107 = vld [vmem:[#allocation2 + $0x148] sm:$0xff]
    %v2108 = vld [vmem:[#allocation2 + $0x150] sm:$0xff]
    %v2109 = vld [vmem:[#allocation2 + $0x158] sm:$0xff]
    %v2110 = vld [vmem:[#allocation2 + $0x160] sm:$0xff]
    %v2111 = vld [vmem:[#allocation2 + $0x168] sm:$0xff]
    %v2112 = vld [vmem:[#allocation2 + $0x170] sm:$0xff]
    %v2113 = vld [vmem:[#allocation2 + $0x178] sm:$0xff]
    %v2114 = vld [vmem:[#allocation2 + $0x180] sm:$0xff]
    %v2115 = vld [vmem:[#allocation2 + $0x188] sm:$0xff]
    %v2116 = vld [vmem:[#allocation2 + $0x190] sm:$0xff]
    %v2117 = vld [vmem:[#allocation2 + $0x198] sm:$0xff]
    %v2118 = vld [vmem:[#allocation2 + $0x1a0] sm:$0xff]
    %v2119 = vld [vmem:[#allocation2 + $0x1a8] sm:$0xff]
    %v2120 = vld [vmem:[#allocation2 + $0x1b0] sm:$0xff]
    %v2121 = vld [vmem:[#allocation2 + $0x1b8] sm:$0xff]
    %v2122 = vld [vmem:[#allocation2 + $0x1c0] sm:$0xff]
    %v2123 = vld [vmem:[#allocation2 + $0x1c8] sm:$0xff]
    %v2124 = vld [vmem:[#allocation2 + $0x1d0] sm:$0xff]
    %v2125 = vld [vmem:[#allocation2 + $0x1d8] sm:$0xff]
    %v2126 = vld [vmem:[#allocation2 + $0x1e0] sm:$0xff]
    %v2127 = vld [vmem:[#allocation2 + $0x1e8] sm:$0xff]
    %v2128 = vld [vmem:[#allocation2 + $0x1f0] sm:$0xff]
    %v2129 = vld [vmem:[#allocation2 + $0x1f8] sm:$0xff]
    %v2130 = vadd.f32 %v2066, %v1898
    %v2131 = vadd.f32 %v2067, %v1987
    %v2132 = vadd.f32 %v2068, %v1900
    %v2133 = vadd.f32 %v2069, %v1989
    %v2134 = vadd.f32 %v2070, %v1903
    %v2135 = vadd.f32 %v2071, %v1992
    %v2136 = vadd.f32 %v2072, %v1905
    %v2137 = vadd.f32 %v2073, %v1994
    %v2138 = vadd.f32 %v2074, %v1908
    %v2139 = vadd.f32 %v2075, %v1997
    %v2140 = vadd.f32 %v2076, %v1910
    %v2141 = vadd.f32 %v2077, %v1999
    %v2142 = vadd.f32 %v2078, %v1913
    %v2143 = vadd.f32 %v2079, %v2002
    %v2144 = vadd.f32 %v2080, %v1915
    %v2145 = vadd.f32 %v2081, %v2004
    %v2146 = vadd.f32 %v2082, %v1918
    %v2147 = vadd.f32 %v2083, %v2007
    %v2148 = vadd.f32 %v2084, %v1920
    %v2149 = vadd.f32 %v2085, %v2009
    %v2150 = vadd.f32 %v2086, %v1923
    %v2151 = vadd.f32 %v2087, %v2012
    %v2152 = vadd.f32 %v2088, %v1925
    %v2153 = vadd.f32 %v2089, %v2014
    %v2154 = vadd.f32 %v2090, %v1928
    %v2155 = vadd.f32 %v2091, %v2017
    %v2156 = vadd.f32 %v2092, %v1930
    %v2157 = vadd.f32 %v2093, %v2019
    %v2158 = vadd.f32 %v2094, %v1933
    %v2159 = vadd.f32 %v2095, %v2022
    %v2160 = vadd.f32 %v2096, %v1935
    %v2161 = vadd.f32 %v2097, %v2024
    %v2162 = vadd.f32 %v2098, %v1938
    %v2163 = vadd.f32 %v2099, %v2027
    %v2164 = vadd.f32 %v2100, %v1940
    %v2165 = vadd.f32 %v2101, %v2029
    %v2166 = vadd.f32 %v2102, %v1943
    %v2167 = vadd.f32 %v2103, %v2032
    %v2168 = vadd.f32 %v2104, %v1945
    %v2169 = vadd.f32 %v2105, %v2034
    %v2170 = vadd.f32 %v2106, %v1948
    %v2171 = vadd.f32 %v2107, %v2037
    %v2172 = vadd.f32 %v2108, %v1950
    %v2173 = vadd.f32 %v2109, %v2039
    %v2174 = vadd.f32 %v2110, %v1953
    %v2175 = vadd.f32 %v2111, %v2042
    %v2176 = vadd.f32 %v2112, %v1955
    %v2177 = vadd.f32 %v2113, %v2044
    %v2178 = vadd.f32 %v2114, %v1958
    %v2179 = vadd.f32 %v2115, %v2047
    %v2180 = vadd.f32 %v2116, %v1960
    %v2181 = vadd.f32 %v2117, %v2049
    %v2182 = vadd.f32 %v2118, %v1963
    %v2183 = vadd.f32 %v2119, %v2052
    %v2184 = vadd.f32 %v2120, %v1965
    %v2185 = vadd.f32 %v2121, %v2054
    %v2186 = vadd.f32 %v2122, %v1968
    %v2187 = vadd.f32 %v2123, %v2057
    %v2188 = vadd.f32 %v2124, %v1970
    %v2189 = vadd.f32 %v2125, %v2059
    %v2190 = vadd.f32 %v2126, %v1973
    %v2191 = vadd.f32 %v2127, %v2062
    %v2192 = vadd.f32 %v2128, %v1975
    %v2193 = vadd.f32 %v2129, %v2064
    %2194 = vst [vmem:[#allocation2] sm:$0xff] %v2130
    %2195 = vst [vmem:[#allocation2 + $0x8] sm:$0xff] %v2131
    %2196 = vst [vmem:[#allocation2 + $0x10] sm:$0xff] %v2132
    %2197 = vst [vmem:[#allocation2 + $0x18] sm:$0xff] %v2133
    %2198 = vst [vmem:[#allocation2 + $0x20] sm:$0xff] %v2134
    %2199 = vst [vmem:[#allocation2 + $0x28] sm:$0xff] %v2135
    %2200 = vst [vmem:[#allocation2 + $0x30] sm:$0xff] %v2136
    %2201 = vst [vmem:[#allocation2 + $0x38] sm:$0xff] %v2137
    %2202 = vst [vmem:[#allocation2 + $0x40] sm:$0xff] %v2138
    %2203 = vst [vmem:[#allocation2 + $0x48] sm:$0xff] %v2139
    %2204 = vst [vmem:[#allocation2 + $0x50] sm:$0xff] %v2140
    %2205 = vst [vmem:[#allocation2 + $0x58] sm:$0xff] %v2141
    %2206 = vst [vmem:[#allocation2 + $0x60] sm:$0xff] %v2142
    %2207 = vst [vmem:[#allocation2 + $0x68] sm:$0xff] %v2143
    %2208 = vst [vmem:[#allocation2 + $0x70] sm:$0xff] %v2144
    %2209 = vst [vmem:[#allocation2 + $0x78] sm:$0xff] %v2145
    %2210 = vst [vmem:[#allocation2 + $0x80] sm:$0xff] %v2146
    %2211 = vst [vmem:[#allocation2 + $0x88] sm:$0xff] %v2147
    %2212 = vst [vmem:[#allocation2 + $0x90] sm:$0xff] %v2148
    %2213 = vst [vmem:[#allocation2 + $0x98] sm:$0xff] %v2149
    %2214 = vst [vmem:[#allocation2 + $0xa0] sm:$0xff] %v2150
    %2215 = vst [vmem:[#allocation2 + $0xa8] sm:$0xff] %v2151
    %2216 = vst [vmem:[#allocation2 + $0xb0] sm:$0xff] %v2152
    %2217 = vst [vmem:[#allocation2 + $0xb8] sm:$0xff] %v2153
    %2218 = vst [vmem:[#allocation2 + $0xc0] sm:$0xff] %v2154
    %2219 = vst [vmem:[#allocation2 + $0xc8] sm:$0xff] %v2155
    %2220 = vst [vmem:[#allocation2 + $0xd0] sm:$0xff] %v2156
    %2221 = vst [vmem:[#allocation2 + $0xd8] sm:$0xff] %v2157
    %2222 = vst [vmem:[#allocation2 + $0xe0] sm:$0xff] %v2158
    %2223 = vst [vmem:[#allocation2 + $0xe8] sm:$0xff] %v2159
    %2224 = vst [vmem:[#allocation2 + $0xf0] sm:$0xff] %v2160
    %2225 = vst [vmem:[#allocation2 + $0xf8] sm:$0xff] %v2161
    %2226 = vst [vmem:[#allocation2 + $0x100] sm:$0xff] %v2162
    %2227 = vst [vmem:[#allocation2 + $0x108] sm:$0xff] %v2163
    %2228 = vst [vmem:[#allocation2 + $0x110] sm:$0xff] %v2164
    %2229 = vst [vmem:[#allocation2 + $0x118] sm:$0xff] %v2165
    %2230 = vst [vmem:[#allocation2 + $0x120] sm:$0xff] %v2166
    %2231 = vst [vmem:[#allocation2 + $0x128] sm:$0xff] %v2167
    %2232 = vst [vmem:[#allocation2 + $0x130] sm:$0xff] %v2168
    %2233 = vst [vmem:[#allocation2 + $0x138] sm:$0xff] %v2169
    %2234 = vst [vmem:[#allocation2 + $0x140] sm:$0xff] %v2170
    %2235 = vst [vmem:[#allocation2 + $0x148] sm:$0xff] %v2171
    %2236 = vst [vmem:[#allocation2 + $0x150] sm:$0xff] %v2172
    %2237 = vst [vmem:[#allocation2 + $0x158] sm:$0xff] %v2173
    %2238 = vst [vmem:[#allocation2 + $0x160] sm:$0xff] %v2174
    %2239 = vst [vmem:[#allocation2 + $0x168] sm:$0xff] %v2175
    %2240 = vst [vmem:[#allocation2 + $0x170] sm:$0xff] %v2176
    %2241 = vst [vmem:[#allocation2 + $0x178] sm:$0xff] %v2177
    %2242 = vst [vmem:[#allocation2 + $0x180] sm:$0xff] %v2178
    %2243 = vst [vmem:[#allocation2 + $0x188] sm:$0xff] %v2179
    %2244 = vst [vmem:[#allocation2 + $0x190] sm:$0xff] %v2180
    %2245 = vst [vmem:[#allocation2 + $0x198] sm:$0xff] %v2181
    %2246 = vst [vmem:[#allocation2 + $0x1a0] sm:$0xff] %v2182
    %2247 = vst [vmem:[#allocation2 + $0x1a8] sm:$0xff] %v2183
    %2248 = vst [vmem:[#allocation2 + $0x1b0] sm:$0xff] %v2184
    %2249 = vst [vmem:[#allocation2 + $0x1b8] sm:$0xff] %v2185
    %2250 = vst [vmem:[#allocation2 + $0x1c0] sm:$0xff] %v2186
    %2251 = vst [vmem:[#allocation2 + $0x1c8] sm:$0xff] %v2187
    %2252 = vst [vmem:[#allocation2 + $0x1d0] sm:$0xff] %v2188
    %2253 = vst [vmem:[#allocation2 + $0x1d8] sm:$0xff] %v2189
    %2254 = vst [vmem:[#allocation2 + $0x1e0] sm:$0xff] %v2190
    %2255 = vst [vmem:[#allocation2 + $0x1e8] sm:$0xff] %v2191
    %2256 = vst [vmem:[#allocation2 + $0x1f0] sm:$0xff] %v2192
    %2257 = vst [vmem:[#allocation2 + $0x1f8] sm:$0xff] %v2193
    %v2258 = vld [vmem:[%s0] sm:$0xe]
    %v2259 = vld [vmem:[%s0 + $0x4] sm:$0xf]
    %v2260 = vld [vmem:[%s0 + $0x8] sm:$0xf]
    %v2261 = vld [vmem:[%s0 + $0xc] sm:$0xf]
    %v2262 = vld [vmem:[%s0 + $0x10] sm:$0x3]
    %v2263 = vld [vmem:[%s0 + $0x14] sm:$0xe]
    %v2264 = vld [vmem:[%s0 + $0x18] sm:$0xf]
    %v2265 = vld [vmem:[%s0 + $0x1c] sm:$0xf]
    %v2266 = vld [vmem:[%s0 + $0x20] sm:$0xf]
    %v2267 = vld [vmem:[%s0 + $0x24] sm:$0x3]
    %v2268 = vld [vmem:[%s0 + $0x28] sm:$0xe]
    %v2269 = vld [vmem:[%s0 + $0x2c] sm:$0xf]
    %v2270 = vld [vmem:[%s0 + $0x30] sm:$0xf]
    %v2271 = vld [vmem:[%s0 + $0x34] sm:$0xf]
    %v2272 = vld [vmem:[%s0 + $0x38] sm:$0x3]
    %v2273 = vld [vmem:[%s0 + $0x3c] sm:$0xe]
    %v2274 = vld [vmem:[%s0 + $0x40] sm:$0xf]
    %v2275 = vld [vmem:[%s0 + $0x44] sm:$0xf]
    %v2276 = vld [vmem:[%s0 + $0x48] sm:$0xf]
    %v2277 = vld [vmem:[%s0 + $0x4c] sm:$0x3]
    %v2278 = vld [vmem:[%s0 + $0x50] sm:$0xe]
    %v2279 = vld [vmem:[%s0 + $0x54] sm:$0xf]
    %v2280 = vld [vmem:[%s0 + $0x58] sm:$0xf]
    %v2281 = vld [vmem:[%s0 + $0x5c] sm:$0xf]
    %v2282 = vld [vmem:[%s0 + $0x60] sm:$0x3]
    %v2283 = vld [vmem:[%s0 + $0x64] sm:$0xe]
    %v2284 = vld [vmem:[%s0 + $0x68] sm:$0xf]
    %v2285 = vld [vmem:[%s0 + $0x6c] sm:$0xf]
    %v2286 = vld [vmem:[%s0 + $0x70] sm:$0xf]
    %v2287 = vld [vmem:[%s0 + $0x74] sm:$0x3]
    %v2288 = vld [vmem:[%s0 + $0x78] sm:$0xe]
    %v2289 = vld [vmem:[%s0 + $0x7c] sm:$0xf]
    %v2290 = vld [vmem:[%s0 + $0x80] sm:$0xf]
    %v2291 = vld [vmem:[%s0 + $0x84] sm:$0xf]
    %v2292 = vld [vmem:[%s0 + $0x88] sm:$0x3]
    %v2293 = vld [vmem:[%s0 + $0x8c] sm:$0xe]
    %v2294 = vld [vmem:[%s0 + $0x90] sm:$0xf]
    %v2295 = vld [vmem:[%s0 + $0x94] sm:$0xf]
    %v2296 = vld [vmem:[%s0 + $0x98] sm:$0xf]
    %v2297 = vld [vmem:[%s0 + $0x9c] sm:$0x3]
    %vm2298 = vsmask.f32 2304
    %vm2299 = vsmask.f32 6416
    %vm2300 = vmor %vm2298, %vm2299
    %v2302 = vshrl.u32 %v2258, 16
    %v2304 = vrot.slane %v2302, 5
    %v2305 = vshll.u32 %v2258, 16
    %v2307 = vrot.slane %v2305, 6
    %v2308 = vor.u32 %v2304, %v2307
    %v2309 = vrot.slane %v2308, 4
    %v2311 = vshrl.u32 %v2259, 16
    %v2313 = vrot.slane %v2311, 5
    %v2314 = vshll.u32 %v2259, 16
    %v2316 = vrot.slane %v2314, 6
    %v2317 = vor.u32 %v2313, %v2316
    %v2318 = vsel %vm2300, %v2309, %v2317
    %v2319 = vrot.slane %v2317, 4
    %v2321 = vshrl.u32 %v2260, 16
    %v2323 = vrot.slane %v2321, 5
    %v2324 = vshll.u32 %v2260, 16
    %v2326 = vrot.slane %v2324, 6
    %v2327 = vor.u32 %v2323, %v2326
    %v2328 = vsel %vm2300, %v2319, %v2327
    %v2329 = vrot.slane %v2327, 4
    %v2331 = vshrl.u32 %v2261, 16
    %v2333 = vrot.slane %v2331, 5
    %v2334 = vshll.u32 %v2261, 16
    %v2336 = vrot.slane %v2334, 6
    %v2337 = vor.u32 %v2333, %v2336
    %v2338 = vsel %vm2300, %v2329, %v2337
    %v2339 = vrot.slane %v2337, 4
    %v2341 = vshrl.u32 %v2262, 16
    %v2343 = vrot.slane %v2341, 5
    %v2344 = vshll.u32 %v2262, 16
    %v2346 = vrot.slane %v2344, 6
    %v2347 = vor.u32 %v2343, %v2346
    %v2348 = vsel %vm2300, %v2339, %v2347
    %v2350 = vshrl.u32 %v2263, 16
    %v2352 = vrot.slane %v2350, 5
    %v2353 = vshll.u32 %v2263, 16
    %v2355 = vrot.slane %v2353, 6
    %v2356 = vor.u32 %v2352, %v2355
    %v2357 = vrot.slane %v2356, 4
    %v2359 = vshrl.u32 %v2264, 16
    %v2361 = vrot.slane %v2359, 5
    %v2362 = vshll.u32 %v2264, 16
    %v2364 = vrot.slane %v2362, 6
    %v2365 = vor.u32 %v2361, %v2364
    %v2366 = vsel %vm2300, %v2357, %v2365
    %v2367 = vrot.slane %v2365, 4
    %v2369 = vshrl.u32 %v2265, 16
    %v2371 = vrot.slane %v2369, 5
    %v2372 = vshll.u32 %v2265, 16
    %v2374 = vrot.slane %v2372, 6
    %v2375 = vor.u32 %v2371, %v2374
    %v2376 = vsel %vm2300, %v2367, %v2375
    %v2377 = vrot.slane %v2375, 4
    %v2379 = vshrl.u32 %v2266, 16
    %v2381 = vrot.slane %v2379, 5
    %v2382 = vshll.u32 %v2266, 16
    %v2384 = vrot.slane %v2382, 6
    %v2385 = vor.u32 %v2381, %v2384
    %v2386 = vsel %vm2300, %v2377, %v2385
    %v2387 = vrot.slane %v2385, 4
    %v2389 = vshrl.u32 %v2267, 16
    %v2391 = vrot.slane %v2389, 5
    %v2392 = vshll.u32 %v2267, 16
    %v2394 = vrot.slane %v2392, 6
    %v2395 = vor.u32 %v2391, %v2394
    %v2396 = vsel %vm2300, %v2387, %v2395
    %v2398 = vshrl.u32 %v2268, 16
    %v2400 = vrot.slane %v2398, 5
    %v2401 = vshll.u32 %v2268, 16
    %v2403 = vrot.slane %v2401, 6
    %v2404 = vor.u32 %v2400, %v2403
    %v2405 = vrot.slane %v2404, 4
    %v2407 = vshrl.u32 %v2269, 16
    %v2409 = vrot.slane %v2407, 5
    %v2410 = vshll.u32 %v2269, 16
    %v2412 = vrot.slane %v2410, 6
    %v2413 = vor.u32 %v2409, %v2412
    %v2414 = vsel %vm2300, %v2405, %v2413
    %v2415 = vrot.slane %v2413, 4
    %v2417 = vshrl.u32 %v2270, 16
    %v2419 = vrot.slane %v2417, 5
    %v2420 = vshll.u32 %v2270, 16
    %v2422 = vrot.slane %v2420, 6
    %v2423 = vor.u32 %v2419, %v2422
    %v2424 = vsel %vm2300, %v2415, %v2423
    %v2425 = vrot.slane %v2423, 4
    %v2427 = vshrl.u32 %v2271, 16
    %v2429 = vrot.slane %v2427, 5
    %v2430 = vshll.u32 %v2271, 16
    %v2432 = vrot.slane %v2430, 6
    %v2433 = vor.u32 %v2429, %v2432
    %v2434 = vsel %vm2300, %v2425, %v2433
    %v2435 = vrot.slane %v2433, 4
    %v2437 = vshrl.u32 %v2272, 16
    %v2439 = vrot.slane %v2437, 5
    %v2440 = vshll.u32 %v2272, 16
    %v2442 = vrot.slane %v2440, 6
    %v2443 = vor.u32 %v2439, %v2442
    %v2444 = vsel %vm2300, %v2435, %v2443
    %v2446 = vshrl.u32 %v2273, 16
    %v2448 = vrot.slane %v2446, 5
    %v2449 = vshll.u32 %v2273, 16
    %v2451 = vrot.slane %v2449, 6
    %v2452 = vor.u32 %v2448, %v2451
    %v2453 = vrot.slane %v2452, 4
    %v2455 = vshrl.u32 %v2274, 16
    %v2457 = vrot.slane %v2455, 5
    %v2458 = vshll.u32 %v2274, 16
    %v2460 = vrot.slane %v2458, 6
    %v2461 = vor.u32 %v2457, %v2460
    %v2462 = vsel %vm2300, %v2453, %v2461
    %v2463 = vrot.slane %v2461, 4
    %v2465 = vshrl.u32 %v2275, 16
    %v2467 = vrot.slane %v2465, 5
    %v2468 = vshll.u32 %v2275, 16
    %v2470 = vrot.slane %v2468, 6
    %v2471 = vor.u32 %v2467, %v2470
    %v2472 = vsel %vm2300, %v2463, %v2471
    %v2473 = vrot.slane %v2471, 4
    %v2475 = vshrl.u32 %v2276, 16
    %v2477 = vrot.slane %v2475, 5
    %v2478 = vshll.u32 %v2276, 16
    %v2480 = vrot.slane %v2478, 6
    %v2481 = vor.u32 %v2477, %v2480
    %v2482 = vsel %vm2300, %v2473, %v2481
    %v2483 = vrot.slane %v2481, 4
    %v2485 = vshrl.u32 %v2277, 16
    %v2487 = vrot.slane %v2485, 5
    %v2488 = vshll.u32 %v2277, 16
    %v2490 = vrot.slane %v2488, 6
    %v2491 = vor.u32 %v2487, %v2490
    %v2492 = vsel %vm2300, %v2483, %v2491
    %v2494 = vshrl.u32 %v2278, 16
    %v2496 = vrot.slane %v2494, 5
    %v2497 = vshll.u32 %v2278, 16
    %v2499 = vrot.slane %v2497, 6
    %v2500 = vor.u32 %v2496, %v2499
    %v2501 = vrot.slane %v2500, 4
    %v2503 = vshrl.u32 %v2279, 16
    %v2505 = vrot.slane %v2503, 5
    %v2506 = vshll.u32 %v2279, 16
    %v2508 = vrot.slane %v2506, 6
    %v2509 = vor.u32 %v2505, %v2508
    %v2510 = vsel %vm2300, %v2501, %v2509
    %v2511 = vrot.slane %v2509, 4
    %v2513 = vshrl.u32 %v2280, 16
    %v2515 = vrot.slane %v2513, 5
    %v2516 = vshll.u32 %v2280, 16
    %v2518 = vrot.slane %v2516, 6
    %v2519 = vor.u32 %v2515, %v2518
    %v2520 = vsel %vm2300, %v2511, %v2519
    %v2521 = vrot.slane %v2519, 4
    %v2523 = vshrl.u32 %v2281, 16
    %v2525 = vrot.slane %v2523, 5
    %v2526 = vshll.u32 %v2281, 16
    %v2528 = vrot.slane %v2526, 6
    %v2529 = vor.u32 %v2525, %v2528
    %v2530 = vsel %vm2300, %v2521, %v2529
    %v2531 = vrot.slane %v2529, 4
    %v2533 = vshrl.u32 %v2282, 16
    %v2535 = vrot.slane %v2533, 5
    %v2536 = vshll.u32 %v2282, 16
    %v2538 = vrot.slane %v2536, 6
    %v2539 = vor.u32 %v2535, %v2538
    %v2540 = vsel %vm2300, %v2531, %v2539
    %v2542 = vshrl.u32 %v2283, 16
    %v2544 = vrot.slane %v2542, 5
    %v2545 = vshll.u32 %v2283, 16
    %v2547 = vrot.slane %v2545, 6
    %v2548 = vor.u32 %v2544, %v2547
    %v2549 = vrot.slane %v2548, 4
    %v2551 = vshrl.u32 %v2284, 16
    %v2553 = vrot.slane %v2551, 5
    %v2554 = vshll.u32 %v2284, 16
    %v2556 = vrot.slane %v2554, 6
    %v2557 = vor.u32 %v2553, %v2556
    %v2558 = vsel %vm2300, %v2549, %v2557
    %v2559 = vrot.slane %v2557, 4
    %v2561 = vshrl.u32 %v2285, 16
    %v2563 = vrot.slane %v2561, 5
    %v2564 = vshll.u32 %v2285, 16
    %v2566 = vrot.slane %v2564, 6
    %v2567 = vor.u32 %v2563, %v2566
    %v2568 = vsel %vm2300, %v2559, %v2567
    %v2569 = vrot.slane %v2567, 4
    %v2571 = vshrl.u32 %v2286, 16
    %v2573 = vrot.slane %v2571, 5
    %v2574 = vshll.u32 %v2286, 16
    %v2576 = vrot.slane %v2574, 6
    %v2577 = vor.u32 %v2573, %v2576
    %v2578 = vsel %vm2300, %v2569, %v2577
    %v2579 = vrot.slane %v2577, 4
    %v2581 = vshrl.u32 %v2287, 16
    %v2583 = vrot.slane %v2581, 5
    %v2584 = vshll.u32 %v2287, 16
    %v2586 = vrot.slane %v2584, 6
    %v2587 = vor.u32 %v2583, %v2586
    %v2588 = vsel %vm2300, %v2579, %v2587
    %v2590 = vshrl.u32 %v2288, 16
    %v2592 = vrot.slane %v2590, 5
    %v2593 = vshll.u32 %v2288, 16
    %v2595 = vrot.slane %v2593, 6
    %v2596 = vor.u32 %v2592, %v2595
    %v2597 = vrot.slane %v2596, 4
    %v2599 = vshrl.u32 %v2289, 16
    %v2601 = vrot.slane %v2599, 5
    %v2602 = vshll.u32 %v2289, 16
    %v2604 = vrot.slane %v2602, 6
    %v2605 = vor.u32 %v2601, %v2604
    %v2606 = vsel %vm2300, %v2597, %v2605
    %v2607 = vrot.slane %v2605, 4
    %v2609 = vshrl.u32 %v2290, 16
    %v2611 = vrot.slane %v2609, 5
    %v2612 = vshll.u32 %v2290, 16
    %v2614 = vrot.slane %v2612, 6
    %v2615 = vor.u32 %v2611, %v2614
    %v2616 = vsel %vm2300, %v2607, %v2615
    %v2617 = vrot.slane %v2615, 4
    %v2619 = vshrl.u32 %v2291, 16
    %v2621 = vrot.slane %v2619, 5
    %v2622 = vshll.u32 %v2291, 16
    %v2624 = vrot.slane %v2622, 6
    %v2625 = vor.u32 %v2621, %v2624
    %v2626 = vsel %vm2300, %v2617, %v2625
    %v2627 = vrot.slane %v2625, 4
    %v2629 = vshrl.u32 %v2292, 16
    %v2631 = vrot.slane %v2629, 5
    %v2632 = vshll.u32 %v2292, 16
    %v2634 = vrot.slane %v2632, 6
    %v2635 = vor.u32 %v2631, %v2634
    %v2636 = vsel %vm2300, %v2627, %v2635
    %v2638 = vshrl.u32 %v2293, 16
    %v2640 = vrot.slane %v2638, 5
    %v2641 = vshll.u32 %v2293, 16
    %v2643 = vrot.slane %v2641, 6
    %v2644 = vor.u32 %v2640, %v2643
    %v2645 = vrot.slane %v2644, 4
    %v2647 = vshrl.u32 %v2294, 16
    %v2649 = vrot.slane %v2647, 5
    %v2650 = vshll.u32 %v2294, 16
    %v2652 = vrot.slane %v2650, 6
    %v2653 = vor.u32 %v2649, %v2652
    %v2654 = vsel %vm2300, %v2645, %v2653
    %v2655 = vrot.slane %v2653, 4
    %v2657 = vshrl.u32 %v2295, 16
    %v2659 = vrot.slane %v2657, 5
    %v2660 = vshll.u32 %v2295, 16
    %v2662 = vrot.slane %v2660, 6
    %v2663 = vor.u32 %v2659, %v2662
    %v2664 = vsel %vm2300, %v2655, %v2663
    %v2665 = vrot.slane %v2663, 4
    %v2667 = vshrl.u32 %v2296, 16
    %v2669 = vrot.slane %v2667, 5
    %v2670 = vshll.u32 %v2296, 16
    %v2672 = vrot.slane %v2670, 6
    %v2673 = vor.u32 %v2669, %v2672
    %v2674 = vsel %vm2300, %v2665, %v2673
    %v2675 = vrot.slane %v2673, 4
    %v2677 = vshrl.u32 %v2297, 16
    %v2679 = vrot.slane %v2677, 5
    %v2680 = vshll.u32 %v2297, 16
    %v2682 = vrot.slane %v2680, 6
    %v2683 = vor.u32 %v2679, %v2682
    %v2684 = vsel %vm2300, %v2675, %v2683
    %s2685 = scalar_lea.vmem %s1, 384
    %v2686 = vld [vmem:[%s2685] sm:$0xff]
    %v2687 = vld [vmem:[%s2685 + $0x8] sm:$0xff]
    %v2688 = vld [vmem:[%s2685 + $0x10] sm:$0xff]
    %v2689 = vld [vmem:[%s2685 + $0x18] sm:$0xff]
    %v2690 = vld [vmem:[%s2685 + $0x20] sm:$0xff]
    %v2691 = vld [vmem:[%s2685 + $0x28] sm:$0xff]
    %v2692 = vld [vmem:[%s2685 + $0x30] sm:$0xff]
    %v2693 = vld [vmem:[%s2685 + $0x38] sm:$0xff]
    %v2694 = vld [vmem:[%s2685 + $0x40] sm:$0xff]
    %v2695 = vld [vmem:[%s2685 + $0x48] sm:$0xff]
    %v2696 = vld [vmem:[%s2685 + $0x50] sm:$0xff]
    %v2697 = vld [vmem:[%s2685 + $0x58] sm:$0xff]
    %v2698 = vld [vmem:[%s2685 + $0x60] sm:$0xff]
    %v2699 = vld [vmem:[%s2685 + $0x68] sm:$0xff]
    %v2700 = vld [vmem:[%s2685 + $0x70] sm:$0xff]
    %v2701 = vld [vmem:[%s2685 + $0x78] sm:$0xff]
    %v2702 = vunpack.c.l.b16 %v2318
    %v2703 = vunpack.c.l.b16 %v2328
    %v2704 = vunpack.c.l.b16 %v2338
    %v2705 = vunpack.c.l.b16 %v2348
    %v2706 = vunpack.c.l.b16 %v2366
    %v2707 = vunpack.c.l.b16 %v2376
    %v2708 = vunpack.c.l.b16 %v2386
    %v2709 = vunpack.c.l.b16 %v2396
    %v2710 = vunpack.c.l.b16 %v2414
    %v2711 = vunpack.c.l.b16 %v2424
    %v2712 = vunpack.c.l.b16 %v2434
    %v2713 = vunpack.c.l.b16 %v2444
    %v2714 = vunpack.c.l.b16 %v2462
    %v2715 = vunpack.c.l.b16 %v2472
    %v2716 = vunpack.c.l.b16 %v2482
    %v2717 = vunpack.c.l.b16 %v2492
    %v2718 = vunpack.c.l.b16 %v2510
    %v2719 = vunpack.c.l.b16 %v2520
    %v2720 = vunpack.c.l.b16 %v2530
    %v2721 = vunpack.c.l.b16 %v2540
    %v2722 = vunpack.c.l.b16 %v2558
    %v2723 = vunpack.c.l.b16 %v2568
    %v2724 = vunpack.c.l.b16 %v2578
    %v2725 = vunpack.c.l.b16 %v2588
    %v2726 = vunpack.c.l.b16 %v2606
    %v2727 = vunpack.c.l.b16 %v2616
    %v2728 = vunpack.c.l.b16 %v2626
    %v2729 = vunpack.c.l.b16 %v2636
    %v2730 = vunpack.c.l.b16 %v2654
    %v2731 = vunpack.c.l.b16 %v2664
    %v2732 = vunpack.c.l.b16 %v2674
    %v2733 = vunpack.c.l.b16 %v2684
    %v2734 = vpack.c.b16 %v2703, %v2702
    %v2735 = vpack.c.b16 %v2705, %v2704
    %v2736 = vpack.c.b16 %v2707, %v2706
    %v2737 = vpack.c.b16 %v2709, %v2708
    %v2738 = vpack.c.b16 %v2711, %v2710
    %v2739 = vpack.c.b16 %v2713, %v2712
    %v2740 = vpack.c.b16 %v2715, %v2714
    %v2741 = vpack.c.b16 %v2717, %v2716
    %v2742 = vpack.c.b16 %v2719, %v2718
    %v2743 = vpack.c.b16 %v2721, %v2720
    %v2744 = vpack.c.b16 %v2723, %v2722
    %v2745 = vpack.c.b16 %v2725, %v2724
    %v2746 = vpack.c.b16 %v2727, %v2726
    %v2747 = vpack.c.b16 %v2729, %v2728
    %v2748 = vpack.c.b16 %v2731, %v2730
    %v2749 = vpack.c.b16 %v2733, %v2732
    %v2782 = vunpack.c.l.b16 %v2686
    %v2783 = vunpack.c.h.b16 %v2686
    %v2784 = vunpack.c.l.b16 %v2687
    %v2785 = vunpack.c.h.b16 %v2687
    %v2786 = vunpack.c.l.b16 %v2688
    %v2787 = vunpack.c.h.b16 %v2688
    %v2788 = vunpack.c.l.b16 %v2689
    %v2789 = vunpack.c.h.b16 %v2689
    %v2790 = vunpack.c.l.b16 %v2690
    %v2791 = vunpack.c.h.b16 %v2690
    %v2792 = vunpack.c.l.b16 %v2691
    %v2793 = vunpack.c.h.b16 %v2691
    %v2794 = vunpack.c.l.b16 %v2692
    %v2795 = vunpack.c.h.b16 %v2692
    %v2796 = vunpack.c.l.b16 %v2693
    %v2797 = vunpack.c.h.b16 %v2693
    %v2798 = vunpack.c.l.b16 %v2694
    %v2799 = vunpack.c.h.b16 %v2694
    %v2800 = vunpack.c.l.b16 %v2695
    %v2801 = vunpack.c.h.b16 %v2695
    %v2802 = vunpack.c.l.b16 %v2696
    %v2803 = vunpack.c.h.b16 %v2696
    %v2804 = vunpack.c.l.b16 %v2697
    %v2805 = vunpack.c.h.b16 %v2697
    %v2806 = vunpack.c.l.b16 %v2698
    %v2807 = vunpack.c.h.b16 %v2698
    %v2808 = vunpack.c.l.b16 %v2699
    %v2809 = vunpack.c.h.b16 %v2699
    %v2810 = vunpack.c.l.b16 %v2700
    %v2811 = vunpack.c.h.b16 %v2700
    %v2812 = vunpack.c.l.b16 %v2701
    %v2813 = vunpack.c.h.b16 %v2701
    %v2814 = vpack.c.b16 %v2784, %v2782
    %v2815 = vpack.c.b16 %v2785, %v2783
    %v2816 = vpack.c.b16 %v2788, %v2786
    %v2817 = vpack.c.b16 %v2789, %v2787
    %v2818 = vpack.c.b16 %v2792, %v2790
    %v2819 = vpack.c.b16 %v2793, %v2791
    %v2820 = vpack.c.b16 %v2796, %v2794
    %v2821 = vpack.c.b16 %v2797, %v2795
    %v2822 = vpack.c.b16 %v2800, %v2798
    %v2823 = vpack.c.b16 %v2801, %v2799
    %v2824 = vpack.c.b16 %v2804, %v2802
    %v2825 = vpack.c.b16 %v2805, %v2803
    %v2826 = vpack.c.b16 %v2808, %v2806
    %v2827 = vpack.c.b16 %v2809, %v2807
    %v2828 = vpack.c.b16 %v2812, %v2810
    %v2829 = vpack.c.b16 %v2813, %v2811
    %2846 = vmatpush.bf16.msra.mxu0 %v2828
    %2847 = vmatpush.bf16.msra.mxu0 %v2826
    %2848 = vmatpush.bf16.msra.mxu0 %v2824
    %2849 = vmatpush.bf16.msra.mxu0 %v2822
    %2850 = vmatpush.bf16.msra.mxu0 %v2820
    %2851 = vmatpush.bf16.msra.mxu0 %v2818
    %2852 = vmatpush.bf16.msra.mxu0 %v2816
    %2853 = vmatpush.bf16.msra.mxu0 %v2814
    %2854 = vmatmul.bf16.gmra.mxu0 %v2734
    %v2855 = vpop.f32.mrf.mxu0
    %v2856 = vadd.f32 0.0, %v2855
    %v2857 = vpop.f32.mrf.mxu0
    %v2858 = vadd.f32 0.0, %v2857
    %2859 = vmatmul.bf16.gmra.mxu0 %v2735
    %v2860 = vpop.f32.mrf.mxu0
    %v2861 = vadd.f32 0.0, %v2860
    %v2862 = vpop.f32.mrf.mxu0
    %v2863 = vadd.f32 0.0, %v2862
    %2864 = vmatmul.bf16.gmra.mxu0 %v2736
    %v2865 = vpop.f32.mrf.mxu0
    %v2866 = vadd.f32 0.0, %v2865
    %v2867 = vpop.f32.mrf.mxu0
    %v2868 = vadd.f32 0.0, %v2867
    %2869 = vmatmul.bf16.gmra.mxu0 %v2737
    %v2870 = vpop.f32.mrf.mxu0
    %v2871 = vadd.f32 0.0, %v2870
    %v2872 = vpop.f32.mrf.mxu0
    %v2873 = vadd.f32 0.0, %v2872
    %2874 = vmatmul.bf16.gmra.mxu0 %v2738
    %v2875 = vpop.f32.mrf.mxu0
    %v2876 = vadd.f32 0.0, %v2875
    %v2877 = vpop.f32.mrf.mxu0
    %v2878 = vadd.f32 0.0, %v2877
    %2879 = vmatmul.bf16.gmra.mxu0 %v2739
    %v2880 = vpop.f32.mrf.mxu0
    %v2881 = vadd.f32 0.0, %v2880
    %v2882 = vpop.f32.mrf.mxu0
    %v2883 = vadd.f32 0.0, %v2882
    %2884 = vmatmul.bf16.gmra.mxu0 %v2740
    %v2885 = vpop.f32.mrf.mxu0
    %v2886 = vadd.f32 0.0, %v2885
    %v2887 = vpop.f32.mrf.mxu0
    %v2888 = vadd.f32 0.0, %v2887
    %2889 = vmatmul.bf16.gmra.mxu0 %v2741
    %v2890 = vpop.f32.mrf.mxu0
    %v2891 = vadd.f32 0.0, %v2890
    %v2892 = vpop.f32.mrf.mxu0
    %v2893 = vadd.f32 0.0, %v2892
    %2894 = vmatmul.bf16.gmra.mxu0 %v2742
    %v2895 = vpop.f32.mrf.mxu0
    %v2896 = vadd.f32 0.0, %v2895
    %v2897 = vpop.f32.mrf.mxu0
    %v2898 = vadd.f32 0.0, %v2897
    %2899 = vmatmul.bf16.gmra.mxu0 %v2743
    %v2900 = vpop.f32.mrf.mxu0
    %v2901 = vadd.f32 0.0, %v2900
    %v2902 = vpop.f32.mrf.mxu0
    %v2903 = vadd.f32 0.0, %v2902
    %2904 = vmatmul.bf16.gmra.mxu0 %v2744
    %v2905 = vpop.f32.mrf.mxu0
    %v2906 = vadd.f32 0.0, %v2905
    %v2907 = vpop.f32.mrf.mxu0
    %v2908 = vadd.f32 0.0, %v2907
    %2909 = vmatmul.bf16.gmra.mxu0 %v2745
    %v2910 = vpop.f32.mrf.mxu0
    %v2911 = vadd.f32 0.0, %v2910
    %v2912 = vpop.f32.mrf.mxu0
    %v2913 = vadd.f32 0.0, %v2912
    %2914 = vmatmul.bf16.gmra.mxu0 %v2746
    %v2915 = vpop.f32.mrf.mxu0
    %v2916 = vadd.f32 0.0, %v2915
    %v2917 = vpop.f32.mrf.mxu0
    %v2918 = vadd.f32 0.0, %v2917
    %2919 = vmatmul.bf16.gmra.mxu0 %v2747
    %v2920 = vpop.f32.mrf.mxu0
    %v2921 = vadd.f32 0.0, %v2920
    %v2922 = vpop.f32.mrf.mxu0
    %v2923 = vadd.f32 0.0, %v2922
    %2924 = vmatmul.bf16.gmra.mxu0 %v2748
    %v2925 = vpop.f32.mrf.mxu0
    %v2926 = vadd.f32 0.0, %v2925
    %v2927 = vpop.f32.mrf.mxu0
    %v2928 = vadd.f32 0.0, %v2927
    %2929 = vmatmul.bf16.gmra.mxu0 %v2749
    %v2930 = vpop.f32.mrf.mxu0
    %v2931 = vadd.f32 0.0, %v2930
    %v2932 = vpop.f32.mrf.mxu0
    %v2933 = vadd.f32 0.0, %v2932
    %2934 = vdwg.mxu0
    %2935 = vmatpush.bf16.msra.mxu0 %v2829
    %2936 = vmatpush.bf16.msra.mxu0 %v2827
    %2937 = vmatpush.bf16.msra.mxu0 %v2825
    %2938 = vmatpush.bf16.msra.mxu0 %v2823
    %2939 = vmatpush.bf16.msra.mxu0 %v2821
    %2940 = vmatpush.bf16.msra.mxu0 %v2819
    %2941 = vmatpush.bf16.msra.mxu0 %v2817
    %2942 = vmatpush.bf16.msra.mxu0 %v2815
    %2943 = vmatmul.bf16.gmra.mxu0 %v2734
    %v2944 = vpop.f32.mrf.mxu0
    %v2945 = vadd.f32 0.0, %v2944
    %v2946 = vpop.f32.mrf.mxu0
    %v2947 = vadd.f32 0.0, %v2946
    %2948 = vmatmul.bf16.gmra.mxu0 %v2735
    %v2949 = vpop.f32.mrf.mxu0
    %v2950 = vadd.f32 0.0, %v2949
    %v2951 = vpop.f32.mrf.mxu0
    %v2952 = vadd.f32 0.0, %v2951
    %2953 = vmatmul.bf16.gmra.mxu0 %v2736
    %v2954 = vpop.f32.mrf.mxu0
    %v2955 = vadd.f32 0.0, %v2954
    %v2956 = vpop.f32.mrf.mxu0
    %v2957 = vadd.f32 0.0, %v2956
    %2958 = vmatmul.bf16.gmra.mxu0 %v2737
    %v2959 = vpop.f32.mrf.mxu0
    %v2960 = vadd.f32 0.0, %v2959
    %v2961 = vpop.f32.mrf.mxu0
    %v2962 = vadd.f32 0.0, %v2961
    %2963 = vmatmul.bf16.gmra.mxu0 %v2738
    %v2964 = vpop.f32.mrf.mxu0
    %v2965 = vadd.f32 0.0, %v2964
    %v2966 = vpop.f32.mrf.mxu0
    %v2967 = vadd.f32 0.0, %v2966
    %2968 = vmatmul.bf16.gmra.mxu0 %v2739
    %v2969 = vpop.f32.mrf.mxu0
    %v2970 = vadd.f32 0.0, %v2969
    %v2971 = vpop.f32.mrf.mxu0
    %v2972 = vadd.f32 0.0, %v2971
    %2973 = vmatmul.bf16.gmra.mxu0 %v2740
    %v2974 = vpop.f32.mrf.mxu0
    %v2975 = vadd.f32 0.0, %v2974
    %v2976 = vpop.f32.mrf.mxu0
    %v2977 = vadd.f32 0.0, %v2976
    %2978 = vmatmul.bf16.gmra.mxu0 %v2741
    %v2979 = vpop.f32.mrf.mxu0
    %v2980 = vadd.f32 0.0, %v2979
    %v2981 = vpop.f32.mrf.mxu0
    %v2982 = vadd.f32 0.0, %v2981
    %2983 = vmatmul.bf16.gmra.mxu0 %v2742
    %v2984 = vpop.f32.mrf.mxu0
    %v2985 = vadd.f32 0.0, %v2984
    %v2986 = vpop.f32.mrf.mxu0
    %v2987 = vadd.f32 0.0, %v2986
    %2988 = vmatmul.bf16.gmra.mxu0 %v2743
    %v2989 = vpop.f32.mrf.mxu0
    %v2990 = vadd.f32 0.0, %v2989
    %v2991 = vpop.f32.mrf.mxu0
    %v2992 = vadd.f32 0.0, %v2991
    %2993 = vmatmul.bf16.gmra.mxu0 %v2744
    %v2994 = vpop.f32.mrf.mxu0
    %v2995 = vadd.f32 0.0, %v2994
    %v2996 = vpop.f32.mrf.mxu0
    %v2997 = vadd.f32 0.0, %v2996
    %2998 = vmatmul.bf16.gmra.mxu0 %v2745
    %v2999 = vpop.f32.mrf.mxu0
    %v3000 = vadd.f32 0.0, %v2999
    %v3001 = vpop.f32.mrf.mxu0
    %v3002 = vadd.f32 0.0, %v3001
    %3003 = vmatmul.bf16.gmra.mxu0 %v2746
    %v3004 = vpop.f32.mrf.mxu0
    %v3005 = vadd.f32 0.0, %v3004
    %v3006 = vpop.f32.mrf.mxu0
    %v3007 = vadd.f32 0.0, %v3006
    %3008 = vmatmul.bf16.gmra.mxu0 %v2747
    %v3009 = vpop.f32.mrf.mxu0
    %v3010 = vadd.f32 0.0, %v3009
    %v3011 = vpop.f32.mrf.mxu0
    %v3012 = vadd.f32 0.0, %v3011
    %3013 = vmatmul.bf16.gmra.mxu0 %v2748
    %v3014 = vpop.f32.mrf.mxu0
    %v3015 = vadd.f32 0.0, %v3014
    %v3016 = vpop.f32.mrf.mxu0
    %v3017 = vadd.f32 0.0, %v3016
    %3018 = vmatmul.bf16.gmra.mxu0 %v2749
    %v3019 = vpop.f32.mrf.mxu0
    %v3020 = vadd.f32 0.0, %v3019
    %v3021 = vpop.f32.mrf.mxu0
    %v3022 = vadd.f32 0.0, %v3021
    %3023 = vdwg.mxu0
    %v3024 = vld [vmem:[#allocation2] sm:$0xff]
    %v3025 = vld [vmem:[#allocation2 + $0x8] sm:$0xff]
    %v3026 = vld [vmem:[#allocation2 + $0x10] sm:$0xff]
    %v3027 = vld [vmem:[#allocation2 + $0x18] sm:$0xff]
    %v3028 = vld [vmem:[#allocation2 + $0x20] sm:$0xff]
    %v3029 = vld [vmem:[#allocation2 + $0x28] sm:$0xff]
    %v3030 = vld [vmem:[#allocation2 + $0x30] sm:$0xff]
    %v3031 = vld [vmem:[#allocation2 + $0x38] sm:$0xff]
    %v3032 = vld [vmem:[#allocation2 + $0x40] sm:$0xff]
    %v3033 = vld [vmem:[#allocation2 + $0x48] sm:$0xff]
    %v3034 = vld [vmem:[#allocation2 + $0x50] sm:$0xff]
    %v3035 = vld [vmem:[#allocation2 + $0x58] sm:$0xff]
    %v3036 = vld [vmem:[#allocation2 + $0x60] sm:$0xff]
    %v3037 = vld [vmem:[#allocation2 + $0x68] sm:$0xff]
    %v3038 = vld [vmem:[#allocation2 + $0x70] sm:$0xff]
    %v3039 = vld [vmem:[#allocation2 + $0x78] sm:$0xff]
    %v3040 = vld [vmem:[#allocation2 + $0x80] sm:$0xff]
    %v3041 = vld [vmem:[#allocation2 + $0x88] sm:$0xff]
    %v3042 = vld [vmem:[#allocation2 + $0x90] sm:$0xff]
    %v3043 = vld [vmem:[#allocation2 + $0x98] sm:$0xff]
    %v3044 = vld [vmem:[#allocation2 + $0xa0] sm:$0xff]
    %v3045 = vld [vmem:[#allocation2 + $0xa8] sm:$0xff]
    %v3046 = vld [vmem:[#allocation2 + $0xb0] sm:$0xff]
    %v3047 = vld [vmem:[#allocation2 + $0xb8] sm:$0xff]
    %v3048 = vld [vmem:[#allocation2 + $0xc0] sm:$0xff]
    %v3049 = vld [vmem:[#allocation2 + $0xc8] sm:$0xff]
    %v3050 = vld [vmem:[#allocation2 + $0xd0] sm:$0xff]
    %v3051 = vld [vmem:[#allocation2 + $0xd8] sm:$0xff]
    %v3052 = vld [vmem:[#allocation2 + $0xe0] sm:$0xff]
    %v3053 = vld [vmem:[#allocation2 + $0xe8] sm:$0xff]
    %v3054 = vld [vmem:[#allocation2 + $0xf0] sm:$0xff]
    %v3055 = vld [vmem:[#allocation2 + $0xf8] sm:$0xff]
    %v3056 = vld [vmem:[#allocation2 + $0x100] sm:$0xff]
    %v3057 = vld [vmem:[#allocation2 + $0x108] sm:$0xff]
    %v3058 = vld [vmem:[#allocation2 + $0x110] sm:$0xff]
    %v3059 = vld [vmem:[#allocation2 + $0x118] sm:$0xff]
    %v3060 = vld [vmem:[#allocation2 + $0x120] sm:$0xff]
    %v3061 = vld [vmem:[#allocation2 + $0x128] sm:$0xff]
    %v3062 = vld [vmem:[#allocation2 + $0x130] sm:$0xff]
    %v3063 = vld [vmem:[#allocation2 + $0x138] sm:$0xff]
    %v3064 = vld [vmem:[#allocation2 + $0x140] sm:$0xff]
    %v3065 = vld [vmem:[#allocation2 + $0x148] sm:$0xff]
    %v3066 = vld [vmem:[#allocation2 + $0x150] sm:$0xff]
    %v3067 = vld [vmem:[#allocation2 + $0x158] sm:$0xff]
    %v3068 = vld [vmem:[#allocation2 + $0x160] sm:$0xff]
    %v3069 = vld [vmem:[#allocation2 + $0x168] sm:$0xff]
    %v3070 = vld [vmem:[#allocation2 + $0x170] sm:$0xff]
    %v3071 = vld [vmem:[#allocation2 + $0x178] sm:$0xff]
    %v3072 = vld [vmem:[#allocation2 + $0x180] sm:$0xff]
    %v3073 = vld [vmem:[#allocation2 + $0x188] sm:$0xff]
    %v3074 = vld [vmem:[#allocation2 + $0x190] sm:$0xff]
    %v3075 = vld [vmem:[#allocation2 + $0x198] sm:$0xff]
    %v3076 = vld [vmem:[#allocation2 + $0x1a0] sm:$0xff]
    %v3077 = vld [vmem:[#allocation2 + $0x1a8] sm:$0xff]
    %v3078 = vld [vmem:[#allocation2 + $0x1b0] sm:$0xff]
    %v3079 = vld [vmem:[#allocation2 + $0x1b8] sm:$0xff]
    %v3080 = vld [vmem:[#allocation2 + $0x1c0] sm:$0xff]
    %v3081 = vld [vmem:[#allocation2 + $0x1c8] sm:$0xff]
    %v3082 = vld [vmem:[#allocation2 + $0x1d0] sm:$0xff]
    %v3083 = vld [vmem:[#allocation2 + $0x1d8] sm:$0xff]
    %v3084 = vld [vmem:[#allocation2 + $0x1e0] sm:$0xff]
    %v3085 = vld [vmem:[#allocation2 + $0x1e8] sm:$0xff]
    %v3086 = vld [vmem:[#allocation2 + $0x1f0] sm:$0xff]
    %v3087 = vld [vmem:[#allocation2 + $0x1f8] sm:$0xff]
    %v3088 = vadd.f32 %v3024, %v2856
    %v3089 = vadd.f32 %v3025, %v2945
    %v3090 = vadd.f32 %v3026, %v2858
    %v3091 = vadd.f32 %v3027, %v2947
    %v3092 = vadd.f32 %v3028, %v2861
    %v3093 = vadd.f32 %v3029, %v2950
    %v3094 = vadd.f32 %v3030, %v2863
    %v3095 = vadd.f32 %v3031, %v2952
    %v3096 = vadd.f32 %v3032, %v2866
    %v3097 = vadd.f32 %v3033, %v2955
    %v3098 = vadd.f32 %v3034, %v2868
    %v3099 = vadd.f32 %v3035, %v2957
    %v3100 = vadd.f32 %v3036, %v2871
    %v3101 = vadd.f32 %v3037, %v2960
    %v3102 = vadd.f32 %v3038, %v2873
    %v3103 = vadd.f32 %v3039, %v2962
    %v3104 = vadd.f32 %v3040, %v2876
    %v3105 = vadd.f32 %v3041, %v2965
    %v3106 = vadd.f32 %v3042, %v2878
    %v3107 = vadd.f32 %v3043, %v2967
    %v3108 = vadd.f32 %v3044, %v2881
    %v3109 = vadd.f32 %v3045, %v2970
    %v3110 = vadd.f32 %v3046, %v2883
    %v3111 = vadd.f32 %v3047, %v2972
    %v3112 = vadd.f32 %v3048, %v2886
    %v3113 = vadd.f32 %v3049, %v2975
    %v3114 = vadd.f32 %v3050, %v2888
    %v3115 = vadd.f32 %v3051, %v2977
    %v3116 = vadd.f32 %v3052, %v2891
    %v3117 = vadd.f32 %v3053, %v2980
    %v3118 = vadd.f32 %v3054, %v2893
    %v3119 = vadd.f32 %v3055, %v2982
    %v3120 = vadd.f32 %v3056, %v2896
    %v3121 = vadd.f32 %v3057, %v2985
    %v3122 = vadd.f32 %v3058, %v2898
    %v3123 = vadd.f32 %v3059, %v2987
    %v3124 = vadd.f32 %v3060, %v2901
    %v3125 = vadd.f32 %v3061, %v2990
    %v3126 = vadd.f32 %v3062, %v2903
    %v3127 = vadd.f32 %v3063, %v2992
    %v3128 = vadd.f32 %v3064, %v2906
    %v3129 = vadd.f32 %v3065, %v2995
    %v3130 = vadd.f32 %v3066, %v2908
    %v3131 = vadd.f32 %v3067, %v2997
    %v3132 = vadd.f32 %v3068, %v2911
    %v3133 = vadd.f32 %v3069, %v3000
    %v3134 = vadd.f32 %v3070, %v2913
    %v3135 = vadd.f32 %v3071, %v3002
    %v3136 = vadd.f32 %v3072, %v2916
    %v3137 = vadd.f32 %v3073, %v3005
    %v3138 = vadd.f32 %v3074, %v2918
    %v3139 = vadd.f32 %v3075, %v3007
    %v3140 = vadd.f32 %v3076, %v2921
    %v3141 = vadd.f32 %v3077, %v3010
    %v3142 = vadd.f32 %v3078, %v2923
    %v3143 = vadd.f32 %v3079, %v3012
    %v3144 = vadd.f32 %v3080, %v2926
    %v3145 = vadd.f32 %v3081, %v3015
    %v3146 = vadd.f32 %v3082, %v2928
    %v3147 = vadd.f32 %v3083, %v3017
    %v3148 = vadd.f32 %v3084, %v2931
    %v3149 = vadd.f32 %v3085, %v3020
    %v3150 = vadd.f32 %v3086, %v2933
    %v3151 = vadd.f32 %v3087, %v3022
    %3152 = vst [vmem:[#allocation2] sm:$0xff] %v3088
    %3153 = vst [vmem:[#allocation2 + $0x8] sm:$0xff] %v3089
    %3154 = vst [vmem:[#allocation2 + $0x10] sm:$0xff] %v3090
    %3155 = vst [vmem:[#allocation2 + $0x18] sm:$0xff] %v3091
    %3156 = vst [vmem:[#allocation2 + $0x20] sm:$0xff] %v3092
    %3157 = vst [vmem:[#allocation2 + $0x28] sm:$0xff] %v3093
    %3158 = vst [vmem:[#allocation2 + $0x30] sm:$0xff] %v3094
    %3159 = vst [vmem:[#allocation2 + $0x38] sm:$0xff] %v3095
    %3160 = vst [vmem:[#allocation2 + $0x40] sm:$0xff] %v3096
    %3161 = vst [vmem:[#allocation2 + $0x48] sm:$0xff] %v3097
    %3162 = vst [vmem:[#allocation2 + $0x50] sm:$0xff] %v3098
    %3163 = vst [vmem:[#allocation2 + $0x58] sm:$0xff] %v3099
    %3164 = vst [vmem:[#allocation2 + $0x60] sm:$0xff] %v3100
    %3165 = vst [vmem:[#allocation2 + $0x68] sm:$0xff] %v3101
    %3166 = vst [vmem:[#allocation2 + $0x70] sm:$0xff] %v3102
    %3167 = vst [vmem:[#allocation2 + $0x78] sm:$0xff] %v3103
    %3168 = vst [vmem:[#allocation2 + $0x80] sm:$0xff] %v3104
    %3169 = vst [vmem:[#allocation2 + $0x88] sm:$0xff] %v3105
    %3170 = vst [vmem:[#allocation2 + $0x90] sm:$0xff] %v3106
    %3171 = vst [vmem:[#allocation2 + $0x98] sm:$0xff] %v3107
    %3172 = vst [vmem:[#allocation2 + $0xa0] sm:$0xff] %v3108
    %3173 = vst [vmem:[#allocation2 + $0xa8] sm:$0xff] %v3109
    %3174 = vst [vmem:[#allocation2 + $0xb0] sm:$0xff] %v3110
    %3175 = vst [vmem:[#allocation2 + $0xb8] sm:$0xff] %v3111
    %3176 = vst [vmem:[#allocation2 + $0xc0] sm:$0xff] %v3112
    %3177 = vst [vmem:[#allocation2 + $0xc8] sm:$0xff] %v3113
    %3178 = vst [vmem:[#allocation2 + $0xd0] sm:$0xff] %v3114
    %3179 = vst [vmem:[#allocation2 + $0xd8] sm:$0xff] %v3115
    %3180 = vst [vmem:[#allocation2 + $0xe0] sm:$0xff] %v3116
    %3181 = vst [vmem:[#allocation2 + $0xe8] sm:$0xff] %v3117
    %3182 = vst [vmem:[#allocation2 + $0xf0] sm:$0xff] %v3118
    %3183 = vst [vmem:[#allocation2 + $0xf8] sm:$0xff] %v3119
    %3184 = vst [vmem:[#allocation2 + $0x100] sm:$0xff] %v3120
    %3185 = vst [vmem:[#allocation2 + $0x108] sm:$0xff] %v3121
    %3186 = vst [vmem:[#allocation2 + $0x110] sm:$0xff] %v3122
    %3187 = vst [vmem:[#allocation2 + $0x118] sm:$0xff] %v3123
    %3188 = vst [vmem:[#allocation2 + $0x120] sm:$0xff] %v3124
    %3189 = vst [vmem:[#allocation2 + $0x128] sm:$0xff] %v3125
    %3190 = vst [vmem:[#allocation2 + $0x130] sm:$0xff] %v3126
    %3191 = vst [vmem:[#allocation2 + $0x138] sm:$0xff] %v3127
    %3192 = vst [vmem:[#allocation2 + $0x140] sm:$0xff] %v3128
    %3193 = vst [vmem:[#allocation2 + $0x148] sm:$0xff] %v3129
    %3194 = vst [vmem:[#allocation2 + $0x150] sm:$0xff] %v3130
    %3195 = vst [vmem:[#allocation2 + $0x158] sm:$0xff] %v3131
    %3196 = vst [vmem:[#allocation2 + $0x160] sm:$0xff] %v3132
    %3197 = vst [vmem:[#allocation2 + $0x168] sm:$0xff] %v3133
    %3198 = vst [vmem:[#allocation2 + $0x170] sm:$0xff] %v3134
    %3199 = vst [vmem:[#allocation2 + $0x178] sm:$0xff] %v3135
    %3200 = vst [vmem:[#allocation2 + $0x180] sm:$0xff] %v3136
    %3201 = vst [vmem:[#allocation2 + $0x188] sm:$0xff] %v3137
    %3202 = vst [vmem:[#allocation2 + $0x190] sm:$0xff] %v3138
    %3203 = vst [vmem:[#allocation2 + $0x198] sm:$0xff] %v3139
    %3204 = vst [vmem:[#allocation2 + $0x1a0] sm:$0xff] %v3140
    %3205 = vst [vmem:[#allocation2 + $0x1a8] sm:$0xff] %v3141
    %3206 = vst [vmem:[#allocation2 + $0x1b0] sm:$0xff] %v3142
    %3207 = vst [vmem:[#allocation2 + $0x1b8] sm:$0xff] %v3143
    %3208 = vst [vmem:[#allocation2 + $0x1c0] sm:$0xff] %v3144
    %3209 = vst [vmem:[#allocation2 + $0x1c8] sm:$0xff] %v3145
    %3210 = vst [vmem:[#allocation2 + $0x1d0] sm:$0xff] %v3146
    %3211 = vst [vmem:[#allocation2 + $0x1d8] sm:$0xff] %v3147
    %3212 = vst [vmem:[#allocation2 + $0x1e0] sm:$0xff] %v3148
    %3213 = vst [vmem:[#allocation2 + $0x1e8] sm:$0xff] %v3149
    %3214 = vst [vmem:[#allocation2 + $0x1f0] sm:$0xff] %v3150
    %3215 = vst [vmem:[#allocation2 + $0x1f8] sm:$0xff] %v3151
    %v3216 = vld [vmem:[%s0] sm:$0xc]
    %v3217 = vld [vmem:[%s0 + $0x4] sm:$0xf]
    %v3218 = vld [vmem:[%s0 + $0x8] sm:$0xf]
    %v3219 = vld [vmem:[%s0 + $0xc] sm:$0xf]
    %v3220 = vld [vmem:[%s0 + $0x10] sm:$0x3]
    %v3221 = vld [vmem:[%s0 + $0x14] sm:$0xc]
    %v3222 = vld [vmem:[%s0 + $0x18] sm:$0xf]
    %v3223 = vld [vmem:[%s0 + $0x1c] sm:$0xf]
    %v3224 = vld [vmem:[%s0 + $0x20] sm:$0xf]
    %v3225 = vld [vmem:[%s0 + $0x24] sm:$0x3]
    %v3226 = vld [vmem:[%s0 + $0x28] sm:$0xc]
    %v3227 = vld [vmem:[%s0 + $0x2c] sm:$0xf]
    %v3228 = vld [vmem:[%s0 + $0x30] sm:$0xf]
    %v3229 = vld [vmem:[%s0 + $0x34] sm:$0xf]
    %v3230 = vld [vmem:[%s0 + $0x38] sm:$0x3]
    %v3231 = vld [vmem:[%s0 + $0x3c] sm:$0xc]
    %v3232 = vld [vmem:[%s0 + $0x40] sm:$0xf]
    %v3233 = vld [vmem:[%s0 + $0x44] sm:$0xf]
    %v3234 = vld [vmem:[%s0 + $0x48] sm:$0xf]
    %v3235 = vld [vmem:[%s0 + $0x4c] sm:$0x3]
    %v3236 = vld [vmem:[%s0 + $0x50] sm:$0xc]
    %v3237 = vld [vmem:[%s0 + $0x54] sm:$0xf]
    %v3238 = vld [vmem:[%s0 + $0x58] sm:$0xf]
    %v3239 = vld [vmem:[%s0 + $0x5c] sm:$0xf]
    %v3240 = vld [vmem:[%s0 + $0x60] sm:$0x3]
    %v3241 = vld [vmem:[%s0 + $0x64] sm:$0xc]
    %v3242 = vld [vmem:[%s0 + $0x68] sm:$0xf]
    %v3243 = vld [vmem:[%s0 + $0x6c] sm:$0xf]
    %v3244 = vld [vmem:[%s0 + $0x70] sm:$0xf]
    %v3245 = vld [vmem:[%s0 + $0x74] sm:$0x3]
    %v3246 = vld [vmem:[%s0 + $0x78] sm:$0xc]
    %v3247 = vld [vmem:[%s0 + $0x7c] sm:$0xf]
    %v3248 = vld [vmem:[%s0 + $0x80] sm:$0xf]
    %v3249 = vld [vmem:[%s0 + $0x84] sm:$0xf]
    %v3250 = vld [vmem:[%s0 + $0x88] sm:$0x3]
    %v3251 = vld [vmem:[%s0 + $0x8c] sm:$0xc]
    %v3252 = vld [vmem:[%s0 + $0x90] sm:$0xf]
    %v3253 = vld [vmem:[%s0 + $0x94] sm:$0xf]
    %v3254 = vld [vmem:[%s0 + $0x98] sm:$0xf]
    %v3255 = vld [vmem:[%s0 + $0x9c] sm:$0x3]
    %vm3296 = vcmask 1041408
    %vm3297 = vcmask 1045508
    %vm3298 = vmor %vm3296, %vm3297
    %v3299 = vrot.slane %v3216, 6
    %v3300 = vrot.slane %v3299, 4
    %v3301 = vrot.slane %v3217, 6
    %v3302 = vsel %vm3298, %v3300, %v3301
    %v3303 = vrot.slane %v3301, 4
    %v3304 = vrot.slane %v3218, 6
    %v3305 = vsel %vm3298, %v3303, %v3304
    %v3306 = vrot.slane %v3304, 4
    %v3307 = vrot.slane %v3219, 6
    %v3308 = vsel %vm3298, %v3306, %v3307
    %v3309 = vrot.slane %v3307, 4
    %v3310 = vrot.slane %v3220, 6
    %v3311 = vsel %vm3298, %v3309, %v3310
    %v3312 = vrot.slane %v3221, 6
    %v3313 = vrot.slane %v3312, 4
    %v3314 = vrot.slane %v3222, 6
    %v3315 = vsel %vm3298, %v3313, %v3314
    %v3316 = vrot.slane %v3314, 4
    %v3317 = vrot.slane %v3223, 6
    %v3318 = vsel %vm3298, %v3316, %v3317
    %v3319 = vrot.slane %v3317, 4
    %v3320 = vrot.slane %v3224, 6
    %v3321 = vsel %vm3298, %v3319, %v3320
    %v3322 = vrot.slane %v3320, 4
    %v3323 = vrot.slane %v3225, 6
    %v3324 = vsel %vm3298, %v3322, %v3323
    %v3325 = vrot.slane %v3226, 6
    %v3326 = vrot.slane %v3325, 4
    %v3327 = vrot.slane %v3227, 6
    %v3328 = vsel %vm3298, %v3326, %v3327
    %v3329 = vrot.slane %v3327, 4
    %v3330 = vrot.slane %v3228, 6
    %v3331 = vsel %vm3298, %v3329, %v3330
    %v3332 = vrot.slane %v3330, 4
    %v3333 = vrot.slane %v3229, 6
    %v3334 = vsel %vm3298, %v3332, %v3333
    %v3335 = vrot.slane %v3333, 4
    %v3336 = vrot.slane %v3230, 6
    %v3337 = vsel %vm3298, %v3335, %v3336
    %v3338 = vrot.slane %v3231, 6
    %v3339 = vrot.slane %v3338, 4
    %v3340 = vrot.slane %v3232, 6
    %v3341 = vsel %vm3298, %v3339, %v3340
    %v3342 = vrot.slane %v3340, 4
    %v3343 = vrot.slane %v3233, 6
    %v3344 = vsel %vm3298, %v3342, %v3343
    %v3345 = vrot.slane %v3343, 4
    %v3346 = vrot.slane %v3234, 6
    %v3347 = vsel %vm3298, %v3345, %v3346
    %v3348 = vrot.slane %v3346, 4
    %v3349 = vrot.slane %v3235, 6
    %v3350 = vsel %vm3298, %v3348, %v3349
    %v3351 = vrot.slane %v3236, 6
    %v3352 = vrot.slane %v3351, 4
    %v3353 = vrot.slane %v3237, 6
    %v3354 = vsel %vm3298, %v3352, %v3353
    %v3355 = vrot.slane %v3353, 4
    %v3356 = vrot.slane %v3238, 6
    %v3357 = vsel %vm3298, %v3355, %v3356
    %v3358 = vrot.slane %v3356, 4
    %v3359 = vrot.slane %v3239, 6
    %v3360 = vsel %vm3298, %v3358, %v3359
    %v3361 = vrot.slane %v3359, 4
    %v3362 = vrot.slane %v3240, 6
    %v3363 = vsel %vm3298, %v3361, %v3362
    %v3364 = vrot.slane %v3241, 6
    %v3365 = vrot.slane %v3364, 4
    %v3366 = vrot.slane %v3242, 6
    %v3367 = vsel %vm3298, %v3365, %v3366
    %v3368 = vrot.slane %v3366, 4
    %v3369 = vrot.slane %v3243, 6
    %v3370 = vsel %vm3298, %v3368, %v3369
    %v3371 = vrot.slane %v3369, 4
    %v3372 = vrot.slane %v3244, 6
    %v3373 = vsel %vm3298, %v3371, %v3372
    %v3374 = vrot.slane %v3372, 4
    %v3375 = vrot.slane %v3245, 6
    %v3376 = vsel %vm3298, %v3374, %v3375
    %v3377 = vrot.slane %v3246, 6
    %v3378 = vrot.slane %v3377, 4
    %v3379 = vrot.slane %v3247, 6
    %v3380 = vsel %vm3298, %v3378, %v3379
    %v3381 = vrot.slane %v3379, 4
    %v3382 = vrot.slane %v3248, 6
    %v3383 = vsel %vm3298, %v3381, %v3382
    %v3384 = vrot.slane %v3382, 4
    %v3385 = vrot.slane %v3249, 6
    %v3386 = vsel %vm3298, %v3384, %v3385
    %v3387 = vrot.slane %v3385, 4
    %v3388 = vrot.slane %v3250, 6
    %v3389 = vsel %vm3298, %v3387, %v3388
    %v3390 = vrot.slane %v3251, 6
    %v3391 = vrot.slane %v3390, 4
    %v3392 = vrot.slane %v3252, 6
    %v3393 = vsel %vm3298, %v3391, %v3392
    %v3394 = vrot.slane %v3392, 4
    %v3395 = vrot.slane %v3253, 6
    %v3396 = vsel %vm3298, %v3394, %v3395
    %v3397 = vrot.slane %v3395, 4
    %v3398 = vrot.slane %v3254, 6
    %v3399 = vsel %vm3298, %v3397, %v3398
    %v3400 = vrot.slane %v3398, 4
    %v3401 = vrot.slane %v3255, 6
    %v3402 = vsel %vm3298, %v3400, %v3401
    %s3403 = scalar_lea.vmem %s1, 512
    %v3404 = vld [vmem:[%s3403] sm:$0xff]
    %v3405 = vld [vmem:[%s3403 + $0x8] sm:$0xff]
    %v3406 = vld [vmem:[%s3403 + $0x10] sm:$0xff]
    %v3407 = vld [vmem:[%s3403 + $0x18] sm:$0xff]
    %v3408 = vld [vmem:[%s3403 + $0x20] sm:$0xff]
    %v3409 = vld [vmem:[%s3403 + $0x28] sm:$0xff]
    %v3410 = vld [vmem:[%s3403 + $0x30] sm:$0xff]
    %v3411 = vld [vmem:[%s3403 + $0x38] sm:$0xff]
    %v3412 = vld [vmem:[%s3403 + $0x40] sm:$0xff]
    %v3413 = vld [vmem:[%s3403 + $0x48] sm:$0xff]
    %v3414 = vld [vmem:[%s3403 + $0x50] sm:$0xff]
    %v3415 = vld [vmem:[%s3403 + $0x58] sm:$0xff]
    %v3416 = vld [vmem:[%s3403 + $0x60] sm:$0xff]
    %v3417 = vld [vmem:[%s3403 + $0x68] sm:$0xff]
    %v3418 = vld [vmem:[%s3403 + $0x70] sm:$0xff]
    %v3419 = vld [vmem:[%s3403 + $0x78] sm:$0xff]
    %v3420 = vunpack.c.l.b16 %v3302
    %v3421 = vunpack.c.l.b16 %v3305
    %v3422 = vunpack.c.l.b16 %v3308
    %v3423 = vunpack.c.l.b16 %v3311
    %v3424 = vunpack.c.l.b16 %v3315
    %v3425 = vunpack.c.l.b16 %v3318
    %v3426 = vunpack.c.l.b16 %v3321
    %v3427 = vunpack.c.l.b16 %v3324
    %v3428 = vunpack.c.l.b16 %v3328
    %v3429 = vunpack.c.l.b16 %v3331
    %v3430 = vunpack.c.l.b16 %v3334
    %v3431 = vunpack.c.l.b16 %v3337
    %v3432 = vunpack.c.l.b16 %v3341
    %v3433 = vunpack.c.l.b16 %v3344
    %v3434 = vunpack.c.l.b16 %v3347
    %v3435 = vunpack.c.l.b16 %v3350
    %v3436 = vunpack.c.l.b16 %v3354
    %v3437 = vunpack.c.l.b16 %v3357
    %v3438 = vunpack.c.l.b16 %v3360
    %v3439 = vunpack.c.l.b16 %v3363
    %v3440 = vunpack.c.l.b16 %v3367
    %v3441 = vunpack.c.l.b16 %v3370
    %v3442 = vunpack.c.l.b16 %v3373
    %v3443 = vunpack.c.l.b16 %v3376
    %v3444 = vunpack.c.l.b16 %v3380
    %v3445 = vunpack.c.l.b16 %v3383
    %v3446 = vunpack.c.l.b16 %v3386
    %v3447 = vunpack.c.l.b16 %v3389
    %v3448 = vunpack.c.l.b16 %v3393
    %v3449 = vunpack.c.l.b16 %v3396
    %v3450 = vunpack.c.l.b16 %v3399
    %v3451 = vunpack.c.l.b16 %v3402
    %v3452 = vpack.c.b16 %v3421, %v3420
    %v3453 = vpack.c.b16 %v3423, %v3422
    %v3454 = vpack.c.b16 %v3425, %v3424
    %v3455 = vpack.c.b16 %v3427, %v3426
    %v3456 = vpack.c.b16 %v3429, %v3428
    %v3457 = vpack.c.b16 %v3431, %v3430
    %v3458 = vpack.c.b16 %v3433, %v3432
    %v3459 = vpack.c.b16 %v3435, %v3434
    %v3460 = vpack.c.b16 %v3437, %v3436
    %v3461 = vpack.c.b16 %v3439, %v3438
    %v3462 = vpack.c.b16 %v3441, %v3440
    %v3463 = vpack.c.b16 %v3443, %v3442
    %v3464 = vpack.c.b16 %v3445, %v3444
    %v3465 = vpack.c.b16 %v3447, %v3446
    %v3466 = vpack.c.b16 %v3449, %v3448
    %v3467 = vpack.c.b16 %v3451, %v3450
    %v3500 = vunpack.c.l.b16 %v3404
    %v3501 = vunpack.c.h.b16 %v3404
    %v3502 = vunpack.c.l.b16 %v3405
    %v3503 = vunpack.c.h.b16 %v3405
    %v3504 = vunpack.c.l.b16 %v3406
    %v3505 = vunpack.c.h.b16 %v3406
    %v3506 = vunpack.c.l.b16 %v3407
    %v3507 = vunpack.c.h.b16 %v3407
    %v3508 = vunpack.c.l.b16 %v3408
    %v3509 = vunpack.c.h.b16 %v3408
    %v3510 = vunpack.c.l.b16 %v3409
    %v3511 = vunpack.c.h.b16 %v3409
    %v3512 = vunpack.c.l.b16 %v3410
    %v3513 = vunpack.c.h.b16 %v3410
    %v3514 = vunpack.c.l.b16 %v3411
    %v3515 = vunpack.c.h.b16 %v3411
    %v3516 = vunpack.c.l.b16 %v3412
    %v3517 = vunpack.c.h.b16 %v3412
    %v3518 = vunpack.c.l.b16 %v3413
    %v3519 = vunpack.c.h.b16 %v3413
    %v3520 = vunpack.c.l.b16 %v3414
    %v3521 = vunpack.c.h.b16 %v3414
    %v3522 = vunpack.c.l.b16 %v3415
    %v3523 = vunpack.c.h.b16 %v3415
    %v3524 = vunpack.c.l.b16 %v3416
    %v3525 = vunpack.c.h.b16 %v3416
    %v3526 = vunpack.c.l.b16 %v3417
    %v3527 = vunpack.c.h.b16 %v3417
    %v3528 = vunpack.c.l.b16 %v3418
    %v3529 = vunpack.c.h.b16 %v3418
    %v3530 = vunpack.c.l.b16 %v3419
    %v3531 = vunpack.c.h.b16 %v3419
    %v3532 = vpack.c.b16 %v3502, %v3500
    %v3533 = vpack.c.b16 %v3503, %v3501
    %v3534 = vpack.c.b16 %v3506, %v3504
    %v3535 = vpack.c.b16 %v3507, %v3505
    %v3536 = vpack.c.b16 %v3510, %v3508
    %v3537 = vpack.c.b16 %v3511, %v3509
    %v3538 = vpack.c.b16 %v3514, %v3512
    %v3539 = vpack.c.b16 %v3515, %v3513
    %v3540 = vpack.c.b16 %v3518, %v3516
    %v3541 = vpack.c.b16 %v3519, %v3517
    %v3542 = vpack.c.b16 %v3522, %v3520
    %v3543 = vpack.c.b16 %v3523, %v3521
    %v3544 = vpack.c.b16 %v3526, %v3524
    %v3545 = vpack.c.b16 %v3527, %v3525
    %v3546 = vpack.c.b16 %v3530, %v3528
    %v3547 = vpack.c.b16 %v3531, %v3529
    %3564 = vmatpush.bf16.msra.mxu0 %v3546
    %3565 = vmatpush.bf16.msra.mxu0 %v3544
    %3566 = vmatpush.bf16.msra.mxu0 %v3542
    %3567 = vmatpush.bf16.msra.mxu0 %v3540
    %3568 = vmatpush.bf16.msra.mxu0 %v3538
    %3569 = vmatpush.bf16.msra.mxu0 %v3536
    %3570 = vmatpush.bf16.msra.mxu0 %v3534
    %3571 = vmatpush.bf16.msra.mxu0 %v3532
    %3572 = vmatmul.bf16.gmra.mxu0 %v3452
    %v3573 = vpop.f32.mrf.mxu0
    %v3574 = vadd.f32 0.0, %v3573
    %v3575 = vpop.f32.mrf.mxu0
    %v3576 = vadd.f32 0.0, %v3575
    %3577 = vmatmul.bf16.gmra.mxu0 %v3453
    %v3578 = vpop.f32.mrf.mxu0
    %v3579 = vadd.f32 0.0, %v3578
    %v3580 = vpop.f32.mrf.mxu0
    %v3581 = vadd.f32 0.0, %v3580
    %3582 = vmatmul.bf16.gmra.mxu0 %v3454
    %v3583 = vpop.f32.mrf.mxu0
    %v3584 = vadd.f32 0.0, %v3583
    %v3585 = vpop.f32.mrf.mxu0
    %v3586 = vadd.f32 0.0, %v3585
    %3587 = vmatmul.bf16.gmra.mxu0 %v3455
    %v3588 = vpop.f32.mrf.mxu0
    %v3589 = vadd.f32 0.0, %v3588
    %v3590 = vpop.f32.mrf.mxu0
    %v3591 = vadd.f32 0.0, %v3590
    %3592 = vmatmul.bf16.gmra.mxu0 %v3456
    %v3593 = vpop.f32.mrf.mxu0
    %v3594 = vadd.f32 0.0, %v3593
    %v3595 = vpop.f32.mrf.mxu0
    %v3596 = vadd.f32 0.0, %v3595
    %3597 = vmatmul.bf16.gmra.mxu0 %v3457
    %v3598 = vpop.f32.mrf.mxu0
    %v3599 = vadd.f32 0.0, %v3598
    %v3600 = vpop.f32.mrf.mxu0
    %v3601 = vadd.f32 0.0, %v3600
    %3602 = vmatmul.bf16.gmra.mxu0 %v3458
    %v3603 = vpop.f32.mrf.mxu0
    %v3604 = vadd.f32 0.0, %v3603
    %v3605 = vpop.f32.mrf.mxu0
    %v3606 = vadd.f32 0.0, %v3605
    %3607 = vmatmul.bf16.gmra.mxu0 %v3459
    %v3608 = vpop.f32.mrf.mxu0
    %v3609 = vadd.f32 0.0, %v3608
    %v3610 = vpop.f32.mrf.mxu0
    %v3611 = vadd.f32 0.0, %v3610
    %3612 = vmatmul.bf16.gmra.mxu0 %v3460
    %v3613 = vpop.f32.mrf.mxu0
    %v3614 = vadd.f32 0.0, %v3613
    %v3615 = vpop.f32.mrf.mxu0
    %v3616 = vadd.f32 0.0, %v3615
    %3617 = vmatmul.bf16.gmra.mxu0 %v3461
    %v3618 = vpop.f32.mrf.mxu0
    %v3619 = vadd.f32 0.0, %v3618
    %v3620 = vpop.f32.mrf.mxu0
    %v3621 = vadd.f32 0.0, %v3620
    %3622 = vmatmul.bf16.gmra.mxu0 %v3462
    %v3623 = vpop.f32.mrf.mxu0
    %v3624 = vadd.f32 0.0, %v3623
    %v3625 = vpop.f32.mrf.mxu0
    %v3626 = vadd.f32 0.0, %v3625
    %3627 = vmatmul.bf16.gmra.mxu0 %v3463
    %v3628 = vpop.f32.mrf.mxu0
    %v3629 = vadd.f32 0.0, %v3628
    %v3630 = vpop.f32.mrf.mxu0
    %v3631 = vadd.f32 0.0, %v3630
    %3632 = vmatmul.bf16.gmra.mxu0 %v3464
    %v3633 = vpop.f32.mrf.mxu0
    %v3634 = vadd.f32 0.0, %v3633
    %v3635 = vpop.f32.mrf.mxu0
    %v3636 = vadd.f32 0.0, %v3635
    %3637 = vmatmul.bf16.gmra.mxu0 %v3465
    %v3638 = vpop.f32.mrf.mxu0
    %v3639 = vadd.f32 0.0, %v3638
    %v3640 = vpop.f32.mrf.mxu0
    %v3641 = vadd.f32 0.0, %v3640
    %3642 = vmatmul.bf16.gmra.mxu0 %v3466
    %v3643 = vpop.f32.mrf.mxu0
    %v3644 = vadd.f32 0.0, %v3643
    %v3645 = vpop.f32.mrf.mxu0
    %v3646 = vadd.f32 0.0, %v3645
    %3647 = vmatmul.bf16.gmra.mxu0 %v3467
    %v3648 = vpop.f32.mrf.mxu0
    %v3649 = vadd.f32 0.0, %v3648
    %v3650 = vpop.f32.mrf.mxu0
    %v3651 = vadd.f32 0.0, %v3650
    %3652 = vdwg.mxu0
    %3653 = vmatpush.bf16.msra.mxu0 %v3547
    %3654 = vmatpush.bf16.msra.mxu0 %v3545
    %3655 = vmatpush.bf16.msra.mxu0 %v3543
    %3656 = vmatpush.bf16.msra.mxu0 %v3541
    %3657 = vmatpush.bf16.msra.mxu0 %v3539
    %3658 = vmatpush.bf16.msra.mxu0 %v3537
    %3659 = vmatpush.bf16.msra.mxu0 %v3535
    %3660 = vmatpush.bf16.msra.mxu0 %v3533
    %3661 = vmatmul.bf16.gmra.mxu0 %v3452
    %v3662 = vpop.f32.mrf.mxu0
    %v3663 = vadd.f32 0.0, %v3662
    %v3664 = vpop.f32.mrf.mxu0
    %v3665 = vadd.f32 0.0, %v3664
    %3666 = vmatmul.bf16.gmra.mxu0 %v3453
    %v3667 = vpop.f32.mrf.mxu0
    %v3668 = vadd.f32 0.0, %v3667
    %v3669 = vpop.f32.mrf.mxu0
    %v3670 = vadd.f32 0.0, %v3669
    %3671 = vmatmul.bf16.gmra.mxu0 %v3454
    %v3672 = vpop.f32.mrf.mxu0
    %v3673 = vadd.f32 0.0, %v3672
    %v3674 = vpop.f32.mrf.mxu0
    %v3675 = vadd.f32 0.0, %v3674
    %3676 = vmatmul.bf16.gmra.mxu0 %v3455
    %v3677 = vpop.f32.mrf.mxu0
    %v3678 = vadd.f32 0.0, %v3677
    %v3679 = vpop.f32.mrf.mxu0
    %v3680 = vadd.f32 0.0, %v3679
    %3681 = vmatmul.bf16.gmra.mxu0 %v3456
    %v3682 = vpop.f32.mrf.mxu0
    %v3683 = vadd.f32 0.0, %v3682
    %v3684 = vpop.f32.mrf.mxu0
    %v3685 = vadd.f32 0.0, %v3684
    %3686 = vmatmul.bf16.gmra.mxu0 %v3457
    %v3687 = vpop.f32.mrf.mxu0
    %v3688 = vadd.f32 0.0, %v3687
    %v3689 = vpop.f32.mrf.mxu0
    %v3690 = vadd.f32 0.0, %v3689
    %3691 = vmatmul.bf16.gmra.mxu0 %v3458
    %v3692 = vpop.f32.mrf.mxu0
    %v3693 = vadd.f32 0.0, %v3692
    %v3694 = vpop.f32.mrf.mxu0
    %v3695 = vadd.f32 0.0, %v3694
    %3696 = vmatmul.bf16.gmra.mxu0 %v3459
    %v3697 = vpop.f32.mrf.mxu0
    %v3698 = vadd.f32 0.0, %v3697
    %v3699 = vpop.f32.mrf.mxu0
    %v3700 = vadd.f32 0.0, %v3699
    %3701 = vmatmul.bf16.gmra.mxu0 %v3460
    %v3702 = vpop.f32.mrf.mxu0
    %v3703 = vadd.f32 0.0, %v3702
    %v3704 = vpop.f32.mrf.mxu0
    %v3705 = vadd.f32 0.0, %v3704
    %3706 = vmatmul.bf16.gmra.mxu0 %v3461
    %v3707 = vpop.f32.mrf.mxu0
    %v3708 = vadd.f32 0.0, %v3707
    %v3709 = vpop.f32.mrf.mxu0
    %v3710 = vadd.f32 0.0, %v3709
    %3711 = vmatmul.bf16.gmra.mxu0 %v3462
    %v3712 = vpop.f32.mrf.mxu0
    %v3713 = vadd.f32 0.0, %v3712
    %v3714 = vpop.f32.mrf.mxu0
    %v3715 = vadd.f32 0.0, %v3714
    %3716 = vmatmul.bf16.gmra.mxu0 %v3463
    %v3717 = vpop.f32.mrf.mxu0
    %v3718 = vadd.f32 0.0, %v3717
    %v3719 = vpop.f32.mrf.mxu0
    %v3720 = vadd.f32 0.0, %v3719
    %3721 = vmatmul.bf16.gmra.mxu0 %v3464
    %v3722 = vpop.f32.mrf.mxu0
    %v3723 = vadd.f32 0.0, %v3722
    %v3724 = vpop.f32.mrf.mxu0
    %v3725 = vadd.f32 0.0, %v3724
    %3726 = vmatmul.bf16.gmra.mxu0 %v3465
    %v3727 = vpop.f32.mrf.mxu0
    %v3728 = vadd.f32 0.0, %v3727
    %v3729 = vpop.f32.mrf.mxu0
    %v3730 = vadd.f32 0.0, %v3729
    %3731 = vmatmul.bf16.gmra.mxu0 %v3466
    %v3732 = vpop.f32.mrf.mxu0
    %v3733 = vadd.f32 0.0, %v3732
    %v3734 = vpop.f32.mrf.mxu0
    %v3735 = vadd.f32 0.0, %v3734
    %3736 = vmatmul.bf16.gmra.mxu0 %v3467
    %v3737 = vpop.f32.mrf.mxu0
    %v3738 = vadd.f32 0.0, %v3737
    %v3739 = vpop.f32.mrf.mxu0
    %v3740 = vadd.f32 0.0, %v3739
    %3741 = vdwg.mxu0
    %v3742 = vld [vmem:[#allocation2] sm:$0xff]
    %v3743 = vld [vmem:[#allocation2 + $0x8] sm:$0xff]
    %v3744 = vld [vmem:[#allocation2 + $0x10] sm:$0xff]
    %v3745 = vld [vmem:[#allocation2 + $0x18] sm:$0xff]
    %v3746 = vld [vmem:[#allocation2 + $0x20] sm:$0xff]
    %v3747 = vld [vmem:[#allocation2 + $0x28] sm:$0xff]
    %v3748 = vld [vmem:[#allocation2 + $0x30] sm:$0xff]
    %v3749 = vld [vmem:[#allocation2 + $0x38] sm:$0xff]
    %v3750 = vld [vmem:[#allocation2 + $0x40] sm:$0xff]
    %v3751 = vld [vmem:[#allocation2 + $0x48] sm:$0xff]
    %v3752 = vld [vmem:[#allocation2 + $0x50] sm:$0xff]
    %v3753 = vld [vmem:[#allocation2 + $0x58] sm:$0xff]
    %v3754 = vld [vmem:[#allocation2 + $0x60] sm:$0xff]
    %v3755 = vld [vmem:[#allocation2 + $0x68] sm:$0xff]
    %v3756 = vld [vmem:[#allocation2 + $0x70] sm:$0xff]
    %v3757 = vld [vmem:[#allocation2 + $0x78] sm:$0xff]
    %v3758 = vld [vmem:[#allocation2 + $0x80] sm:$0xff]
    %v3759 = vld [vmem:[#allocation2 + $0x88] sm:$0xff]
    %v3760 = vld [vmem:[#allocation2 + $0x90] sm:$0xff]
    %v3761 = vld [vmem:[#allocation2 + $0x98] sm:$0xff]
    %v3762 = vld [vmem:[#allocation2 + $0xa0] sm:$0xff]
    %v3763 = vld [vmem:[#allocation2 + $0xa8] sm:$0xff]
    %v3764 = vld [vmem:[#allocation2 + $0xb0] sm:$0xff]
    %v3765 = vld [vmem:[#allocation2 + $0xb8] sm:$0xff]
    %v3766 = vld [vmem:[#allocation2 + $0xc0] sm:$0xff]
    %v3767 = vld [vmem:[#allocation2 + $0xc8] sm:$0xff]
    %v3768 = vld [vmem:[#allocation2 + $0xd0] sm:$0xff]
    %v3769 = vld [vmem:[#allocation2 + $0xd8] sm:$0xff]
    %v3770 = vld [vmem:[#allocation2 + $0xe0] sm:$0xff]
    %v3771 = vld [vmem:[#allocation2 + $0xe8] sm:$0xff]
    %v3772 = vld [vmem:[#allocation2 + $0xf0] sm:$0xff]
    %v3773 = vld [vmem:[#allocation2 + $0xf8] sm:$0xff]
    %v3774 = vld [vmem:[#allocation2 + $0x100] sm:$0xff]
    %v3775 = vld [vmem:[#allocation2 + $0x108] sm:$0xff]
    %v3776 = vld [vmem:[#allocation2 + $0x110] sm:$0xff]
    %v3777 = vld [vmem:[#allocation2 + $0x118] sm:$0xff]
    %v3778 = vld [vmem:[#allocation2 + $0x120] sm:$0xff]
    %v3779 = vld [vmem:[#allocation2 + $0x128] sm:$0xff]
    %v3780 = vld [vmem:[#allocation2 + $0x130] sm:$0xff]
    %v3781 = vld [vmem:[#allocation2 + $0x138] sm:$0xff]
    %v3782 = vld [vmem:[#allocation2 + $0x140] sm:$0xff]
    %v3783 = vld [vmem:[#allocation2 + $0x148] sm:$0xff]
    %v3784 = vld [vmem:[#allocation2 + $0x150] sm:$0xff]
    %v3785 = vld [vmem:[#allocation2 + $0x158] sm:$0xff]
    %v3786 = vld [vmem:[#allocation2 + $0x160] sm:$0xff]
    %v3787 = vld [vmem:[#allocation2 + $0x168] sm:$0xff]
    %v3788 = vld [vmem:[#allocation2 + $0x170] sm:$0xff]
    %v3789 = vld [vmem:[#allocation2 + $0x178] sm:$0xff]
    %v3790 = vld [vmem:[#allocation2 + $0x180] sm:$0xff]
    %v3791 = vld [vmem:[#allocation2 + $0x188] sm:$0xff]
    %v3792 = vld [vmem:[#allocation2 + $0x190] sm:$0xff]
    %v3793 = vld [vmem:[#allocation2 + $0x198] sm:$0xff]
    %v3794 = vld [vmem:[#allocation2 + $0x1a0] sm:$0xff]
    %v3795 = vld [vmem:[#allocation2 + $0x1a8] sm:$0xff]
    %v3796 = vld [vmem:[#allocation2 + $0x1b0] sm:$0xff]
    %v3797 = vld [vmem:[#allocation2 + $0x1b8] sm:$0xff]
    %v3798 = vld [vmem:[#allocation2 + $0x1c0] sm:$0xff]
    %v3799 = vld [vmem:[#allocation2 + $0x1c8] sm:$0xff]
    %v3800 = vld [vmem:[#allocation2 + $0x1d0] sm:$0xff]
    %v3801 = vld [vmem:[#allocation2 + $0x1d8] sm:$0xff]
    %v3802 = vld [vmem:[#allocation2 + $0x1e0] sm:$0xff]
    %v3803 = vld [vmem:[#allocation2 + $0x1e8] sm:$0xff]
    %v3804 = vld [vmem:[#allocation2 + $0x1f0] sm:$0xff]
    %v3805 = vld [vmem:[#allocation2 + $0x1f8] sm:$0xff]
    %v3806 = vadd.f32 %v3742, %v3574
    %v3807 = vadd.f32 %v3743, %v3663
    %v3808 = vadd.f32 %v3744, %v3576
    %v3809 = vadd.f32 %v3745, %v3665
    %v3810 = vadd.f32 %v3746, %v3579
    %v3811 = vadd.f32 %v3747, %v3668
    %v3812 = vadd.f32 %v3748, %v3581
    %v3813 = vadd.f32 %v3749, %v3670
    %v3814 = vadd.f32 %v3750, %v3584
    %v3815 = vadd.f32 %v3751, %v3673
    %v3816 = vadd.f32 %v3752, %v3586
    %v3817 = vadd.f32 %v3753, %v3675
    %v3818 = vadd.f32 %v3754, %v3589
    %v3819 = vadd.f32 %v3755, %v3678
    %v3820 = vadd.f32 %v3756, %v3591
    %v3821 = vadd.f32 %v3757, %v3680
    %v3822 = vadd.f32 %v3758, %v3594
    %v3823 = vadd.f32 %v3759, %v3683
    %v3824 = vadd.f32 %v3760, %v3596
    %v3825 = vadd.f32 %v3761, %v3685
    %v3826 = vadd.f32 %v3762, %v3599
    %v3827 = vadd.f32 %v3763, %v3688
    %v3828 = vadd.f32 %v3764, %v3601
    %v3829 = vadd.f32 %v3765, %v3690
    %v3830 = vadd.f32 %v3766, %v3604
    %v3831 = vadd.f32 %v3767, %v3693
    %v3832 = vadd.f32 %v3768, %v3606
    %v3833 = vadd.f32 %v3769, %v3695
    %v3834 = vadd.f32 %v3770, %v3609
    %v3835 = vadd.f32 %v3771, %v3698
    %v3836 = vadd.f32 %v3772, %v3611
    %v3837 = vadd.f32 %v3773, %v3700
    %v3838 = vadd.f32 %v3774, %v3614
    %v3839 = vadd.f32 %v3775, %v3703
    %v3840 = vadd.f32 %v3776, %v3616
    %v3841 = vadd.f32 %v3777, %v3705
    %v3842 = vadd.f32 %v3778, %v3619
    %v3843 = vadd.f32 %v3779, %v3708
    %v3844 = vadd.f32 %v3780, %v3621
    %v3845 = vadd.f32 %v3781, %v3710
    %v3846 = vadd.f32 %v3782, %v3624
    %v3847 = vadd.f32 %v3783, %v3713
    %v3848 = vadd.f32 %v3784, %v3626
    %v3849 = vadd.f32 %v3785, %v3715
    %v3850 = vadd.f32 %v3786, %v3629
    %v3851 = vadd.f32 %v3787, %v3718
    %v3852 = vadd.f32 %v3788, %v3631
    %v3853 = vadd.f32 %v3789, %v3720
    %v3854 = vadd.f32 %v3790, %v3634
    %v3855 = vadd.f32 %v3791, %v3723
    %v3856 = vadd.f32 %v3792, %v3636
    %v3857 = vadd.f32 %v3793, %v3725
    %v3858 = vadd.f32 %v3794, %v3639
    %v3859 = vadd.f32 %v3795, %v3728
    %v3860 = vadd.f32 %v3796, %v3641
    %v3861 = vadd.f32 %v3797, %v3730
    %v3862 = vadd.f32 %v3798, %v3644
    %v3863 = vadd.f32 %v3799, %v3733
    %v3864 = vadd.f32 %v3800, %v3646
    %v3865 = vadd.f32 %v3801, %v3735
    %v3866 = vadd.f32 %v3802, %v3649
    %v3867 = vadd.f32 %v3803, %v3738
    %v3868 = vadd.f32 %v3804, %v3651
    %v3869 = vadd.f32 %v3805, %v3740
    %3870 = vst [vmem:[#allocation2] sm:$0xff] %v3806
    %3871 = vst [vmem:[#allocation2 + $0x8] sm:$0xff] %v3807
    %3872 = vst [vmem:[#allocation2 + $0x10] sm:$0xff] %v3808
    %3873 = vst [vmem:[#allocation2 + $0x18] sm:$0xff] %v3809
    %3874 = vst [vmem:[#allocation2 + $0x20] sm:$0xff] %v3810
    %3875 = vst [vmem:[#allocation2 + $0x28] sm:$0xff] %v3811
    %3876 = vst [vmem:[#allocation2 + $0x30] sm:$0xff] %v3812
    %3877 = vst [vmem:[#allocation2 + $0x38] sm:$0xff] %v3813
    %3878 = vst [vmem:[#allocation2 + $0x40] sm:$0xff] %v3814
    %3879 = vst [vmem:[#allocation2 + $0x48] sm:$0xff] %v3815
    %3880 = vst [vmem:[#allocation2 + $0x50] sm:$0xff] %v3816
    %3881 = vst [vmem:[#allocation2 + $0x58] sm:$0xff] %v3817
    %3882 = vst [vmem:[#allocation2 + $0x60] sm:$0xff] %v3818
    %3883 = vst [vmem:[#allocation2 + $0x68] sm:$0xff] %v3819
    %3884 = vst [vmem:[#allocation2 + $0x70] sm:$0xff] %v3820
    %3885 = vst [vmem:[#allocation2 + $0x78] sm:$0xff] %v3821
    %3886 = vst [vmem:[#allocation2 + $0x80] sm:$0xff] %v3822
    %3887 = vst [vmem:[#allocation2 + $0x88] sm:$0xff] %v3823
    %3888 = vst [vmem:[#allocation2 + $0x90] sm:$0xff] %v3824
    %3889 = vst [vmem:[#allocation2 + $0x98] sm:$0xff] %v3825
    %3890 = vst [vmem:[#allocation2 + $0xa0] sm:$0xff] %v3826
    %3891 = vst [vmem:[#allocation2 + $0xa8] sm:$0xff] %v3827
    %3892 = vst [vmem:[#allocation2 + $0xb0] sm:$0xff] %v3828
    %3893 = vst [vmem:[#allocation2 + $0xb8] sm:$0xff] %v3829
    %3894 = vst [vmem:[#allocation2 + $0xc0] sm:$0xff] %v3830
    %3895 = vst [vmem:[#allocation2 + $0xc8] sm:$0xff] %v3831
    %3896 = vst [vmem:[#allocation2 + $0xd0] sm:$0xff] %v3832
    %3897 = vst [vmem:[#allocation2 + $0xd8] sm:$0xff] %v3833
    %3898 = vst [vmem:[#allocation2 + $0xe0] sm:$0xff] %v3834
    %3899 = vst [vmem:[#allocation2 + $0xe8] sm:$0xff] %v3835
    %3900 = vst [vmem:[#allocation2 + $0xf0] sm:$0xff] %v3836
    %3901 = vst [vmem:[#allocation2 + $0xf8] sm:$0xff] %v3837
    %3902 = vst [vmem:[#allocation2 + $0x100] sm:$0xff] %v3838
    %3903 = vst [vmem:[#allocation2 + $0x108] sm:$0xff] %v3839
    %3904 = vst [vmem:[#allocation2 + $0x110] sm:$0xff] %v3840
    %3905 = vst [vmem:[#allocation2 + $0x118] sm:$0xff] %v3841
    %3906 = vst [vmem:[#allocation2 + $0x120] sm:$0xff] %v3842
    %3907 = vst [vmem:[#allocation2 + $0x128] sm:$0xff] %v3843
    %3908 = vst [vmem:[#allocation2 + $0x130] sm:$0xff] %v3844
    %3909 = vst [vmem:[#allocation2 + $0x138] sm:$0xff] %v3845
    %3910 = vst [vmem:[#allocation2 + $0x140] sm:$0xff] %v3846
    %3911 = vst [vmem:[#allocation2 + $0x148] sm:$0xff] %v3847
    %3912 = vst [vmem:[#allocation2 + $0x150] sm:$0xff] %v3848
    %3913 = vst [vmem:[#allocation2 + $0x158] sm:$0xff] %v3849
    %3914 = vst [vmem:[#allocation2 + $0x160] sm:$0xff] %v3850
    %3915 = vst [vmem:[#allocation2 + $0x168] sm:$0xff] %v3851
    %3916 = vst [vmem:[#allocation2 + $0x170] sm:$0xff] %v3852
    %3917 = vst [vmem:[#allocation2 + $0x178] sm:$0xff] %v3853
    %3918 = vst [vmem:[#allocation2 + $0x180] sm:$0xff] %v3854
    %3919 = vst [vmem:[#allocation2 + $0x188] sm:$0xff] %v3855
    %3920 = vst [vmem:[#allocation2 + $0x190] sm:$0xff] %v3856
    %3921 = vst [vmem:[#allocation2 + $0x198] sm:$0xff] %v3857
    %3922 = vst [vmem:[#allocation2 + $0x1a0] sm:$0xff] %v3858
    %3923 = vst [vmem:[#allocation2 + $0x1a8] sm:$0xff] %v3859
    %3924 = vst [vmem:[#allocation2 + $0x1b0] sm:$0xff] %v3860
    %3925 = vst [vmem:[#allocation2 + $0x1b8] sm:$0xff] %v3861
    %3926 = vst [vmem:[#allocation2 + $0x1c0] sm:$0xff] %v3862
    %3927 = vst [vmem:[#allocation2 + $0x1c8] sm:$0xff] %v3863
    %3928 = vst [vmem:[#allocation2 + $0x1d0] sm:$0xff] %v3864
    %3929 = vst [vmem:[#allocation2 + $0x1d8] sm:$0xff] %v3865
    %3930 = vst [vmem:[#allocation2 + $0x1e0] sm:$0xff] %v3866
    %3931 = vst [vmem:[#allocation2 + $0x1e8] sm:$0xff] %v3867
    %3932 = vst [vmem:[#allocation2 + $0x1f0] sm:$0xff] %v3868
    %3933 = vst [vmem:[#allocation2 + $0x1f8] sm:$0xff] %v3869
    %v3934 = vld [vmem:[#allocation2] sm:$0xff]
    %v3935 = vld [vmem:[#allocation2 + $0x8] sm:$0xff]
    %v3936 = vld [vmem:[#allocation2 + $0x10] sm:$0xff]
    %v3937 = vld [vmem:[#allocation2 + $0x18] sm:$0xff]
    %v3938 = vld [vmem:[#allocation2 + $0x20] sm:$0xff]
    %v3939 = vld [vmem:[#allocation2 + $0x28] sm:$0xff]
    %v3940 = vld [vmem:[#allocation2 + $0x30] sm:$0xff]
    %v3941 = vld [vmem:[#allocation2 + $0x38] sm:$0xff]
    %v3942 = vld [vmem:[#allocation2 + $0x40] sm:$0xff]
    %v3943 = vld [vmem:[#allocation2 + $0x48] sm:$0xff]
    %v3944 = vld [vmem:[#allocation2 + $0x50] sm:$0xff]
    %v3945 = vld [vmem:[#allocation2 + $0x58] sm:$0xff]
    %v3946 = vld [vmem:[#allocation2 + $0x60] sm:$0xff]
    %v3947 = vld [vmem:[#allocation2 + $0x68] sm:$0xff]
    %v3948 = vld [vmem:[#allocation2 + $0x70] sm:$0xff]
    %v3949 = vld [vmem:[#allocation2 + $0x78] sm:$0xff]
    %v3950 = vld [vmem:[#allocation2 + $0x80] sm:$0xff]
    %v3951 = vld [vmem:[#allocation2 + $0x88] sm:$0xff]
    %v3952 = vld [vmem:[#allocation2 + $0x90] sm:$0xff]
    %v3953 = vld [vmem:[#allocation2 + $0x98] sm:$0xff]
    %v3954 = vld [vmem:[#allocation2 + $0xa0] sm:$0xff]
    %v3955 = vld [vmem:[#allocation2 + $0xa8] sm:$0xff]
    %v3956 = vld [vmem:[#allocation2 + $0xb0] sm:$0xff]
    %v3957 = vld [vmem:[#allocation2 + $0xb8] sm:$0xff]
    %v3958 = vld [vmem:[#allocation2 + $0xc0] sm:$0xff]
    %v3959 = vld [vmem:[#allocation2 + $0xc8] sm:$0xff]
    %v3960 = vld [vmem:[#allocation2 + $0xd0] sm:$0xff]
    %v3961 = vld [vmem:[#allocation2 + $0xd8] sm:$0xff]
    %v3962 = vld [vmem:[#allocation2 + $0xe0] sm:$0xff]
    %v3963 = vld [vmem:[#allocation2 + $0xe8] sm:$0xff]
    %v3964 = vld [vmem:[#allocation2 + $0xf0] sm:$0xff]
    %v3965 = vld [vmem:[#allocation2 + $0xf8] sm:$0xff]
    %v3966 = vld [vmem:[#allocation2 + $0x100] sm:$0xff]
    %v3967 = vld [vmem:[#allocation2 + $0x108] sm:$0xff]
    %v3968 = vld [vmem:[#allocation2 + $0x110] sm:$0xff]
    %v3969 = vld [vmem:[#allocation2 + $0x118] sm:$0xff]
    %v3970 = vld [vmem:[#allocation2 + $0x120] sm:$0xff]
    %v3971 = vld [vmem:[#allocation2 + $0x128] sm:$0xff]
    %v3972 = vld [vmem:[#allocation2 + $0x130] sm:$0xff]
    %v3973 = vld [vmem:[#allocation2 + $0x138] sm:$0xff]
    %v3974 = vld [vmem:[#allocation2 + $0x140] sm:$0xff]
    %v3975 = vld [vmem:[#allocation2 + $0x148] sm:$0xff]
    %v3976 = vld [vmem:[#allocation2 + $0x150] sm:$0xff]
    %v3977 = vld [vmem:[#allocation2 + $0x158] sm:$0xff]
    %v3978 = vld [vmem:[#allocation2 + $0x160] sm:$0xff]
    %v3979 = vld [vmem:[#allocation2 + $0x168] sm:$0xff]
    %v3980 = vld [vmem:[#allocation2 + $0x170] sm:$0xff]
    %v3981 = vld [vmem:[#allocation2 + $0x178] sm:$0xff]
    %v3982 = vld [vmem:[#allocation2 + $0x180] sm:$0xff]
    %v3983 = vld [vmem:[#allocation2 + $0x188] sm:$0xff]
    %v3984 = vld [vmem:[#allocation2 + $0x190] sm:$0xff]
    %v3985 = vld [vmem:[#allocation2 + $0x198] sm:$0xff]
    %v3986 = vld [vmem:[#allocation2 + $0x1a0] sm:$0xff]
    %v3987 = vld [vmem:[#allocation2 + $0x1a8] sm:$0xff]
    %v3988 = vld [vmem:[#allocation2 + $0x1b0] sm:$0xff]
    %v3989 = vld [vmem:[#allocation2 + $0x1b8] sm:$0xff]
    %v3990 = vld [vmem:[#allocation2 + $0x1c0] sm:$0xff]
    %v3991 = vld [vmem:[#allocation2 + $0x1c8] sm:$0xff]
    %v3992 = vld [vmem:[#allocation2 + $0x1d0] sm:$0xff]
    %v3993 = vld [vmem:[#allocation2 + $0x1d8] sm:$0xff]
    %v3994 = vld [vmem:[#allocation2 + $0x1e0] sm:$0xff]
    %v3995 = vld [vmem:[#allocation2 + $0x1e8] sm:$0xff]
    %v3996 = vld [vmem:[#allocation2 + $0x1f0] sm:$0xff]
    %v3997 = vld [vmem:[#allocation2 + $0x1f8] sm:$0xff]
    %v3998 = vld [vmem:[%s10] ss:$8 sm:$0x3]
    %v4000 = vperm.slane %v3998, 0
    %v4001 = vperm.slane %v3998, 1
    %v4004 = vadd.f32 %v3934, %v4000
    %v4005 = vadd.f32 %v3935, %v4001
    %v4006 = vadd.f32 %v3936, %v4000
    %v4007 = vadd.f32 %v3937, %v4001
    %v4008 = vadd.f32 %v3938, %v4000
    %v4009 = vadd.f32 %v3939, %v4001
    %v4010 = vadd.f32 %v3940, %v4000
    %v4011 = vadd.f32 %v3941, %v4001
    %v4012 = vadd.f32 %v3942, %v4000
    %v4013 = vadd.f32 %v3943, %v4001
    %v4014 = vadd.f32 %v3944, %v4000
    %v4015 = vadd.f32 %v3945, %v4001
    %v4016 = vadd.f32 %v3946, %v4000
    %v4017 = vadd.f32 %v3947, %v4001
    %v4018 = vadd.f32 %v3948, %v4000
    %v4019 = vadd.f32 %v3949, %v4001
    %v4020 = vadd.f32 %v3950, %v4000
    %v4021 = vadd.f32 %v3951, %v4001
    %v4022 = vadd.f32 %v3952, %v4000
    %v4023 = vadd.f32 %v3953, %v4001
    %v4024 = vadd.f32 %v3954, %v4000
    %v4025 = vadd.f32 %v3955, %v4001
    %v4026 = vadd.f32 %v3956, %v4000
    %v4027 = vadd.f32 %v3957, %v4001
    %v4028 = vadd.f32 %v3958, %v4000
    %v4029 = vadd.f32 %v3959, %v4001
    %v4030 = vadd.f32 %v3960, %v4000
    %v4031 = vadd.f32 %v3961, %v4001
    %v4032 = vadd.f32 %v3962, %v4000
    %v4033 = vadd.f32 %v3963, %v4001
    %v4034 = vadd.f32 %v3964, %v4000
    %v4035 = vadd.f32 %v3965, %v4001
    %v4036 = vadd.f32 %v3966, %v4000
    %v4037 = vadd.f32 %v3967, %v4001
    %v4038 = vadd.f32 %v3968, %v4000
    %v4039 = vadd.f32 %v3969, %v4001
    %v4040 = vadd.f32 %v3970, %v4000
    %v4041 = vadd.f32 %v3971, %v4001
    %v4042 = vadd.f32 %v3972, %v4000
    %v4043 = vadd.f32 %v3973, %v4001
    %v4044 = vadd.f32 %v3974, %v4000
    %v4045 = vadd.f32 %v3975, %v4001
    %v4046 = vadd.f32 %v3976, %v4000
    %v4047 = vadd.f32 %v3977, %v4001
    %v4048 = vadd.f32 %v3978, %v4000
    %v4049 = vadd.f32 %v3979, %v4001
    %v4050 = vadd.f32 %v3980, %v4000
    %v4051 = vadd.f32 %v3981, %v4001
    %v4052 = vadd.f32 %v3982, %v4000
    %v4053 = vadd.f32 %v3983, %v4001
    %v4054 = vadd.f32 %v3984, %v4000
    %v4055 = vadd.f32 %v3985, %v4001
    %v4056 = vadd.f32 %v3986, %v4000
    %v4057 = vadd.f32 %v3987, %v4001
    %v4058 = vadd.f32 %v3988, %v4000
    %v4059 = vadd.f32 %v3989, %v4001
    %v4060 = vadd.f32 %v3990, %v4000
    %v4061 = vadd.f32 %v3991, %v4001
    %v4062 = vadd.f32 %v3992, %v4000
    %v4063 = vadd.f32 %v3993, %v4001
    %v4064 = vadd.f32 %v3994, %v4000
    %v4065 = vadd.f32 %v3995, %v4001
    %v4066 = vadd.f32 %v3996, %v4000
    %v4067 = vadd.f32 %v3997, %v4001
    %v4068 = vmax.f32 %v4004, 0.0
    %v4069 = vmax.f32 %v4005, 0.0
    %v4070 = vmax.f32 %v4006, 0.0
    %v4071 = vmax.f32 %v4007, 0.0
    %v4072 = vmax.f32 %v4008, 0.0
    %v4073 = vmax.f32 %v4009, 0.0
    %v4074 = vmax.f32 %v4010, 0.0
    %v4075 = vmax.f32 %v4011, 0.0
    %v4076 = vmax.f32 %v4012, 0.0
    %v4077 = vmax.f32 %v4013, 0.0
    %v4078 = vmax.f32 %v4014, 0.0
    %v4079 = vmax.f32 %v4015, 0.0
    %v4080 = vmax.f32 %v4016, 0.0
    %v4081 = vmax.f32 %v4017, 0.0
    %v4082 = vmax.f32 %v4018, 0.0
    %v4083 = vmax.f32 %v4019, 0.0
    %v4084 = vmax.f32 %v4020, 0.0
    %v4085 = vmax.f32 %v4021, 0.0
    %v4086 = vmax.f32 %v4022, 0.0
    %v4087 = vmax.f32 %v4023, 0.0
    %v4088 = vmax.f32 %v4024, 0.0
    %v4089 = vmax.f32 %v4025, 0.0
    %v4090 = vmax.f32 %v4026, 0.0
    %v4091 = vmax.f32 %v4027, 0.0
    %v4092 = vmax.f32 %v4028, 0.0
    %v4093 = vmax.f32 %v4029, 0.0
    %v4094 = vmax.f32 %v4030, 0.0
    %v4095 = vmax.f32 %v4031, 0.0
    %v4096 = vmax.f32 %v4032, 0.0
    %v4097 = vmax.f32 %v4033, 0.0
    %v4098 = vmax.f32 %v4034, 0.0
    %v4099 = vmax.f32 %v4035, 0.0
    %v4100 = vmax.f32 %v4036, 0.0
    %v4101 = vmax.f32 %v4037, 0.0
    %v4102 = vmax.f32 %v4038, 0.0
    %v4103 = vmax.f32 %v4039, 0.0
    %v4104 = vmax.f32 %v4040, 0.0
    %v4105 = vmax.f32 %v4041, 0.0
    %v4106 = vmax.f32 %v4042, 0.0
    %v4107 = vmax.f32 %v4043, 0.0
    %v4108 = vmax.f32 %v4044, 0.0
    %v4109 = vmax.f32 %v4045, 0.0
    %v4110 = vmax.f32 %v4046, 0.0
    %v4111 = vmax.f32 %v4047, 0.0
    %v4112 = vmax.f32 %v4048, 0.0
    %v4113 = vmax.f32 %v4049, 0.0
    %v4114 = vmax.f32 %v4050, 0.0
    %v4115 = vmax.f32 %v4051, 0.0
    %v4116 = vmax.f32 %v4052, 0.0
    %v4117 = vmax.f32 %v4053, 0.0
    %v4118 = vmax.f32 %v4054, 0.0
    %v4119 = vmax.f32 %v4055, 0.0
    %v4120 = vmax.f32 %v4056, 0.0
    %v4121 = vmax.f32 %v4057, 0.0
    %v4122 = vmax.f32 %v4058, 0.0
    %v4123 = vmax.f32 %v4059, 0.0
    %v4124 = vmax.f32 %v4060, 0.0
    %v4125 = vmax.f32 %v4061, 0.0
    %v4126 = vmax.f32 %v4062, 0.0
    %v4127 = vmax.f32 %v4063, 0.0
    %v4128 = vmax.f32 %v4064, 0.0
    %v4129 = vmax.f32 %v4065, 0.0
    %v4130 = vmax.f32 %v4066, 0.0
    %v4131 = vmax.f32 %v4067, 0.0
    %v4132 = vpack.c.bf16 %v4070, %v4068
    %v4133 = vpack.c.bf16 %v4071, %v4069
    %v4134 = vpack.c.bf16 %v4074, %v4072
    %v4135 = vpack.c.bf16 %v4075, %v4073
    %v4136 = vpack.c.bf16 %v4078, %v4076
    %v4137 = vpack.c.bf16 %v4079, %v4077
    %v4138 = vpack.c.bf16 %v4082, %v4080
    %v4139 = vpack.c.bf16 %v4083, %v4081
    %v4140 = vpack.c.bf16 %v4086, %v4084
    %v4141 = vpack.c.bf16 %v4087, %v4085
    %v4142 = vpack.c.bf16 %v4090, %v4088
    %v4143 = vpack.c.bf16 %v4091, %v4089
    %v4144 = vpack.c.bf16 %v4094, %v4092
    %v4145 = vpack.c.bf16 %v4095, %v4093
    %v4146 = vpack.c.bf16 %v4098, %v4096
    %v4147 = vpack.c.bf16 %v4099, %v4097
    %v4148 = vpack.c.bf16 %v4102, %v4100
    %v4149 = vpack.c.bf16 %v4103, %v4101
    %v4150 = vpack.c.bf16 %v4106, %v4104
    %v4151 = vpack.c.bf16 %v4107, %v4105
    %v4152 = vpack.c.bf16 %v4110, %v4108
    %v4153 = vpack.c.bf16 %v4111, %v4109
    %v4154 = vpack.c.bf16 %v4114, %v4112
    %v4155 = vpack.c.bf16 %v4115, %v4113
    %v4156 = vpack.c.bf16 %v4118, %v4116
    %v4157 = vpack.c.bf16 %v4119, %v4117
    %v4158 = vpack.c.bf16 %v4122, %v4120
    %v4159 = vpack.c.bf16 %v4123, %v4121
    %v4160 = vpack.c.bf16 %v4126, %v4124
    %v4161 = vpack.c.bf16 %v4127, %v4125
    %v4162 = vpack.c.bf16 %v4130, %v4128
    %v4163 = vpack.c.bf16 %v4131, %v4129
    %v4164 = vld [vmem:[#allocation5] sm:$0xff]
    %v4165 = vld [vmem:[#allocation5 + $0x8] sm:$0xff]
    %v4166 = vld [vmem:[#allocation5 + $0x10] sm:$0xff]
    %v4167 = vld [vmem:[#allocation5 + $0x18] sm:$0xff]
    %v4168 = vld [vmem:[#allocation5 + $0x20] sm:$0xff]
    %v4169 = vld [vmem:[#allocation5 + $0x28] sm:$0xff]
    %v4170 = vld [vmem:[#allocation5 + $0x30] sm:$0xff]
    %v4171 = vld [vmem:[#allocation5 + $0x38] sm:$0xff]
    %v4172 = vld [vmem:[#allocation5 + $0x40] sm:$0xff]
    %v4173 = vld [vmem:[#allocation5 + $0x48] sm:$0xff]
    %v4174 = vld [vmem:[#allocation5 + $0x50] sm:$0xff]
    %v4175 = vld [vmem:[#allocation5 + $0x58] sm:$0xff]
    %v4176 = vld [vmem:[#allocation5 + $0x60] sm:$0xff]
    %v4177 = vld [vmem:[#allocation5 + $0x68] sm:$0xff]
    %v4178 = vld [vmem:[#allocation5 + $0x70] sm:$0xff]
    %v4179 = vld [vmem:[#allocation5 + $0x78] sm:$0xff]
    %v4196 = vunpack.c.l.b16 %v4164
    %v4197 = vunpack.c.h.b16 %v4164
    %v4198 = vunpack.c.l.b16 %v4165
    %v4199 = vunpack.c.h.b16 %v4165
    %v4200 = vunpack.c.l.b16 %v4166
    %v4201 = vunpack.c.h.b16 %v4166
    %v4202 = vunpack.c.l.b16 %v4167
    %v4203 = vunpack.c.h.b16 %v4167
    %v4204 = vunpack.c.l.b16 %v4168
    %v4205 = vunpack.c.h.b16 %v4168
    %v4206 = vunpack.c.l.b16 %v4169
    %v4207 = vunpack.c.h.b16 %v4169
    %v4208 = vunpack.c.l.b16 %v4170
    %v4209 = vunpack.c.h.b16 %v4170
    %v4210 = vunpack.c.l.b16 %v4171
    %v4211 = vunpack.c.h.b16 %v4171
    %v4212 = vunpack.c.l.b16 %v4172
    %v4213 = vunpack.c.h.b16 %v4172
    %v4214 = vunpack.c.l.b16 %v4173
    %v4215 = vunpack.c.h.b16 %v4173
    %v4216 = vunpack.c.l.b16 %v4174
    %v4217 = vunpack.c.h.b16 %v4174
    %v4218 = vunpack.c.l.b16 %v4175
    %v4219 = vunpack.c.h.b16 %v4175
    %v4220 = vunpack.c.l.b16 %v4176
    %v4221 = vunpack.c.h.b16 %v4176
    %v4222 = vunpack.c.l.b16 %v4177
    %v4223 = vunpack.c.h.b16 %v4177
    %v4224 = vunpack.c.l.b16 %v4178
    %v4225 = vunpack.c.h.b16 %v4178
    %v4226 = vunpack.c.l.b16 %v4179
    %v4227 = vunpack.c.h.b16 %v4179
    %v4228 = vpack.c.b16 %v4198, %v4196
    %v4229 = vpack.c.b16 %v4199, %v4197
    %v4230 = vpack.c.b16 %v4202, %v4200
    %v4231 = vpack.c.b16 %v4203, %v4201
    %v4232 = vpack.c.b16 %v4206, %v4204
    %v4233 = vpack.c.b16 %v4207, %v4205
    %v4234 = vpack.c.b16 %v4210, %v4208
    %v4235 = vpack.c.b16 %v4211, %v4209
    %v4236 = vpack.c.b16 %v4214, %v4212
    %v4237 = vpack.c.b16 %v4215, %v4213
    %v4238 = vpack.c.b16 %v4218, %v4216
    %v4239 = vpack.c.b16 %v4219, %v4217
    %v4240 = vpack.c.b16 %v4222, %v4220
    %v4241 = vpack.c.b16 %v4223, %v4221
    %v4242 = vpack.c.b16 %v4226, %v4224
    %v4243 = vpack.c.b16 %v4227, %v4225
    %4260 = vmatpush.bf16.msra.mxu0 %v4146
    %4261 = vmatpush.bf16.msra.mxu0 %v4144
    %4262 = vmatpush.bf16.msra.mxu0 %v4142
    %4263 = vmatpush.bf16.msra.mxu0 %v4140
    %4264 = vmatpush.bf16.msra.mxu0 %v4138
    %4265 = vmatpush.bf16.msra.mxu0 %v4136
    %4266 = vmatpush.bf16.msra.mxu0 %v4134
    %4267 = vmatpush.bf16.msra.mxu0 %v4132
    %4268 = vmatmul.bf16.gmra.mxu0 %v4228
    %v4269 = vpop.f32.mrf.mxu0
    %v4270 = vadd.f32 0.0, %v4269
    %v4271 = vpop.f32.mrf.mxu0
    %v4272 = vadd.f32 0.0, %v4271
    %4273 = vmatmul.bf16.gmra.mxu0 %v4230
    %v4274 = vpop.f32.mrf.mxu0
    %v4275 = vadd.f32 0.0, %v4274
    %v4276 = vpop.f32.mrf.mxu0
    %v4277 = vadd.f32 0.0, %v4276
    %4278 = vmatmul.bf16.gmra.mxu0 %v4232
    %v4279 = vpop.f32.mrf.mxu0
    %v4280 = vadd.f32 0.0, %v4279
    %v4281 = vpop.f32.mrf.mxu0
    %v4282 = vadd.f32 0.0, %v4281
    %4283 = vmatmul.bf16.gmra.mxu0 %v4234
    %v4284 = vpop.f32.mrf.mxu0
    %v4285 = vadd.f32 0.0, %v4284
    %v4286 = vpop.f32.mrf.mxu0
    %v4287 = vadd.f32 0.0, %v4286
    %4288 = vmatmul.bf16.gmra.mxu0 %v4236
    %v4289 = vpop.f32.mrf.mxu0
    %v4290 = vadd.f32 0.0, %v4289
    %v4291 = vpop.f32.mrf.mxu0
    %v4292 = vadd.f32 0.0, %v4291
    %4293 = vmatmul.bf16.gmra.mxu0 %v4238
    %v4294 = vpop.f32.mrf.mxu0
    %v4295 = vadd.f32 0.0, %v4294
    %v4296 = vpop.f32.mrf.mxu0
    %v4297 = vadd.f32 0.0, %v4296
    %4298 = vmatmul.bf16.gmra.mxu0 %v4240
    %v4299 = vpop.f32.mrf.mxu0
    %v4300 = vadd.f32 0.0, %v4299
    %v4301 = vpop.f32.mrf.mxu0
    %v4302 = vadd.f32 0.0, %v4301
    %4303 = vmatmul.bf16.gmra.mxu0 %v4242
    %v4304 = vpop.f32.mrf.mxu0
    %v4305 = vadd.f32 0.0, %v4304
    %v4306 = vpop.f32.mrf.mxu0
    %v4307 = vadd.f32 0.0, %v4306
    %4308 = vdwg.mxu0
    %4309 = vmatpush.bf16.msra.mxu0 %v4162
    %4310 = vmatpush.bf16.msra.mxu0 %v4160
    %4311 = vmatpush.bf16.msra.mxu0 %v4158
    %4312 = vmatpush.bf16.msra.mxu0 %v4156
    %4313 = vmatpush.bf16.msra.mxu0 %v4154
    %4314 = vmatpush.bf16.msra.mxu0 %v4152
    %4315 = vmatpush.bf16.msra.mxu0 %v4150
    %4316 = vmatpush.bf16.msra.mxu0 %v4148
    %4317 = vmatmul.bf16.gmra.mxu0 %v4229
    %v4318 = vpop.f32.mrf.mxu0
    %v4319 = vadd.f32 %v4270, %v4318
    %v4320 = vpop.f32.mrf.mxu0
    %v4321 = vadd.f32 %v4272, %v4320
    %4322 = vmatmul.bf16.gmra.mxu0 %v4231
    %v4323 = vpop.f32.mrf.mxu0
    %v4324 = vadd.f32 %v4275, %v4323
    %v4325 = vpop.f32.mrf.mxu0
    %v4326 = vadd.f32 %v4277, %v4325
    %4327 = vmatmul.bf16.gmra.mxu0 %v4233
    %v4328 = vpop.f32.mrf.mxu0
    %v4329 = vadd.f32 %v4280, %v4328
    %v4330 = vpop.f32.mrf.mxu0
    %v4331 = vadd.f32 %v4282, %v4330
    %4332 = vmatmul.bf16.gmra.mxu0 %v4235
    %v4333 = vpop.f32.mrf.mxu0
    %v4334 = vadd.f32 %v4285, %v4333
    %v4335 = vpop.f32.mrf.mxu0
    %v4336 = vadd.f32 %v4287, %v4335
    %4337 = vmatmul.bf16.gmra.mxu0 %v4237
    %v4338 = vpop.f32.mrf.mxu0
    %v4339 = vadd.f32 %v4290, %v4338
    %v4340 = vpop.f32.mrf.mxu0
    %v4341 = vadd.f32 %v4292, %v4340
    %4342 = vmatmul.bf16.gmra.mxu0 %v4239
    %v4343 = vpop.f32.mrf.mxu0
    %v4344 = vadd.f32 %v4295, %v4343
    %v4345 = vpop.f32.mrf.mxu0
    %v4346 = vadd.f32 %v4297, %v4345
    %4347 = vmatmul.bf16.gmra.mxu0 %v4241
    %v4348 = vpop.f32.mrf.mxu0
    %v4349 = vadd.f32 %v4300, %v4348
    %v4350 = vpop.f32.mrf.mxu0
    %v4351 = vadd.f32 %v4302, %v4350
    %4352 = vmatmul.bf16.gmra.mxu0 %v4243
    %v4353 = vpop.f32.mrf.mxu0
    %v4354 = vadd.f32 %v4305, %v4353
    %v4355 = vpop.f32.mrf.mxu0
    %v4356 = vadd.f32 %v4307, %v4355
    %4357 = vdwg.mxu0
    %4358 = vmatpush.bf16.msra.mxu0 %v4147
    %4359 = vmatpush.bf16.msra.mxu0 %v4145
    %4360 = vmatpush.bf16.msra.mxu0 %v4143
    %4361 = vmatpush.bf16.msra.mxu0 %v4141
    %4362 = vmatpush.bf16.msra.mxu0 %v4139
    %4363 = vmatpush.bf16.msra.mxu0 %v4137
    %4364 = vmatpush.bf16.msra.mxu0 %v4135
    %4365 = vmatpush.bf16.msra.mxu0 %v4133
    %4366 = vmatmul.bf16.gmra.mxu0 %v4228
    %v4367 = vpop.f32.mrf.mxu0
    %v4368 = vadd.f32 0.0, %v4367
    %v4369 = vpop.f32.mrf.mxu0
    %v4370 = vadd.f32 0.0, %v4369
    %4371 = vmatmul.bf16.gmra.mxu0 %v4230
    %v4372 = vpop.f32.mrf.mxu0
    %v4373 = vadd.f32 0.0, %v4372
    %v4374 = vpop.f32.mrf.mxu0
    %v4375 = vadd.f32 0.0, %v4374
    %4376 = vmatmul.bf16.gmra.mxu0 %v4232
    %v4377 = vpop.f32.mrf.mxu0
    %v4378 = vadd.f32 0.0, %v4377
    %v4379 = vpop.f32.mrf.mxu0
    %v4380 = vadd.f32 0.0, %v4379
    %4381 = vmatmul.bf16.gmra.mxu0 %v4234
    %v4382 = vpop.f32.mrf.mxu0
    %v4383 = vadd.f32 0.0, %v4382
    %v4384 = vpop.f32.mrf.mxu0
    %v4385 = vadd.f32 0.0, %v4384
    %4386 = vmatmul.bf16.gmra.mxu0 %v4236
    %v4387 = vpop.f32.mrf.mxu0
    %v4388 = vadd.f32 0.0, %v4387
    %v4389 = vpop.f32.mrf.mxu0
    %v4390 = vadd.f32 0.0, %v4389
    %4391 = vmatmul.bf16.gmra.mxu0 %v4238
    %v4392 = vpop.f32.mrf.mxu0
    %v4393 = vadd.f32 0.0, %v4392
    %v4394 = vpop.f32.mrf.mxu0
    %v4395 = vadd.f32 0.0, %v4394
    %4396 = vmatmul.bf16.gmra.mxu0 %v4240
    %v4397 = vpop.f32.mrf.mxu0
    %v4398 = vadd.f32 0.0, %v4397
    %v4399 = vpop.f32.mrf.mxu0
    %v4400 = vadd.f32 0.0, %v4399
    %4401 = vmatmul.bf16.gmra.mxu0 %v4242
    %v4402 = vpop.f32.mrf.mxu0
    %v4403 = vadd.f32 0.0, %v4402
    %v4404 = vpop.f32.mrf.mxu0
    %v4405 = vadd.f32 0.0, %v4404
    %4406 = vdwg.mxu0
    %4407 = vmatpush.bf16.msra.mxu0 %v4163
    %4408 = vmatpush.bf16.msra.mxu0 %v4161
    %4409 = vmatpush.bf16.msra.mxu0 %v4159
    %4410 = vmatpush.bf16.msra.mxu0 %v4157
    %4411 = vmatpush.bf16.msra.mxu0 %v4155
    %4412 = vmatpush.bf16.msra.mxu0 %v4153
    %4413 = vmatpush.bf16.msra.mxu0 %v4151
    %4414 = vmatpush.bf16.msra.mxu0 %v4149
    %4415 = vmatmul.bf16.gmra.mxu0 %v4229
    %v4416 = vpop.f32.mrf.mxu0
    %v4417 = vadd.f32 %v4368, %v4416
    %v4418 = vpop.f32.mrf.mxu0
    %v4419 = vadd.f32 %v4370, %v4418
    %4420 = vmatmul.bf16.gmra.mxu0 %v4231
    %v4421 = vpop.f32.mrf.mxu0
    %v4422 = vadd.f32 %v4373, %v4421
    %v4423 = vpop.f32.mrf.mxu0
    %v4424 = vadd.f32 %v4375, %v4423
    %4425 = vmatmul.bf16.gmra.mxu0 %v4233
    %v4426 = vpop.f32.mrf.mxu0
    %v4427 = vadd.f32 %v4378, %v4426
    %v4428 = vpop.f32.mrf.mxu0
    %v4429 = vadd.f32 %v4380, %v4428
    %4430 = vmatmul.bf16.gmra.mxu0 %v4235
    %v4431 = vpop.f32.mrf.mxu0
    %v4432 = vadd.f32 %v4383, %v4431
    %v4433 = vpop.f32.mrf.mxu0
    %v4434 = vadd.f32 %v4385, %v4433
    %4435 = vmatmul.bf16.gmra.mxu0 %v4237
    %v4436 = vpop.f32.mrf.mxu0
    %v4437 = vadd.f32 %v4388, %v4436
    %v4438 = vpop.f32.mrf.mxu0
    %v4439 = vadd.f32 %v4390, %v4438
    %4440 = vmatmul.bf16.gmra.mxu0 %v4239
    %v4441 = vpop.f32.mrf.mxu0
    %v4442 = vadd.f32 %v4393, %v4441
    %v4443 = vpop.f32.mrf.mxu0
    %v4444 = vadd.f32 %v4395, %v4443
    %4445 = vmatmul.bf16.gmra.mxu0 %v4241
    %v4446 = vpop.f32.mrf.mxu0
    %v4447 = vadd.f32 %v4398, %v4446
    %v4448 = vpop.f32.mrf.mxu0
    %v4449 = vadd.f32 %v4400, %v4448
    %4450 = vmatmul.bf16.gmra.mxu0 %v4243
    %v4451 = vpop.f32.mrf.mxu0
    %v4452 = vadd.f32 %v4403, %v4451
    %v4453 = vpop.f32.mrf.mxu0
    %v4454 = vadd.f32 %v4405, %v4453
    %4455 = vdwg.mxu0
    %v4456 = vpack.c.bf16 %v4321, %v4319
    %v4457 = vpack.c.bf16 %v4419, %v4417
    %v4458 = vpack.c.bf16 %v4326, %v4324
    %v4459 = vpack.c.bf16 %v4424, %v4422
    %v4460 = vpack.c.bf16 %v4331, %v4329
    %v4461 = vpack.c.bf16 %v4429, %v4427
    %v4462 = vpack.c.bf16 %v4336, %v4334
    %v4463 = vpack.c.bf16 %v4434, %v4432
    %v4464 = vpack.c.bf16 %v4341, %v4339
    %v4465 = vpack.c.bf16 %v4439, %v4437
    %v4466 = vpack.c.bf16 %v4346, %v4344
    %v4467 = vpack.c.bf16 %v4444, %v4442
    %v4468 = vpack.c.bf16 %v4351, %v4349
    %v4469 = vpack.c.bf16 %v4449, %v4447
    %v4470 = vpack.c.bf16 %v4356, %v4354
    %v4471 = vpack.c.bf16 %v4454, %v4452
    %v4472 = vld [vmem:[#allocation7] sm:$0xf]
    %v4473 = vld [vmem:[#allocation7 + $0x4] sm:$0xf]
    %v4474 = vld [vmem:[#allocation7 + $0x8] sm:$0xf]
    %v4475 = vld [vmem:[#allocation7 + $0xc] sm:$0xf]
    %v4476 = vld [vmem:[#allocation7 + $0x10] sm:$0xf]
    %v4477 = vld [vmem:[#allocation7 + $0x14] sm:$0xf]
    %v4478 = vld [vmem:[#allocation7 + $0x18] sm:$0xf]
    %v4479 = vld [vmem:[#allocation7 + $0x1c] sm:$0xf]
    %v4480 = vld [vmem:[#allocation7 + $0x20] sm:$0xf]
    %v4481 = vld [vmem:[#allocation7 + $0x24] sm:$0xf]
    %v4482 = vld [vmem:[#allocation7 + $0x28] sm:$0xf]
    %v4483 = vld [vmem:[#allocation7 + $0x2c] sm:$0xf]
    %v4484 = vld [vmem:[#allocation7 + $0x30] sm:$0xf]
    %v4485 = vld [vmem:[#allocation7 + $0x34] sm:$0xf]
    %v4486 = vld [vmem:[#allocation7 + $0x38] sm:$0xf]
    %v4487 = vld [vmem:[#allocation7 + $0x3c] sm:$0xf]
    %v4488 = vld [vmem:[#allocation7 + $0x40] sm:$0xf]
    %v4489 = vld [vmem:[#allocation7 + $0x44] sm:$0xf]
    %v4490 = vld [vmem:[#allocation7 + $0x48] sm:$0xf]
    %v4491 = vld [vmem:[#allocation7 + $0x4c] sm:$0xf]
    %v4492 = vld [vmem:[#allocation7 + $0x50] sm:$0xf]
    %v4493 = vld [vmem:[#allocation7 + $0x54] sm:$0xf]
    %v4494 = vld [vmem:[#allocation7 + $0x58] sm:$0xf]
    %v4495 = vld [vmem:[#allocation7 + $0x5c] sm:$0xf]
    %v4496 = vld [vmem:[#allocation7 + $0x60] sm:$0xf]
    %v4497 = vld [vmem:[#allocation7 + $0x64] sm:$0xf]
    %v4498 = vld [vmem:[#allocation7 + $0x68] sm:$0xf]
    %v4499 = vld [vmem:[#allocation7 + $0x6c] sm:$0xf]
    %v4500 = vld [vmem:[#allocation7 + $0x70] sm:$0xf]
    %v4501 = vld [vmem:[#allocation7 + $0x74] sm:$0xf]
    %v4502 = vld [vmem:[#allocation7 + $0x78] sm:$0xf]
    %v4503 = vld [vmem:[#allocation7 + $0x7c] sm:$0xf]
    %v4536 = vunpack.c.l.b16 %v4472
    %v4537 = vunpack.c.l.b16 %v4473
    %v4538 = vunpack.c.l.b16 %v4474
    %v4539 = vunpack.c.l.b16 %v4475
    %v4540 = vunpack.c.l.b16 %v4476
    %v4541 = vunpack.c.l.b16 %v4477
    %v4542 = vunpack.c.l.b16 %v4478
    %v4543 = vunpack.c.l.b16 %v4479
    %v4544 = vunpack.c.l.b16 %v4480
    %v4545 = vunpack.c.l.b16 %v4481
    %v4546 = vunpack.c.l.b16 %v4482
    %v4547 = vunpack.c.l.b16 %v4483
    %v4548 = vunpack.c.l.b16 %v4484
    %v4549 = vunpack.c.l.b16 %v4485
    %v4550 = vunpack.c.l.b16 %v4486
    %v4551 = vunpack.c.l.b16 %v4487
    %v4552 = vunpack.c.l.b16 %v4488
    %v4553 = vunpack.c.l.b16 %v4489
    %v4554 = vunpack.c.l.b16 %v4490
    %v4555 = vunpack.c.l.b16 %v4491
    %v4556 = vunpack.c.l.b16 %v4492
    %v4557 = vunpack.c.l.b16 %v4493
    %v4558 = vunpack.c.l.b16 %v4494
    %v4559 = vunpack.c.l.b16 %v4495
    %v4560 = vunpack.c.l.b16 %v4496
    %v4561 = vunpack.c.l.b16 %v4497
    %v4562 = vunpack.c.l.b16 %v4498
    %v4563 = vunpack.c.l.b16 %v4499
    %v4564 = vunpack.c.l.b16 %v4500
    %v4565 = vunpack.c.l.b16 %v4501
    %v4566 = vunpack.c.l.b16 %v4502
    %v4567 = vunpack.c.l.b16 %v4503
    %v4568 = vpack.c.b16 %v4537, %v4536
    %v4569 = vpack.c.b16 %v4539, %v4538
    %v4570 = vpack.c.b16 %v4541, %v4540
    %v4571 = vpack.c.b16 %v4543, %v4542
    %v4572 = vpack.c.b16 %v4545, %v4544
    %v4573 = vpack.c.b16 %v4547, %v4546
    %v4574 = vpack.c.b16 %v4549, %v4548
    %v4575 = vpack.c.b16 %v4551, %v4550
    %v4576 = vpack.c.b16 %v4553, %v4552
    %v4577 = vpack.c.b16 %v4555, %v4554
    %v4578 = vpack.c.b16 %v4557, %v4556
    %v4579 = vpack.c.b16 %v4559, %v4558
    %v4580 = vpack.c.b16 %v4561, %v4560
    %v4581 = vpack.c.b16 %v4563, %v4562
    %v4582 = vpack.c.b16 %v4565, %v4564
    %v4583 = vpack.c.b16 %v4567, %v4566
    %4600 = vmatpush.bf16.msra.mxu0 %v4575
    %4601 = vmatpush.bf16.msra.mxu0 %v4574
    %4602 = vmatpush.bf16.msra.mxu0 %v4573
    %4603 = vmatpush.bf16.msra.mxu0 %v4572
    %4604 = vmatpush.bf16.msra.mxu0 %v4571
    %4605 = vmatpush.bf16.msra.mxu0 %v4570
    %4606 = vmatpush.bf16.msra.mxu0 %v4569
    %4607 = vmatpush.bf16.msra.mxu0 %v4568
    %4608 = vmatmul.bf16.gmra.mxu0 %v4456
    %v4609 = vpop.f32.mrf.mxu0
    %v4610 = vadd.f32 0.0, %v4609
    %v4611 = vpop.f32.mrf.mxu0
    %v4612 = vadd.f32 0.0, %v4611
    %4613 = vmatmul.bf16.gmra.mxu0 %v4458
    %v4614 = vpop.f32.mrf.mxu0
    %v4615 = vadd.f32 0.0, %v4614
    %v4616 = vpop.f32.mrf.mxu0
    %v4617 = vadd.f32 0.0, %v4616
    %4618 = vmatmul.bf16.gmra.mxu0 %v4460
    %v4619 = vpop.f32.mrf.mxu0
    %v4620 = vadd.f32 0.0, %v4619
    %v4621 = vpop.f32.mrf.mxu0
    %v4622 = vadd.f32 0.0, %v4621
    %4623 = vmatmul.bf16.gmra.mxu0 %v4462
    %v4624 = vpop.f32.mrf.mxu0
    %v4625 = vadd.f32 0.0, %v4624
    %v4626 = vpop.f32.mrf.mxu0
    %v4627 = vadd.f32 0.0, %v4626
    %4628 = vmatmul.bf16.gmra.mxu0 %v4464
    %v4629 = vpop.f32.mrf.mxu0
    %v4630 = vadd.f32 0.0, %v4629
    %v4631 = vpop.f32.mrf.mxu0
    %v4632 = vadd.f32 0.0, %v4631
    %4633 = vmatmul.bf16.gmra.mxu0 %v4466
    %v4634 = vpop.f32.mrf.mxu0
    %v4635 = vadd.f32 0.0, %v4634
    %v4636 = vpop.f32.mrf.mxu0
    %v4637 = vadd.f32 0.0, %v4636
    %4638 = vmatmul.bf16.gmra.mxu0 %v4468
    %v4639 = vpop.f32.mrf.mxu0
    %v4640 = vadd.f32 0.0, %v4639
    %v4641 = vpop.f32.mrf.mxu0
    %v4642 = vadd.f32 0.0, %v4641
    %4643 = vmatmul.bf16.gmra.mxu0 %v4470
    %v4644 = vpop.f32.mrf.mxu0
    %v4645 = vadd.f32 0.0, %v4644
    %v4646 = vpop.f32.mrf.mxu0
    %v4647 = vadd.f32 0.0, %v4646
    %4648 = vdwg.mxu0
    %4649 = vmatpush.bf16.msra.mxu0 %v4583
    %4650 = vmatpush.bf16.msra.mxu0 %v4582
    %4651 = vmatpush.bf16.msra.mxu0 %v4581
    %4652 = vmatpush.bf16.msra.mxu0 %v4580
    %4653 = vmatpush.bf16.msra.mxu0 %v4579
    %4654 = vmatpush.bf16.msra.mxu0 %v4578
    %4655 = vmatpush.bf16.msra.mxu0 %v4577
    %4656 = vmatpush.bf16.msra.mxu0 %v4576
    %4657 = vmatmul.bf16.gmra.mxu0 %v4457
    %v4658 = vpop.f32.mrf.mxu0
    %v4659 = vadd.f32 %v4610, %v4658
    %v4660 = vpop.f32.mrf.mxu0
    %v4661 = vadd.f32 %v4612, %v4660
    %4662 = vmatmul.bf16.gmra.mxu0 %v4459
    %v4663 = vpop.f32.mrf.mxu0
    %v4664 = vadd.f32 %v4615, %v4663
    %v4665 = vpop.f32.mrf.mxu0
    %v4666 = vadd.f32 %v4617, %v4665
    %4667 = vmatmul.bf16.gmra.mxu0 %v4461
    %v4668 = vpop.f32.mrf.mxu0
    %v4669 = vadd.f32 %v4620, %v4668
    %v4670 = vpop.f32.mrf.mxu0
    %v4671 = vadd.f32 %v4622, %v4670
    %4672 = vmatmul.bf16.gmra.mxu0 %v4463
    %v4673 = vpop.f32.mrf.mxu0
    %v4674 = vadd.f32 %v4625, %v4673
    %v4675 = vpop.f32.mrf.mxu0
    %v4676 = vadd.f32 %v4627, %v4675
    %4677 = vmatmul.bf16.gmra.mxu0 %v4465
    %v4678 = vpop.f32.mrf.mxu0
    %v4679 = vadd.f32 %v4630, %v4678
    %v4680 = vpop.f32.mrf.mxu0
    %v4681 = vadd.f32 %v4632, %v4680
    %4682 = vmatmul.bf16.gmra.mxu0 %v4467
    %v4683 = vpop.f32.mrf.mxu0
    %v4684 = vadd.f32 %v4635, %v4683
    %v4685 = vpop.f32.mrf.mxu0
    %v4686 = vadd.f32 %v4637, %v4685
    %4687 = vmatmul.bf16.gmra.mxu0 %v4469
    %v4688 = vpop.f32.mrf.mxu0
    %v4689 = vadd.f32 %v4640, %v4688
    %v4690 = vpop.f32.mrf.mxu0
    %v4691 = vadd.f32 %v4642, %v4690
    %4692 = vmatmul.bf16.gmra.mxu0 %v4471
    %v4693 = vpop.f32.mrf.mxu0
    %v4694 = vadd.f32 %v4645, %v4693
    %v4695 = vpop.f32.mrf.mxu0
    %v4696 = vadd.f32 %v4647, %v4695
    %4697 = vdwg.mxu0
    %v4698 = vpack.c.bf16 %v4659, %v4659
    %v4699 = vpack.c.bf16 %v4661, %v4661
    %v4700 = vpack.c.bf16 %v4664, %v4664
    %v4701 = vpack.c.bf16 %v4666, %v4666
    %v4702 = vpack.c.bf16 %v4669, %v4669
    %v4703 = vpack.c.bf16 %v4671, %v4671
    %v4704 = vpack.c.bf16 %v4674, %v4674
    %v4705 = vpack.c.bf16 %v4676, %v4676
    %v4706 = vpack.c.bf16 %v4679, %v4679
    %v4707 = vpack.c.bf16 %v4681, %v4681
    %v4708 = vpack.c.bf16 %v4684, %v4684
    %v4709 = vpack.c.bf16 %v4686, %v4686
    %v4710 = vpack.c.bf16 %v4689, %v4689
    %v4711 = vpack.c.bf16 %v4691, %v4691
    %v4712 = vpack.c.bf16 %v4694, %v4694
    %v4713 = vpack.c.bf16 %v4696, %v4696
    %4714 = vst [vmem:[#allocation4] sm:$0xf] %v4698
    %4715 = vst [vmem:[#allocation4 + $0x4] sm:$0xf] %v4699
    %4716 = vst [vmem:[#allocation4 + $0xc] sm:$0xf] %v4700
    %4717 = vst [vmem:[#allocation4 + $0x10] sm:$0xf] %v4701
    %4718 = vst [vmem:[#allocation4 + $0x18] sm:$0xf] %v4702
    %4719 = vst [vmem:[#allocation4 + $0x1c] sm:$0xf] %v4703
    %4720 = vst [vmem:[#allocation4 + $0x24] sm:$0xf] %v4704
    %4721 = vst [vmem:[#allocation4 + $0x28] sm:$0xf] %v4705
    %4722 = vst [vmem:[#allocation4 + $0x30] sm:$0xf] %v4706
    %4723 = vst [vmem:[#allocation4 + $0x34] sm:$0xf] %v4707
    %4724 = vst [vmem:[#allocation4 + $0x3c] sm:$0xf] %v4708
    %4725 = vst [vmem:[#allocation4 + $0x40] sm:$0xf] %v4709
    %4726 = vst [vmem:[#allocation4 + $0x48] sm:$0xf] %v4710
    %4727 = vst [vmem:[#allocation4 + $0x4c] sm:$0xf] %v4711
    %4728 = vst [vmem:[#allocation4 + $0x54] sm:$0xf] %v4712
    %4729 = vst [vmem:[#allocation4 + $0x58] sm:$0xf] %v4713
    %4730 = vst [vmem:[#allocation4 + $0x8] sm:$0xf] 0
    %4731 = vst [vmem:[#allocation4 + $0x14] sm:$0xf] 0
    %4732 = vst [vmem:[#allocation4 + $0x20] sm:$0xf] 0
    %4733 = vst [vmem:[#allocation4 + $0x2c] sm:$0xf] 0
    %4734 = vst [vmem:[#allocation4 + $0x38] sm:$0xf] 0
    %4735 = vst [vmem:[#allocation4 + $0x44] sm:$0xf] 0
    %4736 = vst [vmem:[#allocation4 + $0x50] sm:$0xf] 0
    %4737 = vst [vmem:[#allocation4 + $0x5c] sm:$0xf] 0
    %v4738 = vld [vmem:[#allocation4] sm:$0xf]
    %v4739 = vld [vmem:[#allocation4 + $0x4] sm:$0xf]
    %v4740 = vld [vmem:[#allocation4 + $0xc] sm:$0xf]
    %v4741 = vld [vmem:[#allocation4 + $0x10] sm:$0xf]
    %v4742 = vld [vmem:[#allocation4 + $0x18] sm:$0xf]
    %v4743 = vld [vmem:[#allocation4 + $0x1c] sm:$0xf]
    %v4744 = vld [vmem:[#allocation4 + $0x24] sm:$0xf]
    %v4745 = vld [vmem:[#allocation4 + $0x28] sm:$0xf]
    %v4746 = vld [vmem:[#allocation4 + $0x30] sm:$0xf]
    %v4747 = vld [vmem:[#allocation4 + $0x34] sm:$0xf]
    %v4748 = vld [vmem:[#allocation4 + $0x3c] sm:$0xf]
    %v4749 = vld [vmem:[#allocation4 + $0x40] sm:$0xf]
    %v4750 = vld [vmem:[#allocation4 + $0x48] sm:$0xf]
    %v4751 = vld [vmem:[#allocation4 + $0x4c] sm:$0xf]
    %v4752 = vld [vmem:[#allocation4 + $0x54] sm:$0xf]
    %v4753 = vld [vmem:[#allocation4 + $0x58] sm:$0xf]
    %v4754 = vld [vmem:[#allocation9] sm:$0xff]
    %v4755 = vld [vmem:[#allocation9 + $0x8] sm:$0xff]
    %v4756 = vld [vmem:[#allocation9 + $0x10] sm:$0xff]
    %v4757 = vld [vmem:[#allocation9 + $0x18] sm:$0xff]
    %v4758 = vld [vmem:[#allocation9 + $0x20] sm:$0xff]
    %v4759 = vld [vmem:[#allocation9 + $0x28] sm:$0xff]
    %v4760 = vld [vmem:[#allocation9 + $0x30] sm:$0xff]
    %v4761 = vld [vmem:[#allocation9 + $0x38] sm:$0xff]
    %v4762 = vld [vmem:[#allocation9 + $0x40] sm:$0xff]
    %v4763 = vld [vmem:[#allocation9 + $0x48] sm:$0xff]
    %v4764 = vld [vmem:[#allocation9 + $0x50] sm:$0xff]
    %v4765 = vld [vmem:[#allocation9 + $0x58] sm:$0xff]
    %v4766 = vld [vmem:[#allocation9 + $0x60] sm:$0xff]
    %v4767 = vld [vmem:[#allocation9 + $0x68] sm:$0xff]
    %v4768 = vld [vmem:[#allocation9 + $0x70] sm:$0xff]
    %v4769 = vld [vmem:[#allocation9 + $0x78] sm:$0xff]
    %v4786 = vunpack.c.l.b16 %v4738
    %v4787 = vunpack.c.l.b16 %v4739
    %v4788 = vunpack.c.l.b16 %v4740
    %v4789 = vunpack.c.l.b16 %v4741
    %v4790 = vunpack.c.l.b16 %v4742
    %v4791 = vunpack.c.l.b16 %v4743
    %v4792 = vunpack.c.l.b16 %v4744
    %v4793 = vunpack.c.l.b16 %v4745
    %v4794 = vunpack.c.l.b16 %v4746
    %v4795 = vunpack.c.l.b16 %v4747
    %v4796 = vunpack.c.l.b16 %v4748
    %v4797 = vunpack.c.l.b16 %v4749
    %v4798 = vunpack.c.l.b16 %v4750
    %v4799 = vunpack.c.l.b16 %v4751
    %v4800 = vunpack.c.l.b16 %v4752
    %v4801 = vunpack.c.l.b16 %v4753
    %v4802 = vpack.c.b16 %v4787, %v4786
    %v4803 = vpack.c.b16 %v4789, %v4788
    %v4804 = vpack.c.b16 %v4791, %v4790
    %v4805 = vpack.c.b16 %v4793, %v4792
    %v4806 = vpack.c.b16 %v4795, %v4794
    %v4807 = vpack.c.b16 %v4797, %v4796
    %v4808 = vpack.c.b16 %v4799, %v4798
    %v4809 = vpack.c.b16 %v4801, %v4800
    %v4834 = vunpack.c.l.b16 %v4754
    %v4835 = vunpack.c.h.b16 %v4754
    %v4836 = vunpack.c.l.b16 %v4755
    %v4837 = vunpack.c.h.b16 %v4755
    %v4838 = vunpack.c.l.b16 %v4756
    %v4839 = vunpack.c.h.b16 %v4756
    %v4840 = vunpack.c.l.b16 %v4757
    %v4841 = vunpack.c.h.b16 %v4757
    %v4842 = vunpack.c.l.b16 %v4758
    %v4843 = vunpack.c.h.b16 %v4758
    %v4844 = vunpack.c.l.b16 %v4759
    %v4845 = vunpack.c.h.b16 %v4759
    %v4846 = vunpack.c.l.b16 %v4760
    %v4847 = vunpack.c.h.b16 %v4760
    %v4848 = vunpack.c.l.b16 %v4761
    %v4849 = vunpack.c.h.b16 %v4761
    %v4850 = vunpack.c.l.b16 %v4762
    %v4851 = vunpack.c.h.b16 %v4762
    %v4852 = vunpack.c.l.b16 %v4763
    %v4853 = vunpack.c.h.b16 %v4763
    %v4854 = vunpack.c.l.b16 %v4764
    %v4855 = vunpack.c.h.b16 %v4764
    %v4856 = vunpack.c.l.b16 %v4765
    %v4857 = vunpack.c.h.b16 %v4765
    %v4858 = vunpack.c.l.b16 %v4766
    %v4859 = vunpack.c.h.b16 %v4766
    %v4860 = vunpack.c.l.b16 %v4767
    %v4861 = vunpack.c.h.b16 %v4767
    %v4862 = vunpack.c.l.b16 %v4768
    %v4863 = vunpack.c.h.b16 %v4768
    %v4864 = vunpack.c.l.b16 %v4769
    %v4865 = vunpack.c.h.b16 %v4769
    %v4866 = vpack.c.b16 %v4836, %v4834
    %v4867 = vpack.c.b16 %v4837, %v4835
    %v4868 = vpack.c.b16 %v4840, %v4838
    %v4869 = vpack.c.b16 %v4841, %v4839
    %v4870 = vpack.c.b16 %v4844, %v4842
    %v4871 = vpack.c.b16 %v4845, %v4843
    %v4872 = vpack.c.b16 %v4848, %v4846
    %v4873 = vpack.c.b16 %v4849, %v4847
    %v4874 = vpack.c.b16 %v4852, %v4850
    %v4875 = vpack.c.b16 %v4853, %v4851
    %v4876 = vpack.c.b16 %v4856, %v4854
    %v4877 = vpack.c.b16 %v4857, %v4855
    %v4878 = vpack.c.b16 %v4860, %v4858
    %v4879 = vpack.c.b16 %v4861, %v4859
    %v4880 = vpack.c.b16 %v4864, %v4862
    %v4881 = vpack.c.b16 %v4865, %v4863
    %4898 = vmatpush.bf16.msra.mxu0 %v4880
    %4899 = vmatpush.bf16.msra.mxu0 %v4878
    %4900 = vmatpush.bf16.msra.mxu0 %v4876
    %4901 = vmatpush.bf16.msra.mxu0 %v4874
    %4902 = vmatpush.bf16.msra.mxu0 %v4872
    %4903 = vmatpush.bf16.msra.mxu0 %v4870
    %4904 = vmatpush.bf16.msra.mxu0 %v4868
    %4905 = vmatpush.bf16.msra.mxu0 %v4866
    %4906 = vmatmul.bf16.gmra.mxu0 %v4802
    %v4907 = vpop.f32.mrf.mxu0
    %v4908 = vadd.f32 0.0, %v4907
    %v4909 = vpop.f32.mrf.mxu0
    %v4910 = vadd.f32 0.0, %v4909
    %4911 = vmatmul.bf16.gmra.mxu0 %v4803
    %v4912 = vpop.f32.mrf.mxu0
    %v4913 = vadd.f32 0.0, %v4912
    %v4914 = vpop.f32.mrf.mxu0
    %v4915 = vadd.f32 0.0, %v4914
    %4916 = vmatmul.bf16.gmra.mxu0 %v4804
    %v4917 = vpop.f32.mrf.mxu0
    %v4918 = vadd.f32 0.0, %v4917
    %v4919 = vpop.f32.mrf.mxu0
    %v4920 = vadd.f32 0.0, %v4919
    %4921 = vmatmul.bf16.gmra.mxu0 %v4805
    %v4922 = vpop.f32.mrf.mxu0
    %v4923 = vadd.f32 0.0, %v4922
    %v4924 = vpop.f32.mrf.mxu0
    %v4925 = vadd.f32 0.0, %v4924
    %4926 = vmatmul.bf16.gmra.mxu0 %v4806
    %v4927 = vpop.f32.mrf.mxu0
    %v4928 = vadd.f32 0.0, %v4927
    %v4929 = vpop.f32.mrf.mxu0
    %v4930 = vadd.f32 0.0, %v4929
    %4931 = vmatmul.bf16.gmra.mxu0 %v4807
    %v4932 = vpop.f32.mrf.mxu0
    %v4933 = vadd.f32 0.0, %v4932
    %v4934 = vpop.f32.mrf.mxu0
    %v4935 = vadd.f32 0.0, %v4934
    %4936 = vmatmul.bf16.gmra.mxu0 %v4808
    %v4937 = vpop.f32.mrf.mxu0
    %v4938 = vadd.f32 0.0, %v4937
    %v4939 = vpop.f32.mrf.mxu0
    %v4940 = vadd.f32 0.0, %v4939
    %4941 = vmatmul.bf16.gmra.mxu0 %v4809
    %v4942 = vpop.f32.mrf.mxu0
    %v4943 = vadd.f32 0.0, %v4942
    %v4944 = vpop.f32.mrf.mxu0
    %v4945 = vadd.f32 0.0, %v4944
    %4946 = vdwg.mxu0
    %4947 = vmatpush.bf16.msra.mxu0 %v4881
    %4948 = vmatpush.bf16.msra.mxu0 %v4879
    %4949 = vmatpush.bf16.msra.mxu0 %v4877
    %4950 = vmatpush.bf16.msra.mxu0 %v4875
    %4951 = vmatpush.bf16.msra.mxu0 %v4873
    %4952 = vmatpush.bf16.msra.mxu0 %v4871
    %4953 = vmatpush.bf16.msra.mxu0 %v4869
    %4954 = vmatpush.bf16.msra.mxu0 %v4867
    %4955 = vmatmul.bf16.gmra.mxu0 %v4802
    %v4956 = vpop.f32.mrf.mxu0
    %v4957 = vadd.f32 0.0, %v4956
    %v4958 = vpop.f32.mrf.mxu0
    %v4959 = vadd.f32 0.0, %v4958
    %4960 = vmatmul.bf16.gmra.mxu0 %v4803
    %v4961 = vpop.f32.mrf.mxu0
    %v4962 = vadd.f32 0.0, %v4961
    %v4963 = vpop.f32.mrf.mxu0
    %v4964 = vadd.f32 0.0, %v4963
    %4965 = vmatmul.bf16.gmra.mxu0 %v4804
    %v4966 = vpop.f32.mrf.mxu0
    %v4967 = vadd.f32 0.0, %v4966
    %v4968 = vpop.f32.mrf.mxu0
    %v4969 = vadd.f32 0.0, %v4968
    %4970 = vmatmul.bf16.gmra.mxu0 %v4805
    %v4971 = vpop.f32.mrf.mxu0
    %v4972 = vadd.f32 0.0, %v4971
    %v4973 = vpop.f32.mrf.mxu0
    %v4974 = vadd.f32 0.0, %v4973
    %4975 = vmatmul.bf16.gmra.mxu0 %v4806
    %v4976 = vpop.f32.mrf.mxu0
    %v4977 = vadd.f32 0.0, %v4976
    %v4978 = vpop.f32.mrf.mxu0
    %v4979 = vadd.f32 0.0, %v4978
    %4980 = vmatmul.bf16.gmra.mxu0 %v4807
    %v4981 = vpop.f32.mrf.mxu0
    %v4982 = vadd.f32 0.0, %v4981
    %v4983 = vpop.f32.mrf.mxu0
    %v4984 = vadd.f32 0.0, %v4983
    %4985 = vmatmul.bf16.gmra.mxu0 %v4808
    %v4986 = vpop.f32.mrf.mxu0
    %v4987 = vadd.f32 0.0, %v4986
    %v4988 = vpop.f32.mrf.mxu0
    %v4989 = vadd.f32 0.0, %v4988
    %4990 = vmatmul.bf16.gmra.mxu0 %v4809
    %v4991 = vpop.f32.mrf.mxu0
    %v4992 = vadd.f32 0.0, %v4991
    %v4993 = vpop.f32.mrf.mxu0
    %v4994 = vadd.f32 0.0, %v4993
    %4995 = vdwg.mxu0
    %4996 = vst [vmem:[#allocation3] sm:$0xff] %v4908
    %4997 = vst [vmem:[#allocation3 + $0x8] sm:$0xff] %v4957
    %4998 = vst [vmem:[#allocation3 + $0x10] sm:$0xff] %v4910
    %4999 = vst [vmem:[#allocation3 + $0x18] sm:$0xff] %v4959
    %5000 = vst [vmem:[#allocation3 + $0x20] sm:$0xff] %v4913
    %5001 = vst [vmem:[#allocation3 + $0x28] sm:$0xff] %v4962
    %5002 = vst [vmem:[#allocation3 + $0x30] sm:$0xff] %v4915
    %5003 = vst [vmem:[#allocation3 + $0x38] sm:$0xff] %v4964
    %5004 = vst [vmem:[#allocation3 + $0x40] sm:$0xff] %v4918
    %5005 = vst [vmem:[#allocation3 + $0x48] sm:$0xff] %v4967
    %5006 = vst [vmem:[#allocation3 + $0x50] sm:$0xff] %v4920
    %5007 = vst [vmem:[#allocation3 + $0x58] sm:$0xff] %v4969
    %5008 = vst [vmem:[#allocation3 + $0x60] sm:$0xff] %v4923
    %5009 = vst [vmem:[#allocation3 + $0x68] sm:$0xff] %v4972
    %5010 = vst [vmem:[#allocation3 + $0x70] sm:$0xff] %v4925
    %5011 = vst [vmem:[#allocation3 + $0x78] sm:$0xff] %v4974
    %5012 = vst [vmem:[#allocation3 + $0x80] sm:$0xff] %v4928
    %5013 = vst [vmem:[#allocation3 + $0x88] sm:$0xff] %v4977
    %5014 = vst [vmem:[#allocation3 + $0x90] sm:$0xff] %v4930
    %5015 = vst [vmem:[#allocation3 + $0x98] sm:$0xff] %v4979
    %5016 = vst [vmem:[#allocation3 + $0xa0] sm:$0xff] %v4933
    %5017 = vst [vmem:[#allocation3 + $0xa8] sm:$0xff] %v4982
    %5018 = vst [vmem:[#allocation3 + $0xb0] sm:$0xff] %v4935
    %5019 = vst [vmem:[#allocation3 + $0xb8] sm:$0xff] %v4984
    %5020 = vst [vmem:[#allocation3 + $0xc0] sm:$0xff] %v4938
    %5021 = vst [vmem:[#allocation3 + $0xc8] sm:$0xff] %v4987
    %5022 = vst [vmem:[#allocation3 + $0xd0] sm:$0xff] %v4940
    %5023 = vst [vmem:[#allocation3 + $0xd8] sm:$0xff] %v4989
    %5024 = vst [vmem:[#allocation3 + $0xe0] sm:$0xff] %v4943
    %5025 = vst [vmem:[#allocation3 + $0xe8] sm:$0xff] %v4992
    %5026 = vst [vmem:[#allocation3 + $0xf0] sm:$0xff] %v4945
    %5027 = vst [vmem:[#allocation3 + $0xf8] sm:$0xff] %v4994
    %v5028 = vld [vmem:[#allocation4] sm:$0xf]
    %v5029 = vld [vmem:[#allocation4 + $0x4] sm:$0xf]
    %v5030 = vld [vmem:[#allocation4 + $0x8] sm:$0x1]
    %v5031 = vld [vmem:[#allocation4 + $0xc] sm:$0xf]
    %v5032 = vld [vmem:[#allocation4 + $0x10] sm:$0xf]
    %v5033 = vld [vmem:[#allocation4 + $0x14] sm:$0x1]
    %v5034 = vld [vmem:[#allocation4 + $0x18] sm:$0xf]
    %v5035 = vld [vmem:[#allocation4 + $0x1c] sm:$0xf]
    %v5036 = vld [vmem:[#allocation4 + $0x20] sm:$0x1]
    %v5037 = vld [vmem:[#allocation4 + $0x24] sm:$0xf]
    %v5038 = vld [vmem:[#allocation4 + $0x28] sm:$0xf]
    %v5039 = vld [vmem:[#allocation4 + $0x2c] sm:$0x1]
    %v5040 = vld [vmem:[#allocation4 + $0x30] sm:$0xf]
    %v5041 = vld [vmem:[#allocation4 + $0x34] sm:$0xf]
    %v5042 = vld [vmem:[#allocation4 + $0x38] sm:$0x1]
    %v5043 = vld [vmem:[#allocation4 + $0x3c] sm:$0xf]
    %v5044 = vld [vmem:[#allocation4 + $0x40] sm:$0xf]
    %v5045 = vld [vmem:[#allocation4 + $0x44] sm:$0x1]
    %v5046 = vld [vmem:[#allocation4 + $0x48] sm:$0xf]
    %v5047 = vld [vmem:[#allocation4 + $0x4c] sm:$0xf]
    %v5048 = vld [vmem:[#allocation4 + $0x50] sm:$0x1]
    %v5049 = vld [vmem:[#allocation4 + $0x54] sm:$0xf]
    %v5050 = vld [vmem:[#allocation4 + $0x58] sm:$0xf]
    %v5051 = vld [vmem:[#allocation4 + $0x5c] sm:$0x1]
    %v5053 = vshrl.u32 %v5028, 16
    %v5055 = vrot.slane %v5053, 4
    %v5056 = vshll.u32 %v5028, 16
    %v5058 = vrot.slane %v5056, 5
    %v5059 = vor.u32 %v5055, %v5058
    %v5060 = vrot.slane %v5059, 4
    %v5062 = vshll.u32 %v5029, 16
    %v5064 = vrot.slane %v5062, 5
    %v5065 = vsel %vm656, %v5060, %v5064
    %v5066 = vshrl.u32 %v5029, 16
    %v5068 = vrot.slane %v5066, 4
    %v5069 = vor.u32 %v5068, %v5064
    %v5070 = vrot.slane %v5069, 4
    %v5072 = vshll.u32 %v5030, 16
    %v5074 = vrot.slane %v5072, 5
    %v5075 = vsel %vm656, %v5070, %v5074
    %v5077 = vshrl.u32 %v5031, 16
    %v5079 = vrot.slane %v5077, 4
    %v5080 = vshll.u32 %v5031, 16
    %v5082 = vrot.slane %v5080, 5
    %v5083 = vor.u32 %v5079, %v5082
    %v5084 = vrot.slane %v5083, 4
    %v5086 = vshll.u32 %v5032, 16
    %v5088 = vrot.slane %v5086, 5
    %v5089 = vsel %vm656, %v5084, %v5088
    %v5090 = vshrl.u32 %v5032, 16
    %v5092 = vrot.slane %v5090, 4
    %v5093 = vor.u32 %v5092, %v5088
    %v5094 = vrot.slane %v5093, 4
    %v5096 = vshll.u32 %v5033, 16
    %v5098 = vrot.slane %v5096, 5
    %v5099 = vsel %vm656, %v5094, %v5098
    %v5101 = vshrl.u32 %v5034, 16
    %v5103 = vrot.slane %v5101, 4
    %v5104 = vshll.u32 %v5034, 16
    %v5106 = vrot.slane %v5104, 5
    %v5107 = vor.u32 %v5103, %v5106
    %v5108 = vrot.slane %v5107, 4
    %v5110 = vshll.u32 %v5035, 16
    %v5112 = vrot.slane %v5110, 5
    %v5113 = vsel %vm656, %v5108, %v5112
    %v5114 = vshrl.u32 %v5035, 16
    %v5116 = vrot.slane %v5114, 4
    %v5117 = vor.u32 %v5116, %v5112
    %v5118 = vrot.slane %v5117, 4
    %v5120 = vshll.u32 %v5036, 16
    %v5122 = vrot.slane %v5120, 5
    %v5123 = vsel %vm656, %v5118, %v5122
    %v5125 = vshrl.u32 %v5037, 16
    %v5127 = vrot.slane %v5125, 4
    %v5128 = vshll.u32 %v5037, 16
    %v5130 = vrot.slane %v5128, 5
    %v5131 = vor.u32 %v5127, %v5130
    %v5132 = vrot.slane %v5131, 4
    %v5134 = vshll.u32 %v5038, 16
    %v5136 = vrot.slane %v5134, 5
    %v5137 = vsel %vm656, %v5132, %v5136
    %v5138 = vshrl.u32 %v5038, 16
    %v5140 = vrot.slane %v5138, 4
    %v5141 = vor.u32 %v5140, %v5136
    %v5142 = vrot.slane %v5141, 4
    %v5144 = vshll.u32 %v5039, 16
    %v5146 = vrot.slane %v5144, 5
    %v5147 = vsel %vm656, %v5142, %v5146
    %v5149 = vshrl.u32 %v5040, 16
    %v5151 = vrot.slane %v5149, 4
    %v5152 = vshll.u32 %v5040, 16
    %v5154 = vrot.slane %v5152, 5
    %v5155 = vor.u32 %v5151, %v5154
    %v5156 = vrot.slane %v5155, 4
    %v5158 = vshll.u32 %v5041, 16
    %v5160 = vrot.slane %v5158, 5
    %v5161 = vsel %vm656, %v5156, %v5160
    %v5162 = vshrl.u32 %v5041, 16
    %v5164 = vrot.slane %v5162, 4
    %v5165 = vor.u32 %v5164, %v5160
    %v5166 = vrot.slane %v5165, 4
    %v5168 = vshll.u32 %v5042, 16
    %v5170 = vrot.slane %v5168, 5
    %v5171 = vsel %vm656, %v5166, %v5170
    %v5173 = vshrl.u32 %v5043, 16
    %v5175 = vrot.slane %v5173, 4
    %v5176 = vshll.u32 %v5043, 16
    %v5178 = vrot.slane %v5176, 5
    %v5179 = vor.u32 %v5175, %v5178
    %v5180 = vrot.slane %v5179, 4
    %v5182 = vshll.u32 %v5044, 16
    %v5184 = vrot.slane %v5182, 5
    %v5185 = vsel %vm656, %v5180, %v5184
    %v5186 = vshrl.u32 %v5044, 16
    %v5188 = vrot.slane %v5186, 4
    %v5189 = vor.u32 %v5188, %v5184
    %v5190 = vrot.slane %v5189, 4
    %v5192 = vshll.u32 %v5045, 16
    %v5194 = vrot.slane %v5192, 5
    %v5195 = vsel %vm656, %v5190, %v5194
    %v5197 = vshrl.u32 %v5046, 16
    %v5199 = vrot.slane %v5197, 4
    %v5200 = vshll.u32 %v5046, 16
    %v5202 = vrot.slane %v5200, 5
    %v5203 = vor.u32 %v5199, %v5202
    %v5204 = vrot.slane %v5203, 4
    %v5206 = vshll.u32 %v5047, 16
    %v5208 = vrot.slane %v5206, 5
    %v5209 = vsel %vm656, %v5204, %v5208
    %v5210 = vshrl.u32 %v5047, 16
    %v5212 = vrot.slane %v5210, 4
    %v5213 = vor.u32 %v5212, %v5208
    %v5214 = vrot.slane %v5213, 4
    %v5216 = vshll.u32 %v5048, 16
    %v5218 = vrot.slane %v5216, 5
    %v5219 = vsel %vm656, %v5214, %v5218
    %v5221 = vshrl.u32 %v5049, 16
    %v5223 = vrot.slane %v5221, 4
    %v5224 = vshll.u32 %v5049, 16
    %v5226 = vrot.slane %v5224, 5
    %v5227 = vor.u32 %v5223, %v5226
    %v5228 = vrot.slane %v5227, 4
    %v5230 = vshll.u32 %v5050, 16
    %v5232 = vrot.slane %v5230, 5
    %v5233 = vsel %vm656, %v5228, %v5232
    %v5234 = vshrl.u32 %v5050, 16
    %v5236 = vrot.slane %v5234, 4
    %v5237 = vor.u32 %v5236, %v5232
    %v5238 = vrot.slane %v5237, 4
    %v5240 = vshll.u32 %v5051, 16
    %v5242 = vrot.slane %v5240, 5
    %v5243 = vsel %vm656, %v5238, %v5242
    %s5244 = scalar_lea.vmem [#allocation9], 128
    %v5245 = vld [vmem:[%s5244] sm:$0xff]
    %v5246 = vld [vmem:[%s5244 + $0x8] sm:$0xff]
    %v5247 = vld [vmem:[%s5244 + $0x10] sm:$0xff]
    %v5248 = vld [vmem:[%s5244 + $0x18] sm:$0xff]
    %v5249 = vld [vmem:[%s5244 + $0x20] sm:$0xff]
    %v5250 = vld [vmem:[%s5244 + $0x28] sm:$0xff]
    %v5251 = vld [vmem:[%s5244 + $0x30] sm:$0xff]
    %v5252 = vld [vmem:[%s5244 + $0x38] sm:$0xff]
    %v5253 = vld [vmem:[%s5244 + $0x40] sm:$0xff]
    %v5254 = vld [vmem:[%s5244 + $0x48] sm:$0xff]
    %v5255 = vld [vmem:[%s5244 + $0x50] sm:$0xff]
    %v5256 = vld [vmem:[%s5244 + $0x58] sm:$0xff]
    %v5257 = vld [vmem:[%s5244 + $0x60] sm:$0xff]
    %v5258 = vld [vmem:[%s5244 + $0x68] sm:$0xff]
    %v5259 = vld [vmem:[%s5244 + $0x70] sm:$0xff]
    %v5260 = vld [vmem:[%s5244 + $0x78] sm:$0xff]
    %v5261 = vunpack.c.l.b16 %v5065
    %v5262 = vunpack.c.l.b16 %v5075
    %v5263 = vunpack.c.l.b16 %v5089
    %v5264 = vunpack.c.l.b16 %v5099
    %v5265 = vunpack.c.l.b16 %v5113
    %v5266 = vunpack.c.l.b16 %v5123
    %v5267 = vunpack.c.l.b16 %v5137
    %v5268 = vunpack.c.l.b16 %v5147
    %v5269 = vunpack.c.l.b16 %v5161
    %v5270 = vunpack.c.l.b16 %v5171
    %v5271 = vunpack.c.l.b16 %v5185
    %v5272 = vunpack.c.l.b16 %v5195
    %v5273 = vunpack.c.l.b16 %v5209
    %v5274 = vunpack.c.l.b16 %v5219
    %v5275 = vunpack.c.l.b16 %v5233
    %v5276 = vunpack.c.l.b16 %v5243
    %v5277 = vpack.c.b16 %v5262, %v5261
    %v5278 = vpack.c.b16 %v5264, %v5263
    %v5279 = vpack.c.b16 %v5266, %v5265
    %v5280 = vpack.c.b16 %v5268, %v5267
    %v5281 = vpack.c.b16 %v5270, %v5269
    %v5282 = vpack.c.b16 %v5272, %v5271
    %v5283 = vpack.c.b16 %v5274, %v5273
    %v5284 = vpack.c.b16 %v5276, %v5275
    %v5309 = vunpack.c.l.b16 %v5245
    %v5310 = vunpack.c.h.b16 %v5245
    %v5311 = vunpack.c.l.b16 %v5246
    %v5312 = vunpack.c.h.b16 %v5246
    %v5313 = vunpack.c.l.b16 %v5247
    %v5314 = vunpack.c.h.b16 %v5247
    %v5315 = vunpack.c.l.b16 %v5248
    %v5316 = vunpack.c.h.b16 %v5248
    %v5317 = vunpack.c.l.b16 %v5249
    %v5318 = vunpack.c.h.b16 %v5249
    %v5319 = vunpack.c.l.b16 %v5250
    %v5320 = vunpack.c.h.b16 %v5250
    %v5321 = vunpack.c.l.b16 %v5251
    %v5322 = vunpack.c.h.b16 %v5251
    %v5323 = vunpack.c.l.b16 %v5252
    %v5324 = vunpack.c.h.b16 %v5252
    %v5325 = vunpack.c.l.b16 %v5253
    %v5326 = vunpack.c.h.b16 %v5253
    %v5327 = vunpack.c.l.b16 %v5254
    %v5328 = vunpack.c.h.b16 %v5254
    %v5329 = vunpack.c.l.b16 %v5255
    %v5330 = vunpack.c.h.b16 %v5255
    %v5331 = vunpack.c.l.b16 %v5256
    %v5332 = vunpack.c.h.b16 %v5256
    %v5333 = vunpack.c.l.b16 %v5257
    %v5334 = vunpack.c.h.b16 %v5257
    %v5335 = vunpack.c.l.b16 %v5258
    %v5336 = vunpack.c.h.b16 %v5258
    %v5337 = vunpack.c.l.b16 %v5259
    %v5338 = vunpack.c.h.b16 %v5259
    %v5339 = vunpack.c.l.b16 %v5260
    %v5340 = vunpack.c.h.b16 %v5260
    %v5341 = vpack.c.b16 %v5311, %v5309
    %v5342 = vpack.c.b16 %v5312, %v5310
    %v5343 = vpack.c.b16 %v5315, %v5313
    %v5344 = vpack.c.b16 %v5316, %v5314
    %v5345 = vpack.c.b16 %v5319, %v5317
    %v5346 = vpack.c.b16 %v5320, %v5318
    %v5347 = vpack.c.b16 %v5323, %v5321
    %v5348 = vpack.c.b16 %v5324, %v5322
    %v5349 = vpack.c.b16 %v5327, %v5325
    %v5350 = vpack.c.b16 %v5328, %v5326
    %v5351 = vpack.c.b16 %v5331, %v5329
    %v5352 = vpack.c.b16 %v5332, %v5330
    %v5353 = vpack.c.b16 %v5335, %v5333
    %v5354 = vpack.c.b16 %v5336, %v5334
    %v5355 = vpack.c.b16 %v5339, %v5337
    %v5356 = vpack.c.b16 %v5340, %v5338
    %5373 = vmatpush.bf16.msra.mxu0 %v5355
    %5374 = vmatpush.bf16.msra.mxu0 %v5353
    %5375 = vmatpush.bf16.msra.mxu0 %v5351
    %5376 = vmatpush.bf16.msra.mxu0 %v5349
    %5377 = vmatpush.bf16.msra.mxu0 %v5347
    %5378 = vmatpush.bf16.msra.mxu0 %v5345
    %5379 = vmatpush.bf16.msra.mxu0 %v5343
    %5380 = vmatpush.bf16.msra.mxu0 %v5341
    %5381 = vmatmul.bf16.gmra.mxu0 %v5277
    %v5382 = vpop.f32.mrf.mxu0
    %v5383 = vadd.f32 0.0, %v5382
    %v5384 = vpop.f32.mrf.mxu0
    %v5385 = vadd.f32 0.0, %v5384
    %5386 = vmatmul.bf16.gmra.mxu0 %v5278
    %v5387 = vpop.f32.mrf.mxu0
    %v5388 = vadd.f32 0.0, %v5387
    %v5389 = vpop.f32.mrf.mxu0
    %v5390 = vadd.f32 0.0, %v5389
    %5391 = vmatmul.bf16.gmra.mxu0 %v5279
    %v5392 = vpop.f32.mrf.mxu0
    %v5393 = vadd.f32 0.0, %v5392
    %v5394 = vpop.f32.mrf.mxu0
    %v5395 = vadd.f32 0.0, %v5394
    %5396 = vmatmul.bf16.gmra.mxu0 %v5280
    %v5397 = vpop.f32.mrf.mxu0
    %v5398 = vadd.f32 0.0, %v5397
    %v5399 = vpop.f32.mrf.mxu0
    %v5400 = vadd.f32 0.0, %v5399
    %5401 = vmatmul.bf16.gmra.mxu0 %v5281
    %v5402 = vpop.f32.mrf.mxu0
    %v5403 = vadd.f32 0.0, %v5402
    %v5404 = vpop.f32.mrf.mxu0
    %v5405 = vadd.f32 0.0, %v5404
    %5406 = vmatmul.bf16.gmra.mxu0 %v5282
    %v5407 = vpop.f32.mrf.mxu0
    %v5408 = vadd.f32 0.0, %v5407
    %v5409 = vpop.f32.mrf.mxu0
    %v5410 = vadd.f32 0.0, %v5409
    %5411 = vmatmul.bf16.gmra.mxu0 %v5283
    %v5412 = vpop.f32.mrf.mxu0
    %v5413 = vadd.f32 0.0, %v5412
    %v5414 = vpop.f32.mrf.mxu0
    %v5415 = vadd.f32 0.0, %v5414
    %5416 = vmatmul.bf16.gmra.mxu0 %v5284
    %v5417 = vpop.f32.mrf.mxu0
    %v5418 = vadd.f32 0.0, %v5417
    %v5419 = vpop.f32.mrf.mxu0
    %v5420 = vadd.f32 0.0, %v5419
    %5421 = vdwg.mxu0
    %5422 = vmatpush.bf16.msra.mxu0 %v5356
    %5423 = vmatpush.bf16.msra.mxu0 %v5354
    %5424 = vmatpush.bf16.msra.mxu0 %v5352
    %5425 = vmatpush.bf16.msra.mxu0 %v5350
    %5426 = vmatpush.bf16.msra.mxu0 %v5348
    %5427 = vmatpush.bf16.msra.mxu0 %v5346
    %5428 = vmatpush.bf16.msra.mxu0 %v5344
    %5429 = vmatpush.bf16.msra.mxu0 %v5342
    %5430 = vmatmul.bf16.gmra.mxu0 %v5277
    %v5431 = vpop.f32.mrf.mxu0
    %v5432 = vadd.f32 0.0, %v5431
    %v5433 = vpop.f32.mrf.mxu0
    %v5434 = vadd.f32 0.0, %v5433
    %5435 = vmatmul.bf16.gmra.mxu0 %v5278
    %v5436 = vpop.f32.mrf.mxu0
    %v5437 = vadd.f32 0.0, %v5436
    %v5438 = vpop.f32.mrf.mxu0
    %v5439 = vadd.f32 0.0, %v5438
    %5440 = vmatmul.bf16.gmra.mxu0 %v5279
    %v5441 = vpop.f32.mrf.mxu0
    %v5442 = vadd.f32 0.0, %v5441
    %v5443 = vpop.f32.mrf.mxu0
    %v5444 = vadd.f32 0.0, %v5443
    %5445 = vmatmul.bf16.gmra.mxu0 %v5280
    %v5446 = vpop.f32.mrf.mxu0
    %v5447 = vadd.f32 0.0, %v5446
    %v5448 = vpop.f32.mrf.mxu0
    %v5449 = vadd.f32 0.0, %v5448
    %5450 = vmatmul.bf16.gmra.mxu0 %v5281
    %v5451 = vpop.f32.mrf.mxu0
    %v5452 = vadd.f32 0.0, %v5451
    %v5453 = vpop.f32.mrf.mxu0
    %v5454 = vadd.f32 0.0, %v5453
    %5455 = vmatmul.bf16.gmra.mxu0 %v5282
    %v5456 = vpop.f32.mrf.mxu0
    %v5457 = vadd.f32 0.0, %v5456
    %v5458 = vpop.f32.mrf.mxu0
    %v5459 = vadd.f32 0.0, %v5458
    %5460 = vmatmul.bf16.gmra.mxu0 %v5283
    %v5461 = vpop.f32.mrf.mxu0
    %v5462 = vadd.f32 0.0, %v5461
    %v5463 = vpop.f32.mrf.mxu0
    %v5464 = vadd.f32 0.0, %v5463
    %5465 = vmatmul.bf16.gmra.mxu0 %v5284
    %v5466 = vpop.f32.mrf.mxu0
    %v5467 = vadd.f32 0.0, %v5466
    %v5468 = vpop.f32.mrf.mxu0
    %v5469 = vadd.f32 0.0, %v5468
    %5470 = vdwg.mxu0
    %v5471 = vld [vmem:[#allocation3] sm:$0xff]
    %v5472 = vld [vmem:[#allocation3 + $0x8] sm:$0xff]
    %v5473 = vld [vmem:[#allocation3 + $0x10] sm:$0xff]
    %v5474 = vld [vmem:[#allocation3 + $0x18] sm:$0xff]
    %v5475 = vld [vmem:[#allocation3 + $0x20] sm:$0xff]
    %v5476 = vld [vmem:[#allocation3 + $0x28] sm:$0xff]
    %v5477 = vld [vmem:[#allocation3 + $0x30] sm:$0xff]
    %v5478 = vld [vmem:[#allocation3 + $0x38] sm:$0xff]
    %v5479 = vld [vmem:[#allocation3 + $0x40] sm:$0xff]
    %v5480 = vld [vmem:[#allocation3 + $0x48] sm:$0xff]
    %v5481 = vld [vmem:[#allocation3 + $0x50] sm:$0xff]
    %v5482 = vld [vmem:[#allocation3 + $0x58] sm:$0xff]
    %v5483 = vld [vmem:[#allocation3 + $0x60] sm:$0xff]
    %v5484 = vld [vmem:[#allocation3 + $0x68] sm:$0xff]
    %v5485 = vld [vmem:[#allocation3 + $0x70] sm:$0xff]
    %v5486 = vld [vmem:[#allocation3 + $0x78] sm:$0xff]
    %v5487 = vld [vmem:[#allocation3 + $0x80] sm:$0xff]
    %v5488 = vld [vmem:[#allocation3 + $0x88] sm:$0xff]
    %v5489 = vld [vmem:[#allocation3 + $0x90] sm:$0xff]
    %v5490 = vld [vmem:[#allocation3 + $0x98] sm:$0xff]
    %v5491 = vld [vmem:[#allocation3 + $0xa0] sm:$0xff]
    %v5492 = vld [vmem:[#allocation3 + $0xa8] sm:$0xff]
    %v5493 = vld [vmem:[#allocation3 + $0xb0] sm:$0xff]
    %v5494 = vld [vmem:[#allocation3 + $0xb8] sm:$0xff]
    %v5495 = vld [vmem:[#allocation3 + $0xc0] sm:$0xff]
    %v5496 = vld [vmem:[#allocation3 + $0xc8] sm:$0xff]
    %v5497 = vld [vmem:[#allocation3 + $0xd0] sm:$0xff]
    %v5498 = vld [vmem:[#allocation3 + $0xd8] sm:$0xff]
    %v5499 = vld [vmem:[#allocation3 + $0xe0] sm:$0xff]
    %v5500 = vld [vmem:[#allocation3 + $0xe8] sm:$0xff]
    %v5501 = vld [vmem:[#allocation3 + $0xf0] sm:$0xff]
    %v5502 = vld [vmem:[#allocation3 + $0xf8] sm:$0xff]
    %v5503 = vadd.f32 %v5471, %v5383
    %v5504 = vadd.f32 %v5472, %v5432
    %v5505 = vadd.f32 %v5473, %v5385
    %v5506 = vadd.f32 %v5474, %v5434
    %v5507 = vadd.f32 %v5475, %v5388
    %v5508 = vadd.f32 %v5476, %v5437
    %v5509 = vadd.f32 %v5477, %v5390
    %v5510 = vadd.f32 %v5478, %v5439
    %v5511 = vadd.f32 %v5479, %v5393
    %v5512 = vadd.f32 %v5480, %v5442
    %v5513 = vadd.f32 %v5481, %v5395
    %v5514 = vadd.f32 %v5482, %v5444
    %v5515 = vadd.f32 %v5483, %v5398
    %v5516 = vadd.f32 %v5484, %v5447
    %v5517 = vadd.f32 %v5485, %v5400
    %v5518 = vadd.f32 %v5486, %v5449
    %v5519 = vadd.f32 %v5487, %v5403
    %v5520 = vadd.f32 %v5488, %v5452
    %v5521 = vadd.f32 %v5489, %v5405
    %v5522 = vadd.f32 %v5490, %v5454
    %v5523 = vadd.f32 %v5491, %v5408
    %v5524 = vadd.f32 %v5492, %v5457
    %v5525 = vadd.f32 %v5493, %v5410
    %v5526 = vadd.f32 %v5494, %v5459
    %v5527 = vadd.f32 %v5495, %v5413
    %v5528 = vadd.f32 %v5496, %v5462
    %v5529 = vadd.f32 %v5497, %v5415
    %v5530 = vadd.f32 %v5498, %v5464
    %v5531 = vadd.f32 %v5499, %v5418
    %v5532 = vadd.f32 %v5500, %v5467
    %v5533 = vadd.f32 %v5501, %v5420
    %v5534 = vadd.f32 %v5502, %v5469
    %5535 = vst [vmem:[#allocation3] sm:$0xff] %v5503
    %5536 = vst [vmem:[#allocation3 + $0x8] sm:$0xff] %v5504
    %5537 = vst [vmem:[#allocation3 + $0x10] sm:$0xff] %v5505
    %5538 = vst [vmem:[#allocation3 + $0x18] sm:$0xff] %v5506
    %5539 = vst [vmem:[#allocation3 + $0x20] sm:$0xff] %v5507
    %5540 = vst [vmem:[#allocation3 + $0x28] sm:$0xff] %v5508
    %5541 = vst [vmem:[#allocation3 + $0x30] sm:$0xff] %v5509
    %5542 = vst [vmem:[#allocation3 + $0x38] sm:$0xff] %v5510
    %5543 = vst [vmem:[#allocation3 + $0x40] sm:$0xff] %v5511
    %5544 = vst [vmem:[#allocation3 + $0x48] sm:$0xff] %v5512
    %5545 = vst [vmem:[#allocation3 + $0x50] sm:$0xff] %v5513
    %5546 = vst [vmem:[#allocation3 + $0x58] sm:$0xff] %v5514
    %5547 = vst [vmem:[#allocation3 + $0x60] sm:$0xff] %v5515
    %5548 = vst [vmem:[#allocation3 + $0x68] sm:$0xff] %v5516
    %5549 = vst [vmem:[#allocation3 + $0x70] sm:$0xff] %v5517
    %5550 = vst [vmem:[#allocation3 + $0x78] sm:$0xff] %v5518
    %5551 = vst [vmem:[#allocation3 + $0x80] sm:$0xff] %v5519
    %5552 = vst [vmem:[#allocation3 + $0x88] sm:$0xff] %v5520
    %5553 = vst [vmem:[#allocation3 + $0x90] sm:$0xff] %v5521
    %5554 = vst [vmem:[#allocation3 + $0x98] sm:$0xff] %v5522
    %5555 = vst [vmem:[#allocation3 + $0xa0] sm:$0xff] %v5523
    %5556 = vst [vmem:[#allocation3 + $0xa8] sm:$0xff] %v5524
    %5557 = vst [vmem:[#allocation3 + $0xb0] sm:$0xff] %v5525
    %5558 = vst [vmem:[#allocation3 + $0xb8] sm:$0xff] %v5526
    %5559 = vst [vmem:[#allocation3 + $0xc0] sm:$0xff] %v5527
    %5560 = vst [vmem:[#allocation3 + $0xc8] sm:$0xff] %v5528
    %5561 = vst [vmem:[#allocation3 + $0xd0] sm:$0xff] %v5529
    %5562 = vst [vmem:[#allocation3 + $0xd8] sm:$0xff] %v5530
    %5563 = vst [vmem:[#allocation3 + $0xe0] sm:$0xff] %v5531
    %5564 = vst [vmem:[#allocation3 + $0xe8] sm:$0xff] %v5532
    %5565 = vst [vmem:[#allocation3 + $0xf0] sm:$0xff] %v5533
    %5566 = vst [vmem:[#allocation3 + $0xf8] sm:$0xff] %v5534
    %v5567 = vld [vmem:[#allocation4] sm:$0xe]
    %v5568 = vld [vmem:[#allocation4 + $0x4] sm:$0xf]
    %v5569 = vld [vmem:[#allocation4 + $0x8] sm:$0x1]
    %v5570 = vld [vmem:[#allocation4 + $0xc] sm:$0xe]
    %v5571 = vld [vmem:[#allocation4 + $0x10] sm:$0xf]
    %v5572 = vld [vmem:[#allocation4 + $0x14] sm:$0x1]
    %v5573 = vld [vmem:[#allocation4 + $0x18] sm:$0xe]
    %v5574 = vld [vmem:[#allocation4 + $0x1c] sm:$0xf]
    %v5575 = vld [vmem:[#allocation4 + $0x20] sm:$0x1]
    %v5576 = vld [vmem:[#allocation4 + $0x24] sm:$0xe]
    %v5577 = vld [vmem:[#allocation4 + $0x28] sm:$0xf]
    %v5578 = vld [vmem:[#allocation4 + $0x2c] sm:$0x1]
    %v5579 = vld [vmem:[#allocation4 + $0x30] sm:$0xe]
    %v5580 = vld [vmem:[#allocation4 + $0x34] sm:$0xf]
    %v5581 = vld [vmem:[#allocation4 + $0x38] sm:$0x1]
    %v5582 = vld [vmem:[#allocation4 + $0x3c] sm:$0xe]
    %v5583 = vld [vmem:[#allocation4 + $0x40] sm:$0xf]
    %v5584 = vld [vmem:[#allocation4 + $0x44] sm:$0x1]
    %v5585 = vld [vmem:[#allocation4 + $0x48] sm:$0xe]
    %v5586 = vld [vmem:[#allocation4 + $0x4c] sm:$0xf]
    %v5587 = vld [vmem:[#allocation4 + $0x50] sm:$0x1]
    %v5588 = vld [vmem:[#allocation4 + $0x54] sm:$0xe]
    %v5589 = vld [vmem:[#allocation4 + $0x58] sm:$0xf]
    %v5590 = vld [vmem:[#allocation4 + $0x5c] sm:$0x1]
    %v5615 = vrot.slane %v5567, 5
    %v5616 = vrot.slane %v5615, 4
    %v5617 = vrot.slane %v5568, 5
    %v5618 = vsel %vm1622, %v5616, %v5617
    %v5619 = vrot.slane %v5617, 4
    %v5620 = vrot.slane %v5569, 5
    %v5621 = vsel %vm1622, %v5619, %v5620
    %v5622 = vrot.slane %v5570, 5
    %v5623 = vrot.slane %v5622, 4
    %v5624 = vrot.slane %v5571, 5
    %v5625 = vsel %vm1622, %v5623, %v5624
    %v5626 = vrot.slane %v5624, 4
    %v5627 = vrot.slane %v5572, 5
    %v5628 = vsel %vm1622, %v5626, %v5627
    %v5629 = vrot.slane %v5573, 5
    %v5630 = vrot.slane %v5629, 4
    %v5631 = vrot.slane %v5574, 5
    %v5632 = vsel %vm1622, %v5630, %v5631
    %v5633 = vrot.slane %v5631, 4
    %v5634 = vrot.slane %v5575, 5
    %v5635 = vsel %vm1622, %v5633, %v5634
    %v5636 = vrot.slane %v5576, 5
    %v5637 = vrot.slane %v5636, 4
    %v5638 = vrot.slane %v5577, 5
    %v5639 = vsel %vm1622, %v5637, %v5638
    %v5640 = vrot.slane %v5638, 4
    %v5641 = vrot.slane %v5578, 5
    %v5642 = vsel %vm1622, %v5640, %v5641
    %v5643 = vrot.slane %v5579, 5
    %v5644 = vrot.slane %v5643, 4
    %v5645 = vrot.slane %v5580, 5
    %v5646 = vsel %vm1622, %v5644, %v5645
    %v5647 = vrot.slane %v5645, 4
    %v5648 = vrot.slane %v5581, 5
    %v5649 = vsel %vm1622, %v5647, %v5648
    %v5650 = vrot.slane %v5582, 5
    %v5651 = vrot.slane %v5650, 4
    %v5652 = vrot.slane %v5583, 5
    %v5653 = vsel %vm1622, %v5651, %v5652
    %v5654 = vrot.slane %v5652, 4
    %v5655 = vrot.slane %v5584, 5
    %v5656 = vsel %vm1622, %v5654, %v5655
    %v5657 = vrot.slane %v5585, 5
    %v5658 = vrot.slane %v5657, 4
    %v5659 = vrot.slane %v5586, 5
    %v5660 = vsel %vm1622, %v5658, %v5659
    %v5661 = vrot.slane %v5659, 4
    %v5662 = vrot.slane %v5587, 5
    %v5663 = vsel %vm1622, %v5661, %v5662
    %v5664 = vrot.slane %v5588, 5
    %v5665 = vrot.slane %v5664, 4
    %v5666 = vrot.slane %v5589, 5
    %v5667 = vsel %vm1622, %v5665, %v5666
    %v5668 = vrot.slane %v5666, 4
    %v5669 = vrot.slane %v5590, 5
    %v5670 = vsel %vm1622, %v5668, %v5669
    %s5671 = scalar_lea.vmem [#allocation9], 256
    %v5672 = vld [vmem:[%s5671] sm:$0xff]
    %v5673 = vld [vmem:[%s5671 + $0x8] sm:$0xff]
    %v5674 = vld [vmem:[%s5671 + $0x10] sm:$0xff]
    %v5675 = vld [vmem:[%s5671 + $0x18] sm:$0xff]
    %v5676 = vld [vmem:[%s5671 + $0x20] sm:$0xff]
    %v5677 = vld [vmem:[%s5671 + $0x28] sm:$0xff]
    %v5678 = vld [vmem:[%s5671 + $0x30] sm:$0xff]
    %v5679 = vld [vmem:[%s5671 + $0x38] sm:$0xff]
    %v5680 = vld [vmem:[%s5671 + $0x40] sm:$0xff]
    %v5681 = vld [vmem:[%s5671 + $0x48] sm:$0xff]
    %v5682 = vld [vmem:[%s5671 + $0x50] sm:$0xff]
    %v5683 = vld [vmem:[%s5671 + $0x58] sm:$0xff]
    %v5684 = vld [vmem:[%s5671 + $0x60] sm:$0xff]
    %v5685 = vld [vmem:[%s5671 + $0x68] sm:$0xff]
    %v5686 = vld [vmem:[%s5671 + $0x70] sm:$0xff]
    %v5687 = vld [vmem:[%s5671 + $0x78] sm:$0xff]
    %v5688 = vunpack.c.l.b16 %v5618
    %v5689 = vunpack.c.l.b16 %v5621
    %v5690 = vunpack.c.l.b16 %v5625
    %v5691 = vunpack.c.l.b16 %v5628
    %v5692 = vunpack.c.l.b16 %v5632
    %v5693 = vunpack.c.l.b16 %v5635
    %v5694 = vunpack.c.l.b16 %v5639
    %v5695 = vunpack.c.l.b16 %v5642
    %v5696 = vunpack.c.l.b16 %v5646
    %v5697 = vunpack.c.l.b16 %v5649
    %v5698 = vunpack.c.l.b16 %v5653
    %v5699 = vunpack.c.l.b16 %v5656
    %v5700 = vunpack.c.l.b16 %v5660
    %v5701 = vunpack.c.l.b16 %v5663
    %v5702 = vunpack.c.l.b16 %v5667
    %v5703 = vunpack.c.l.b16 %v5670
    %v5704 = vpack.c.b16 %v5689, %v5688
    %v5705 = vpack.c.b16 %v5691, %v5690
    %v5706 = vpack.c.b16 %v5693, %v5692
    %v5707 = vpack.c.b16 %v5695, %v5694
    %v5708 = vpack.c.b16 %v5697, %v5696
    %v5709 = vpack.c.b16 %v5699, %v5698
    %v5710 = vpack.c.b16 %v5701, %v5700
    %v5711 = vpack.c.b16 %v5703, %v5702
    %v5736 = vunpack.c.l.b16 %v5672
    %v5737 = vunpack.c.h.b16 %v5672
    %v5738 = vunpack.c.l.b16 %v5673
    %v5739 = vunpack.c.h.b16 %v5673
    %v5740 = vunpack.c.l.b16 %v5674
    %v5741 = vunpack.c.h.b16 %v5674
    %v5742 = vunpack.c.l.b16 %v5675
    %v5743 = vunpack.c.h.b16 %v5675
    %v5744 = vunpack.c.l.b16 %v5676
    %v5745 = vunpack.c.h.b16 %v5676
    %v5746 = vunpack.c.l.b16 %v5677
    %v5747 = vunpack.c.h.b16 %v5677
    %v5748 = vunpack.c.l.b16 %v5678
    %v5749 = vunpack.c.h.b16 %v5678
    %v5750 = vunpack.c.l.b16 %v5679
    %v5751 = vunpack.c.h.b16 %v5679
    %v5752 = vunpack.c.l.b16 %v5680
    %v5753 = vunpack.c.h.b16 %v5680
    %v5754 = vunpack.c.l.b16 %v5681
    %v5755 = vunpack.c.h.b16 %v5681
    %v5756 = vunpack.c.l.b16 %v5682
    %v5757 = vunpack.c.h.b16 %v5682
    %v5758 = vunpack.c.l.b16 %v5683
    %v5759 = vunpack.c.h.b16 %v5683
    %v5760 = vunpack.c.l.b16 %v5684
    %v5761 = vunpack.c.h.b16 %v5684
    %v5762 = vunpack.c.l.b16 %v5685
    %v5763 = vunpack.c.h.b16 %v5685
    %v5764 = vunpack.c.l.b16 %v5686
    %v5765 = vunpack.c.h.b16 %v5686
    %v5766 = vunpack.c.l.b16 %v5687
    %v5767 = vunpack.c.h.b16 %v5687
    %v5768 = vpack.c.b16 %v5738, %v5736
    %v5769 = vpack.c.b16 %v5739, %v5737
    %v5770 = vpack.c.b16 %v5742, %v5740
    %v5771 = vpack.c.b16 %v5743, %v5741
    %v5772 = vpack.c.b16 %v5746, %v5744
    %v5773 = vpack.c.b16 %v5747, %v5745
    %v5774 = vpack.c.b16 %v5750, %v5748
    %v5775 = vpack.c.b16 %v5751, %v5749
    %v5776 = vpack.c.b16 %v5754, %v5752
    %v5777 = vpack.c.b16 %v5755, %v5753
    %v5778 = vpack.c.b16 %v5758, %v5756
    %v5779 = vpack.c.b16 %v5759, %v5757
    %v5780 = vpack.c.b16 %v5762, %v5760
    %v5781 = vpack.c.b16 %v5763, %v5761
    %v5782 = vpack.c.b16 %v5766, %v5764
    %v5783 = vpack.c.b16 %v5767, %v5765
    %5800 = vmatpush.bf16.msra.mxu0 %v5782
    %5801 = vmatpush.bf16.msra.mxu0 %v5780
    %5802 = vmatpush.bf16.msra.mxu0 %v5778
    %5803 = vmatpush.bf16.msra.mxu0 %v5776
    %5804 = vmatpush.bf16.msra.mxu0 %v5774
    %5805 = vmatpush.bf16.msra.mxu0 %v5772
    %5806 = vmatpush.bf16.msra.mxu0 %v5770
    %5807 = vmatpush.bf16.msra.mxu0 %v5768
    %5808 = vmatmul.bf16.gmra.mxu0 %v5704
    %v5809 = vpop.f32.mrf.mxu0
    %v5810 = vadd.f32 0.0, %v5809
    %v5811 = vpop.f32.mrf.mxu0
    %v5812 = vadd.f32 0.0, %v5811
    %5813 = vmatmul.bf16.gmra.mxu0 %v5705
    %v5814 = vpop.f32.mrf.mxu0
    %v5815 = vadd.f32 0.0, %v5814
    %v5816 = vpop.f32.mrf.mxu0
    %v5817 = vadd.f32 0.0, %v5816
    %5818 = vmatmul.bf16.gmra.mxu0 %v5706
    %v5819 = vpop.f32.mrf.mxu0
    %v5820 = vadd.f32 0.0, %v5819
    %v5821 = vpop.f32.mrf.mxu0
    %v5822 = vadd.f32 0.0, %v5821
    %5823 = vmatmul.bf16.gmra.mxu0 %v5707
    %v5824 = vpop.f32.mrf.mxu0
    %v5825 = vadd.f32 0.0, %v5824
    %v5826 = vpop.f32.mrf.mxu0
    %v5827 = vadd.f32 0.0, %v5826
    %5828 = vmatmul.bf16.gmra.mxu0 %v5708
    %v5829 = vpop.f32.mrf.mxu0
    %v5830 = vadd.f32 0.0, %v5829
    %v5831 = vpop.f32.mrf.mxu0
    %v5832 = vadd.f32 0.0, %v5831
    %5833 = vmatmul.bf16.gmra.mxu0 %v5709
    %v5834 = vpop.f32.mrf.mxu0
    %v5835 = vadd.f32 0.0, %v5834
    %v5836 = vpop.f32.mrf.mxu0
    %v5837 = vadd.f32 0.0, %v5836
    %5838 = vmatmul.bf16.gmra.mxu0 %v5710
    %v5839 = vpop.f32.mrf.mxu0
    %v5840 = vadd.f32 0.0, %v5839
    %v5841 = vpop.f32.mrf.mxu0
    %v5842 = vadd.f32 0.0, %v5841
    %5843 = vmatmul.bf16.gmra.mxu0 %v5711
    %v5844 = vpop.f32.mrf.mxu0
    %v5845 = vadd.f32 0.0, %v5844
    %v5846 = vpop.f32.mrf.mxu0
    %v5847 = vadd.f32 0.0, %v5846
    %5848 = vdwg.mxu0
    %5849 = vmatpush.bf16.msra.mxu0 %v5783
    %5850 = vmatpush.bf16.msra.mxu0 %v5781
    %5851 = vmatpush.bf16.msra.mxu0 %v5779
    %5852 = vmatpush.bf16.msra.mxu0 %v5777
    %5853 = vmatpush.bf16.msra.mxu0 %v5775
    %5854 = vmatpush.bf16.msra.mxu0 %v5773
    %5855 = vmatpush.bf16.msra.mxu0 %v5771
    %5856 = vmatpush.bf16.msra.mxu0 %v5769
    %5857 = vmatmul.bf16.gmra.mxu0 %v5704
    %v5858 = vpop.f32.mrf.mxu0
    %v5859 = vadd.f32 0.0, %v5858
    %v5860 = vpop.f32.mrf.mxu0
    %v5861 = vadd.f32 0.0, %v5860
    %5862 = vmatmul.bf16.gmra.mxu0 %v5705
    %v5863 = vpop.f32.mrf.mxu0
    %v5864 = vadd.f32 0.0, %v5863
    %v5865 = vpop.f32.mrf.mxu0
    %v5866 = vadd.f32 0.0, %v5865
    %5867 = vmatmul.bf16.gmra.mxu0 %v5706
    %v5868 = vpop.f32.mrf.mxu0
    %v5869 = vadd.f32 0.0, %v5868
    %v5870 = vpop.f32.mrf.mxu0
    %v5871 = vadd.f32 0.0, %v5870
    %5872 = vmatmul.bf16.gmra.mxu0 %v5707
    %v5873 = vpop.f32.mrf.mxu0
    %v5874 = vadd.f32 0.0, %v5873
    %v5875 = vpop.f32.mrf.mxu0
    %v5876 = vadd.f32 0.0, %v5875
    %5877 = vmatmul.bf16.gmra.mxu0 %v5708
    %v5878 = vpop.f32.mrf.mxu0
    %v5879 = vadd.f32 0.0, %v5878
    %v5880 = vpop.f32.mrf.mxu0
    %v5881 = vadd.f32 0.0, %v5880
    %5882 = vmatmul.bf16.gmra.mxu0 %v5709
    %v5883 = vpop.f32.mrf.mxu0
    %v5884 = vadd.f32 0.0, %v5883
    %v5885 = vpop.f32.mrf.mxu0
    %v5886 = vadd.f32 0.0, %v5885
    %5887 = vmatmul.bf16.gmra.mxu0 %v5710
    %v5888 = vpop.f32.mrf.mxu0
    %v5889 = vadd.f32 0.0, %v5888
    %v5890 = vpop.f32.mrf.mxu0
    %v5891 = vadd.f32 0.0, %v5890
    %5892 = vmatmul.bf16.gmra.mxu0 %v5711
    %v5893 = vpop.f32.mrf.mxu0
    %v5894 = vadd.f32 0.0, %v5893
    %v5895 = vpop.f32.mrf.mxu0
    %v5896 = vadd.f32 0.0, %v5895
    %5897 = vdwg.mxu0
    %v5898 = vld [vmem:[#allocation3] sm:$0xff]
    %v5899 = vld [vmem:[#allocation3 + $0x8] sm:$0xff]
    %v5900 = vld [vmem:[#allocation3 + $0x10] sm:$0xff]
    %v5901 = vld [vmem:[#allocation3 + $0x18] sm:$0xff]
    %v5902 = vld [vmem:[#allocation3 + $0x20] sm:$0xff]
    %v5903 = vld [vmem:[#allocation3 + $0x28] sm:$0xff]
    %v5904 = vld [vmem:[#allocation3 + $0x30] sm:$0xff]
    %v5905 = vld [vmem:[#allocation3 + $0x38] sm:$0xff]
    %v5906 = vld [vmem:[#allocation3 + $0x40] sm:$0xff]
    %v5907 = vld [vmem:[#allocation3 + $0x48] sm:$0xff]
    %v5908 = vld [vmem:[#allocation3 + $0x50] sm:$0xff]
    %v5909 = vld [vmem:[#allocation3 + $0x58] sm:$0xff]
    %v5910 = vld [vmem:[#allocation3 + $0x60] sm:$0xff]
    %v5911 = vld [vmem:[#allocation3 + $0x68] sm:$0xff]
    %v5912 = vld [vmem:[#allocation3 + $0x70] sm:$0xff]
    %v5913 = vld [vmem:[#allocation3 + $0x78] sm:$0xff]
    %v5914 = vld [vmem:[#allocation3 + $0x80] sm:$0xff]
    %v5915 = vld [vmem:[#allocation3 + $0x88] sm:$0xff]
    %v5916 = vld [vmem:[#allocation3 + $0x90] sm:$0xff]
    %v5917 = vld [vmem:[#allocation3 + $0x98] sm:$0xff]
    %v5918 = vld [vmem:[#allocation3 + $0xa0] sm:$0xff]
    %v5919 = vld [vmem:[#allocation3 + $0xa8] sm:$0xff]
    %v5920 = vld [vmem:[#allocation3 + $0xb0] sm:$0xff]
    %v5921 = vld [vmem:[#allocation3 + $0xb8] sm:$0xff]
    %v5922 = vld [vmem:[#allocation3 + $0xc0] sm:$0xff]
    %v5923 = vld [vmem:[#allocation3 + $0xc8] sm:$0xff]
    %v5924 = vld [vmem:[#allocation3 + $0xd0] sm:$0xff]
    %v5925 = vld [vmem:[#allocation3 + $0xd8] sm:$0xff]
    %v5926 = vld [vmem:[#allocation3 + $0xe0] sm:$0xff]
    %v5927 = vld [vmem:[#allocation3 + $0xe8] sm:$0xff]
    %v5928 = vld [vmem:[#allocation3 + $0xf0] sm:$0xff]
    %v5929 = vld [vmem:[#allocation3 + $0xf8] sm:$0xff]
    %v5930 = vadd.f32 %v5898, %v5810
    %v5931 = vadd.f32 %v5899, %v5859
    %v5932 = vadd.f32 %v5900, %v5812
    %v5933 = vadd.f32 %v5901, %v5861
    %v5934 = vadd.f32 %v5902, %v5815
    %v5935 = vadd.f32 %v5903, %v5864
    %v5936 = vadd.f32 %v5904, %v5817
    %v5937 = vadd.f32 %v5905, %v5866
    %v5938 = vadd.f32 %v5906, %v5820
    %v5939 = vadd.f32 %v5907, %v5869
    %v5940 = vadd.f32 %v5908, %v5822
    %v5941 = vadd.f32 %v5909, %v5871
    %v5942 = vadd.f32 %v5910, %v5825
    %v5943 = vadd.f32 %v5911, %v5874
    %v5944 = vadd.f32 %v5912, %v5827
    %v5945 = vadd.f32 %v5913, %v5876
    %v5946 = vadd.f32 %v5914, %v5830
    %v5947 = vadd.f32 %v5915, %v5879
    %v5948 = vadd.f32 %v5916, %v5832
    %v5949 = vadd.f32 %v5917, %v5881
    %v5950 = vadd.f32 %v5918, %v5835
    %v5951 = vadd.f32 %v5919, %v5884
    %v5952 = vadd.f32 %v5920, %v5837
    %v5953 = vadd.f32 %v5921, %v5886
    %v5954 = vadd.f32 %v5922, %v5840
    %v5955 = vadd.f32 %v5923, %v5889
    %v5956 = vadd.f32 %v5924, %v5842
    %v5957 = vadd.f32 %v5925, %v5891
    %v5958 = vadd.f32 %v5926, %v5845
    %v5959 = vadd.f32 %v5927, %v5894
    %v5960 = vadd.f32 %v5928, %v5847
    %v5961 = vadd.f32 %v5929, %v5896
    %5962 = vst [vmem:[#allocation3] sm:$0xff] %v5930
    %5963 = vst [vmem:[#allocation3 + $0x8] sm:$0xff] %v5931
    %5964 = vst [vmem:[#allocation3 + $0x10] sm:$0xff] %v5932
    %5965 = vst [vmem:[#allocation3 + $0x18] sm:$0xff] %v5933
    %5966 = vst [vmem:[#allocation3 + $0x20] sm:$0xff] %v5934
    %5967 = vst [vmem:[#allocation3 + $0x28] sm:$0xff] %v5935
    %5968 = vst [vmem:[#allocation3 + $0x30] sm:$0xff] %v5936
    %5969 = vst [vmem:[#allocation3 + $0x38] sm:$0xff] %v5937
    %5970 = vst [vmem:[#allocation3 + $0x40] sm:$0xff] %v5938
    %5971 = vst [vmem:[#allocation3 + $0x48] sm:$0xff] %v5939
    %5972 = vst [vmem:[#allocation3 + $0x50] sm:$0xff] %v5940
    %5973 = vst [vmem:[#allocation3 + $0x58] sm:$0xff] %v5941
    %5974 = vst [vmem:[#allocation3 + $0x60] sm:$0xff] %v5942
    %5975 = vst [vmem:[#allocation3 + $0x68] sm:$0xff] %v5943
    %5976 = vst [vmem:[#allocation3 + $0x70] sm:$0xff] %v5944
    %5977 = vst [vmem:[#allocation3 + $0x78] sm:$0xff] %v5945
    %5978 = vst [vmem:[#allocation3 + $0x80] sm:$0xff] %v5946
    %5979 = vst [vmem:[#allocation3 + $0x88] sm:$0xff] %v5947
    %5980 = vst [vmem:[#allocation3 + $0x90] sm:$0xff] %v5948
    %5981 = vst [vmem:[#allocation3 + $0x98] sm:$0xff] %v5949
    %5982 = vst [vmem:[#allocation3 + $0xa0] sm:$0xff] %v5950
    %5983 = vst [vmem:[#allocation3 + $0xa8] sm:$0xff] %v5951
    %5984 = vst [vmem:[#allocation3 + $0xb0] sm:$0xff] %v5952
    %5985 = vst [vmem:[#allocation3 + $0xb8] sm:$0xff] %v5953
    %5986 = vst [vmem:[#allocation3 + $0xc0] sm:$0xff] %v5954
    %5987 = vst [vmem:[#allocation3 + $0xc8] sm:$0xff] %v5955
    %5988 = vst [vmem:[#allocation3 + $0xd0] sm:$0xff] %v5956
    %5989 = vst [vmem:[#allocation3 + $0xd8] sm:$0xff] %v5957
    %5990 = vst [vmem:[#allocation3 + $0xe0] sm:$0xff] %v5958
    %5991 = vst [vmem:[#allocation3 + $0xe8] sm:$0xff] %v5959
    %5992 = vst [vmem:[#allocation3 + $0xf0] sm:$0xff] %v5960
    %5993 = vst [vmem:[#allocation3 + $0xf8] sm:$0xff] %v5961
    %v5994 = vld [vmem:[#allocation4] sm:$0xe]
    %v5995 = vld [vmem:[#allocation4 + $0x4] sm:$0xf]
    %v5996 = vld [vmem:[#allocation4 + $0x8] sm:$0x3]
    %v5997 = vld [vmem:[#allocation4 + $0xc] sm:$0xe]
    %v5998 = vld [vmem:[#allocation4 + $0x10] sm:$0xf]
    %v5999 = vld [vmem:[#allocation4 + $0x14] sm:$0x3]
    %v6000 = vld [vmem:[#allocation4 + $0x18] sm:$0xe]
    %v6001 = vld [vmem:[#allocation4 + $0x1c] sm:$0xf]
    %v6002 = vld [vmem:[#allocation4 + $0x20] sm:$0x3]
    %v6003 = vld [vmem:[#allocation4 + $0x24] sm:$0xe]
    %v6004 = vld [vmem:[#allocation4 + $0x28] sm:$0xf]
    %v6005 = vld [vmem:[#allocation4 + $0x2c] sm:$0x3]
    %v6006 = vld [vmem:[#allocation4 + $0x30] sm:$0xe]
    %v6007 = vld [vmem:[#allocation4 + $0x34] sm:$0xf]
    %v6008 = vld [vmem:[#allocation4 + $0x38] sm:$0x3]
    %v6009 = vld [vmem:[#allocation4 + $0x3c] sm:$0xe]
    %v6010 = vld [vmem:[#allocation4 + $0x40] sm:$0xf]
    %v6011 = vld [vmem:[#allocation4 + $0x44] sm:$0x3]
    %v6012 = vld [vmem:[#allocation4 + $0x48] sm:$0xe]
    %v6013 = vld [vmem:[#allocation4 + $0x4c] sm:$0xf]
    %v6014 = vld [vmem:[#allocation4 + $0x50] sm:$0x3]
    %v6015 = vld [vmem:[#allocation4 + $0x54] sm:$0xe]
    %v6016 = vld [vmem:[#allocation4 + $0x58] sm:$0xf]
    %v6017 = vld [vmem:[#allocation4 + $0x5c] sm:$0x3]
    %v6019 = vshrl.u32 %v5994, 16
    %v6021 = vrot.slane %v6019, 5
    %v6022 = vshll.u32 %v5994, 16
    %v6024 = vrot.slane %v6022, 6
    %v6025 = vor.u32 %v6021, %v6024
    %v6026 = vrot.slane %v6025, 4
    %v6028 = vshrl.u32 %v5995, 16
    %v6030 = vrot.slane %v6028, 5
    %v6031 = vshll.u32 %v5995, 16
    %v6033 = vrot.slane %v6031, 6
    %v6034 = vor.u32 %v6030, %v6033
    %v6035 = vsel %vm2300, %v6026, %v6034
    %v6036 = vrot.slane %v6034, 4
    %v6038 = vshrl.u32 %v5996, 16
    %v6040 = vrot.slane %v6038, 5
    %v6041 = vshll.u32 %v5996, 16
    %v6043 = vrot.slane %v6041, 6
    %v6044 = vor.u32 %v6040, %v6043
    %v6045 = vsel %vm2300, %v6036, %v6044
    %v6047 = vshrl.u32 %v5997, 16
    %v6049 = vrot.slane %v6047, 5
    %v6050 = vshll.u32 %v5997, 16
    %v6052 = vrot.slane %v6050, 6
    %v6053 = vor.u32 %v6049, %v6052
    %v6054 = vrot.slane %v6053, 4
    %v6056 = vshrl.u32 %v5998, 16
    %v6058 = vrot.slane %v6056, 5
    %v6059 = vshll.u32 %v5998, 16
    %v6061 = vrot.slane %v6059, 6
    %v6062 = vor.u32 %v6058, %v6061
    %v6063 = vsel %vm2300, %v6054, %v6062
    %v6064 = vrot.slane %v6062, 4
    %v6066 = vshrl.u32 %v5999, 16
    %v6068 = vrot.slane %v6066, 5
    %v6069 = vshll.u32 %v5999, 16
    %v6071 = vrot.slane %v6069, 6
    %v6072 = vor.u32 %v6068, %v6071
    %v6073 = vsel %vm2300, %v6064, %v6072
    %v6075 = vshrl.u32 %v6000, 16
    %v6077 = vrot.slane %v6075, 5
    %v6078 = vshll.u32 %v6000, 16
    %v6080 = vrot.slane %v6078, 6
    %v6081 = vor.u32 %v6077, %v6080
    %v6082 = vrot.slane %v6081, 4
    %v6084 = vshrl.u32 %v6001, 16
    %v6086 = vrot.slane %v6084, 5
    %v6087 = vshll.u32 %v6001, 16
    %v6089 = vrot.slane %v6087, 6
    %v6090 = vor.u32 %v6086, %v6089
    %v6091 = vsel %vm2300, %v6082, %v6090
    %v6092 = vrot.slane %v6090, 4
    %v6094 = vshrl.u32 %v6002, 16
    %v6096 = vrot.slane %v6094, 5
    %v6097 = vshll.u32 %v6002, 16
    %v6099 = vrot.slane %v6097, 6
    %v6100 = vor.u32 %v6096, %v6099
    %v6101 = vsel %vm2300, %v6092, %v6100
    %v6103 = vshrl.u32 %v6003, 16
    %v6105 = vrot.slane %v6103, 5
    %v6106 = vshll.u32 %v6003, 16
    %v6108 = vrot.slane %v6106, 6
    %v6109 = vor.u32 %v6105, %v6108
    %v6110 = vrot.slane %v6109, 4
    %v6112 = vshrl.u32 %v6004, 16
    %v6114 = vrot.slane %v6112, 5
    %v6115 = vshll.u32 %v6004, 16
    %v6117 = vrot.slane %v6115, 6
    %v6118 = vor.u32 %v6114, %v6117
    %v6119 = vsel %vm2300, %v6110, %v6118
    %v6120 = vrot.slane %v6118, 4
    %v6122 = vshrl.u32 %v6005, 16
    %v6124 = vrot.slane %v6122, 5
    %v6125 = vshll.u32 %v6005, 16
    %v6127 = vrot.slane %v6125, 6
    %v6128 = vor.u32 %v6124, %v6127
    %v6129 = vsel %vm2300, %v6120, %v6128
    %v6131 = vshrl.u32 %v6006, 16
    %v6133 = vrot.slane %v6131, 5
    %v6134 = vshll.u32 %v6006, 16
    %v6136 = vrot.slane %v6134, 6
    %v6137 = vor.u32 %v6133, %v6136
    %v6138 = vrot.slane %v6137, 4
    %v6140 = vshrl.u32 %v6007, 16
    %v6142 = vrot.slane %v6140, 5
    %v6143 = vshll.u32 %v6007, 16
    %v6145 = vrot.slane %v6143, 6
    %v6146 = vor.u32 %v6142, %v6145
    %v6147 = vsel %vm2300, %v6138, %v6146
    %v6148 = vrot.slane %v6146, 4
    %v6150 = vshrl.u32 %v6008, 16
    %v6152 = vrot.slane %v6150, 5
    %v6153 = vshll.u32 %v6008, 16
    %v6155 = vrot.slane %v6153, 6
    %v6156 = vor.u32 %v6152, %v6155
    %v6157 = vsel %vm2300, %v6148, %v6156
    %v6159 = vshrl.u32 %v6009, 16
    %v6161 = vrot.slane %v6159, 5
    %v6162 = vshll.u32 %v6009, 16
    %v6164 = vrot.slane %v6162, 6
    %v6165 = vor.u32 %v6161, %v6164
    %v6166 = vrot.slane %v6165, 4
    %v6168 = vshrl.u32 %v6010, 16
    %v6170 = vrot.slane %v6168, 5
    %v6171 = vshll.u32 %v6010, 16
    %v6173 = vrot.slane %v6171, 6
    %v6174 = vor.u32 %v6170, %v6173
    %v6175 = vsel %vm2300, %v6166, %v6174
    %v6176 = vrot.slane %v6174, 4
    %v6178 = vshrl.u32 %v6011, 16
    %v6180 = vrot.slane %v6178, 5
    %v6181 = vshll.u32 %v6011, 16
    %v6183 = vrot.slane %v6181, 6
    %v6184 = vor.u32 %v6180, %v6183
    %v6185 = vsel %vm2300, %v6176, %v6184
    %v6187 = vshrl.u32 %v6012, 16
    %v6189 = vrot.slane %v6187, 5
    %v6190 = vshll.u32 %v6012, 16
    %v6192 = vrot.slane %v6190, 6
    %v6193 = vor.u32 %v6189, %v6192
    %v6194 = vrot.slane %v6193, 4
    %v6196 = vshrl.u32 %v6013, 16
    %v6198 = vrot.slane %v6196, 5
    %v6199 = vshll.u32 %v6013, 16
    %v6201 = vrot.slane %v6199, 6
    %v6202 = vor.u32 %v6198, %v6201
    %v6203 = vsel %vm2300, %v6194, %v6202
    %v6204 = vrot.slane %v6202, 4
    %v6206 = vshrl.u32 %v6014, 16
    %v6208 = vrot.slane %v6206, 5
    %v6209 = vshll.u32 %v6014, 16
    %v6211 = vrot.slane %v6209, 6
    %v6212 = vor.u32 %v6208, %v6211
    %v6213 = vsel %vm2300, %v6204, %v6212
    %v6215 = vshrl.u32 %v6015, 16
    %v6217 = vrot.slane %v6215, 5
    %v6218 = vshll.u32 %v6015, 16
    %v6220 = vrot.slane %v6218, 6
    %v6221 = vor.u32 %v6217, %v6220
    %v6222 = vrot.slane %v6221, 4
    %v6224 = vshrl.u32 %v6016, 16
    %v6226 = vrot.slane %v6224, 5
    %v6227 = vshll.u32 %v6016, 16
    %v6229 = vrot.slane %v6227, 6
    %v6230 = vor.u32 %v6226, %v6229
    %v6231 = vsel %vm2300, %v6222, %v6230
    %v6232 = vrot.slane %v6230, 4
    %v6234 = vshrl.u32 %v6017, 16
    %v6236 = vrot.slane %v6234, 5
    %v6237 = vshll.u32 %v6017, 16
    %v6239 = vrot.slane %v6237, 6
    %v6240 = vor.u32 %v6236, %v6239
    %v6241 = vsel %vm2300, %v6232, %v6240
    %s6242 = scalar_lea.vmem [#allocation9], 384
    %v6243 = vld [vmem:[%s6242] sm:$0xff]
    %v6244 = vld [vmem:[%s6242 + $0x8] sm:$0xff]
    %v6245 = vld [vmem:[%s6242 + $0x10] sm:$0xff]
    %v6246 = vld [vmem:[%s6242 + $0x18] sm:$0xff]
    %v6247 = vld [vmem:[%s6242 + $0x20] sm:$0xff]
    %v6248 = vld [vmem:[%s6242 + $0x28] sm:$0xff]
    %v6249 = vld [vmem:[%s6242 + $0x30] sm:$0xff]
    %v6250 = vld [vmem:[%s6242 + $0x38] sm:$0xff]
    %v6251 = vld [vmem:[%s6242 + $0x40] sm:$0xff]
    %v6252 = vld [vmem:[%s6242 + $0x48] sm:$0xff]
    %v6253 = vld [vmem:[%s6242 + $0x50] sm:$0xff]
    %v6254 = vld [vmem:[%s6242 + $0x58] sm:$0xff]
    %v6255 = vld [vmem:[%s6242 + $0x60] sm:$0xff]
    %v6256 = vld [vmem:[%s6242 + $0x68] sm:$0xff]
    %v6257 = vld [vmem:[%s6242 + $0x70] sm:$0xff]
    %v6258 = vld [vmem:[%s6242 + $0x78] sm:$0xff]
    %v6259 = vunpack.c.l.b16 %v6035
    %v6260 = vunpack.c.l.b16 %v6045
    %v6261 = vunpack.c.l.b16 %v6063
    %v6262 = vunpack.c.l.b16 %v6073
    %v6263 = vunpack.c.l.b16 %v6091
    %v6264 = vunpack.c.l.b16 %v6101
    %v6265 = vunpack.c.l.b16 %v6119
    %v6266 = vunpack.c.l.b16 %v6129
    %v6267 = vunpack.c.l.b16 %v6147
    %v6268 = vunpack.c.l.b16 %v6157
    %v6269 = vunpack.c.l.b16 %v6175
    %v6270 = vunpack.c.l.b16 %v6185
    %v6271 = vunpack.c.l.b16 %v6203
    %v6272 = vunpack.c.l.b16 %v6213
    %v6273 = vunpack.c.l.b16 %v6231
    %v6274 = vunpack.c.l.b16 %v6241
    %v6275 = vpack.c.b16 %v6260, %v6259
    %v6276 = vpack.c.b16 %v6262, %v6261
    %v6277 = vpack.c.b16 %v6264, %v6263
    %v6278 = vpack.c.b16 %v6266, %v6265
    %v6279 = vpack.c.b16 %v6268, %v6267
    %v6280 = vpack.c.b16 %v6270, %v6269
    %v6281 = vpack.c.b16 %v6272, %v6271
    %v6282 = vpack.c.b16 %v6274, %v6273
    %v6307 = vunpack.c.l.b16 %v6243
    %v6308 = vunpack.c.h.b16 %v6243
    %v6309 = vunpack.c.l.b16 %v6244
    %v6310 = vunpack.c.h.b16 %v6244
    %v6311 = vunpack.c.l.b16 %v6245
    %v6312 = vunpack.c.h.b16 %v6245
    %v6313 = vunpack.c.l.b16 %v6246
    %v6314 = vunpack.c.h.b16 %v6246
    %v6315 = vunpack.c.l.b16 %v6247
    %v6316 = vunpack.c.h.b16 %v6247
    %v6317 = vunpack.c.l.b16 %v6248
    %v6318 = vunpack.c.h.b16 %v6248
    %v6319 = vunpack.c.l.b16 %v6249
    %v6320 = vunpack.c.h.b16 %v6249
    %v6321 = vunpack.c.l.b16 %v6250
    %v6322 = vunpack.c.h.b16 %v6250
    %v6323 = vunpack.c.l.b16 %v6251
    %v6324 = vunpack.c.h.b16 %v6251
    %v6325 = vunpack.c.l.b16 %v6252
    %v6326 = vunpack.c.h.b16 %v6252
    %v6327 = vunpack.c.l.b16 %v6253
    %v6328 = vunpack.c.h.b16 %v6253
    %v6329 = vunpack.c.l.b16 %v6254
    %v6330 = vunpack.c.h.b16 %v6254
    %v6331 = vunpack.c.l.b16 %v6255
    %v6332 = vunpack.c.h.b16 %v6255
    %v6333 = vunpack.c.l.b16 %v6256
    %v6334 = vunpack.c.h.b16 %v6256
    %v6335 = vunpack.c.l.b16 %v6257
    %v6336 = vunpack.c.h.b16 %v6257
    %v6337 = vunpack.c.l.b16 %v6258
    %v6338 = vunpack.c.h.b16 %v6258
    %v6339 = vpack.c.b16 %v6309, %v6307
    %v6340 = vpack.c.b16 %v6310, %v6308
    %v6341 = vpack.c.b16 %v6313, %v6311
    %v6342 = vpack.c.b16 %v6314, %v6312
    %v6343 = vpack.c.b16 %v6317, %v6315
    %v6344 = vpack.c.b16 %v6318, %v6316
    %v6345 = vpack.c.b16 %v6321, %v6319
    %v6346 = vpack.c.b16 %v6322, %v6320
    %v6347 = vpack.c.b16 %v6325, %v6323
    %v6348 = vpack.c.b16 %v6326, %v6324
    %v6349 = vpack.c.b16 %v6329, %v6327
    %v6350 = vpack.c.b16 %v6330, %v6328
    %v6351 = vpack.c.b16 %v6333, %v6331
    %v6352 = vpack.c.b16 %v6334, %v6332
    %v6353 = vpack.c.b16 %v6337, %v6335
    %v6354 = vpack.c.b16 %v6338, %v6336
    %6371 = vmatpush.bf16.msra.mxu0 %v6353
    %6372 = vmatpush.bf16.msra.mxu0 %v6351
    %6373 = vmatpush.bf16.msra.mxu0 %v6349
    %6374 = vmatpush.bf16.msra.mxu0 %v6347
    %6375 = vmatpush.bf16.msra.mxu0 %v6345
    %6376 = vmatpush.bf16.msra.mxu0 %v6343
    %6377 = vmatpush.bf16.msra.mxu0 %v6341
    %6378 = vmatpush.bf16.msra.mxu0 %v6339
    %6379 = vmatmul.bf16.gmra.mxu0 %v6275
    %v6380 = vpop.f32.mrf.mxu0
    %v6381 = vadd.f32 0.0, %v6380
    %v6382 = vpop.f32.mrf.mxu0
    %v6383 = vadd.f32 0.0, %v6382
    %6384 = vmatmul.bf16.gmra.mxu0 %v6276
    %v6385 = vpop.f32.mrf.mxu0
    %v6386 = vadd.f32 0.0, %v6385
    %v6387 = vpop.f32.mrf.mxu0
    %v6388 = vadd.f32 0.0, %v6387
    %6389 = vmatmul.bf16.gmra.mxu0 %v6277
    %v6390 = vpop.f32.mrf.mxu0
    %v6391 = vadd.f32 0.0, %v6390
    %v6392 = vpop.f32.mrf.mxu0
    %v6393 = vadd.f32 0.0, %v6392
    %6394 = vmatmul.bf16.gmra.mxu0 %v6278
    %v6395 = vpop.f32.mrf.mxu0
    %v6396 = vadd.f32 0.0, %v6395
    %v6397 = vpop.f32.mrf.mxu0
    %v6398 = vadd.f32 0.0, %v6397
    %6399 = vmatmul.bf16.gmra.mxu0 %v6279
    %v6400 = vpop.f32.mrf.mxu0
    %v6401 = vadd.f32 0.0, %v6400
    %v6402 = vpop.f32.mrf.mxu0
    %v6403 = vadd.f32 0.0, %v6402
    %6404 = vmatmul.bf16.gmra.mxu0 %v6280
    %v6405 = vpop.f32.mrf.mxu0
    %v6406 = vadd.f32 0.0, %v6405
    %v6407 = vpop.f32.mrf.mxu0
    %v6408 = vadd.f32 0.0, %v6407
    %6409 = vmatmul.bf16.gmra.mxu0 %v6281
    %v6410 = vpop.f32.mrf.mxu0
    %v6411 = vadd.f32 0.0, %v6410
    %v6412 = vpop.f32.mrf.mxu0
    %v6413 = vadd.f32 0.0, %v6412
    %6414 = vmatmul.bf16.gmra.mxu0 %v6282
    %v6415 = vpop.f32.mrf.mxu0
    %v6416 = vadd.f32 0.0, %v6415
    %v6417 = vpop.f32.mrf.mxu0
    %v6418 = vadd.f32 0.0, %v6417
    %6419 = vdwg.mxu0
    %6420 = vmatpush.bf16.msra.mxu0 %v6354
    %6421 = vmatpush.bf16.msra.mxu0 %v6352
    %6422 = vmatpush.bf16.msra.mxu0 %v6350
    %6423 = vmatpush.bf16.msra.mxu0 %v6348
    %6424 = vmatpush.bf16.msra.mxu0 %v6346
    %6425 = vmatpush.bf16.msra.mxu0 %v6344
    %6426 = vmatpush.bf16.msra.mxu0 %v6342
    %6427 = vmatpush.bf16.msra.mxu0 %v6340
    %6428 = vmatmul.bf16.gmra.mxu0 %v6275
    %v6429 = vpop.f32.mrf.mxu0
    %v6430 = vadd.f32 0.0, %v6429
    %v6431 = vpop.f32.mrf.mxu0
    %v6432 = vadd.f32 0.0, %v6431
    %6433 = vmatmul.bf16.gmra.mxu0 %v6276
    %v6434 = vpop.f32.mrf.mxu0
    %v6435 = vadd.f32 0.0, %v6434
    %v6436 = vpop.f32.mrf.mxu0
    %v6437 = vadd.f32 0.0, %v6436
    %6438 = vmatmul.bf16.gmra.mxu0 %v6277
    %v6439 = vpop.f32.mrf.mxu0
    %v6440 = vadd.f32 0.0, %v6439
    %v6441 = vpop.f32.mrf.mxu0
    %v6442 = vadd.f32 0.0, %v6441
    %6443 = vmatmul.bf16.gmra.mxu0 %v6278
    %v6444 = vpop.f32.mrf.mxu0
    %v6445 = vadd.f32 0.0, %v6444
    %v6446 = vpop.f32.mrf.mxu0
    %v6447 = vadd.f32 0.0, %v6446
    %6448 = vmatmul.bf16.gmra.mxu0 %v6279
    %v6449 = vpop.f32.mrf.mxu0
    %v6450 = vadd.f32 0.0, %v6449
    %v6451 = vpop.f32.mrf.mxu0
    %v6452 = vadd.f32 0.0, %v6451
    %6453 = vmatmul.bf16.gmra.mxu0 %v6280
    %v6454 = vpop.f32.mrf.mxu0
    %v6455 = vadd.f32 0.0, %v6454
    %v6456 = vpop.f32.mrf.mxu0
    %v6457 = vadd.f32 0.0, %v6456
    %6458 = vmatmul.bf16.gmra.mxu0 %v6281
    %v6459 = vpop.f32.mrf.mxu0
    %v6460 = vadd.f32 0.0, %v6459
    %v6461 = vpop.f32.mrf.mxu0
    %v6462 = vadd.f32 0.0, %v6461
    %6463 = vmatmul.bf16.gmra.mxu0 %v6282
    %v6464 = vpop.f32.mrf.mxu0
    %v6465 = vadd.f32 0.0, %v6464
    %v6466 = vpop.f32.mrf.mxu0
    %v6467 = vadd.f32 0.0, %v6466
    %6468 = vdwg.mxu0
    %v6469 = vld [vmem:[#allocation3] sm:$0xff]
    %v6470 = vld [vmem:[#allocation3 + $0x8] sm:$0xff]
    %v6471 = vld [vmem:[#allocation3 + $0x10] sm:$0xff]
    %v6472 = vld [vmem:[#allocation3 + $0x18] sm:$0xff]
    %v6473 = vld [vmem:[#allocation3 + $0x20] sm:$0xff]
    %v6474 = vld [vmem:[#allocation3 + $0x28] sm:$0xff]
    %v6475 = vld [vmem:[#allocation3 + $0x30] sm:$0xff]
    %v6476 = vld [vmem:[#allocation3 + $0x38] sm:$0xff]
    %v6477 = vld [vmem:[#allocation3 + $0x40] sm:$0xff]
    %v6478 = vld [vmem:[#allocation3 + $0x48] sm:$0xff]
    %v6479 = vld [vmem:[#allocation3 + $0x50] sm:$0xff]
    %v6480 = vld [vmem:[#allocation3 + $0x58] sm:$0xff]
    %v6481 = vld [vmem:[#allocation3 + $0x60] sm:$0xff]
    %v6482 = vld [vmem:[#allocation3 + $0x68] sm:$0xff]
    %v6483 = vld [vmem:[#allocation3 + $0x70] sm:$0xff]
    %v6484 = vld [vmem:[#allocation3 + $0x78] sm:$0xff]
    %v6485 = vld [vmem:[#allocation3 + $0x80] sm:$0xff]
    %v6486 = vld [vmem:[#allocation3 + $0x88] sm:$0xff]
    %v6487 = vld [vmem:[#allocation3 + $0x90] sm:$0xff]
    %v6488 = vld [vmem:[#allocation3 + $0x98] sm:$0xff]
    %v6489 = vld [vmem:[#allocation3 + $0xa0] sm:$0xff]
    %v6490 = vld [vmem:[#allocation3 + $0xa8] sm:$0xff]
    %v6491 = vld [vmem:[#allocation3 + $0xb0] sm:$0xff]
    %v6492 = vld [vmem:[#allocation3 + $0xb8] sm:$0xff]
    %v6493 = vld [vmem:[#allocation3 + $0xc0] sm:$0xff]
    %v6494 = vld [vmem:[#allocation3 + $0xc8] sm:$0xff]
    %v6495 = vld [vmem:[#allocation3 + $0xd0] sm:$0xff]
    %v6496 = vld [vmem:[#allocation3 + $0xd8] sm:$0xff]
    %v6497 = vld [vmem:[#allocation3 + $0xe0] sm:$0xff]
    %v6498 = vld [vmem:[#allocation3 + $0xe8] sm:$0xff]
    %v6499 = vld [vmem:[#allocation3 + $0xf0] sm:$0xff]
    %v6500 = vld [vmem:[#allocation3 + $0xf8] sm:$0xff]
    %v6501 = vadd.f32 %v6469, %v6381
    %v6502 = vadd.f32 %v6470, %v6430
    %v6503 = vadd.f32 %v6471, %v6383
    %v6504 = vadd.f32 %v6472, %v6432
    %v6505 = vadd.f32 %v6473, %v6386
    %v6506 = vadd.f32 %v6474, %v6435
    %v6507 = vadd.f32 %v6475, %v6388
    %v6508 = vadd.f32 %v6476, %v6437
    %v6509 = vadd.f32 %v6477, %v6391
    %v6510 = vadd.f32 %v6478, %v6440
    %v6511 = vadd.f32 %v6479, %v6393
    %v6512 = vadd.f32 %v6480, %v6442
    %v6513 = vadd.f32 %v6481, %v6396
    %v6514 = vadd.f32 %v6482, %v6445
    %v6515 = vadd.f32 %v6483, %v6398
    %v6516 = vadd.f32 %v6484, %v6447
    %v6517 = vadd.f32 %v6485, %v6401
    %v6518 = vadd.f32 %v6486, %v6450
    %v6519 = vadd.f32 %v6487, %v6403
    %v6520 = vadd.f32 %v6488, %v6452
    %v6521 = vadd.f32 %v6489, %v6406
    %v6522 = vadd.f32 %v6490, %v6455
    %v6523 = vadd.f32 %v6491, %v6408
    %v6524 = vadd.f32 %v6492, %v6457
    %v6525 = vadd.f32 %v6493, %v6411
    %v6526 = vadd.f32 %v6494, %v6460
    %v6527 = vadd.f32 %v6495, %v6413
    %v6528 = vadd.f32 %v6496, %v6462
    %v6529 = vadd.f32 %v6497, %v6416
    %v6530 = vadd.f32 %v6498, %v6465
    %v6531 = vadd.f32 %v6499, %v6418
    %v6532 = vadd.f32 %v6500, %v6467
    %6533 = vst [vmem:[#allocation3] sm:$0xff] %v6501
    %6534 = vst [vmem:[#allocation3 + $0x8] sm:$0xff] %v6502
    %6535 = vst [vmem:[#allocation3 + $0x10] sm:$0xff] %v6503
    %6536 = vst [vmem:[#allocation3 + $0x18] sm:$0xff] %v6504
    %6537 = vst [vmem:[#allocation3 + $0x20] sm:$0xff] %v6505
    %6538 = vst [vmem:[#allocation3 + $0x28] sm:$0xff] %v6506
    %6539 = vst [vmem:[#allocation3 + $0x30] sm:$0xff] %v6507
    %6540 = vst [vmem:[#allocation3 + $0x38] sm:$0xff] %v6508
    %6541 = vst [vmem:[#allocation3 + $0x40] sm:$0xff] %v6509
    %6542 = vst [vmem:[#allocation3 + $0x48] sm:$0xff] %v6510
    %6543 = vst [vmem:[#allocation3 + $0x50] sm:$0xff] %v6511
    %6544 = vst [vmem:[#allocation3 + $0x58] sm:$0xff] %v6512
    %6545 = vst [vmem:[#allocation3 + $0x60] sm:$0xff] %v6513
    %6546 = vst [vmem:[#allocation3 + $0x68] sm:$0xff] %v6514
    %6547 = vst [vmem:[#allocation3 + $0x70] sm:$0xff] %v6515
    %6548 = vst [vmem:[#allocation3 + $0x78] sm:$0xff] %v6516
    %6549 = vst [vmem:[#allocation3 + $0x80] sm:$0xff] %v6517
    %6550 = vst [vmem:[#allocation3 + $0x88] sm:$0xff] %v6518
    %6551 = vst [vmem:[#allocation3 + $0x90] sm:$0xff] %v6519
    %6552 = vst [vmem:[#allocation3 + $0x98] sm:$0xff] %v6520
    %6553 = vst [vmem:[#allocation3 + $0xa0] sm:$0xff] %v6521
    %6554 = vst [vmem:[#allocation3 + $0xa8] sm:$0xff] %v6522
    %6555 = vst [vmem:[#allocation3 + $0xb0] sm:$0xff] %v6523
    %6556 = vst [vmem:[#allocation3 + $0xb8] sm:$0xff] %v6524
    %6557 = vst [vmem:[#allocation3 + $0xc0] sm:$0xff] %v6525
    %6558 = vst [vmem:[#allocation3 + $0xc8] sm:$0xff] %v6526
    %6559 = vst [vmem:[#allocation3 + $0xd0] sm:$0xff] %v6527
    %6560 = vst [vmem:[#allocation3 + $0xd8] sm:$0xff] %v6528
    %6561 = vst [vmem:[#allocation3 + $0xe0] sm:$0xff] %v6529
    %6562 = vst [vmem:[#allocation3 + $0xe8] sm:$0xff] %v6530
    %6563 = vst [vmem:[#allocation3 + $0xf0] sm:$0xff] %v6531
    %6564 = vst [vmem:[#allocation3 + $0xf8] sm:$0xff] %v6532
    %v6565 = vld [vmem:[#allocation4] sm:$0xc]
    %v6566 = vld [vmem:[#allocation4 + $0x4] sm:$0xf]
    %v6567 = vld [vmem:[#allocation4 + $0x8] sm:$0x3]
    %v6568 = vld [vmem:[#allocation4 + $0xc] sm:$0xc]
    %v6569 = vld [vmem:[#allocation4 + $0x10] sm:$0xf]
    %v6570 = vld [vmem:[#allocation4 + $0x14] sm:$0x3]
    %v6571 = vld [vmem:[#allocation4 + $0x18] sm:$0xc]
    %v6572 = vld [vmem:[#allocation4 + $0x1c] sm:$0xf]
    %v6573 = vld [vmem:[#allocation4 + $0x20] sm:$0x3]
    %v6574 = vld [vmem:[#allocation4 + $0x24] sm:$0xc]
    %v6575 = vld [vmem:[#allocation4 + $0x28] sm:$0xf]
    %v6576 = vld [vmem:[#allocation4 + $0x2c] sm:$0x3]
    %v6577 = vld [vmem:[#allocation4 + $0x30] sm:$0xc]
    %v6578 = vld [vmem:[#allocation4 + $0x34] sm:$0xf]
    %v6579 = vld [vmem:[#allocation4 + $0x38] sm:$0x3]
    %v6580 = vld [vmem:[#allocation4 + $0x3c] sm:$0xc]
    %v6581 = vld [vmem:[#allocation4 + $0x40] sm:$0xf]
    %v6582 = vld [vmem:[#allocation4 + $0x44] sm:$0x3]
    %v6583 = vld [vmem:[#allocation4 + $0x48] sm:$0xc]
    %v6584 = vld [vmem:[#allocation4 + $0x4c] sm:$0xf]
    %v6585 = vld [vmem:[#allocation4 + $0x50] sm:$0x3]
    %v6586 = vld [vmem:[#allocation4 + $0x54] sm:$0xc]
    %v6587 = vld [vmem:[#allocation4 + $0x58] sm:$0xf]
    %v6588 = vld [vmem:[#allocation4 + $0x5c] sm:$0x3]
    %v6613 = vrot.slane %v6565, 6
    %v6614 = vrot.slane %v6613, 4
    %v6615 = vrot.slane %v6566, 6
    %v6616 = vsel %vm3298, %v6614, %v6615
    %v6617 = vrot.slane %v6615, 4
    %v6618 = vrot.slane %v6567, 6
    %v6619 = vsel %vm3298, %v6617, %v6618
    %v6620 = vrot.slane %v6568, 6
    %v6621 = vrot.slane %v6620, 4
    %v6622 = vrot.slane %v6569, 6
    %v6623 = vsel %vm3298, %v6621, %v6622
    %v6624 = vrot.slane %v6622, 4
    %v6625 = vrot.slane %v6570, 6
    %v6626 = vsel %vm3298, %v6624, %v6625
    %v6627 = vrot.slane %v6571, 6
    %v6628 = vrot.slane %v6627, 4
    %v6629 = vrot.slane %v6572, 6
    %v6630 = vsel %vm3298, %v6628, %v6629
    %v6631 = vrot.slane %v6629, 4
    %v6632 = vrot.slane %v6573, 6
    %v6633 = vsel %vm3298, %v6631, %v6632
    %v6634 = vrot.slane %v6574, 6
    %v6635 = vrot.slane %v6634, 4
    %v6636 = vrot.slane %v6575, 6
    %v6637 = vsel %vm3298, %v6635, %v6636
    %v6638 = vrot.slane %v6636, 4
    %v6639 = vrot.slane %v6576, 6
    %v6640 = vsel %vm3298, %v6638, %v6639
    %v6641 = vrot.slane %v6577, 6
    %v6642 = vrot.slane %v6641, 4
    %v6643 = vrot.slane %v6578, 6
    %v6644 = vsel %vm3298, %v6642, %v6643
    %v6645 = vrot.slane %v6643, 4
    %v6646 = vrot.slane %v6579, 6
    %v6647 = vsel %vm3298, %v6645, %v6646
    %v6648 = vrot.slane %v6580, 6
    %v6649 = vrot.slane %v6648, 4
    %v6650 = vrot.slane %v6581, 6
    %v6651 = vsel %vm3298, %v6649, %v6650
    %v6652 = vrot.slane %v6650, 4
    %v6653 = vrot.slane %v6582, 6
    %v6654 = vsel %vm3298, %v6652, %v6653
    %v6655 = vrot.slane %v6583, 6
    %v6656 = vrot.slane %v6655, 4
    %v6657 = vrot.slane %v6584, 6
    %v6658 = vsel %vm3298, %v6656, %v6657
    %v6659 = vrot.slane %v6657, 4
    %v6660 = vrot.slane %v6585, 6
    %v6661 = vsel %vm3298, %v6659, %v6660
    %v6662 = vrot.slane %v6586, 6
    %v6663 = vrot.slane %v6662, 4
    %v6664 = vrot.slane %v6587, 6
    %v6665 = vsel %vm3298, %v6663, %v6664
    %v6666 = vrot.slane %v6664, 4
    %v6667 = vrot.slane %v6588, 6
    %v6668 = vsel %vm3298, %v6666, %v6667
    %s6669 = scalar_lea.vmem [#allocation9], 512
    %v6670 = vld [vmem:[%s6669] sm:$0xff]
    %v6671 = vld [vmem:[%s6669 + $0x8] sm:$0xff]
    %v6672 = vld [vmem:[%s6669 + $0x10] sm:$0xff]
    %v6673 = vld [vmem:[%s6669 + $0x18] sm:$0xff]
    %v6674 = vld [vmem:[%s6669 + $0x20] sm:$0xff]
    %v6675 = vld [vmem:[%s6669 + $0x28] sm:$0xff]
    %v6676 = vld [vmem:[%s6669 + $0x30] sm:$0xff]
    %v6677 = vld [vmem:[%s6669 + $0x38] sm:$0xff]
    %v6678 = vld [vmem:[%s6669 + $0x40] sm:$0xff]
    %v6679 = vld [vmem:[%s6669 + $0x48] sm:$0xff]
    %v6680 = vld [vmem:[%s6669 + $0x50] sm:$0xff]
    %v6681 = vld [vmem:[%s6669 + $0x58] sm:$0xff]
    %v6682 = vld [vmem:[%s6669 + $0x60] sm:$0xff]
    %v6683 = vld [vmem:[%s6669 + $0x68] sm:$0xff]
    %v6684 = vld [vmem:[%s6669 + $0x70] sm:$0xff]
    %v6685 = vld [vmem:[%s6669 + $0x78] sm:$0xff]
    %v6686 = vunpack.c.l.b16 %v6616
    %v6687 = vunpack.c.l.b16 %v6619
    %v6688 = vunpack.c.l.b16 %v6623
    %v6689 = vunpack.c.l.b16 %v6626
    %v6690 = vunpack.c.l.b16 %v6630
    %v6691 = vunpack.c.l.b16 %v6633
    %v6692 = vunpack.c.l.b16 %v6637
    %v6693 = vunpack.c.l.b16 %v6640
    %v6694 = vunpack.c.l.b16 %v6644
    %v6695 = vunpack.c.l.b16 %v6647
    %v6696 = vunpack.c.l.b16 %v6651
    %v6697 = vunpack.c.l.b16 %v6654
    %v6698 = vunpack.c.l.b16 %v6658
    %v6699 = vunpack.c.l.b16 %v6661
    %v6700 = vunpack.c.l.b16 %v6665
    %v6701 = vunpack.c.l.b16 %v6668
    %v6702 = vpack.c.b16 %v6687, %v6686
    %v6703 = vpack.c.b16 %v6689, %v6688
    %v6704 = vpack.c.b16 %v6691, %v6690
    %v6705 = vpack.c.b16 %v6693, %v6692
    %v6706 = vpack.c.b16 %v6695, %v6694
    %v6707 = vpack.c.b16 %v6697, %v6696
    %v6708 = vpack.c.b16 %v6699, %v6698
    %v6709 = vpack.c.b16 %v6701, %v6700
    %v6734 = vunpack.c.l.b16 %v6670
    %v6735 = vunpack.c.h.b16 %v6670
    %v6736 = vunpack.c.l.b16 %v6671
    %v6737 = vunpack.c.h.b16 %v6671
    %v6738 = vunpack.c.l.b16 %v6672
    %v6739 = vunpack.c.h.b16 %v6672
    %v6740 = vunpack.c.l.b16 %v6673
    %v6741 = vunpack.c.h.b16 %v6673
    %v6742 = vunpack.c.l.b16 %v6674
    %v6743 = vunpack.c.h.b16 %v6674
    %v6744 = vunpack.c.l.b16 %v6675
    %v6745 = vunpack.c.h.b16 %v6675
    %v6746 = vunpack.c.l.b16 %v6676
    %v6747 = vunpack.c.h.b16 %v6676
    %v6748 = vunpack.c.l.b16 %v6677
    %v6749 = vunpack.c.h.b16 %v6677
    %v6750 = vunpack.c.l.b16 %v6678
    %v6751 = vunpack.c.h.b16 %v6678
    %v6752 = vunpack.c.l.b16 %v6679
    %v6753 = vunpack.c.h.b16 %v6679
    %v6754 = vunpack.c.l.b16 %v6680
    %v6755 = vunpack.c.h.b16 %v6680
    %v6756 = vunpack.c.l.b16 %v6681
    %v6757 = vunpack.c.h.b16 %v6681
    %v6758 = vunpack.c.l.b16 %v6682
    %v6759 = vunpack.c.h.b16 %v6682
    %v6760 = vunpack.c.l.b16 %v6683
    %v6761 = vunpack.c.h.b16 %v6683
    %v6762 = vunpack.c.l.b16 %v6684
    %v6763 = vunpack.c.h.b16 %v6684
    %v6764 = vunpack.c.l.b16 %v6685
    %v6765 = vunpack.c.h.b16 %v6685
    %v6766 = vpack.c.b16 %v6736, %v6734
    %v6767 = vpack.c.b16 %v6737, %v6735
    %v6768 = vpack.c.b16 %v6740, %v6738
    %v6769 = vpack.c.b16 %v6741, %v6739
    %v6770 = vpack.c.b16 %v6744, %v6742
    %v6771 = vpack.c.b16 %v6745, %v6743
    %v6772 = vpack.c.b16 %v6748, %v6746
    %v6773 = vpack.c.b16 %v6749, %v6747
    %v6774 = vpack.c.b16 %v6752, %v6750
    %v6775 = vpack.c.b16 %v6753, %v6751
    %v6776 = vpack.c.b16 %v6756, %v6754
    %v6777 = vpack.c.b16 %v6757, %v6755
    %v6778 = vpack.c.b16 %v6760, %v6758
    %v6779 = vpack.c.b16 %v6761, %v6759
    %v6780 = vpack.c.b16 %v6764, %v6762
    %v6781 = vpack.c.b16 %v6765, %v6763
    %6798 = vmatpush.bf16.msra.mxu0 %v6780
    %6799 = vmatpush.bf16.msra.mxu0 %v6778
    %6800 = vmatpush.bf16.msra.mxu0 %v6776
    %6801 = vmatpush.bf16.msra.mxu0 %v6774
    %6802 = vmatpush.bf16.msra.mxu0 %v6772
    %6803 = vmatpush.bf16.msra.mxu0 %v6770
    %6804 = vmatpush.bf16.msra.mxu0 %v6768
    %6805 = vmatpush.bf16.msra.mxu0 %v6766
    %6806 = vmatmul.bf16.gmra.mxu0 %v6702
    %v6807 = vpop.f32.mrf.mxu0
    %v6808 = vadd.f32 0.0, %v6807
    %v6809 = vpop.f32.mrf.mxu0
    %v6810 = vadd.f32 0.0, %v6809
    %6811 = vmatmul.bf16.gmra.mxu0 %v6703
    %v6812 = vpop.f32.mrf.mxu0
    %v6813 = vadd.f32 0.0, %v6812
    %v6814 = vpop.f32.mrf.mxu0
    %v6815 = vadd.f32 0.0, %v6814
    %6816 = vmatmul.bf16.gmra.mxu0 %v6704
    %v6817 = vpop.f32.mrf.mxu0
    %v6818 = vadd.f32 0.0, %v6817
    %v6819 = vpop.f32.mrf.mxu0
    %v6820 = vadd.f32 0.0, %v6819
    %6821 = vmatmul.bf16.gmra.mxu0 %v6705
    %v6822 = vpop.f32.mrf.mxu0
    %v6823 = vadd.f32 0.0, %v6822
    %v6824 = vpop.f32.mrf.mxu0
    %v6825 = vadd.f32 0.0, %v6824
    %6826 = vmatmul.bf16.gmra.mxu0 %v6706
    %v6827 = vpop.f32.mrf.mxu0
    %v6828 = vadd.f32 0.0, %v6827
    %v6829 = vpop.f32.mrf.mxu0
    %v6830 = vadd.f32 0.0, %v6829
    %6831 = vmatmul.bf16.gmra.mxu0 %v6707
    %v6832 = vpop.f32.mrf.mxu0
    %v6833 = vadd.f32 0.0, %v6832
    %v6834 = vpop.f32.mrf.mxu0
    %v6835 = vadd.f32 0.0, %v6834
    %6836 = vmatmul.bf16.gmra.mxu0 %v6708
    %v6837 = vpop.f32.mrf.mxu0
    %v6838 = vadd.f32 0.0, %v6837
    %v6839 = vpop.f32.mrf.mxu0
    %v6840 = vadd.f32 0.0, %v6839
    %6841 = vmatmul.bf16.gmra.mxu0 %v6709
    %v6842 = vpop.f32.mrf.mxu0
    %v6843 = vadd.f32 0.0, %v6842
    %v6844 = vpop.f32.mrf.mxu0
    %v6845 = vadd.f32 0.0, %v6844
    %6846 = vdwg.mxu0
    %6847 = vmatpush.bf16.msra.mxu0 %v6781
    %6848 = vmatpush.bf16.msra.mxu0 %v6779
    %6849 = vmatpush.bf16.msra.mxu0 %v6777
    %6850 = vmatpush.bf16.msra.mxu0 %v6775
    %6851 = vmatpush.bf16.msra.mxu0 %v6773
    %6852 = vmatpush.bf16.msra.mxu0 %v6771
    %6853 = vmatpush.bf16.msra.mxu0 %v6769
    %6854 = vmatpush.bf16.msra.mxu0 %v6767
    %6855 = vmatmul.bf16.gmra.mxu0 %v6702
    %v6856 = vpop.f32.mrf.mxu0
    %v6857 = vadd.f32 0.0, %v6856
    %v6858 = vpop.f32.mrf.mxu0
    %v6859 = vadd.f32 0.0, %v6858
    %6860 = vmatmul.bf16.gmra.mxu0 %v6703
    %v6861 = vpop.f32.mrf.mxu0
    %v6862 = vadd.f32 0.0, %v6861
    %v6863 = vpop.f32.mrf.mxu0
    %v6864 = vadd.f32 0.0, %v6863
    %6865 = vmatmul.bf16.gmra.mxu0 %v6704
    %v6866 = vpop.f32.mrf.mxu0
    %v6867 = vadd.f32 0.0, %v6866
    %v6868 = vpop.f32.mrf.mxu0
    %v6869 = vadd.f32 0.0, %v6868
    %6870 = vmatmul.bf16.gmra.mxu0 %v6705
    %v6871 = vpop.f32.mrf.mxu0
    %v6872 = vadd.f32 0.0, %v6871
    %v6873 = vpop.f32.mrf.mxu0
    %v6874 = vadd.f32 0.0, %v6873
    %6875 = vmatmul.bf16.gmra.mxu0 %v6706
    %v6876 = vpop.f32.mrf.mxu0
    %v6877 = vadd.f32 0.0, %v6876
    %v6878 = vpop.f32.mrf.mxu0
    %v6879 = vadd.f32 0.0, %v6878
    %6880 = vmatmul.bf16.gmra.mxu0 %v6707
    %v6881 = vpop.f32.mrf.mxu0
    %v6882 = vadd.f32 0.0, %v6881
    %v6883 = vpop.f32.mrf.mxu0
    %v6884 = vadd.f32 0.0, %v6883
    %6885 = vmatmul.bf16.gmra.mxu0 %v6708
    %v6886 = vpop.f32.mrf.mxu0
    %v6887 = vadd.f32 0.0, %v6886
    %v6888 = vpop.f32.mrf.mxu0
    %v6889 = vadd.f32 0.0, %v6888
    %6890 = vmatmul.bf16.gmra.mxu0 %v6709
    %v6891 = vpop.f32.mrf.mxu0
    %v6892 = vadd.f32 0.0, %v6891
    %v6893 = vpop.f32.mrf.mxu0
    %v6894 = vadd.f32 0.0, %v6893
    %6895 = vdwg.mxu0
    %v6896 = vld [vmem:[#allocation3] sm:$0xff]
    %v6897 = vld [vmem:[#allocation3 + $0x8] sm:$0xff]
    %v6898 = vld [vmem:[#allocation3 + $0x10] sm:$0xff]
    %v6899 = vld [vmem:[#allocation3 + $0x18] sm:$0xff]
    %v6900 = vld [vmem:[#allocation3 + $0x20] sm:$0xff]
    %v6901 = vld [vmem:[#allocation3 + $0x28] sm:$0xff]
    %v6902 = vld [vmem:[#allocation3 + $0x30] sm:$0xff]
    %v6903 = vld [vmem:[#allocation3 + $0x38] sm:$0xff]
    %v6904 = vld [vmem:[#allocation3 + $0x40] sm:$0xff]
    %v6905 = vld [vmem:[#allocation3 + $0x48] sm:$0xff]
    %v6906 = vld [vmem:[#allocation3 + $0x50] sm:$0xff]
    %v6907 = vld [vmem:[#allocation3 + $0x58] sm:$0xff]
    %v6908 = vld [vmem:[#allocation3 + $0x60] sm:$0xff]
    %v6909 = vld [vmem:[#allocation3 + $0x68] sm:$0xff]
    %v6910 = vld [vmem:[#allocation3 + $0x70] sm:$0xff]
    %v6911 = vld [vmem:[#allocation3 + $0x78] sm:$0xff]
    %v6912 = vld [vmem:[#allocation3 + $0x80] sm:$0xff]
    %v6913 = vld [vmem:[#allocation3 + $0x88] sm:$0xff]
    %v6914 = vld [vmem:[#allocation3 + $0x90] sm:$0xff]
    %v6915 = vld [vmem:[#allocation3 + $0x98] sm:$0xff]
    %v6916 = vld [vmem:[#allocation3 + $0xa0] sm:$0xff]
    %v6917 = vld [vmem:[#allocation3 + $0xa8] sm:$0xff]
    %v6918 = vld [vmem:[#allocation3 + $0xb0] sm:$0xff]
    %v6919 = vld [vmem:[#allocation3 + $0xb8] sm:$0xff]
    %v6920 = vld [vmem:[#allocation3 + $0xc0] sm:$0xff]
    %v6921 = vld [vmem:[#allocation3 + $0xc8] sm:$0xff]
    %v6922 = vld [vmem:[#allocation3 + $0xd0] sm:$0xff]
    %v6923 = vld [vmem:[#allocation3 + $0xd8] sm:$0xff]
    %v6924 = vld [vmem:[#allocation3 + $0xe0] sm:$0xff]
    %v6925 = vld [vmem:[#allocation3 + $0xe8] sm:$0xff]
    %v6926 = vld [vmem:[#allocation3 + $0xf0] sm:$0xff]
    %v6927 = vld [vmem:[#allocation3 + $0xf8] sm:$0xff]
    %v6928 = vadd.f32 %v6896, %v6808
    %v6929 = vadd.f32 %v6897, %v6857
    %v6930 = vadd.f32 %v6898, %v6810
    %v6931 = vadd.f32 %v6899, %v6859
    %v6932 = vadd.f32 %v6900, %v6813
    %v6933 = vadd.f32 %v6901, %v6862
    %v6934 = vadd.f32 %v6902, %v6815
    %v6935 = vadd.f32 %v6903, %v6864
    %v6936 = vadd.f32 %v6904, %v6818
    %v6937 = vadd.f32 %v6905, %v6867
    %v6938 = vadd.f32 %v6906, %v6820
    %v6939 = vadd.f32 %v6907, %v6869
    %v6940 = vadd.f32 %v6908, %v6823
    %v6941 = vadd.f32 %v6909, %v6872
    %v6942 = vadd.f32 %v6910, %v6825
    %v6943 = vadd.f32 %v6911, %v6874
    %v6944 = vadd.f32 %v6912, %v6828
    %v6945 = vadd.f32 %v6913, %v6877
    %v6946 = vadd.f32 %v6914, %v6830
    %v6947 = vadd.f32 %v6915, %v6879
    %v6948 = vadd.f32 %v6916, %v6833
    %v6949 = vadd.f32 %v6917, %v6882
    %v6950 = vadd.f32 %v6918, %v6835
    %v6951 = vadd.f32 %v6919, %v6884
    %v6952 = vadd.f32 %v6920, %v6838
    %v6953 = vadd.f32 %v6921, %v6887
    %v6954 = vadd.f32 %v6922, %v6840
    %v6955 = vadd.f32 %v6923, %v6889
    %v6956 = vadd.f32 %v6924, %v6843
    %v6957 = vadd.f32 %v6925, %v6892
    %v6958 = vadd.f32 %v6926, %v6845
    %v6959 = vadd.f32 %v6927, %v6894
    %6960 = vst [vmem:[#allocation3] sm:$0xff] %v6928
    %6961 = vst [vmem:[#allocation3 + $0x8] sm:$0xff] %v6929
    %6962 = vst [vmem:[#allocation3 + $0x10] sm:$0xff] %v6930
    %6963 = vst [vmem:[#allocation3 + $0x18] sm:$0xff] %v6931
    %6964 = vst [vmem:[#allocation3 + $0x20] sm:$0xff] %v6932
    %6965 = vst [vmem:[#allocation3 + $0x28] sm:$0xff] %v6933
    %6966 = vst [vmem:[#allocation3 + $0x30] sm:$0xff] %v6934
    %6967 = vst [vmem:[#allocation3 + $0x38] sm:$0xff] %v6935
    %6968 = vst [vmem:[#allocation3 + $0x40] sm:$0xff] %v6936
    %6969 = vst [vmem:[#allocation3 + $0x48] sm:$0xff] %v6937
    %6970 = vst [vmem:[#allocation3 + $0x50] sm:$0xff] %v6938
    %6971 = vst [vmem:[#allocation3 + $0x58] sm:$0xff] %v6939
    %6972 = vst [vmem:[#allocation3 + $0x60] sm:$0xff] %v6940
    %6973 = vst [vmem:[#allocation3 + $0x68] sm:$0xff] %v6941
    %6974 = vst [vmem:[#allocation3 + $0x70] sm:$0xff] %v6942
    %6975 = vst [vmem:[#allocation3 + $0x78] sm:$0xff] %v6943
    %6976 = vst [vmem:[#allocation3 + $0x80] sm:$0xff] %v6944
    %6977 = vst [vmem:[#allocation3 + $0x88] sm:$0xff] %v6945
    %6978 = vst [vmem:[#allocation3 + $0x90] sm:$0xff] %v6946
    %6979 = vst [vmem:[#allocation3 + $0x98] sm:$0xff] %v6947
    %6980 = vst [vmem:[#allocation3 + $0xa0] sm:$0xff] %v6948
    %6981 = vst [vmem:[#allocation3 + $0xa8] sm:$0xff] %v6949
    %6982 = vst [vmem:[#allocation3 + $0xb0] sm:$0xff] %v6950
    %6983 = vst [vmem:[#allocation3 + $0xb8] sm:$0xff] %v6951
    %6984 = vst [vmem:[#allocation3 + $0xc0] sm:$0xff] %v6952
    %6985 = vst [vmem:[#allocation3 + $0xc8] sm:$0xff] %v6953
    %6986 = vst [vmem:[#allocation3 + $0xd0] sm:$0xff] %v6954
    %6987 = vst [vmem:[#allocation3 + $0xd8] sm:$0xff] %v6955
    %6988 = vst [vmem:[#allocation3 + $0xe0] sm:$0xff] %v6956
    %6989 = vst [vmem:[#allocation3 + $0xe8] sm:$0xff] %v6957
    %6990 = vst [vmem:[#allocation3 + $0xf0] sm:$0xff] %v6958
    %6991 = vst [vmem:[#allocation3 + $0xf8] sm:$0xff] %v6959
    %v6992 = vld [vmem:[#allocation3] sm:$0xff]
    %v6993 = vld [vmem:[#allocation3 + $0x8] sm:$0xff]
    %v6994 = vld [vmem:[#allocation3 + $0x10] sm:$0xff]
    %v6995 = vld [vmem:[#allocation3 + $0x18] sm:$0xff]
    %v6996 = vld [vmem:[#allocation3 + $0x20] sm:$0xff]
    %v6997 = vld [vmem:[#allocation3 + $0x28] sm:$0xff]
    %v6998 = vld [vmem:[#allocation3 + $0x30] sm:$0xff]
    %v6999 = vld [vmem:[#allocation3 + $0x38] sm:$0xff]
    %v7000 = vld [vmem:[#allocation3 + $0x40] sm:$0xff]
    %v7001 = vld [vmem:[#allocation3 + $0x48] sm:$0xff]
    %v7002 = vld [vmem:[#allocation3 + $0x50] sm:$0xff]
    %v7003 = vld [vmem:[#allocation3 + $0x58] sm:$0xff]
    %v7004 = vld [vmem:[#allocation3 + $0x60] sm:$0xff]
    %v7005 = vld [vmem:[#allocation3 + $0x68] sm:$0xff]
    %v7006 = vld [vmem:[#allocation3 + $0x70] sm:$0xff]
    %v7007 = vld [vmem:[#allocation3 + $0x78] sm:$0xff]
    %v7008 = vld [vmem:[#allocation3 + $0x80] sm:$0xff]
    %v7009 = vld [vmem:[#allocation3 + $0x88] sm:$0xff]
    %v7010 = vld [vmem:[#allocation3 + $0x90] sm:$0xff]
    %v7011 = vld [vmem:[#allocation3 + $0x98] sm:$0xff]
    %v7012 = vld [vmem:[#allocation3 + $0xa0] sm:$0xff]
    %v7013 = vld [vmem:[#allocation3 + $0xa8] sm:$0xff]
    %v7014 = vld [vmem:[#allocation3 + $0xb0] sm:$0xff]
    %v7015 = vld [vmem:[#allocation3 + $0xb8] sm:$0xff]
    %v7016 = vld [vmem:[#allocation3 + $0xc0] sm:$0xff]
    %v7017 = vld [vmem:[#allocation3 + $0xc8] sm:$0xff]
    %v7018 = vld [vmem:[#allocation3 + $0xd0] sm:$0xff]
    %v7019 = vld [vmem:[#allocation3 + $0xd8] sm:$0xff]
    %v7020 = vld [vmem:[#allocation3 + $0xe0] sm:$0xff]
    %v7021 = vld [vmem:[#allocation3 + $0xe8] sm:$0xff]
    %v7022 = vld [vmem:[#allocation3 + $0xf0] sm:$0xff]
    %v7023 = vld [vmem:[#allocation3 + $0xf8] sm:$0xff]
    %s7024 = scalar_lea.vmem %s10, 1
    %v7025 = vld [vmem:[%s7024] ss:$8 sm:$0x3]
    %v7027 = vperm.slane %v7025, 0
    %v7028 = vperm.slane %v7025, 1
    %v7031 = vadd.f32 %v6992, %v7027
    %v7032 = vadd.f32 %v6993, %v7028
    %v7033 = vadd.f32 %v6994, %v7027
    %v7034 = vadd.f32 %v6995, %v7028
    %v7035 = vadd.f32 %v6996, %v7027
    %v7036 = vadd.f32 %v6997, %v7028
    %v7037 = vadd.f32 %v6998, %v7027
    %v7038 = vadd.f32 %v6999, %v7028
    %v7039 = vadd.f32 %v7000, %v7027
    %v7040 = vadd.f32 %v7001, %v7028
    %v7041 = vadd.f32 %v7002, %v7027
    %v7042 = vadd.f32 %v7003, %v7028
    %v7043 = vadd.f32 %v7004, %v7027
    %v7044 = vadd.f32 %v7005, %v7028
    %v7045 = vadd.f32 %v7006, %v7027
    %v7046 = vadd.f32 %v7007, %v7028
    %v7047 = vadd.f32 %v7008, %v7027
    %v7048 = vadd.f32 %v7009, %v7028
    %v7049 = vadd.f32 %v7010, %v7027
    %v7050 = vadd.f32 %v7011, %v7028
    %v7051 = vadd.f32 %v7012, %v7027
    %v7052 = vadd.f32 %v7013, %v7028
    %v7053 = vadd.f32 %v7014, %v7027
    %v7054 = vadd.f32 %v7015, %v7028
    %v7055 = vadd.f32 %v7016, %v7027
    %v7056 = vadd.f32 %v7017, %v7028
    %v7057 = vadd.f32 %v7018, %v7027
    %v7058 = vadd.f32 %v7019, %v7028
    %v7059 = vadd.f32 %v7020, %v7027
    %v7060 = vadd.f32 %v7021, %v7028
    %v7061 = vadd.f32 %v7022, %v7027
    %v7062 = vadd.f32 %v7023, %v7028
    %v7063 = vmax.f32 %v7031, 0.0
    %v7064 = vmax.f32 %v7032, 0.0
    %v7065 = vmax.f32 %v7033, 0.0
    %v7066 = vmax.f32 %v7034, 0.0
    %v7067 = vmax.f32 %v7035, 0.0
    %v7068 = vmax.f32 %v7036, 0.0
    %v7069 = vmax.f32 %v7037, 0.0
    %v7070 = vmax.f32 %v7038, 0.0
    %v7071 = vmax.f32 %v7039, 0.0
    %v7072 = vmax.f32 %v7040, 0.0
    %v7073 = vmax.f32 %v7041, 0.0
    %v7074 = vmax.f32 %v7042, 0.0
    %v7075 = vmax.f32 %v7043, 0.0
    %v7076 = vmax.f32 %v7044, 0.0
    %v7077 = vmax.f32 %v7045, 0.0
    %v7078 = vmax.f32 %v7046, 0.0
    %v7079 = vmax.f32 %v7047, 0.0
    %v7080 = vmax.f32 %v7048, 0.0
    %v7081 = vmax.f32 %v7049, 0.0
    %v7082 = vmax.f32 %v7050, 0.0
    %v7083 = vmax.f32 %v7051, 0.0
    %v7084 = vmax.f32 %v7052, 0.0
    %v7085 = vmax.f32 %v7053, 0.0
    %v7086 = vmax.f32 %v7054, 0.0
    %v7087 = vmax.f32 %v7055, 0.0
    %v7088 = vmax.f32 %v7056, 0.0
    %v7089 = vmax.f32 %v7057, 0.0
    %v7090 = vmax.f32 %v7058, 0.0
    %v7091 = vmax.f32 %v7059, 0.0
    %v7092 = vmax.f32 %v7060, 0.0
    %v7093 = vmax.f32 %v7061, 0.0
    %v7094 = vmax.f32 %v7062, 0.0
    %v7095 = vpack.c.bf16 %v7065, %v7063
    %v7096 = vpack.c.bf16 %v7066, %v7064
    %v7097 = vpack.c.bf16 %v7069, %v7067
    %v7098 = vpack.c.bf16 %v7070, %v7068
    %v7099 = vpack.c.bf16 %v7073, %v7071
    %v7100 = vpack.c.bf16 %v7074, %v7072
    %v7101 = vpack.c.bf16 %v7077, %v7075
    %v7102 = vpack.c.bf16 %v7078, %v7076
    %v7103 = vpack.c.bf16 %v7081, %v7079
    %v7104 = vpack.c.bf16 %v7082, %v7080
    %v7105 = vpack.c.bf16 %v7085, %v7083
    %v7106 = vpack.c.bf16 %v7086, %v7084
    %v7107 = vpack.c.bf16 %v7089, %v7087
    %v7108 = vpack.c.bf16 %v7090, %v7088
    %v7109 = vpack.c.bf16 %v7093, %v7091
    %v7110 = vpack.c.bf16 %v7094, %v7092
    %v7111 = vld [vmem:[#allocation10] sm:$0xf]
    %v7112 = vld [vmem:[#allocation10 + $0x4] sm:$0xf]
    %v7113 = vld [vmem:[#allocation10 + $0x8] sm:$0xf]
    %v7114 = vld [vmem:[#allocation10 + $0xc] sm:$0xf]
    %v7115 = vld [vmem:[#allocation10 + $0x10] sm:$0xf]
    %v7116 = vld [vmem:[#allocation10 + $0x14] sm:$0xf]
    %v7123 = vunpack.c.l.b16 %v7111
    %v7124 = vunpack.c.l.b16 %v7112
    %v7125 = vunpack.c.l.b16 %v7113
    %v7126 = vunpack.c.l.b16 %v7114
    %v7127 = vunpack.c.l.b16 %v7115
    %v7128 = vunpack.c.l.b16 %v7116
    %v7129 = vpack.c.b16 %v7124, %v7123
    %v7130 = vpack.c.b16 %v7126, %v7125
    %v7131 = vpack.c.b16 %v7128, %v7127
    %7135 = vmatpush.bf16.msra.mxu0 %v7109
    %7136 = vmatpush.bf16.msra.mxu0 %v7107
    %7137 = vmatpush.bf16.msra.mxu0 %v7105
    %7138 = vmatpush.bf16.msra.mxu0 %v7103
    %7139 = vmatpush.bf16.msra.mxu0 %v7101
    %7140 = vmatpush.bf16.msra.mxu0 %v7099
    %7141 = vmatpush.bf16.msra.mxu0 %v7097
    %7142 = vmatpush.bf16.msra.mxu0 %v7095
    %7143 = vmatmul.bf16.gmra.mxu0 %v7129
    %v7144 = vpop.f32.mrf.mxu0
    %v7145 = vadd.f32 0.0, %v7144
    %v7146 = vpop.f32.mrf.mxu0
    %v7147 = vadd.f32 0.0, %v7146
    %7148 = vmatmul.bf16.gmra.mxu0 %v7130
    %v7149 = vpop.f32.mrf.mxu0
    %v7150 = vadd.f32 0.0, %v7149
    %v7151 = vpop.f32.mrf.mxu0
    %v7152 = vadd.f32 0.0, %v7151
    %7153 = vmatmul.bf16.gmra.mxu0 %v7131
    %v7154 = vpop.f32.mrf.mxu0
    %v7155 = vadd.f32 0.0, %v7154
    %v7156 = vpop.f32.mrf.mxu0
    %v7157 = vadd.f32 0.0, %v7156
    %7158 = vdwg.mxu0
    %7159 = vmatpush.bf16.msra.mxu0 %v7110
    %7160 = vmatpush.bf16.msra.mxu0 %v7108
    %7161 = vmatpush.bf16.msra.mxu0 %v7106
    %7162 = vmatpush.bf16.msra.mxu0 %v7104
    %7163 = vmatpush.bf16.msra.mxu0 %v7102
    %7164 = vmatpush.bf16.msra.mxu0 %v7100
    %7165 = vmatpush.bf16.msra.mxu0 %v7098
    %7166 = vmatpush.bf16.msra.mxu0 %v7096
    %7167 = vmatmul.bf16.gmra.mxu0 %v7129
    %v7168 = vpop.f32.mrf.mxu0
    %v7169 = vadd.f32 0.0, %v7168
    %v7170 = vpop.f32.mrf.mxu0
    %v7171 = vadd.f32 0.0, %v7170
    %7172 = vmatmul.bf16.gmra.mxu0 %v7130
    %v7173 = vpop.f32.mrf.mxu0
    %v7174 = vadd.f32 0.0, %v7173
    %v7175 = vpop.f32.mrf.mxu0
    %v7176 = vadd.f32 0.0, %v7175
    %7177 = vmatmul.bf16.gmra.mxu0 %v7131
    %v7178 = vpop.f32.mrf.mxu0
    %v7179 = vadd.f32 0.0, %v7178
    %v7180 = vpop.f32.mrf.mxu0
    %v7181 = vadd.f32 0.0, %v7180
    %7182 = vdwg.mxu0
    %v7183 = vpack.c.bf16 %v7147, %v7145
    %v7184 = vpack.c.bf16 %v7171, %v7169
    %v7185 = vpack.c.bf16 %v7152, %v7150
    %v7186 = vpack.c.bf16 %v7176, %v7174
    %v7187 = vpack.c.bf16 %v7157, %v7155
    %v7188 = vpack.c.bf16 %v7181, %v7179
    %v7189 = vld [vmem:[#allocation12] sm:$0xf]
    %v7190 = vld [vmem:[#allocation12 + $0x4] sm:$0xf]
    %v7191 = vld [vmem:[#allocation12 + $0x8] sm:$0xf]
    %v7192 = vld [vmem:[#allocation12 + $0xc] sm:$0xf]
    %v7193 = vld [vmem:[#allocation12 + $0x10] sm:$0xf]
    %v7194 = vld [vmem:[#allocation12 + $0x14] sm:$0xf]
    %v7195 = vld [vmem:[#allocation12 + $0x18] sm:$0xf]
    %v7196 = vld [vmem:[#allocation12 + $0x1c] sm:$0xf]
    %v7197 = vld [vmem:[#allocation12 + $0x20] sm:$0xf]
    %v7198 = vld [vmem:[#allocation12 + $0x24] sm:$0xf]
    %v7199 = vld [vmem:[#allocation12 + $0x28] sm:$0xf]
    %v7200 = vld [vmem:[#allocation12 + $0x2c] sm:$0xf]
    %v7201 = vld [vmem:[#allocation12 + $0x30] sm:$0xf]
    %v7202 = vld [vmem:[#allocation12 + $0x34] sm:$0xf]
    %v7203 = vld [vmem:[#allocation12 + $0x38] sm:$0xf]
    %v7204 = vld [vmem:[#allocation12 + $0x3c] sm:$0xf]
    %v7205 = vld [vmem:[#allocation12 + $0x40] sm:$0xf]
    %v7206 = vld [vmem:[#allocation12 + $0x44] sm:$0xf]
    %v7207 = vld [vmem:[#allocation12 + $0x48] sm:$0xf]
    %v7208 = vld [vmem:[#allocation12 + $0x4c] sm:$0xf]
    %v7209 = vld [vmem:[#allocation12 + $0x50] sm:$0xf]
    %v7210 = vld [vmem:[#allocation12 + $0x54] sm:$0xf]
    %v7211 = vld [vmem:[#allocation12 + $0x58] sm:$0xf]
    %v7212 = vld [vmem:[#allocation12 + $0x5c] sm:$0xf]
    %v7213 = vld [vmem:[#allocation12 + $0x60] sm:$0xf]
    %v7214 = vld [vmem:[#allocation12 + $0x64] sm:$0xf]
    %v7215 = vld [vmem:[#allocation12 + $0x68] sm:$0xf]
    %v7216 = vld [vmem:[#allocation12 + $0x6c] sm:$0xf]
    %v7217 = vld [vmem:[#allocation12 + $0x70] sm:$0xf]
    %v7218 = vld [vmem:[#allocation12 + $0x74] sm:$0xf]
    %v7219 = vld [vmem:[#allocation12 + $0x78] sm:$0xf]
    %v7220 = vld [vmem:[#allocation12 + $0x7c] sm:$0xf]
    %v7253 = vunpack.c.l.b16 %v7189
    %v7254 = vunpack.c.l.b16 %v7190
    %v7255 = vunpack.c.l.b16 %v7191
    %v7256 = vunpack.c.l.b16 %v7192
    %v7257 = vunpack.c.l.b16 %v7193
    %v7258 = vunpack.c.l.b16 %v7194
    %v7259 = vunpack.c.l.b16 %v7195
    %v7260 = vunpack.c.l.b16 %v7196
    %v7261 = vunpack.c.l.b16 %v7197
    %v7262 = vunpack.c.l.b16 %v7198
    %v7263 = vunpack.c.l.b16 %v7199
    %v7264 = vunpack.c.l.b16 %v7200
    %v7265 = vunpack.c.l.b16 %v7201
    %v7266 = vunpack.c.l.b16 %v7202
    %v7267 = vunpack.c.l.b16 %v7203
    %v7268 = vunpack.c.l.b16 %v7204
    %v7269 = vunpack.c.l.b16 %v7205
    %v7270 = vunpack.c.l.b16 %v7206
    %v7271 = vunpack.c.l.b16 %v7207
    %v7272 = vunpack.c.l.b16 %v7208
    %v7273 = vunpack.c.l.b16 %v7209
    %v7274 = vunpack.c.l.b16 %v7210
    %v7275 = vunpack.c.l.b16 %v7211
    %v7276 = vunpack.c.l.b16 %v7212
    %v7277 = vunpack.c.l.b16 %v7213
    %v7278 = vunpack.c.l.b16 %v7214
    %v7279 = vunpack.c.l.b16 %v7215
    %v7280 = vunpack.c.l.b16 %v7216
    %v7281 = vunpack.c.l.b16 %v7217
    %v7282 = vunpack.c.l.b16 %v7218
    %v7283 = vunpack.c.l.b16 %v7219
    %v7284 = vunpack.c.l.b16 %v7220
    %v7285 = vpack.c.b16 %v7254, %v7253
    %v7286 = vpack.c.b16 %v7256, %v7255
    %v7287 = vpack.c.b16 %v7258, %v7257
    %v7288 = vpack.c.b16 %v7260, %v7259
    %v7289 = vpack.c.b16 %v7262, %v7261
    %v7290 = vpack.c.b16 %v7264, %v7263
    %v7291 = vpack.c.b16 %v7266, %v7265
    %v7292 = vpack.c.b16 %v7268, %v7267
    %v7293 = vpack.c.b16 %v7270, %v7269
    %v7294 = vpack.c.b16 %v7272, %v7271
    %v7295 = vpack.c.b16 %v7274, %v7273
    %v7296 = vpack.c.b16 %v7276, %v7275
    %v7297 = vpack.c.b16 %v7278, %v7277
    %v7298 = vpack.c.b16 %v7280, %v7279
    %v7299 = vpack.c.b16 %v7282, %v7281
    %v7300 = vpack.c.b16 %v7284, %v7283
    %7317 = vmatpush.bf16.msra.mxu0 %v7292
    %7318 = vmatpush.bf16.msra.mxu0 %v7291
    %7319 = vmatpush.bf16.msra.mxu0 %v7290
    %7320 = vmatpush.bf16.msra.mxu0 %v7289
    %7321 = vmatpush.bf16.msra.mxu0 %v7288
    %7322 = vmatpush.bf16.msra.mxu0 %v7287
    %7323 = vmatpush.bf16.msra.mxu0 %v7286
    %7324 = vmatpush.bf16.msra.mxu0 %v7285
    %7325 = vmatmul.bf16.gmra.mxu0 %v7183
    %v7326 = vpop.f32.mrf.mxu0
    %v7327 = vadd.f32 0.0, %v7326
    %v7328 = vpop.f32.mrf.mxu0
    %v7329 = vadd.f32 0.0, %v7328
    %7330 = vmatmul.bf16.gmra.mxu0 %v7185
    %v7331 = vpop.f32.mrf.mxu0
    %v7332 = vadd.f32 0.0, %v7331
    %v7333 = vpop.f32.mrf.mxu0
    %v7334 = vadd.f32 0.0, %v7333
    %7335 = vmatmul.bf16.gmra.mxu0 %v7187
    %v7336 = vpop.f32.mrf.mxu0
    %v7337 = vadd.f32 0.0, %v7336
    %v7338 = vpop.f32.mrf.mxu0
    %v7339 = vadd.f32 0.0, %v7338
    %7340 = vdwg.mxu0
    %7341 = vmatpush.bf16.msra.mxu0 %v7300
    %7342 = vmatpush.bf16.msra.mxu0 %v7299
    %7343 = vmatpush.bf16.msra.mxu0 %v7298
    %7344 = vmatpush.bf16.msra.mxu0 %v7297
    %7345 = vmatpush.bf16.msra.mxu0 %v7296
    %7346 = vmatpush.bf16.msra.mxu0 %v7295
    %7347 = vmatpush.bf16.msra.mxu0 %v7294
    %7348 = vmatpush.bf16.msra.mxu0 %v7293
    %7349 = vmatmul.bf16.gmra.mxu0 %v7184
    %v7350 = vpop.f32.mrf.mxu0
    %v7351 = vadd.f32 %v7327, %v7350
    %v7352 = vpop.f32.mrf.mxu0
    %v7353 = vadd.f32 %v7329, %v7352
    %7354 = vmatmul.bf16.gmra.mxu0 %v7186
    %v7355 = vpop.f32.mrf.mxu0
    %v7356 = vadd.f32 %v7332, %v7355
    %v7357 = vpop.f32.mrf.mxu0
    %v7358 = vadd.f32 %v7334, %v7357
    %7359 = vmatmul.bf16.gmra.mxu0 %v7188
    %v7360 = vpop.f32.mrf.mxu0
    %v7361 = vadd.f32 %v7337, %v7360
    %v7362 = vpop.f32.mrf.mxu0
    %v7363 = vadd.f32 %v7339, %v7362
    %7364 = vdwg.mxu0
    %v7365 = vpack.c.bf16 %v7351, %v7351
    %v7366 = vpack.c.bf16 %v7353, %v7353
    %v7367 = vpack.c.bf16 %v7356, %v7356
    %v7368 = vpack.c.bf16 %v7358, %v7358
    %v7369 = vpack.c.bf16 %v7361, %v7361
    %v7370 = vpack.c.bf16 %v7363, %v7363
    %v7371 = vld [vmem:[%s7] sm:$0xf]
    %v7372 = vld [vmem:[%s7 + $0x4] sm:$0xf]
    %v7373 = vld [vmem:[%s7 + $0x8] sm:$0xf]
    %v7374 = vld [vmem:[%s7 + $0xc] sm:$0xf]
    %v7375 = vld [vmem:[%s7 + $0x10] sm:$0xf]
    %v7376 = vld [vmem:[%s7 + $0x14] sm:$0xf]
    %v7377 = vld [vmem:[%s7 + $0x18] sm:$0xf]
    %v7378 = vld [vmem:[%s7 + $0x1c] sm:$0xf]
    %v7379 = vld [vmem:[%s7 + $0x20] sm:$0xf]
    %v7380 = vld [vmem:[%s7 + $0x24] sm:$0xf]
    %v7381 = vld [vmem:[%s7 + $0x28] sm:$0xf]
    %v7382 = vld [vmem:[%s7 + $0x2c] sm:$0xf]
    %v7383 = vld [vmem:[%s7 + $0x30] sm:$0xf]
    %v7384 = vld [vmem:[%s7 + $0x34] sm:$0xf]
    %v7385 = vld [vmem:[%s7 + $0x38] sm:$0xf]
    %v7386 = vld [vmem:[%s7 + $0x3c] sm:$0xf]
    %s7387 = scalar_lea.vmem %s7, 64
    %v7388 = vld [vmem:[%s7387] sm:$0xf]
    %v7389 = vld [vmem:[%s7387 + $0x4] sm:$0xf]
    %v7390 = vld [vmem:[%s7387 + $0x8] sm:$0xf]
    %v7391 = vld [vmem:[%s7387 + $0xc] sm:$0xf]
    %v7392 = vld [vmem:[%s7387 + $0x10] sm:$0xf]
    %v7393 = vld [vmem:[%s7387 + $0x14] sm:$0xf]
    %v7394 = vld [vmem:[%s7387 + $0x18] sm:$0xf]
    %v7395 = vld [vmem:[%s7387 + $0x1c] sm:$0xf]
    %v7396 = vld [vmem:[%s7387 + $0x20] sm:$0xf]
    %v7397 = vld [vmem:[%s7387 + $0x24] sm:$0xf]
    %v7398 = vld [vmem:[%s7387 + $0x28] sm:$0xf]
    %v7399 = vld [vmem:[%s7387 + $0x2c] sm:$0xf]
    %v7400 = vld [vmem:[%s7387 + $0x30] sm:$0xf]
    %v7401 = vld [vmem:[%s7387 + $0x34] sm:$0xf]
    %v7402 = vld [vmem:[%s7387 + $0x38] sm:$0xf]
    %v7403 = vld [vmem:[%s7387 + $0x3c] sm:$0xf]
    %v7420 = vunpack.c.l.b16 %v7388
    %v7421 = vunpack.c.l.b16 %v7389
    %v7422 = vunpack.c.l.b16 %v7390
    %v7423 = vunpack.c.l.b16 %v7391
    %v7424 = vunpack.c.l.b16 %v7392
    %v7425 = vunpack.c.l.b16 %v7393
    %v7426 = vunpack.c.l.b16 %v7394
    %v7427 = vunpack.c.l.b16 %v7395
    %v7428 = vunpack.c.l.b16 %v7396
    %v7429 = vunpack.c.l.b16 %v7397
    %v7430 = vunpack.c.l.b16 %v7398
    %v7431 = vunpack.c.l.b16 %v7399
    %v7432 = vunpack.c.l.b16 %v7400
    %v7433 = vunpack.c.l.b16 %v7401
    %v7434 = vunpack.c.l.b16 %v7402
    %v7435 = vunpack.c.l.b16 %v7403
    %v7436 = vpack.c.b16 %v7421, %v7420
    %v7437 = vpack.c.b16 %v7423, %v7422
    %v7438 = vpack.c.b16 %v7425, %v7424
    %v7439 = vpack.c.b16 %v7427, %v7426
    %v7440 = vpack.c.b16 %v7429, %v7428
    %v7441 = vpack.c.b16 %v7431, %v7430
    %v7442 = vpack.c.b16 %v7433, %v7432
    %v7443 = vpack.c.b16 %v7435, %v7434
    %7452 = vmatpush.bf16.msra.mxu0 %v7443
    %7453 = vmatpush.bf16.msra.mxu0 %v7442
    %7454 = vmatpush.bf16.msra.mxu0 %v7441
    %7455 = vmatpush.bf16.msra.mxu0 %v7440
    %7456 = vmatpush.bf16.msra.mxu0 %v7439
    %7457 = vmatpush.bf16.msra.mxu0 %v7438
    %7458 = vmatpush.bf16.msra.mxu0 %v7437
    %7459 = vmatpush.bf16.msra.mxu0 %v7436
    %7460 = vmatmul.bf16.gmra.mxu0 %v7366
    %v7461 = vpop.f32.mrf.mxu0
    %v7462 = vadd.f32 0.0, %v7461
    %v7463 = vpop.f32.mrf.mxu0
    %7464 = vdwg.mxu0
    %v7481 = vunpack.c.l.b16 %v7371
    %v7482 = vunpack.c.l.b16 %v7372
    %v7483 = vunpack.c.l.b16 %v7373
    %v7484 = vunpack.c.l.b16 %v7374
    %v7485 = vunpack.c.l.b16 %v7375
    %v7486 = vunpack.c.l.b16 %v7376
    %v7487 = vunpack.c.l.b16 %v7377
    %v7488 = vunpack.c.l.b16 %v7378
    %v7489 = vunpack.c.l.b16 %v7379
    %v7490 = vunpack.c.l.b16 %v7380
    %v7491 = vunpack.c.l.b16 %v7381
    %v7492 = vunpack.c.l.b16 %v7382
    %v7493 = vunpack.c.l.b16 %v7383
    %v7494 = vunpack.c.l.b16 %v7384
    %v7495 = vunpack.c.l.b16 %v7385
    %v7496 = vunpack.c.l.b16 %v7386
    %v7497 = vpack.c.b16 %v7482, %v7481
    %v7498 = vpack.c.b16 %v7484, %v7483
    %v7499 = vpack.c.b16 %v7486, %v7485
    %v7500 = vpack.c.b16 %v7488, %v7487
    %v7501 = vpack.c.b16 %v7490, %v7489
    %v7502 = vpack.c.b16 %v7492, %v7491
    %v7503 = vpack.c.b16 %v7494, %v7493
    %v7504 = vpack.c.b16 %v7496, %v7495
    %7513 = vmatpush.bf16.msra.mxu0 %v7504
    %7514 = vmatpush.bf16.msra.mxu0 %v7503
    %7515 = vmatpush.bf16.msra.mxu0 %v7502
    %7516 = vmatpush.bf16.msra.mxu0 %v7501
    %7517 = vmatpush.bf16.msra.mxu0 %v7500
    %7518 = vmatpush.bf16.msra.mxu0 %v7499
    %7519 = vmatpush.bf16.msra.mxu0 %v7498
    %7520 = vmatpush.bf16.msra.mxu0 %v7497
    %7521 = vmatmul.bf16.gmra.mxu0 %v7365
    %v7522 = vpop.f32.mrf.mxu0
    %v7523 = vadd.f32 %v7462, %v7522
    %v7524 = vpop.f32.mrf.mxu0
    %7525 = vdwg.mxu0
    %s7526 = scalar_lea.vmem %s7, 128
    %v7527 = vld [vmem:[%s7526] sm:$0xf]
    %v7528 = vld [vmem:[%s7526 + $0x4] sm:$0xf]
    %v7529 = vld [vmem:[%s7526 + $0x8] sm:$0xf]
    %v7530 = vld [vmem:[%s7526 + $0xc] sm:$0xf]
    %v7531 = vld [vmem:[%s7526 + $0x10] sm:$0xf]
    %v7532 = vld [vmem:[%s7526 + $0x14] sm:$0xf]
    %v7533 = vld [vmem:[%s7526 + $0x18] sm:$0xf]
    %v7534 = vld [vmem:[%s7526 + $0x1c] sm:$0xf]
    %v7535 = vld [vmem:[%s7526 + $0x20] sm:$0xf]
    %v7536 = vld [vmem:[%s7526 + $0x24] sm:$0xf]
    %v7537 = vld [vmem:[%s7526 + $0x28] sm:$0xf]
    %v7538 = vld [vmem:[%s7526 + $0x2c] sm:$0xf]
    %v7539 = vld [vmem:[%s7526 + $0x30] sm:$0xf]
    %v7540 = vld [vmem:[%s7526 + $0x34] sm:$0xf]
    %v7541 = vld [vmem:[%s7526 + $0x38] sm:$0xf]
    %v7542 = vld [vmem:[%s7526 + $0x3c] sm:$0xf]
    %v7559 = vunpack.c.l.b16 %v7527
    %v7560 = vunpack.c.l.b16 %v7528
    %v7561 = vunpack.c.l.b16 %v7529
    %v7562 = vunpack.c.l.b16 %v7530
    %v7563 = vunpack.c.l.b16 %v7531
    %v7564 = vunpack.c.l.b16 %v7532
    %v7565 = vunpack.c.l.b16 %v7533
    %v7566 = vunpack.c.l.b16 %v7534
    %v7567 = vunpack.c.l.b16 %v7535
    %v7568 = vunpack.c.l.b16 %v7536
    %v7569 = vunpack.c.l.b16 %v7537
    %v7570 = vunpack.c.l.b16 %v7538
    %v7571 = vunpack.c.l.b16 %v7539
    %v7572 = vunpack.c.l.b16 %v7540
    %v7573 = vunpack.c.l.b16 %v7541
    %v7574 = vunpack.c.l.b16 %v7542
    %v7575 = vpack.c.b16 %v7560, %v7559
    %v7576 = vpack.c.b16 %v7562, %v7561
    %v7577 = vpack.c.b16 %v7564, %v7563
    %v7578 = vpack.c.b16 %v7566, %v7565
    %v7579 = vpack.c.b16 %v7568, %v7567
    %v7580 = vpack.c.b16 %v7570, %v7569
    %v7581 = vpack.c.b16 %v7572, %v7571
    %v7582 = vpack.c.b16 %v7574, %v7573
    %7591 = vmatpush.bf16.msra.mxu0 %v7582
    %7592 = vmatpush.bf16.msra.mxu0 %v7581
    %7593 = vmatpush.bf16.msra.mxu0 %v7580
    %7594 = vmatpush.bf16.msra.mxu0 %v7579
    %7595 = vmatpush.bf16.msra.mxu0 %v7578
    %7596 = vmatpush.bf16.msra.mxu0 %v7577
    %7597 = vmatpush.bf16.msra.mxu0 %v7576
    %7598 = vmatpush.bf16.msra.mxu0 %v7575
    %7599 = vmatmul.bf16.gmra.mxu0 %v7367
    %v7600 = vpop.f32.mrf.mxu0
    %v7601 = vadd.f32 0.0, %v7600
    %v7602 = vpop.f32.mrf.mxu0
    %7603 = vdwg.mxu0
    %v7604 = vadd.f32 %v7523, %v7601
    %s7605 = scalar_lea.vmem %s7, 192
    %v7606 = vld [vmem:[%s7605] sm:$0xf]
    %v7607 = vld [vmem:[%s7605 + $0x4] sm:$0xf]
    %v7608 = vld [vmem:[%s7605 + $0x8] sm:$0xf]
    %v7609 = vld [vmem:[%s7605 + $0xc] sm:$0xf]
    %v7610 = vld [vmem:[%s7605 + $0x10] sm:$0xf]
    %v7611 = vld [vmem:[%s7605 + $0x14] sm:$0xf]
    %v7612 = vld [vmem:[%s7605 + $0x18] sm:$0xf]
    %v7613 = vld [vmem:[%s7605 + $0x1c] sm:$0xf]
    %v7614 = vld [vmem:[%s7605 + $0x20] sm:$0xf]
    %v7615 = vld [vmem:[%s7605 + $0x24] sm:$0xf]
    %v7616 = vld [vmem:[%s7605 + $0x28] sm:$0xf]
    %v7617 = vld [vmem:[%s7605 + $0x2c] sm:$0xf]
    %v7618 = vld [vmem:[%s7605 + $0x30] sm:$0xf]
    %v7619 = vld [vmem:[%s7605 + $0x34] sm:$0xf]
    %v7620 = vld [vmem:[%s7605 + $0x38] sm:$0xf]
    %v7621 = vld [vmem:[%s7605 + $0x3c] sm:$0xf]
    %v7638 = vunpack.c.l.b16 %v7606
    %v7639 = vunpack.c.l.b16 %v7607
    %v7640 = vunpack.c.l.b16 %v7608
    %v7641 = vunpack.c.l.b16 %v7609
    %v7642 = vunpack.c.l.b16 %v7610
    %v7643 = vunpack.c.l.b16 %v7611
    %v7644 = vunpack.c.l.b16 %v7612
    %v7645 = vunpack.c.l.b16 %v7613
    %v7646 = vunpack.c.l.b16 %v7614
    %v7647 = vunpack.c.l.b16 %v7615
    %v7648 = vunpack.c.l.b16 %v7616
    %v7649 = vunpack.c.l.b16 %v7617
    %v7650 = vunpack.c.l.b16 %v7618
    %v7651 = vunpack.c.l.b16 %v7619
    %v7652 = vunpack.c.l.b16 %v7620
    %v7653 = vunpack.c.l.b16 %v7621
    %v7654 = vpack.c.b16 %v7639, %v7638
    %v7655 = vpack.c.b16 %v7641, %v7640
    %v7656 = vpack.c.b16 %v7643, %v7642
    %v7657 = vpack.c.b16 %v7645, %v7644
    %v7658 = vpack.c.b16 %v7647, %v7646
    %v7659 = vpack.c.b16 %v7649, %v7648
    %v7660 = vpack.c.b16 %v7651, %v7650
    %v7661 = vpack.c.b16 %v7653, %v7652
    %7670 = vmatpush.bf16.msra.mxu0 %v7661
    %7671 = vmatpush.bf16.msra.mxu0 %v7660
    %7672 = vmatpush.bf16.msra.mxu0 %v7659
    %7673 = vmatpush.bf16.msra.mxu0 %v7658
    %7674 = vmatpush.bf16.msra.mxu0 %v7657
    %7675 = vmatpush.bf16.msra.mxu0 %v7656
    %7676 = vmatpush.bf16.msra.mxu0 %v7655
    %7677 = vmatpush.bf16.msra.mxu0 %v7654
    %7678 = vmatmul.bf16.gmra.mxu0 %v7368
    %v7679 = vpop.f32.mrf.mxu0
    %v7680 = vadd.f32 0.0, %v7679
    %v7681 = vpop.f32.mrf.mxu0
    %7682 = vdwg.mxu0
    %v7683 = vadd.f32 %v7604, %v7680
    %s7684 = scalar_lea.vmem %s7, 256
    %v7685 = vld [vmem:[%s7684] sm:$0xf]
    %v7686 = vld [vmem:[%s7684 + $0x4] sm:$0xf]
    %v7687 = vld [vmem:[%s7684 + $0x8] sm:$0xf]
    %v7688 = vld [vmem:[%s7684 + $0xc] sm:$0xf]
    %v7689 = vld [vmem:[%s7684 + $0x10] sm:$0xf]
    %v7690 = vld [vmem:[%s7684 + $0x14] sm:$0xf]
    %v7691 = vld [vmem:[%s7684 + $0x18] sm:$0xf]
    %v7692 = vld [vmem:[%s7684 + $0x1c] sm:$0xf]
    %v7693 = vld [vmem:[%s7684 + $0x20] sm:$0xf]
    %v7694 = vld [vmem:[%s7684 + $0x24] sm:$0xf]
    %v7695 = vld [vmem:[%s7684 + $0x28] sm:$0xf]
    %v7696 = vld [vmem:[%s7684 + $0x2c] sm:$0xf]
    %v7697 = vld [vmem:[%s7684 + $0x30] sm:$0xf]
    %v7698 = vld [vmem:[%s7684 + $0x34] sm:$0xf]
    %v7699 = vld [vmem:[%s7684 + $0x38] sm:$0xf]
    %v7700 = vld [vmem:[%s7684 + $0x3c] sm:$0xf]
    %v7717 = vunpack.c.l.b16 %v7685
    %v7718 = vunpack.c.l.b16 %v7686
    %v7719 = vunpack.c.l.b16 %v7687
    %v7720 = vunpack.c.l.b16 %v7688
    %v7721 = vunpack.c.l.b16 %v7689
    %v7722 = vunpack.c.l.b16 %v7690
    %v7723 = vunpack.c.l.b16 %v7691
    %v7724 = vunpack.c.l.b16 %v7692
    %v7725 = vunpack.c.l.b16 %v7693
    %v7726 = vunpack.c.l.b16 %v7694
    %v7727 = vunpack.c.l.b16 %v7695
    %v7728 = vunpack.c.l.b16 %v7696
    %v7729 = vunpack.c.l.b16 %v7697
    %v7730 = vunpack.c.l.b16 %v7698
    %v7731 = vunpack.c.l.b16 %v7699
    %v7732 = vunpack.c.l.b16 %v7700
    %v7733 = vpack.c.b16 %v7718, %v7717
    %v7734 = vpack.c.b16 %v7720, %v7719
    %v7735 = vpack.c.b16 %v7722, %v7721
    %v7736 = vpack.c.b16 %v7724, %v7723
    %v7737 = vpack.c.b16 %v7726, %v7725
    %v7738 = vpack.c.b16 %v7728, %v7727
    %v7739 = vpack.c.b16 %v7730, %v7729
    %v7740 = vpack.c.b16 %v7732, %v7731
    %7749 = vmatpush.bf16.msra.mxu0 %v7740
    %7750 = vmatpush.bf16.msra.mxu0 %v7739
    %7751 = vmatpush.bf16.msra.mxu0 %v7738
    %7752 = vmatpush.bf16.msra.mxu0 %v7737
    %7753 = vmatpush.bf16.msra.mxu0 %v7736
    %7754 = vmatpush.bf16.msra.mxu0 %v7735
    %7755 = vmatpush.bf16.msra.mxu0 %v7734
    %7756 = vmatpush.bf16.msra.mxu0 %v7733
    %7757 = vmatmul.bf16.gmra.mxu0 %v7369
    %v7758 = vpop.f32.mrf.mxu0
    %v7759 = vadd.f32 0.0, %v7758
    %v7760 = vpop.f32.mrf.mxu0
    %7761 = vdwg.mxu0
    %v7762 = vadd.f32 %v7683, %v7759
    %s7763 = scalar_lea.vmem %s7, 320
    %v7764 = vld [vmem:[%s7763] sm:$0xf]
    %v7765 = vld [vmem:[%s7763 + $0x4] sm:$0xf]
    %v7766 = vld [vmem:[%s7763 + $0x8] sm:$0xf]
    %v7767 = vld [vmem:[%s7763 + $0xc] sm:$0xf]
    %v7768 = vld [vmem:[%s7763 + $0x10] sm:$0xf]
    %v7769 = vld [vmem:[%s7763 + $0x14] sm:$0xf]
    %v7770 = vld [vmem:[%s7763 + $0x18] sm:$0xf]
    %v7771 = vld [vmem:[%s7763 + $0x1c] sm:$0xf]
    %v7772 = vld [vmem:[%s7763 + $0x20] sm:$0xf]
    %v7773 = vld [vmem:[%s7763 + $0x24] sm:$0xf]
    %v7774 = vld [vmem:[%s7763 + $0x28] sm:$0xf]
    %v7775 = vld [vmem:[%s7763 + $0x2c] sm:$0xf]
    %v7776 = vld [vmem:[%s7763 + $0x30] sm:$0xf]
    %v7777 = vld [vmem:[%s7763 + $0x34] sm:$0xf]
    %v7778 = vld [vmem:[%s7763 + $0x38] sm:$0xf]
    %v7779 = vld [vmem:[%s7763 + $0x3c] sm:$0xf]
    %v7796 = vunpack.c.l.b16 %v7764
    %v7797 = vunpack.c.l.b16 %v7765
    %v7798 = vunpack.c.l.b16 %v7766
    %v7799 = vunpack.c.l.b16 %v7767
    %v7800 = vunpack.c.l.b16 %v7768
    %v7801 = vunpack.c.l.b16 %v7769
    %v7802 = vunpack.c.l.b16 %v7770
    %v7803 = vunpack.c.l.b16 %v7771
    %v7804 = vunpack.c.l.b16 %v7772
    %v7805 = vunpack.c.l.b16 %v7773
    %v7806 = vunpack.c.l.b16 %v7774
    %v7807 = vunpack.c.l.b16 %v7775
    %v7808 = vunpack.c.l.b16 %v7776
    %v7809 = vunpack.c.l.b16 %v7777
    %v7810 = vunpack.c.l.b16 %v7778
    %v7811 = vunpack.c.l.b16 %v7779
    %v7812 = vpack.c.b16 %v7797, %v7796
    %v7813 = vpack.c.b16 %v7799, %v7798
    %v7814 = vpack.c.b16 %v7801, %v7800
    %v7815 = vpack.c.b16 %v7803, %v7802
    %v7816 = vpack.c.b16 %v7805, %v7804
    %v7817 = vpack.c.b16 %v7807, %v7806
    %v7818 = vpack.c.b16 %v7809, %v7808
    %v7819 = vpack.c.b16 %v7811, %v7810
    %7828 = vmatpush.bf16.msra.mxu0 %v7819
    %7829 = vmatpush.bf16.msra.mxu0 %v7818
    %7830 = vmatpush.bf16.msra.mxu0 %v7817
    %7831 = vmatpush.bf16.msra.mxu0 %v7816
    %7832 = vmatpush.bf16.msra.mxu0 %v7815
    %7833 = vmatpush.bf16.msra.mxu0 %v7814
    %7834 = vmatpush.bf16.msra.mxu0 %v7813
    %7835 = vmatpush.bf16.msra.mxu0 %v7812
    %7836 = vmatmul.bf16.gmra.mxu0 %v7370
    %v7837 = vpop.f32.mrf.mxu0
    %v7838 = vadd.f32 0.0, %v7837
    %v7839 = vpop.f32.mrf.mxu0
    %7840 = vdwg.mxu0
    %v7841 = vadd.f32 %v7762, %v7838
    %v7842 = vld [vmem:[%s10 + $0x2] ss:$0 sm:$0xff]
    %v7843 = vadd.f32 %v7841, %v7842
    %v7844 = vpack.c.bf16 %v7843, %v7843
    %v7845 = vld [vmem:[#allocation13] sm:$0xf]
    %v7846 = vld [vmem:[#allocation13 + $0x4] sm:$0xf]
    %v7847 = vld [vmem:[#allocation13 + $0x8] sm:$0xf]
    %v7848 = vld [vmem:[#allocation13 + $0xc] sm:$0xf]
    %v7849 = vld [vmem:[#allocation13 + $0x10] sm:$0xf]
    %v7850 = vld [vmem:[#allocation13 + $0x14] sm:$0xf]
    %v7851 = vld [vmem:[#allocation13 + $0x18] sm:$0xf]
    %v7852 = vld [vmem:[#allocation13 + $0x1c] sm:$0xf]
    %v7853 = vld [vmem:[#allocation13 + $0x20] sm:$0xf]
    %v7854 = vld [vmem:[#allocation13 + $0x24] sm:$0xf]
    %v7855 = vld [vmem:[#allocation13 + $0x28] sm:$0xf]
    %v7856 = vld [vmem:[#allocation13 + $0x2c] sm:$0xf]
    %v7857 = vld [vmem:[#allocation13 + $0x30] sm:$0xf]
    %v7858 = vld [vmem:[#allocation13 + $0x34] sm:$0xf]
    %v7859 = vld [vmem:[#allocation13 + $0x38] sm:$0xf]
    %v7860 = vld [vmem:[#allocation13 + $0x3c] sm:$0xf]
    %v7861 = vld [vmem:[%s10 + $0x3] ss:$0 sm:$0xff]
    %v7878 = vunpack.c.l.b16 %v7845
    %v7879 = vunpack.c.l.b16 %v7846
    %v7880 = vunpack.c.l.b16 %v7847
    %v7881 = vunpack.c.l.b16 %v7848
    %v7882 = vunpack.c.l.b16 %v7849
    %v7883 = vunpack.c.l.b16 %v7850
    %v7884 = vunpack.c.l.b16 %v7851
    %v7885 = vunpack.c.l.b16 %v7852
    %v7886 = vunpack.c.l.b16 %v7853
    %v7887 = vunpack.c.l.b16 %v7854
    %v7888 = vunpack.c.l.b16 %v7855
    %v7889 = vunpack.c.l.b16 %v7856
    %v7890 = vunpack.c.l.b16 %v7857
    %v7891 = vunpack.c.l.b16 %v7858
    %v7892 = vunpack.c.l.b16 %v7859
    %v7893 = vunpack.c.l.b16 %v7860
    %v7894 = vpack.c.b16 %v7879, %v7878
    %v7895 = vpack.c.b16 %v7881, %v7880
    %v7896 = vpack.c.b16 %v7883, %v7882
    %v7897 = vpack.c.b16 %v7885, %v7884
    %v7898 = vpack.c.b16 %v7887, %v7886
    %v7899 = vpack.c.b16 %v7889, %v7888
    %v7900 = vpack.c.b16 %v7891, %v7890
    %v7901 = vpack.c.b16 %v7893, %v7892
    %7910 = vmatpush.bf16.msra.mxu0 %v7901
    %7911 = vmatpush.bf16.msra.mxu0 %v7900
    %7912 = vmatpush.bf16.msra.mxu0 %v7899
    %7913 = vmatpush.bf16.msra.mxu0 %v7898
    %7914 = vmatpush.bf16.msra.mxu0 %v7897
    %7915 = vmatpush.bf16.msra.mxu0 %v7896
    %7916 = vmatpush.bf16.msra.mxu0 %v7895
    %7917 = vmatpush.bf16.msra.mxu0 %v7894
    %7918 = vmatmul.bf16.gmra.mxu0 %v7844
    %v7919 = vpop.f32.mrf.mxu0
    %v7920 = vadd.f32 %v7861, %v7919
    %v7921 = vpop.f32.mrf.mxu0
    %7922 = vdwg.mxu0
    %v7923 = vpack.c.bf16 %v7920, %v7920
    %v7924 = vld [vmem:[#allocation15] sm:$0xf]
    %v7925 = vld [vmem:[#allocation15 + $0x4] sm:$0xf]
    %v7926 = vld [vmem:[#allocation15 + $0x8] sm:$0xf]
    %v7927 = vld [vmem:[#allocation15 + $0xc] sm:$0xf]
    %v7928 = vld [vmem:[#allocation15 + $0x10] sm:$0xf]
    %v7929 = vld [vmem:[#allocation15 + $0x14] sm:$0xf]
    %v7930 = vld [vmem:[#allocation15 + $0x18] sm:$0xf]
    %v7931 = vld [vmem:[#allocation15 + $0x1c] sm:$0xf]
    %v7932 = vld [vmem:[#allocation15 + $0x20] sm:$0xf]
    %v7933 = vld [vmem:[#allocation15 + $0x24] sm:$0xf]
    %v7934 = vld [vmem:[#allocation15 + $0x28] sm:$0xf]
    %v7935 = vld [vmem:[#allocation15 + $0x2c] sm:$0xf]
    %v7936 = vld [vmem:[#allocation15 + $0x30] sm:$0xf]
    %v7937 = vld [vmem:[#allocation15 + $0x34] sm:$0xf]
    %v7938 = vld [vmem:[#allocation15 + $0x38] sm:$0xf]
    %v7939 = vld [vmem:[#allocation15 + $0x3c] sm:$0xf]
    %v7940 = vld [vmem:[%s10 + $0x4] ss:$0 sm:$0xff]
    %v7957 = vunpack.c.l.b16 %v7924
    %v7958 = vunpack.c.l.b16 %v7925
    %v7959 = vunpack.c.l.b16 %v7926
    %v7960 = vunpack.c.l.b16 %v7927
    %v7961 = vunpack.c.l.b16 %v7928
    %v7962 = vunpack.c.l.b16 %v7929
    %v7963 = vunpack.c.l.b16 %v7930
    %v7964 = vunpack.c.l.b16 %v7931
    %v7965 = vunpack.c.l.b16 %v7932
    %v7966 = vunpack.c.l.b16 %v7933
    %v7967 = vunpack.c.l.b16 %v7934
    %v7968 = vunpack.c.l.b16 %v7935
    %v7969 = vunpack.c.l.b16 %v7936
    %v7970 = vunpack.c.l.b16 %v7937
    %v7971 = vunpack.c.l.b16 %v7938
    %v7972 = vunpack.c.l.b16 %v7939
    %v7973 = vpack.c.b16 %v7958, %v7957
    %v7974 = vpack.c.b16 %v7960, %v7959
    %v7975 = vpack.c.b16 %v7962, %v7961
    %v7976 = vpack.c.b16 %v7964, %v7963
    %v7977 = vpack.c.b16 %v7966, %v7965
    %v7978 = vpack.c.b16 %v7968, %v7967
    %v7979 = vpack.c.b16 %v7970, %v7969
    %v7980 = vpack.c.b16 %v7972, %v7971
    %7989 = vmatpush.bf16.msra.mxu0 %v7980
    %7990 = vmatpush.bf16.msra.mxu0 %v7979
    %7991 = vmatpush.bf16.msra.mxu0 %v7978
    %7992 = vmatpush.bf16.msra.mxu0 %v7977
    %7993 = vmatpush.bf16.msra.mxu0 %v7976
    %7994 = vmatpush.bf16.msra.mxu0 %v7975
    %7995 = vmatpush.bf16.msra.mxu0 %v7974
    %7996 = vmatpush.bf16.msra.mxu0 %v7973
    %7997 = vmatmul.bf16.gmra.mxu0 %v7923
    %v7998 = vpop.f32.mrf.mxu0
    %v7999 = vadd.f32 %v7940, %v7998
    %v8000 = vpop.f32.mrf.mxu0
    %8001 = vdwg.mxu0
    %8002 = vst [vmem:[%s11] sm:$0xff] %v7999
    // Predicated region
    $region74: #{lenet_forward.1} parent=1 // pred_check
      _
    $region75: #{lenet_forward.1} parent=1 // pred_check_branch
      %8004 = sbr.rel (0) target = $region77
    $region76: #{lenet_forward.1} parent=1 // pred_region
      _
    $region77: #{lenet_forward.1} parent=1 // pred_fallthru
      _
    // Predicated region
    $region78: #{lenet_forward.1} parent=1 // pred_check
      _
    $region79: #{lenet_forward.1} parent=1 // pred_check_branch
      %8006 = sbr.rel (0) target = $region81
    $region80: #{lenet_forward.1} parent=1 // pred_region
      _
    $region81: #{lenet_forward.1} parent=1 // pred_fallthru
      _
    %8007 = vsyncpa [#allocation6], 1
    %8008 = vsyncpa [#allocation8], 1
    %8009 = vsyncpa [#allocation11], 1
    %8010 = vsyncpa [#allocation14], 1

</llo_original>
